<compile_context>
chip_gen: v5e
topology: v5e:2x2
jax: 0.10.0
libtpu: 0.0.40
codegen_flags: <defaults>
</compile_context>

<pallas_src>
import functools
from dataclasses import dataclass
from typing import List

import jax
import jax.numpy as jnp
from jax import lax
from jax.experimental import pallas as pl
from jax.experimental.pallas import tpu as pltpu

SMALL_NUMBER = 1e-7
PNA_DELTA = 1.1515

_SMEM = pltpu.MemorySpace.SMEM
_VMEM_LIMIT = 48 * 1024 * 1024        # explicit scoped-VMEM raise (safe on v5e..v7x)
_EDGE_CHUNK = 128                     # lane-aligned scatter-max chunk
_NODE_TILE = 128                      # node-parallel tile (TODO(synk): 256 on v6e)


@dataclass
class GNNConfig:
    type: str = "PNA"
    num_edge_types: int = 2
    hidden_dim: int = 32
    num_heads: int = 4
    per_head_dim: int = 8
    intermediate_dim: int = 64
    message_function_depth: int = 1     # fused path assumes depth 1 (single Linear)
    num_layers: int = 2
    dropout_rate: float = 0.0           # dropout is identity at rate 0 (eval semantics)
    use_rezero_scaling: bool = True
    make_edges_bidirectional: bool = True


def _round_up(x, m):
    return ((x + m - 1) // m) * m


def _msg_width(md_all):
    # [sum(md) | mean(md) | max(md) | const-1 | zero pad] padded to 128 lanes.
    return _round_up(3 * md_all + 1, 128)


# ---------------------------------------------------------------------------
# Kernel 1: fused per-edge-type message MLP (all heads + all types, one call)
# ---------------------------------------------------------------------------

def _fused_message_kernel(feat_ref, w_ref, b_ref, o_ref):
    """relu(feat @ W + b) for one (edge_type, edge_chunk) grid step.

    feat:(1,TE,2H) bf16; W:(1,2H,MW) bf16 block-diagonal over heads with column
    layout [sum_all | mean_all | max_all | 1 | pad]; output is a lane-dense
    MW(=128)-wide bf16 block.  Padded edge rows produce relu(bias) garbage that
    is gated out downstream by their all-zero one-hot column."""
    y = jnp.dot(feat_ref[0], w_ref[0], preferred_element_type=jnp.float32)
    y = y + b_ref[0]
    o_ref[0] = jnp.maximum(y, 0.0).astype(o_ref.dtype)


def fused_message_mlp(feat, w, b, *, msg_tile):
    num_types, ept, two_h = feat.shape
    mw = w.shape[-1]
    return pl.pallas_call(
        _fused_message_kernel,
        out_shape=jax.ShapeDtypeStruct((num_types, ept, mw), jnp.bfloat16),
        grid=(num_types, ept // msg_tile),
        in_specs=[
            pl.BlockSpec((1, msg_tile, two_h), lambda t, c: (t, c, 0)),
            pl.BlockSpec((1, two_h, mw), lambda t, c: (t, 0, 0)),
            pl.BlockSpec((1, 1, mw), lambda t, c: (t, 0, 0)),
        ],
        out_specs=pl.BlockSpec((1, msg_tile, mw), lambda t, c: (t, c, 0)),
        compiler_params=pltpu.CompilerParams(
            dimension_semantics=("parallel", "parallel"),
            vmem_limit_bytes=_VMEM_LIMIT),
    )(feat, w, b)


# ---------------------------------------------------------------------------
# Kernel 2: fused PNA aggregation + msg_out + ReZero + LayerNorm + BOOM
# ---------------------------------------------------------------------------

def _agg_tail_kernel(x_ref, oh_ref, msg_ref, wo_ref, bo_ref, g_ref, be_ref,
                     w1_ref, b1_ref, w2_ref, b2_ref, alpha_ref, o_ref,
                     *, md, e_chunk, n_chunks):
    tm = x_ref.shape[0]
    alpha = alpha_ref[0, 0]

    # ---- PNA aggregation (all heads fused; agg never leaves VMEM) ----------
    oh = oh_ref[...]                                                    # (TM, Ep)
    # sum / mean-numerator / degree from ONE MXU contraction: the messages
    # carry a constant 1.0 at lane 3*md, so degree is just another output lane.
    big = jnp.dot(oh, msg_ref[...], preferred_element_type=jnp.float32)  # (TM, MW)
    sum_agg = big[:, 0:md]
    deg = big[:, 3 * md:3 * md + 1]
    mean_agg = big[:, md:2 * md] / jnp.maximum(deg, 1.0)

    # scatter-std (two passes over edges, in f32).  Edges whose target lies
    # outside this node tile (or padding edges) have an all-zero one-hot
    # column here, so both the gather and the scatter ignore them.
    oh_f32 = oh.astype(jnp.float32)
    gathered_mean = lax.dot_general(
        oh_f32, mean_agg, (((0,), (0,)), ((), ())),
        preferred_element_type=jnp.float32)                              # (Ep, md)
    mean_msgs = msg_ref[:, md:2 * md].astype(jnp.float32)
    var_e = jnp.maximum(mean_msgs * mean_msgs - gathered_mean * gathered_mean, 0.0)
    var_e = var_e + SMALL_NUMBER
    std_agg = jnp.sqrt(jnp.dot(oh_f32, var_e, preferred_element_type=jnp.float32))

    # scatter-max: messages are post-ReLU (>= 0) and the fill value is 0, so
    # max_n = max_e onehot[n, e] * m[e] is exact.  fori_loop bounds the
    # (TM, e_chunk, md) intermediate to one chunk at a time.
    # TODO(synk): confirm the torch_scatter build fills empty rows with 0 (not
    # dtype-min); the two conventions only differ for isolated nodes.
    def mx_body(c, mx):
        lo = pl.multiple_of(c * e_chunk, e_chunk)
        oh_c = oh_ref[:, pl.ds(lo, e_chunk)].astype(jnp.float32)         # (TM, EC)
        m_c = msg_ref[pl.ds(lo, e_chunk), 2 * md:3 * md].astype(jnp.float32)
        cand = oh_c[:, :, None] * m_c[None, :, :]                        # (TM, EC, md)
        return jnp.maximum(mx, jnp.max(cand, axis=1))

    max_agg = lax.fori_loop(0, n_chunks, mx_body,
                            jnp.zeros((tm, md), jnp.float32))

    # ---- msg_out projection with folded PNA scalers, ReZero, LN, BOOM ------
    agg = jnp.concatenate([sum_agg, mean_agg, std_agg, max_agg], axis=1)  # (TM, 4*md)
    log_deg = jnp.log(deg + 1.0)
    amp = log_deg * (1.0 / PNA_DELTA)
    att = jnp.where(deg > 0.0, PNA_DELTA / (log_deg + SMALL_NUMBER), 0.0)
    scaled = jnp.concatenate([agg, amp * agg, att * agg], axis=1)         # (TM, 12*md)
    new_repr = jnp.dot(scaled.astype(jnp.bfloat16), wo_ref[...],
                       preferred_element_type=jnp.float32) + bo_ref[...]

    x1 = x_ref[...] + alpha * new_repr          # ReZero residual (dropout == identity)

    # boom_norm_layer (LayerNorm, torch eps) + BOOM MLP + second residual.
    mean = jnp.mean(x1, axis=-1, keepdims=True)
    cent = x1 - mean
    var = jnp.mean(cent * cent, axis=-1, keepdims=True)
    ln = cent * lax.rsqrt(var + 1e-5) * g_ref[...] + be_ref[...]
    h1 = jnp.dot(ln.astype(jnp.bfloat16), w1_ref[...],
                 preferred_element_type=jnp.float32) + b1_ref[...]
    h1 = jnp.where(h1 >= 0.0, h1, 0.01 * h1)    # LeakyReLU (torch default slope)
    boomed = jnp.dot(h1.astype(jnp.bfloat16), w2_ref[...],
                     preferred_element_type=jnp.float32) + b2_ref[...]
    o_ref[...] = x1 + alpha * boomed


def agg_and_tail(x_pad, oh, messages, block, *, md, tm):
    n_pad, h = x_pad.shape
    ep, mw = messages.shape
    inter = block["w1"].shape[1]
    kernel = functools.partial(_agg_tail_kernel, md=md,
                               e_chunk=_EDGE_CHUNK, n_chunks=ep // _EDGE_CHUNK)
    const2 = lambda i: (0, 0)
    return pl.pallas_call(
        kernel,
        out_shape=jax.ShapeDtypeStruct((n_pad, h), jnp.float32),
        grid=(n_pad // tm,),
        in_specs=[
            pl.BlockSpec((tm, h), lambda i: (i, 0)),      # x tile
            pl.BlockSpec((tm, ep), lambda i: (i, 0)),     # one-hot tile
            pl.BlockSpec((ep, mw), const2),               # messages (VMEM-resident)
            pl.BlockSpec((12 * md, h), const2),           # wo
            pl.BlockSpec((1, h), const2),                 # bo
            pl.BlockSpec((1, h), const2),                 # ln gamma
            pl.BlockSpec((1, h), const2),                 # ln beta
            pl.BlockSpec((h, inter), const2),             # w1
            pl.BlockSpec((1, inter), const2),             # b1
            pl.BlockSpec((inter, h), const2),             # w2
            pl.BlockSpec((1, h), const2),                 # b2
            pl.BlockSpec(memory_space=_SMEM),             # alpha (ReZero scalar)
        ],
        out_specs=pl.BlockSpec((tm, h), lambda i: (i, 0)),
        compiler_params=pltpu.CompilerParams(
            dimension_semantics=("parallel",),
            vmem_limit_bytes=_VMEM_LIMIT),
    )(x_pad, oh, messages,
      block["wo"], block["bo"], block["ln_gamma"], block["ln_beta"],
      block["w1"], block["b1"], block["w2"], block["b2"], block["alpha"])


# ---------------------------------------------------------------------------
# Parameter initialization (deterministic, PyTorch-Linear-like uniform init)
# ---------------------------------------------------------------------------

def init_linear(key, d_in, d_out):
    kw, kb = jax.random.split(key)
    scale = 1.0 / jnp.sqrt(jnp.float32(d_in))
    w = jax.random.uniform(kw, (d_in, d_out), jnp.float32, -scale, scale)
    b = jax.random.uniform(kb, (d_out,), jnp.float32, -scale, scale)
    return w, b


def init_fused_message_linear(key, cfg: GNNConfig):
    """Per-head Linear(2*d_in -> 3*md) weights assembled into one block-diagonal
    (2*hidden, MW) matrix with columns [sum_all | mean_all | max_all | 1 | pad]."""
    h = cfg.hidden_dim
    nh = cfg.num_heads
    d_in = h // nh
    md = cfg.per_head_dim
    md_all = nh * md
    mw = _msg_width(md_all)
    w = jnp.zeros((2 * h, mw), jnp.float32)
    b = jnp.zeros((mw,), jnp.float32)
    for head in range(nh):
        key, sub = jax.random.split(key)
        wh, bh = init_linear(sub, 2 * d_in, 3 * md)
        for part in range(3):                     # 0: sum, 1: mean, 2: max
            col = part * md_all + head * md
            w = w.at[head * d_in:(head + 1) * d_in, col:col + md].set(
                wh[0:d_in, part * md:(part + 1) * md])
            w = w.at[h + head * d_in:h + (head + 1) * d_in, col:col + md].set(
                wh[d_in:2 * d_in, part * md:(part + 1) * md])
            b = b.at[col:col + md].set(bh[part * md:(part + 1) * md])
    # Constant 1.0 column: relu(0 + 1) == 1 for every edge, so node in-degree
    # falls out of the downstream one-hot @ messages MXU contraction for free.
    b = b.at[3 * md_all].set(1.0)
    return w, b


def init_gnn_params(key, cfg: GNNConfig):
    assert cfg.hidden_dim % cfg.num_heads == 0
    assert cfg.message_function_depth == 1   # TODO(synk): deeper fused message MLP
    assert cfg.intermediate_dim > 0          # TODO(synk): boom-less variant
    h = cfg.hidden_dim
    md_all = cfg.num_heads * cfg.per_head_dim
    blocks = []
    for _ in range(cfg.num_layers):
        block = {}
        ws, bs = [], []
        for _t in range(cfg.num_edge_types):
            key, sub = jax.random.split(key)
            w, b = init_fused_message_linear(sub, cfg)
            ws.append(w)
            bs.append(b)
        block["msg_w"] = jnp.stack(ws, 0).astype(jnp.bfloat16)        # (ET, 2H, MW)
        block["msg_b"] = jnp.stack(bs, 0)[:, None, :]                 # (ET, 1, MW)

        # msg_out Linear(12*md_all -> hidden).  The column order of its input
        # ([sum|mean|std|max] grouped over all heads, then amp/att copies) is a
        # fixed permutation of the reference per-head layout; it is absorbed
        # into this freshly initialized weight.
        key, sub = jax.random.split(key)
        wo, bo = init_linear(sub, 12 * md_all, h)
        block["wo"] = wo.astype(jnp.bfloat16)
        block["bo"] = bo.reshape(1, h)

        block["ln_gamma"] = jnp.ones((1, h), jnp.float32)   # torch LayerNorm defaults
        block["ln_beta"] = jnp.zeros((1, h), jnp.float32)

        key, k1, k2 = jax.random.split(key, 3)
        w1, b1 = init_linear(k1, h, cfg.intermediate_dim)
        w2, b2 = init_linear(k2, cfg.intermediate_dim, h)
        block["w1"] = w1.astype(jnp.bfloat16)
        block["b1"] = b1.reshape(1, -1)
        block["w2"] = w2.astype(jnp.bfloat16)
        block["b2"] = b2.reshape(1, -1)

        block["alpha"] = jnp.full((1, 1), SMALL_NUMBER, jnp.float32)   # ReZero init
        blocks.append(block)
    return blocks


# ---------------------------------------------------------------------------
# Forward pass
# ---------------------------------------------------------------------------

def build_graph_metadata(adj_lists, num_nodes, node_tile):
    """One-hot target matrix + padded gather indices, built ONCE per forward.
    Only the node-major one-hot (N_pad, Ep) is kept (no transposed copy);
    padded edges carry target -1 so their all-zero one-hot column gates them
    out of every aggregation."""
    num_types = len(adj_lists)
    counts = [int(a.shape[0]) for a in adj_lists]
    ept = _round_up(max(max(counts), 1), _EDGE_CHUNK)
    srcs, tgts, tgt_cols = [], [], []
    for a in adj_lists:
        s = a[:, 0].astype(jnp.int32)
        t = a[:, 1].astype(jnp.int32)
        pad = ept - s.shape[0]
        srcs.append(jnp.pad(s, (0, pad)))                  # pad with node 0 (gated out)
        tgts.append(jnp.pad(t, (0, pad)))
        tgt_cols.append(jnp.pad(t, (0, pad), constant_values=-1))
    targets = jnp.concatenate(tgt_cols, axis=0)            # (ET * Ept,), type-major
    n_pad = _round_up(num_nodes, node_tile)
    node_ids = jnp.arange(n_pad, dtype=jnp.int32)
    oh = (node_ids[:, None] == targets[None, :]).astype(jnp.bfloat16)   # (N_pad, Ep)
    msg_tile = 512
    while ept % msg_tile:
        msg_tile //= 2
    return {"srcs": srcs, "tgts": tgts, "oh": oh, "ept": ept,
            "ep": num_types * ept, "n_pad": n_pad, "msg_tile": msg_tile}


def gnn_block_forward(block, x_pad, graph, cfg: GNNConfig, node_tile):
    md_all = cfg.num_heads * cfg.per_head_dim

    # Per-edge-type gathers (JAX glue) stacked into one (ET, Ept, 2H) tensor so
    # ALL edge types run in a single pallas_call with a grid axis over type.
    # TODO(synk): fuse this MLP into the aggregation kernel (edge grid axis +
    # PrefetchScalarGridSpec per-type offsets) so messages never hit HBM.
    feats = [jnp.concatenate([x_pad[graph["srcs"][t]], x_pad[graph["tgts"][t]]], axis=1)
             for t in range(cfg.num_edge_types)]
    feat = jnp.stack(feats, axis=0).astype(jnp.bfloat16)

    messages = fused_message_mlp(feat, block["msg_w"], block["msg_b"],
                                 msg_tile=graph["msg_tile"])
    messages = messages.reshape(graph["ep"], messages.shape[-1])   # row-major view

    return agg_and_tail(x_pad, graph["oh"], messages, block,
                        md=md_all, tm=node_tile)


def gnn_forward(params, node_features, adj_lists, cfg: GNNConfig) -> List[jnp.ndarray]:
    if cfg.make_edges_bidirectional:
        adj_lists = [jnp.concatenate([a, a[:, ::-1]], axis=0) for a in adj_lists]
    num_nodes = node_features.shape[0]
    node_tile = min(_NODE_TILE, _round_up(num_nodes, 8))
    graph = build_graph_metadata(adj_lists, num_nodes, node_tile)
    x = node_features.astype(jnp.float32)
    x_pad = jnp.pad(x, ((0, graph["n_pad"] - num_nodes), (0, 0)))
    all_reprs = [x]
    for block in params:
        x_pad = gnn_block_forward(block, x_pad, graph, cfg, node_tile)
        all_reprs.append(x_pad[:num_nodes])
    return all_reprs


# ---------------------------------------------------------------------------

if __name__ == "__main__":
    cfg = GNNConfig()
    key = jax.random.PRNGKey(0)
    kp, kx, ke = jax.random.split(key, 3)

    params = init_gnn_params(kp, cfg)

    num_nodes = 16
    num_edges = 10
    node_features = jax.random.normal(kx, (num_nodes, cfg.hidden_dim), jnp.float32)
    edge_keys = jax.random.split(ke, cfg.num_edge_types)
    adj_lists = [
        jax.random.randint(k, (num_edges, 2), 0, num_nodes, dtype=jnp.int32)
        for k in edge_keys
    ]

    fwd = jax.jit(lambda nf, adj: gnn_forward(params, nf, adj, cfg))
    outs = jax.block_until_ready(fwd(node_features, adj_lists))

    assert len(outs) == cfg.num_layers + 1
    assert all(o.shape == (num_nodes, cfg.hidden_dim) for o in outs)
    assert all(bool(jnp.all(jnp.isfinite(o))) for o in outs)
    print("KERNEL_OK")
</pallas_src>

<mosaic_0001>
module attributes {stable_mosaic.version = 11 : i64} {
  func.func @_fused_message_kernel(%arg0: i32, %arg1: i32, %arg2: memref<1x128x64xbf16, #tpu.memory_space<vmem>>, %arg3: memref<1x64x128xbf16, #tpu.memory_space<vmem>>, %arg4: memref<1x1x128xf32, #tpu.memory_space<vmem>>, %arg5: memref<1x128x128xbf16, #tpu.memory_space<vmem>>) attributes {dimension_semantics = [#tpu.dimension_semantics<parallel>, #tpu.dimension_semantics<parallel>], iteration_bounds = array<i64: 2, 1>, scalar_prefetch = 0 : i64, scratch_operands = 0 : i64, tpu.core_type = #tpu.core_type<tc>, window_params = [{transform_indices = @transform_0, window_bounds = array<i64: 1, 128, 64>}, {transform_indices = @transform_1, window_bounds = array<i64: 1, 64, 128>}, {transform_indices = @transform_2, window_bounds = array<i64: 1, 1, 128>}, {transform_indices = @transform_3, window_bounds = array<i64: 1, 128, 128>}]} {
    %c0 = arith.constant 0 : index
    %c0_0 = arith.constant 0 : index
    %c0_1 = arith.constant 0 : index
    %0 = vector.load %arg2[%c0, %c0_0, %c0_1] : memref<1x128x64xbf16, #tpu.memory_space<vmem>>, vector<1x128x64xbf16>
    %1 = vector.shape_cast %0 : vector<1x128x64xbf16> to vector<128x64xbf16>
    %c0_2 = arith.constant 0 : index
    %c0_3 = arith.constant 0 : index
    %c0_4 = arith.constant 0 : index
    %2 = vector.load %arg3[%c0_2, %c0_3, %c0_4] : memref<1x64x128xbf16, #tpu.memory_space<vmem>>, vector<1x64x128xbf16>
    %3 = vector.shape_cast %2 : vector<1x64x128xbf16> to vector<64x128xbf16>
    %cst = arith.constant dense<0.000000e+00> : vector<128x128xf32>
    %4 = tpu.matmul %1, %3, %cst {dimension_numbers = #tpu.dot_dimension_numbers<[1], [0], [0], [1], [0, 0, 1, 1], [], []>} : vector<128x64xbf16>, vector<64x128xbf16>, vector<128x128xf32> -> vector<128x128xf32>
    %c0_5 = arith.constant 0 : index
    %c0_6 = arith.constant 0 : index
    %c0_7 = arith.constant 0 : index
    %5 = vector.load %arg4[%c0_5, %c0_6, %c0_7] : memref<1x1x128xf32, #tpu.memory_space<vmem>>, vector<1x1x128xf32>
    %6 = vector.shape_cast %5 : vector<1x1x128xf32> to vector<1x128xf32>
    %7 = vector.broadcast %6 : vector<1x128xf32> to vector<128x128xf32>
    %8 = arith.addf %4, %7 : vector<128x128xf32>
    %cst_8 = arith.constant 0.000000e+00 : f32
    %9 = vector.broadcast %cst_8 : f32 to vector<128x128xf32>
    %10 = arith.maximumf %8, %9 : vector<128x128xf32>
    %11 = arith.truncf %10 : vector<128x128xf32> to vector<128x128xbf16>
    %c0_9 = arith.constant 0 : index
    %c0_10 = arith.constant 0 : index
    %c0_11 = arith.constant 0 : index
    %12 = vector.load %arg5[%c0_9, %c0_10, %c0_11] : memref<1x128x128xbf16, #tpu.memory_space<vmem>>, vector<1x128x128xbf16>
    %13 = vector.shape_cast %12 : vector<1x128x128xbf16> to vector<128x128xbf16>
    %14 = vector.shape_cast %11 : vector<128x128xbf16> to vector<1x128x128xbf16>
    tpu.vector_store %arg5[%c0_9, %c0_10, %c0_11], %14 {strides = array<i32>} : memref<1x128x128xbf16, #tpu.memory_space<vmem>>, vector<1x128x128xbf16>,
    return
  }
  func.func @transform_0(%arg0: i32, %arg1: i32) -> (i32, i32, i32) {
    %c0_i32 = arith.constant 0 : i32
    %c0_i32_0 = arith.constant 0 : i32
    return %arg0, %arg1, %c0_i32 : i32, i32, i32
  }
  func.func @transform_1(%arg0: i32, %arg1: i32) -> (i32, i32, i32) {
    %c0_i32 = arith.constant 0 : i32
    %c0_i32_0 = arith.constant 0 : i32
    %c0_i32_1 = arith.constant 0 : i32
    return %arg0, %c0_i32, %c0_i32_0 : i32, i32, i32
  }
  func.func @transform_2(%arg0: i32, %arg1: i32) -> (i32, i32, i32) {
    %c0_i32 = arith.constant 0 : i32
    %c0_i32_0 = arith.constant 0 : i32
    %c0_i32_1 = arith.constant 0 : i32
    return %arg0, %c0_i32, %c0_i32_0 : i32, i32, i32
  }
  func.func @transform_3(%arg0: i32, %arg1: i32) -> (i32, i32, i32) {
    %c0_i32 = arith.constant 0 : i32
    %c0_i32_0 = arith.constant 0 : i32
    return %arg0, %arg1, %c0_i32 : i32, i32, i32
  }
}

module attributes {stable_mosaic.version = 11 : i64} {
  func.func @_agg_tail_kernel(%arg0: i32, %arg1: memref<16x32xf32, #tpu.memory_space<vmem>>, %arg2: memref<16x256xbf16, #tpu.memory_space<vmem>>, %arg3: memref<256x128xbf16, #tpu.memory_space<vmem>>, %arg4: memref<384x32xbf16, #tpu.memory_space<vmem>>, %arg5: memref<1x32xf32, #tpu.memory_space<vmem>>, %arg6: memref<1x32xf32, #tpu.memory_space<vmem>>, %arg7: memref<1x32xf32, #tpu.memory_space<vmem>>, %arg8: memref<32x64xbf16, #tpu.memory_space<vmem>>, %arg9: memref<1x64xf32, #tpu.memory_space<vmem>>, %arg10: memref<64x32xbf16, #tpu.memory_space<vmem>>, %arg11: memref<1x32xf32, #tpu.memory_space<vmem>>, %arg12: memref<1x1xf32, #tpu.memory_space<smem>>, %arg13: memref<16x32xf32, #tpu.memory_space<vmem>>) attributes {dimension_semantics = [#tpu.dimension_semantics<parallel>], iteration_bounds = array<i64: 1>, scalar_prefetch = 0 : i64, scratch_operands = 0 : i64, tpu.core_type = #tpu.core_type<tc>, window_params = [{transform_indices = @transform_0, window_bounds = array<i64: 16, 32>}, {transform_indices = @transform_1, window_bounds = array<i64: 16, 256>}, {pipeline_mode = #tpu.pipeline_mode<synchronous>, transform_indices = @transform_2, window_bounds = array<i64: 256, 128>}, {pipeline_mode = #tpu.pipeline_mode<synchronous>, transform_indices = @transform_3, window_bounds = array<i64: 384, 32>}, {pipeline_mode = #tpu.pipeline_mode<synchronous>, transform_indices = @transform_4, window_bounds = array<i64: 1, 32>}, {pipeline_mode = #tpu.pipeline_mode<synchronous>, transform_indices = @transform_5, window_bounds = array<i64: 1, 32>}, {pipeline_mode = #tpu.pipeline_mode<synchronous>, transform_indices = @transform_6, window_bounds = array<i64: 1, 32>}, {pipeline_mode = #tpu.pipeline_mode<synchronous>, transform_indices = @transform_7, window_bounds = array<i64: 32, 64>}, {pipeline_mode = #tpu.pipeline_mode<synchronous>, transform_indices = @transform_8, window_bounds = array<i64: 1, 64>}, {pipeline_mode = #tpu.pipeline_mode<synchronous>, transform_indices = @transform_9, window_bounds = array<i64: 64, 32>}, {pipeline_mode = #tpu.pipeline_mode<synchronous>, transform_indices = @transform_10, window_bounds = array<i64: 1, 32>}, {transform_indices = @transform_11, window_bounds = array<i64: 1, 1>}, {transform_indices = @transform_12, window_bounds = array<i64: 16, 32>}]} {
    %c0 = arith.constant 0 : index
    %c0_0 = arith.constant 0 : index
    %0 = memref.load %arg12[%c0, %c0_0] : memref<1x1xf32, #tpu.memory_space<smem>>
    %c0_1 = arith.constant 0 : index
    %c0_2 = arith.constant 0 : index
    %1 = vector.load %arg2[%c0_1, %c0_2] : memref<16x256xbf16, #tpu.memory_space<vmem>>, vector<16x256xbf16>
    %c0_3 = arith.constant 0 : index
    %c0_4 = arith.constant 0 : index
    %2 = vector.load %arg3[%c0_3, %c0_4] : memref<256x128xbf16, #tpu.memory_space<vmem>>, vector<256x128xbf16>
    %cst = arith.constant dense<0.000000e+00> : vector<16x128xf32>
    %3 = tpu.matmul %1, %2, %cst {dimension_numbers = #tpu.dot_dimension_numbers<[1], [0], [0], [1], [0, 0, 1, 1], [], []>} : vector<16x256xbf16>, vector<256x128xbf16>, vector<16x128xf32> -> vector<16x128xf32>
    %4 = vector.extract_strided_slice %3 {offsets = [0, 0], sizes = [16, 32], strides = [1, 1]} : vector<16x128xf32> to vector<16x32xf32>
    %5 = vector.extract_strided_slice %3 {offsets = [0, 96], sizes = [16, 1], strides = [1, 1]} : vector<16x128xf32> to vector<16x1xf32>
    %6 = vector.extract_strided_slice %3 {offsets = [0, 32], sizes = [16, 32], strides = [1, 1]} : vector<16x128xf32> to vector<16x32xf32>
    %cst_5 = arith.constant 1.000000e+00 : f32
    %7 = vector.broadcast %cst_5 : f32 to vector<16x1xf32>
    %8 = arith.maximumf %5, %7 : vector<16x1xf32>
    %9 = vector.broadcast %8 : vector<16x1xf32> to vector<16x32xf32>
    %10 = arith.divf %6, %9 : vector<16x32xf32>
    %11 = arith.extf %1 : vector<16x256xbf16> to vector<16x256xf32>
    %cst_6 = arith.constant dense<0.000000e+00> : vector<256x32xf32>
    %12 = tpu.matmul %11, %10, %cst_6 {dimension_numbers = #tpu.dot_dimension_numbers<[0], [0], [1], [1], [0, 1, 1, 1], [], []>} : vector<16x256xf32>, vector<16x32xf32>, vector<256x32xf32> -> vector<256x32xf32>
    %c0_7 = arith.constant 0 : index
    %c32 = arith.constant 32 : index
    %13 = vector.load %arg3[%c0_7, %c32] : memref<256x128xbf16, #tpu.memory_space<vmem>>, vector<256x32xbf16>
    %14 = arith.extf %13 : vector<256x32xbf16> to vector<256x32xf32>
    %15 = arith.mulf %14, %14 : vector<256x32xf32>
    %16 = arith.mulf %12, %12 : vector<256x32xf32>
    %17 = arith.subf %15, %16 : vector<256x32xf32>
    %cst_8 = arith.constant 0.000000e+00 : f32
    %18 = vector.broadcast %cst_8 : f32 to vector<256x32xf32>
    %19 = arith.maximumf %17, %18 : vector<256x32xf32>
    %cst_9 = arith.constant 1.000000e-07 : f32
    %20 = vector.broadcast %cst_9 : f32 to vector<256x32xf32>
    %21 = arith.addf %19, %20 : vector<256x32xf32>
    %cst_10 = arith.constant dense<0.000000e+00> : vector<16x32xf32>
    %22 = tpu.matmul %11, %21, %cst_10 {dimension_numbers = #tpu.dot_dimension_numbers<[1], [0], [0], [1], [0, 0, 1, 1], [], []>} : vector<16x256xf32>, vector<256x32xf32>, vector<16x32xf32> -> vector<16x32xf32>
    %23 = math.sqrt %22 : vector<16x32xf32>
    %cst_11 = arith.constant 0.000000e+00 : f32
    %24 = vector.broadcast %cst_11 : f32 to vector<16x32xf32>
    %c0_i32 = arith.constant 0 : i32
    %c2_i32 = arith.constant 2 : i32
    %25 = arith.addi %c0_i32, %c2_i32 : i32
    %c1_i32 = arith.constant 1 : i32
    %26 = scf.for %arg14 = %c0_i32 to %25 step %c1_i32 iter_args(%arg15 = %24) -> (vector<16x32xf32>)  : i32 {
      %c128_i32 = arith.constant 128 : i32
      %99 = arith.muli %arg14, %c128_i32 : i32
      %100 = tpu.assume_multiple %99, 128 : i32
      %c0_49 = arith.constant 0 : index
      %101 = arith.index_cast %100 : i32 to index
      %102 = vector.load %arg2[%c0_49, %101] : memref<16x256xbf16, #tpu.memory_space<vmem>>, vector<16x128xbf16>
      %103 = arith.extf %102 : vector<16x128xbf16> to vector<16x128xf32>
      %104 = arith.index_cast %100 : i32 to index
      %c64 = arith.constant 64 : index
      %105 = vector.load %arg3[%104, %c64] : memref<256x128xbf16, #tpu.memory_space<vmem>>, vector<128x32xbf16>
      %106 = arith.extf %105 : vector<128x32xbf16> to vector<128x32xf32>
      %107 = vector.shape_cast %103 : vector<16x128xf32> to vector<16x128x1xf32>
      %108 = vector.shape_cast %106 : vector<128x32xf32> to vector<1x128x32xf32>
      %109 = vector.broadcast %107 : vector<16x128x1xf32> to vector<16x128x32xf32>
      %110 = vector.broadcast %108 : vector<1x128x32xf32> to vector<16x128x32xf32>
      %111 = arith.mulf %109, %110 : vector<16x128x32xf32>
      %cst_50 = arith.constant dense<0xFF800000> : vector<16x32xf32>
      %112 = vector.multi_reduction <maximumf>, %111, %cst_50 [1] : vector<16x128x32xf32> to vector<16x32xf32>
      %113 = arith.maximumf %arg15, %112 : vector<16x32xf32>
      scf.yield %113 : vector<16x32xf32>
    }
    %c2_i32_12 = arith.constant 2 : i32
    %27 = tpu.concatenate %4, %10, %23, %26 in 1 : vector<16x32xf32>, vector<16x32xf32>, vector<16x32xf32>, vector<16x32xf32> -> vector<16x128xf32>
    %cst_13 = arith.constant 1.000000e+00 : f32
    %28 = vector.broadcast %cst_13 : f32 to vector<16x1xf32>
    %29 = arith.addf %5, %28 : vector<16x1xf32>
    %30 = math.log %29 : vector<16x1xf32>
    %cst_14 = arith.constant 0.868432462 : f32
    %31 = vector.broadcast %cst_14 : f32 to vector<16x1xf32>
    %32 = arith.mulf %30, %31 : vector<16x1xf32>
    %cst_15 = arith.constant 0.000000e+00 : f32
    %33 = vector.broadcast %cst_15 : f32 to vector<16x1xf32>
    %34 = arith.cmpf ogt, %5, %33 : vector<16x1xf32>
    %cst_16 = arith.constant 1.000000e-07 : f32
    %35 = vector.broadcast %cst_16 : f32 to vector<16x1xf32>
    %36 = arith.addf %30, %35 : vector<16x1xf32>
    %cst_17 = arith.constant 1.151500e+00 : f32
    %37 = vector.broadcast %cst_17 : f32 to vector<16x1xf32>
    %38 = arith.divf %37, %36 : vector<16x1xf32>
    %cst_18 = arith.constant 0.000000e+00 : f32
    %39 = vector.broadcast %cst_18 : f32 to vector<16x1xf32>
    %40 = arith.select %34, %38, %39 : vector<16x1xi1>, vector<16x1xf32>
    %41 = vector.broadcast %32 : vector<16x1xf32> to vector<16x128xf32>
    %42 = arith.mulf %41, %27 : vector<16x128xf32>
    %43 = vector.broadcast %40 : vector<16x1xf32> to vector<16x128xf32>
    %44 = arith.mulf %43, %27 : vector<16x128xf32>
    %45 = tpu.concatenate %27, %42, %44 in 1 : vector<16x128xf32>, vector<16x128xf32>, vector<16x128xf32> -> vector<16x384xf32>
    %46 = arith.truncf %45 : vector<16x384xf32> to vector<16x384xbf16>
    %c0_19 = arith.constant 0 : index
    %c0_20 = arith.constant 0 : index
    %47 = vector.load %arg4[%c0_19, %c0_20] : memref<384x32xbf16, #tpu.memory_space<vmem>>, vector<384x32xbf16>
    %cst_21 = arith.constant dense<0.000000e+00> : vector<16x32xf32>
    %48 = tpu.matmul %46, %47, %cst_21 {dimension_numbers = #tpu.dot_dimension_numbers<[1], [0], [0], [1], [0, 0, 1, 1], [], []>} : vector<16x384xbf16>, vector<384x32xbf16>, vector<16x32xf32> -> vector<16x32xf32>
    %c0_22 = arith.constant 0 : index
    %c0_23 = arith.constant 0 : index
    %49 = vector.load %arg5[%c0_22, %c0_23] : memref<1x32xf32, #tpu.memory_space<vmem>>, vector<1x32xf32>
    %50 = vector.broadcast %49 : vector<1x32xf32> to vector<16x32xf32>
    %51 = arith.addf %48, %50 : vector<16x32xf32>
    %c0_24 = arith.constant 0 : index
    %c0_25 = arith.constant 0 : index
    %52 = vector.load %arg1[%c0_24, %c0_25] : memref<16x32xf32, #tpu.memory_space<vmem>>, vector<16x32xf32>
    %53 = vector.broadcast %0 : f32 to vector<16x32xf32>
    %54 = arith.mulf %53, %51 : vector<16x32xf32>
    %55 = arith.addf %52, %54 : vector<16x32xf32>
    %cst_26 = arith.constant dense<0.000000e+00> : vector<16xf32>
    %56 = vector.multi_reduction <add>, %55, %cst_26 [1] : vector<16x32xf32> to vector<16xf32>
    %57 = vector.shape_cast %56 : vector<16xf32> to vector<16x1xf32>
    %cst_27 = arith.constant 3.200000e+01 : f32
    %58 = vector.broadcast %cst_27 : f32 to vector<16x1xf32>
    %59 = arith.divf %57, %58 : vector<16x1xf32>
    %60 = vector.broadcast %59 : vector<16x1xf32> to vector<16x32xf32>
    %61 = arith.subf %55, %60 : vector<16x32xf32>
    %62 = arith.mulf %61, %61 : vector<16x32xf32>
    %cst_28 = arith.constant dense<0.000000e+00> : vector<16xf32>
    %63 = vector.multi_reduction <add>, %62, %cst_28 [1] : vector<16x32xf32> to vector<16xf32>
    %64 = vector.shape_cast %63 : vector<16xf32> to vector<16x1xf32>
    %cst_29 = arith.constant 3.200000e+01 : f32
    %65 = vector.broadcast %cst_29 : f32 to vector<16x1xf32>
    %66 = arith.divf %64, %65 : vector<16x1xf32>
    %cst_30 = arith.constant 9.99999974E-6 : f32
    %67 = vector.broadcast %cst_30 : f32 to vector<16x1xf32>
    %68 = arith.addf %66, %67 : vector<16x1xf32>
    %69 = math.rsqrt %68 : vector<16x1xf32>
    %70 = vector.broadcast %69 : vector<16x1xf32> to vector<16x32xf32>
    %71 = arith.mulf %61, %70 : vector<16x32xf32>
    %c0_31 = arith.constant 0 : index
    %c0_32 = arith.constant 0 : index
    %72 = vector.load %arg6[%c0_31, %c0_32] : memref<1x32xf32, #tpu.memory_space<vmem>>, vector<1x32xf32>
    %73 = vector.broadcast %72 : vector<1x32xf32> to vector<16x32xf32>
    %74 = arith.mulf %71, %73 : vector<16x32xf32>
    %c0_33 = arith.constant 0 : index
    %c0_34 = arith.constant 0 : index
    %75 = vector.load %arg7[%c0_33, %c0_34] : memref<1x32xf32, #tpu.memory_space<vmem>>, vector<1x32xf32>
    %76 = vector.broadcast %75 : vector<1x32xf32> to vector<16x32xf32>
    %77 = arith.addf %74, %76 : vector<16x32xf32>
    %78 = arith.truncf %77 : vector<16x32xf32> to vector<16x32xbf16>
    %c0_35 = arith.constant 0 : index
    %c0_36 = arith.constant 0 : index
    %79 = vector.load %arg8[%c0_35, %c0_36] : memref<32x64xbf16, #tpu.memory_space<vmem>>, vector<32x64xbf16>
    %cst_37 = arith.constant dense<0.000000e+00> : vector<16x64xf32>
    %80 = tpu.matmul %78, %79, %cst_37 {dimension_numbers = #tpu.dot_dimension_numbers<[1], [0], [0], [1], [0, 0, 1, 1], [], []>} : vector<16x32xbf16>, vector<32x64xbf16>, vector<16x64xf32> -> vector<16x64xf32>
    %c0_38 = arith.constant 0 : index
    %c0_39 = arith.constant 0 : index
    %81 = vector.load %arg9[%c0_38, %c0_39] : memref<1x64xf32, #tpu.memory_space<vmem>>, vector<1x64xf32>
    %82 = vector.broadcast %81 : vector<1x64xf32> to vector<16x64xf32>
    %83 = arith.addf %80, %82 : vector<16x64xf32>
    %cst_40 = arith.constant 0.000000e+00 : f32
    %84 = vector.broadcast %cst_40 : f32 to vector<16x64xf32>
    %85 = arith.cmpf oge, %83, %84 : vector<16x64xf32>
    %cst_41 = arith.constant 0.00999999977 : f32
    %86 = vector.broadcast %cst_41 : f32 to vector<16x64xf32>
    %87 = arith.mulf %86, %83 : vector<16x64xf32>
    %88 = arith.select %85, %83, %87 : vector<16x64xi1>, vector<16x64xf32>
    %89 = arith.truncf %88 : vector<16x64xf32> to vector<16x64xbf16>
    %c0_42 = arith.constant 0 : index
    %c0_43 = arith.constant 0 : index
    %90 = vector.load %arg10[%c0_42, %c0_43] : memref<64x32xbf16, #tpu.memory_space<vmem>>, vector<64x32xbf16>
    %cst_44 = arith.constant dense<0.000000e+00> : vector<16x32xf32>
    %91 = tpu.matmul %89, %90, %cst_44 {dimension_numbers = #tpu.dot_dimension_numbers<[1], [0], [0], [1], [0, 0, 1, 1], [], []>} : vector<16x64xbf16>, vector<64x32xbf16>, vector<16x32xf32> -> vector<16x32xf32>
    %c0_45 = arith.constant 0 : index
    %c0_46 = arith.constant 0 : index
    %92 = vector.load %arg11[%c0_45, %c0_46] : memref<1x32xf32, #tpu.memory_space<vmem>>, vector<1x32xf32>
    %93 = vector.broadcast %92 : vector<1x32xf32> to vector<16x32xf32>
    %94 = arith.addf %91, %93 : vector<16x32xf32>
    %95 = vector.broadcast %0 : f32 to vector<16x32xf32>
    %96 = arith.mulf %95, %94 : vector<16x32xf32>
    %97 = arith.addf %55, %96 : vector<16x32xf32>
    %c0_47 = arith.constant 0 : index
    %c0_48 = arith.constant 0 : index
    %98 = vector.load %arg13[%c0_47, %c0_48] : memref<16x32xf32, #tpu.memory_space<vmem>>, vector<16x32xf32>
    tpu.vector_store %arg13[%c0_47, %c0_48], %97 {strides = array<i32>} : memref<16x32xf32, #tpu.memory_space<vmem>>, vector<16x32xf32>,
    return
  }
  func.func @transform_0(%arg0: i32) -> (i32, i32) {
    %c0_i32 = arith.constant 0 : i32
    %c0_i32_0 = arith.constant 0 : i32
    return %arg0, %c0_i32 : i32, i32
  }
  func.func @transform_1(%arg0: i32) -> (i32, i32) {
    %c0_i32 = arith.constant 0 : i32
    %c0_i32_0 = arith.constant 0 : i32
    return %arg0, %c0_i32 : i32, i32
  }
  func.func @transform_2(%arg0: i32) -> (i32, i32) {
    %c0_i32 = arith.constant 0 : i32
    %c0_i32_0 = arith.constant 0 : i32
    %c0_i32_1 = arith.constant 0 : i32
    return %c0_i32, %c0_i32_0 : i32, i32
  }
  func.func @transform_3(%arg0: i32) -> (i32, i32) {
    %c0_i32 = arith.constant 0 : i32
    %c0_i32_0 = arith.constant 0 : i32
    %c0_i32_1 = arith.constant 0 : i32
    return %c0_i32, %c0_i32_0 : i32, i32
  }
  func.func @transform_4(%arg0: i32) -> (i32, i32) {
    %c0_i32 = arith.constant 0 : i32
    %c0_i32_0 = arith.constant 0 : i32
    %c0_i32_1 = arith.constant 0 : i32
    return %c0_i32, %c0_i32_0 : i32, i32
  }
  func.func @transform_5(%arg0: i32) -> (i32, i32) {
    %c0_i32 = arith.constant 0 : i32
    %c0_i32_0 = arith.constant 0 : i32
    %c0_i32_1 = arith.constant 0 : i32
    return %c0_i32, %c0_i32_0 : i32, i32
  }
  func.func @transform_6(%arg0: i32) -> (i32, i32) {
    %c0_i32 = arith.constant 0 : i32
    %c0_i32_0 = arith.constant 0 : i32
    %c0_i32_1 = arith.constant 0 : i32
    return %c0_i32, %c0_i32_0 : i32, i32
  }
  func.func @transform_7(%arg0: i32) -> (i32, i32) {
    %c0_i32 = arith.constant 0 : i32
    %c0_i32_0 = arith.constant 0 : i32
    %c0_i32_1 = arith.constant 0 : i32
    return %c0_i32, %c0_i32_0 : i32, i32
  }
  func.func @transform_8(%arg0: i32) -> (i32, i32) {
    %c0_i32 = arith.constant 0 : i32
    %c0_i32_0 = arith.constant 0 : i32
    %c0_i32_1 = arith.constant 0 : i32
    return %c0_i32, %c0_i32_0 : i32, i32
  }
  func.func @transform_9(%arg0: i32) -> (i32, i32) {
    %c0_i32 = arith.constant 0 : i32
    %c0_i32_0 = arith.constant 0 : i32
    %c0_i32_1 = arith.constant 0 : i32
    return %c0_i32, %c0_i32_0 : i32, i32
  }
  func.func @transform_10(%arg0: i32) -> (i32, i32) {
    %c0_i32 = arith.constant 0 : i32
    %c0_i32_0 = arith.constant 0 : i32
    %c0_i32_1 = arith.constant 0 : i32
    return %c0_i32, %c0_i32_0 : i32, i32
  }
  func.func @transform_11(%arg0: i32) -> (i32, i32) {
    %c0_i32 = arith.constant 0 : i32
    %c0_i32_0 = arith.constant 0 : i32
    %c0_i32_1 = arith.constant 0 : i32
    return %c0_i32, %c0_i32_0 : i32, i32
  }
  func.func @transform_12(%arg0: i32) -> (i32, i32) {
    %c0_i32 = arith.constant 0 : i32
    %c0_i32_0 = arith.constant 0 : i32
    return %arg0, %c0_i32 : i32, i32
  }
}

module attributes {stable_mosaic.version = 11 : i64} {
  func.func @_agg_tail_kernel(%arg0: i32, %arg1: memref<16x32xf32, #tpu.memory_space<vmem>>, %arg2: memref<16x256xbf16, #tpu.memory_space<vmem>>, %arg3: memref<256x128xbf16, #tpu.memory_space<vmem>>, %arg4: memref<384x32xbf16, #tpu.memory_space<vmem>>, %arg5: memref<1x32xf32, #tpu.memory_space<vmem>>, %arg6: memref<1x32xf32, #tpu.memory_space<vmem>>, %arg7: memref<1x32xf32, #tpu.memory_space<vmem>>, %arg8: memref<32x64xbf16, #tpu.memory_space<vmem>>, %arg9: memref<1x64xf32, #tpu.memory_space<vmem>>, %arg10: memref<64x32xbf16, #tpu.memory_space<vmem>>, %arg11: memref<1x32xf32, #tpu.memory_space<vmem>>, %arg12: memref<1x1xf32, #tpu.memory_space<smem>>, %arg13: memref<16x32xf32, #tpu.memory_space<vmem>>) attributes {dimension_semantics = [#tpu.dimension_semantics<parallel>], iteration_bounds = array<i64: 1>, scalar_prefetch = 0 : i64, scratch_operands = 0 : i64, tpu.core_type = #tpu.core_type<tc>, window_params = [{transform_indices = @transform_0, window_bounds = array<i64: 16, 32>}, {transform_indices = @transform_1, window_bounds = array<i64: 16, 256>}, {pipeline_mode = #tpu.pipeline_mode<synchronous>, transform_indices = @transform_2, window_bounds = array<i64: 256, 128>}, {pipeline_mode = #tpu.pipeline_mode<synchronous>, transform_indices = @transform_3, window_bounds = array<i64: 384, 32>}, {pipeline_mode = #tpu.pipeline_mode<synchronous>, transform_indices = @transform_4, window_bounds = array<i64: 1, 32>}, {pipeline_mode = #tpu.pipeline_mode<synchronous>, transform_indices = @transform_5, window_bounds = array<i64: 1, 32>}, {pipeline_mode = #tpu.pipeline_mode<synchronous>, transform_indices = @transform_6, window_bounds = array<i64: 1, 32>}, {pipeline_mode = #tpu.pipeline_mode<synchronous>, transform_indices = @transform_7, window_bounds = array<i64: 32, 64>}, {pipeline_mode = #tpu.pipeline_mode<synchronous>, transform_indices = @transform_8, window_bounds = array<i64: 1, 64>}, {pipeline_mode = #tpu.pipeline_mode<synchronous>, transform_indices = @transform_9, window_bounds = array<i64: 64, 32>}, {pipeline_mode = #tpu.pipeline_mode<synchronous>, transform_indices = @transform_10, window_bounds = array<i64: 1, 32>}, {transform_indices = @transform_11, window_bounds = array<i64: 1, 1>}, {transform_indices = @transform_12, window_bounds = array<i64: 16, 32>}]} {
    %c0 = arith.constant 0 : index
    %c0_0 = arith.constant 0 : index
    %0 = memref.load %arg12[%c0, %c0_0] : memref<1x1xf32, #tpu.memory_space<smem>>
    %c0_1 = arith.constant 0 : index
    %c0_2 = arith.constant 0 : index
    %1 = vector.load %arg2[%c0_1, %c0_2] : memref<16x256xbf16, #tpu.memory_space<vmem>>, vector<16x256xbf16>
    %c0_3 = arith.constant 0 : index
    %c0_4 = arith.constant 0 : index
    %2 = vector.load %arg3[%c0_3, %c0_4] : memref<256x128xbf16, #tpu.memory_space<vmem>>, vector<256x128xbf16>
    %cst = arith.constant dense<0.000000e+00> : vector<16x128xf32>
    %3 = tpu.matmul %1, %2, %cst {dimension_numbers = #tpu.dot_dimension_numbers<[1], [0], [0], [1], [0, 0, 1, 1], [], []>} : vector<16x256xbf16>, vector<256x128xbf16>, vector<16x128xf32> -> vector<16x128xf32>
    %4 = vector.extract_strided_slice %3 {offsets = [0, 0], sizes = [16, 32], strides = [1, 1]} : vector<16x128xf32> to vector<16x32xf32>
    %5 = vector.extract_strided_slice %3 {offsets = [0, 96], sizes = [16, 1], strides = [1, 1]} : vector<16x128xf32> to vector<16x1xf32>
    %6 = vector.extract_strided_slice %3 {offsets = [0, 32], sizes = [16, 32], strides = [1, 1]} : vector<16x128xf32> to vector<16x32xf32>
    %cst_5 = arith.constant 1.000000e+00 : f32
    %7 = vector.broadcast %cst_5 : f32 to vector<16x1xf32>
    %8 = arith.maximumf %5, %7 : vector<16x1xf32>
    %9 = vector.broadcast %8 : vector<16x1xf32> to vector<16x32xf32>
    %10 = arith.divf %6, %9 : vector<16x32xf32>
    %11 = arith.extf %1 : vector<16x256xbf16> to vector<16x256xf32>
    %cst_6 = arith.constant dense<0.000000e+00> : vector<256x32xf32>
    %12 = tpu.matmul %11, %10, %cst_6 {dimension_numbers = #tpu.dot_dimension_numbers<[0], [0], [1], [1], [0, 1, 1, 1], [], []>} : vector<16x256xf32>, vector<16x32xf32>, vector<256x32xf32> -> vector<256x32xf32>
    %c0_7 = arith.constant 0 : index
    %c32 = arith.constant 32 : index
    %13 = vector.load %arg3[%c0_7, %c32] : memref<256x128xbf16, #tpu.memory_space<vmem>>, vector<256x32xbf16>
    %14 = arith.extf %13 : vector<256x32xbf16> to vector<256x32xf32>
    %15 = arith.mulf %14, %14 : vector<256x32xf32>
    %16 = arith.mulf %12, %12 : vector<256x32xf32>
    %17 = arith.subf %15, %16 : vector<256x32xf32>
    %cst_8 = arith.constant 0.000000e+00 : f32
    %18 = vector.broadcast %cst_8 : f32 to vector<256x32xf32>
    %19 = arith.maximumf %17, %18 : vector<256x32xf32>
    %cst_9 = arith.constant 1.000000e-07 : f32
    %20 = vector.broadcast %cst_9 : f32 to vector<256x32xf32>
    %21 = arith.addf %19, %20 : vector<256x32xf32>
    %cst_10 = arith.constant dense<0.000000e+00> : vector<16x32xf32>
    %22 = tpu.matmul %11, %21, %cst_10 {dimension_numbers = #tpu.dot_dimension_numbers<[1], [0], [0], [1], [0, 0, 1, 1], [], []>} : vector<16x256xf32>, vector<256x32xf32>, vector<16x32xf32> -> vector<16x32xf32>
    %23 = math.sqrt %22 : vector<16x32xf32>
    %cst_11 = arith.constant 0.000000e+00 : f32
    %24 = vector.broadcast %cst_11 : f32 to vector<16x32xf32>
    %c0_i32 = arith.constant 0 : i32
    %c2_i32 = arith.constant 2 : i32
    %25 = arith.addi %c0_i32, %c2_i32 : i32
    %c1_i32 = arith.constant 1 : i32
    %26 = scf.for %arg14 = %c0_i32 to %25 step %c1_i32 iter_args(%arg15 = %24) -> (vector<16x32xf32>)  : i32 {
      %c128_i32 = arith.constant 128 : i32
      %99 = arith.muli %arg14, %c128_i32 : i32
      %100 = tpu.assume_multiple %99, 128 : i32
      %c0_49 = arith.constant 0 : index
      %101 = arith.index_cast %100 : i32 to index
      %102 = vector.load %arg2[%c0_49, %101] : memref<16x256xbf16, #tpu.memory_space<vmem>>, vector<16x128xbf16>
      %103 = arith.extf %102 : vector<16x128xbf16> to vector<16x128xf32>
      %104 = arith.index_cast %100 : i32 to index
      %c64 = arith.constant 64 : index
      %105 = vector.load %arg3[%104, %c64] : memref<256x128xbf16, #tpu.memory_space<vmem>>, vector<128x32xbf16>
      %106 = arith.extf %105 : vector<128x32xbf16> to vector<128x32xf32>
      %107 = vector.shape_cast %103 : vector<16x128xf32> to vector<16x128x1xf32>
      %108 = vector.shape_cast %106 : vector<128x32xf32> to vector<1x128x32xf32>
      %109 = vector.broadcast %107 : vector<16x128x1xf32> to vector<16x128x32xf32>
      %110 = vector.broadcast %108 : vector<1x128x32xf32> to vector<16x128x32xf32>
      %111 = arith.mulf %109, %110 : vector<16x128x32xf32>
      %cst_50 = arith.constant dense<0xFF800000> : vector<16x32xf32>
      %112 = vector.multi_reduction <maximumf>, %111, %cst_50 [1] : vector<16x128x32xf32> to vector<16x32xf32>
      %113 = arith.maximumf %arg15, %112 : vector<16x32xf32>
      scf.yield %113 : vector<16x32xf32>
    }
    %c2_i32_12 = arith.constant 2 : i32
    %27 = tpu.concatenate %4, %10, %23, %26 in 1 : vector<16x32xf32>, vector<16x32xf32>, vector<16x32xf32>, vector<16x32xf32> -> vector<16x128xf32>
    %cst_13 = arith.constant 1.000000e+00 : f32
    %28 = vector.broadcast %cst_13 : f32 to vector<16x1xf32>
    %29 = arith.addf %5, %28 : vector<16x1xf32>
    %30 = math.log %29 : vector<16x1xf32>
    %cst_14 = arith.constant 0.868432462 : f32
    %31 = vector.broadcast %cst_14 : f32 to vector<16x1xf32>
    %32 = arith.mulf %30, %31 : vector<16x1xf32>
    %cst_15 = arith.constant 0.000000e+00 : f32
    %33 = vector.broadcast %cst_15 : f32 to vector<16x1xf32>
    %34 = arith.cmpf ogt, %5, %33 : vector<16x1xf32>
    %cst_16 = arith.constant 1.000000e-07 : f32
    %35 = vector.broadcast %cst_16 : f32 to vector<16x1xf32>
    %36 = arith.addf %30, %35 : vector<16x1xf32>
    %cst_17 = arith.constant 1.151500e+00 : f32
    %37 = vector.broadcast %cst_17 : f32 to vector<16x1xf32>
    %38 = arith.divf %37, %36 : vector<16x1xf32>
    %cst_18 = arith.constant 0.000000e+00 : f32
    %39 = vector.broadcast %cst_18 : f32 to vector<16x1xf32>
    %40 = arith.select %34, %38, %39 : vector<16x1xi1>, vector<16x1xf32>
    %41 = vector.broadcast %32 : vector<16x1xf32> to vector<16x128xf32>
    %42 = arith.mulf %41, %27 : vector<16x128xf32>
    %43 = vector.broadcast %40 : vector<16x1xf32> to vector<16x128xf32>
    %44 = arith.mulf %43, %27 : vector<16x128xf32>
    %45 = tpu.concatenate %27, %42, %44 in 1 : vector<16x128xf32>, vector<16x128xf32>, vector<16x128xf32> -> vector<16x384xf32>
    %46 = arith.truncf %45 : vector<16x384xf32> to vector<16x384xbf16>
    %c0_19 = arith.constant 0 : index
    %c0_20 = arith.constant 0 : index
    %47 = vector.load %arg4[%c0_19, %c0_20] : memref<384x32xbf16, #tpu.memory_space<vmem>>, vector<384x32xbf16>
    %cst_21 = arith.constant dense<0.000000e+00> : vector<16x32xf32>
    %48 = tpu.matmul %46, %47, %cst_21 {dimension_numbers = #tpu.dot_dimension_numbers<[1], [0], [0], [1], [0, 0, 1, 1], [], []>} : vector<16x384xbf16>, vector<384x32xbf16>, vector<16x32xf32> -> vector<16x32xf32>
    %c0_22 = arith.constant 0 : index
    %c0_23 = arith.constant 0 : index
    %49 = vector.load %arg5[%c0_22, %c0_23] : memref<1x32xf32, #tpu.memory_space<vmem>>, vector<1x32xf32>
    %50 = vector.broadcast %49 : vector<1x32xf32> to vector<16x32xf32>
    %51 = arith.addf %48, %50 : vector<16x32xf32>
    %c0_24 = arith.constant 0 : index
    %c0_25 = arith.constant 0 : index
    %52 = vector.load %arg1[%c0_24, %c0_25] : memref<16x32xf32, #tpu.memory_space<vmem>>, vector<16x32xf32>
    %53 = vector.broadcast %0 : f32 to vector<16x32xf32>
    %54 = arith.mulf %53, %51 : vector<16x32xf32>
    %55 = arith.addf %52, %54 : vector<16x32xf32>
    %cst_26 = arith.constant dense<0.000000e+00> : vector<16xf32>
    %56 = vector.multi_reduction <add>, %55, %cst_26 [1] : vector<16x32xf32> to vector<16xf32>
    %57 = vector.shape_cast %56 : vector<16xf32> to vector<16x1xf32>
    %cst_27 = arith.constant 3.200000e+01 : f32
    %58 = vector.broadcast %cst_27 : f32 to vector<16x1xf32>
    %59 = arith.divf %57, %58 : vector<16x1xf32>
    %60 = vector.broadcast %59 : vector<16x1xf32> to vector<16x32xf32>
    %61 = arith.subf %55, %60 : vector<16x32xf32>
    %62 = arith.mulf %61, %61 : vector<16x32xf32>
    %cst_28 = arith.constant dense<0.000000e+00> : vector<16xf32>
    %63 = vector.multi_reduction <add>, %62, %cst_28 [1] : vector<16x32xf32> to vector<16xf32>
    %64 = vector.shape_cast %63 : vector<16xf32> to vector<16x1xf32>
    %cst_29 = arith.constant 3.200000e+01 : f32
    %65 = vector.broadcast %cst_29 : f32 to vector<16x1xf32>
    %66 = arith.divf %64, %65 : vector<16x1xf32>
    %cst_30 = arith.constant 9.99999974E-6 : f32
    %67 = vector.broadcast %cst_30 : f32 to vector<16x1xf32>
    %68 = arith.addf %66, %67 : vector<16x1xf32>
    %69 = math.rsqrt %68 : vector<16x1xf32>
    %70 = vector.broadcast %69 : vector<16x1xf32> to vector<16x32xf32>
    %71 = arith.mulf %61, %70 : vector<16x32xf32>
    %c0_31 = arith.constant 0 : index
    %c0_32 = arith.constant 0 : index
    %72 = vector.load %arg6[%c0_31, %c0_32] : memref<1x32xf32, #tpu.memory_space<vmem>>, vector<1x32xf32>
    %73 = vector.broadcast %72 : vector<1x32xf32> to vector<16x32xf32>
    %74 = arith.mulf %71, %73 : vector<16x32xf32>
    %c0_33 = arith.constant 0 : index
    %c0_34 = arith.constant 0 : index
    %75 = vector.load %arg7[%c0_33, %c0_34] : memref<1x32xf32, #tpu.memory_space<vmem>>, vector<1x32xf32>
    %76 = vector.broadcast %75 : vector<1x32xf32> to vector<16x32xf32>
    %77 = arith.addf %74, %76 : vector<16x32xf32>
    %78 = arith.truncf %77 : vector<16x32xf32> to vector<16x32xbf16>
    %c0_35 = arith.constant 0 : index
    %c0_36 = arith.constant 0 : index
    %79 = vector.load %arg8[%c0_35, %c0_36] : memref<32x64xbf16, #tpu.memory_space<vmem>>, vector<32x64xbf16>
    %cst_37 = arith.constant dense<0.000000e+00> : vector<16x64xf32>
    %80 = tpu.matmul %78, %79, %cst_37 {dimension_numbers = #tpu.dot_dimension_numbers<[1], [0], [0], [1], [0, 0, 1, 1], [], []>} : vector<16x32xbf16>, vector<32x64xbf16>, vector<16x64xf32> -> vector<16x64xf32>
    %c0_38 = arith.constant 0 : index
    %c0_39 = arith.constant 0 : index
    %81 = vector.load %arg9[%c0_38, %c0_39] : memref<1x64xf32, #tpu.memory_space<vmem>>, vector<1x64xf32>
    %82 = vector.broadcast %81 : vector<1x64xf32> to vector<16x64xf32>
    %83 = arith.addf %80, %82 : vector<16x64xf32>
    %cst_40 = arith.constant 0.000000e+00 : f32
    %84 = vector.broadcast %cst_40 : f32 to vector<16x64xf32>
    %85 = arith.cmpf oge, %83, %84 : vector<16x64xf32>
    %cst_41 = arith.constant 0.00999999977 : f32
    %86 = vector.broadcast %cst_41 : f32 to vector<16x64xf32>
    %87 = arith.mulf %86, %83 : vector<16x64xf32>
    %88 = arith.select %85, %83, %87 : vector<16x64xi1>, vector<16x64xf32>
    %89 = arith.truncf %88 : vector<16x64xf32> to vector<16x64xbf16>
    %c0_42 = arith.constant 0 : index
    %c0_43 = arith.constant 0 : index
    %90 = vector.load %arg10[%c0_42, %c0_43] : memref<64x32xbf16, #tpu.memory_space<vmem>>, vector<64x32xbf16>
    %cst_44 = arith.constant dense<0.000000e+00> : vector<16x32xf32>
    %91 = tpu.matmul %89, %90, %cst_44 {dimension_numbers = #tpu.dot_dimension_numbers<[1], [0], [0], [1], [0, 0, 1, 1], [], []>} : vector<16x64xbf16>, vector<64x32xbf16>, vector<16x32xf32> -> vector<16x32xf32>
    %c0_45 = arith.constant 0 : index
    %c0_46 = arith.constant 0 : index
    %92 = vector.load %arg11[%c0_45, %c0_46] : memref<1x32xf32, #tpu.memory_space<vmem>>, vector<1x32xf32>
    %93 = vector.broadcast %92 : vector<1x32xf32> to vector<16x32xf32>
    %94 = arith.addf %91, %93 : vector<16x32xf32>
    %95 = vector.broadcast %0 : f32 to vector<16x32xf32>
    %96 = arith.mulf %95, %94 : vector<16x32xf32>
    %97 = arith.addf %55, %96 : vector<16x32xf32>
    %c0_47 = arith.constant 0 : index
    %c0_48 = arith.constant 0 : index
    %98 = vector.load %arg13[%c0_47, %c0_48] : memref<16x32xf32, #tpu.memory_space<vmem>>, vector<16x32xf32>
    tpu.vector_store %arg13[%c0_47, %c0_48], %97 {strides = array<i32>} : memref<16x32xf32, #tpu.memory_space<vmem>>, vector<16x32xf32>,
    return
  }
  func.func @transform_0(%arg0: i32) -> (i32, i32) {
    %c0_i32 = arith.constant 0 : i32
    %c0_i32_0 = arith.constant 0 : i32
    return %arg0, %c0_i32 : i32, i32
  }
  func.func @transform_1(%arg0: i32) -> (i32, i32) {
    %c0_i32 = arith.constant 0 : i32
    %c0_i32_0 = arith.constant 0 : i32
    return %arg0, %c0_i32 : i32, i32
  }
  func.func @transform_2(%arg0: i32) -> (i32, i32) {
    %c0_i32 = arith.constant 0 : i32
    %c0_i32_0 = arith.constant 0 : i32
    %c0_i32_1 = arith.constant 0 : i32
    return %c0_i32, %c0_i32_0 : i32, i32
  }
  func.func @transform_3(%arg0: i32) -> (i32, i32) {
    %c0_i32 = arith.constant 0 : i32
    %c0_i32_0 = arith.constant 0 : i32
    %c0_i32_1 = arith.constant 0 : i32
    return %c0_i32, %c0_i32_0 : i32, i32
  }
  func.func @transform_4(%arg0: i32) -> (i32, i32) {
    %c0_i32 = arith.constant 0 : i32
    %c0_i32_0 = arith.constant 0 : i32
    %c0_i32_1 = arith.constant 0 : i32
    return %c0_i32, %c0_i32_0 : i32, i32
  }
  func.func @transform_5(%arg0: i32) -> (i32, i32) {
    %c0_i32 = arith.constant 0 : i32
    %c0_i32_0 = arith.constant 0 : i32
    %c0_i32_1 = arith.constant 0 : i32
    return %c0_i32, %c0_i32_0 : i32, i32
  }
  func.func @transform_6(%arg0: i32) -> (i32, i32) {
    %c0_i32 = arith.constant 0 : i32
    %c0_i32_0 = arith.constant 0 : i32
    %c0_i32_1 = arith.constant 0 : i32
    return %c0_i32, %c0_i32_0 : i32, i32
  }
  func.func @transform_7(%arg0: i32) -> (i32, i32) {
    %c0_i32 = arith.constant 0 : i32
    %c0_i32_0 = arith.constant 0 : i32
    %c0_i32_1 = arith.constant 0 : i32
    return %c0_i32, %c0_i32_0 : i32, i32
  }
  func.func @transform_8(%arg0: i32) -> (i32, i32) {
    %c0_i32 = arith.constant 0 : i32
    %c0_i32_0 = arith.constant 0 : i32
    %c0_i32_1 = arith.constant 0 : i32
    return %c0_i32, %c0_i32_0 : i32, i32
  }
  func.func @transform_9(%arg0: i32) -> (i32, i32) {
    %c0_i32 = arith.constant 0 : i32
    %c0_i32_0 = arith.constant 0 : i32
    %c0_i32_1 = arith.constant 0 : i32
    return %c0_i32, %c0_i32_0 : i32, i32
  }
  func.func @transform_10(%arg0: i32) -> (i32, i32) {
    %c0_i32 = arith.constant 0 : i32
    %c0_i32_0 = arith.constant 0 : i32
    %c0_i32_1 = arith.constant 0 : i32
    return %c0_i32, %c0_i32_0 : i32, i32
  }
  func.func @transform_11(%arg0: i32) -> (i32, i32) {
    %c0_i32 = arith.constant 0 : i32
    %c0_i32_0 = arith.constant 0 : i32
    %c0_i32_1 = arith.constant 0 : i32
    return %c0_i32, %c0_i32_0 : i32, i32
  }
  func.func @transform_12(%arg0: i32) -> (i32, i32) {
    %c0_i32 = arith.constant 0 : i32
    %c0_i32_0 = arith.constant 0 : i32
    return %arg0, %c0_i32 : i32, i32
  }
}

</mosaic_0001>

<llo_original>
// kernel: _lambda_.4
$region0: #{_lambda_.4}
  #allocation0 [shape = 'u32[]', space=smem, size = 0x4, offset = 0x4, fixed_abs, tag = 'smem constant byte address 0x4 - core index']
  #allocation1 [shape = 'u32[72,128]{1,0:T(1,128)}', space=vmem, size = 0x9000, scoped, tag = 'internal scratch']
  %s0 = inlined_call_operand.vmem [shape: bf16[2,128,64], index: 0, kind: input, shape index: {}]
  %s1 = inlined_call_operand.vmem [shape: bf16[2,64,128], index: 1, kind: input, shape index: {}]
  %s2 = inlined_call_operand.vmem [shape: f32[2,1,128], index: 2, kind: input, shape index: {}]
  %s3 = inlined_call_operand.vmem [shape: bf16[2,128,128], index: 3, kind: output, shape index: {}]
  %s4 = sld [smem:[#allocation0]]
  $region45: #{_lambda_.4} parent=0
    _
  %s6 = ssub.s32 1, %s4
  %s7 = scalar_select 0, %s6, %s4
  loop: start=0, step=1, limit=4
  $region2: #{_lambda_.4} parent=0 // loop_pre_header
    _
  $region3: #{_lambda_.4} parent=0 // loop_header
    %s9 = sphi 0, %s13
    %p10 = scmp.ge.s32.totalorder %s9, 4
    %s16 = sphi 0, %s28
    %s17 = sphi 0, %s24
    %s18 = sphi 0, %s16
    %s19 = sphi 0, %s17
    %s20 = sphi 0, %s18
    %s21 = sphi 0, %s19
    %s33 = sphi 0, %s35
    %s36 = sphi 0, %s33
    %s37 = sphi 0, %s36
    %s53 = sphi 0, %s37
    %s59 = sphi 0, %s61
    %s62 = sphi 0, %s59
    %s63 = sphi 0, %s62
    %s79 = sphi 0, %s63
    %s85 = sphi 0, %s87
    %s88 = sphi 0, %s85
    %s89 = sphi 0, %s88
    %s105 = sphi 0, %s89
    %s113 = sphi 0, %s115
    %s116 = sphi 0, %s113
    %s117 = sphi 0, %s116
    %s133 = sphi 0, %s117
  $region4: #{_lambda_.4} parent=0 // loop_header_branch
    %12 = sbr.rel (%p10) target = $region8
  $region5: #{_lambda_.4} parent=0 // loop_body
    %s14 = ssub.s32 %s9, 1
    %s15 = ssub.s32 %s9, 2
    %s22 = sadd.s32 1, %s17
    %p23 = scmp.ge.s32.totalorder %s22, 1
    %s24 = scalar_select %p23, 0, %s22
    %s25 = sadd.s32 1, %s16
    %s26 = scalar_select %p23, %s25, %s16
    %p27 = scmp.ge.s32.totalorder %s26, 2
    %s28 = scalar_select %p27, 0, %s26
    %s29 = ssub.s32 %s16, %s28
    %s30 = ssub.s32 %s17, %s24
    %s31 = sor.u32 %s29, %s30
    %p32 = scmp.eq.s32.totalorder %s31, 0
    %s34 = sadd.s32 %s33, 1
    %s35 = scalar_select %p32, %s33, %s34
    %p38 = pneg %p32
    %p39 = scmp.eq.s32.totalorder %s9, 1
    %p40 = por %p38, %p39
    %p41 = scmp.ne.s32.totalorder %s33, %s36
    %p42 = scmp.eq.s32.totalorder %s9, 0
    %p43 = por %p41, %p42
    %p44 = scmp.ne.s32.totalorder %s33, %s36
    %p45 = scmp.eq.s32.totalorder %s14, 1
    %p46 = por %p44, %p45
    %p47 = scmp.ne.s32.totalorder %s36, %s37
    %p48 = scmp.eq.s32.totalorder %s14, 0
    %p49 = por %p47, %p48
    %p50 = scmp.ne.s32.totalorder %s36, %s37
    %p51 = scmp.eq.s32.totalorder %s15, 1
    %p52 = por %p50, %p51
    %p54 = scmp.ne.s32.totalorder %s37, %s53
    %p55 = scmp.eq.s32.totalorder %s15, 0
    %p56 = por %p54, %p55
    %s57 = ssub.s32 %s16, %s28
    %p58 = scmp.eq.s32.totalorder %s57, 0
    %s60 = sadd.s32 %s59, 1
    %s61 = scalar_select %p58, %s59, %s60
    %p64 = pneg %p58
    %p65 = scmp.eq.s32.totalorder %s9, 1
    %p66 = por %p64, %p65
    %p67 = scmp.ne.s32.totalorder %s59, %s62
    %p68 = scmp.eq.s32.totalorder %s9, 0
    %p69 = por %p67, %p68
    %p70 = scmp.ne.s32.totalorder %s59, %s62
    %p71 = scmp.eq.s32.totalorder %s14, 1
    %p72 = por %p70, %p71
    %p73 = scmp.ne.s32.totalorder %s62, %s63
    %p74 = scmp.eq.s32.totalorder %s14, 0
    %p75 = por %p73, %p74
    %p76 = scmp.ne.s32.totalorder %s62, %s63
    %p77 = scmp.eq.s32.totalorder %s15, 1
    %p78 = por %p76, %p77
    %p80 = scmp.ne.s32.totalorder %s63, %s79
    %p81 = scmp.eq.s32.totalorder %s15, 0
    %p82 = por %p80, %p81
    %s83 = ssub.s32 %s16, %s28
    %p84 = scmp.eq.s32.totalorder %s83, 0
    %s86 = sadd.s32 %s85, 1
    %s87 = scalar_select %p84, %s85, %s86
    %p90 = pneg %p84
    %p91 = scmp.eq.s32.totalorder %s9, 1
    %p92 = por %p90, %p91
    %p93 = scmp.ne.s32.totalorder %s85, %s88
    %p94 = scmp.eq.s32.totalorder %s9, 0
    %p95 = por %p93, %p94
    %p96 = scmp.ne.s32.totalorder %s85, %s88
    %p97 = scmp.eq.s32.totalorder %s14, 1
    %p98 = por %p96, %p97
    %p99 = scmp.ne.s32.totalorder %s88, %s89
    %p100 = scmp.eq.s32.totalorder %s14, 0
    %p101 = por %p99, %p100
    %p102 = scmp.ne.s32.totalorder %s88, %s89
    %p103 = scmp.eq.s32.totalorder %s15, 1
    %p104 = por %p102, %p103
    %p106 = scmp.ne.s32.totalorder %s89, %s105
    %p107 = scmp.eq.s32.totalorder %s15, 0
    %p108 = por %p106, %p107
    %s109 = ssub.s32 %s16, %s28
    %s110 = ssub.s32 %s17, %s24
    %s111 = sor.u32 %s109, %s110
    %p112 = scmp.eq.s32.totalorder %s111, 0
    %s114 = sadd.s32 %s113, 1
    %s115 = scalar_select %p112, %s113, %s114
    %p118 = pneg %p112
    %p119 = scmp.eq.s32.totalorder %s9, 1
    %p120 = por %p118, %p119
    %p121 = scmp.ne.s32.totalorder %s113, %s116
    %p122 = scmp.eq.s32.totalorder %s9, 0
    %p123 = por %p121, %p122
    %p124 = scmp.ne.s32.totalorder %s113, %s116
    %p125 = scmp.eq.s32.totalorder %s14, 1
    %p126 = por %p124, %p125
    %p127 = scmp.ne.s32.totalorder %s116, %s117
    %p128 = scmp.eq.s32.totalorder %s14, 0
    %p129 = por %p127, %p128
    %p130 = scmp.ne.s32.totalorder %s116, %s117
    %p131 = scmp.eq.s32.totalorder %s15, 1
    %p132 = por %p130, %p131
    %p134 = scmp.ne.s32.totalorder %s117, %s133
    %p135 = scmp.eq.s32.totalorder %s15, 0
    %p136 = por %p134, %p135
    %p137 = scmp.le.s32.totalorder 1, %s9
    %p138 = scmp.lt.s32.totalorder %s9, 3
    %p139 = pnand %p137, %p138
    %p140 = pneg %p139
    // Predicated region
    $region9: #{_lambda_.4} parent=5 // pred_check
      _
    $region10: #{_lambda_.4} parent=5 // pred_check_branch
      %142 = sbr.rel (%p139) target = $region12
    $region11: #{_lambda_.4} parent=5 // pred_region
      %s143 = ssub.s32 %s9, 1
    $region12: #{_lambda_.4} parent=5 // pred_fallthru
      _
    %p144 = scmp.lt.s32.totalorder %s9, 2
    // Predicated region
    $region13: #{_lambda_.4} parent=5 // pred_check
      %p145 = pneg %p144
    $region14: #{_lambda_.4} parent=5 // pred_check_branch
      %147 = sbr.rel (%p145) target = $region16
    $region15: #{_lambda_.4} parent=5 // pred_region
      // Predicated region
      $region17: #{_lambda_.4} parent=15 // pred_check
        %p148 = pneg %p43
      $region18: #{_lambda_.4} parent=15 // pred_check_branch
        %150 = sbr.rel (%p148) target = $region20
      $region19: #{_lambda_.4} parent=15 // pred_region
        %s151 = smul.u32 16, %s17
        %p152 = scmp.lt.s32.totalorder %s16, 1
        %s153 = scalar_select %p152, %s16, 1
        %p154 = scmp.lt.s32.totalorder %s151, 15
        %s155 = scalar_select %p154, %s151, 15
        %s156 = smul.addr %s153, 16
        %s157 = sadd.s32 %s155, %s156
        %s158 = smul.addr %s157, 4
        %s159 = scalar_lea.vmem %s0, %s158
        %s160 = smul.u32 16, %s17
      $region20: #{_lambda_.4} parent=15 // pred_fallthru
        _
      // Predicated region
      $region21: #{_lambda_.4} parent=15 // pred_check
        %p161 = pneg %p69
      $region22: #{_lambda_.4} parent=15 // pred_check_branch
        %163 = sbr.rel (%p161) target = $region24
      $region23: #{_lambda_.4} parent=15 // pred_region
        %p164 = scmp.lt.s32.totalorder %s16, 1
        %s165 = scalar_select %p164, %s16, 1
        %s166 = smul.addr %s165, 8
        %s167 = smul.addr %s166, 4
        %s168 = scalar_lea.vmem %s1, %s167
      $region24: #{_lambda_.4} parent=15 // pred_fallthru
        _
      // Predicated region
      $region25: #{_lambda_.4} parent=15 // pred_check
        %p169 = pneg %p95
      $region26: #{_lambda_.4} parent=15 // pred_check_branch
        %171 = sbr.rel (%p169) target = $region28
      $region27: #{_lambda_.4} parent=15 // pred_region
        %p172 = scmp.lt.s32.totalorder %s16, 1
        %s173 = scalar_select %p172, %s16, 1
        %s174 = scalar_lea.vmem %s2, %s173
      $region28: #{_lambda_.4} parent=15 // pred_fallthru
        _
    $region16: #{_lambda_.4} parent=5 // pred_fallthru
      _
    %p175 = scmp.le.s32.totalorder 1, %s9
    %p176 = scmp.lt.s32.totalorder %s9, 3
    %p177 = pnand %p175, %p176
    %p178 = pneg %p177
    // Predicated region
    $region29: #{_lambda_.4} parent=5 // pred_check
      _
    $region30: #{_lambda_.4} parent=5 // pred_check_branch
      %180 = sbr.rel (%p177) target = $region32
    $region31: #{_lambda_.4} parent=5 // pred_region
      %s181 = ssub.s32 %s9, 1
      %s182 = smul.u32 16, %s19
      %p183 = scmp.lt.s32.totalorder %s18, 1
      %s184 = scalar_select %p183, %s18, 1
      %p185 = scmp.lt.s32.totalorder %s182, 15
      %s186 = scalar_select %p185, %s182, 15
      %s187 = smul.addr %s184, 16
      %s188 = sadd.s32 %s186, %s187
      %s189 = smul.addr %s188, 4
      %s190 = scalar_lea.vmem %s0, %s189
      %p191 = pneg %p49
      %p192 = pneg %p46
      %p193 = scmp.lt.s32.totalorder %s18, 1
      %s194 = scalar_select %p193, %s18, 1
      %s195 = smul.addr %s194, 8
      %s196 = smul.addr %s195, 4
      %s197 = scalar_lea.vmem %s1, %s196
      %p198 = pneg %p75
      %p199 = pneg %p72
      %p200 = scmp.lt.s32.totalorder %s18, 1
      %s201 = scalar_select %p200, %s18, 1
      %s202 = scalar_lea.vmem %s2, %s201
      %p203 = pneg %p101
      %p204 = pneg %p98
      %p205 = pneg %p129
      %p206 = pneg %p126
      %s207 = smul.u32 16, %s19
      %p208 = scmp.lt.s32.totalorder %s18, 1
      %s209 = scalar_select %p208, %s18, 1
      %p210 = scmp.lt.s32.totalorder %s207, 15
      %s211 = scalar_select %p210, %s207, 15
      %s212 = smul.addr %s209, 16
      %s213 = sadd.s32 %s211, %s212
      %s214 = smul.addr %s213, 4
      %s215 = scalar_lea.vmem %s3, %s214
      %s216 = smul.u32 16, %s19
      %p217 = scmp.lt.s32.totalorder %s18, 1
      %s218 = scalar_select %p217, %s18, 1
      %p219 = scmp.lt.s32.totalorder %s216, 15
      %s220 = scalar_select %p219, %s216, 15
      %s221 = smul.addr %s218, 16
      %s222 = sadd.s32 %s220, %s221
      %s223 = smul.addr %s222, 4
      %s224 = scalar_lea.vmem %s0, %s223
      %s225 = smul.u32 16, %s19
      %p226 = scmp.lt.s32.totalorder %s18, 1
      %s227 = scalar_select %p226, %s18, 1
      %s228 = smul.addr %s227, 8
      %s229 = smul.addr %s228, 4
      %s230 = scalar_lea.vmem %s1, %s229
      %p231 = scmp.lt.s32.totalorder %s18, 1
      %s232 = scalar_select %p231, %s18, 1
      %s233 = scalar_lea.vmem %s2, %s232
      %s234 = smul.u32 16, %s19
      %p235 = scmp.lt.s32.totalorder %s18, 1
      %s236 = scalar_select %p235, %s18, 1
      %p237 = scmp.lt.s32.totalorder %s234, 15
      %s238 = scalar_select %p237, %s234, 15
      %s239 = smul.addr %s236, 16
      %s240 = sadd.s32 %s238, %s239
      %s241 = smul.addr %s240, 4
      %s242 = scalar_lea.vmem %s3, %s241
      %s243 = smul.u32 16, %s19
      %v245 = vld [vmem:[%s224] sm:$0xf]
      %v246 = vld [vmem:[%s224 + $0x4] sm:$0xf]
      %v247 = vld [vmem:[%s224 + $0x8] sm:$0xf]
      %v248 = vld [vmem:[%s224 + $0xc] sm:$0xf]
      %v249 = vld [vmem:[%s224 + $0x10] sm:$0xf]
      %v250 = vld [vmem:[%s224 + $0x14] sm:$0xf]
      %v251 = vld [vmem:[%s224 + $0x18] sm:$0xf]
      %v252 = vld [vmem:[%s224 + $0x1c] sm:$0xf]
      %v253 = vld [vmem:[%s224 + $0x20] sm:$0xf]
      %v254 = vld [vmem:[%s224 + $0x24] sm:$0xf]
      %v255 = vld [vmem:[%s224 + $0x28] sm:$0xf]
      %v256 = vld [vmem:[%s224 + $0x2c] sm:$0xf]
      %v257 = vld [vmem:[%s224 + $0x30] sm:$0xf]
      %v258 = vld [vmem:[%s224 + $0x34] sm:$0xf]
      %v259 = vld [vmem:[%s224 + $0x38] sm:$0xf]
      %v260 = vld [vmem:[%s224 + $0x3c] sm:$0xf]
      %v261 = vld [vmem:[%s230] sm:$0xf]
      %v262 = vld [vmem:[%s230 + $0x4] sm:$0xf]
      %v263 = vld [vmem:[%s230 + $0x8] sm:$0xf]
      %v264 = vld [vmem:[%s230 + $0xc] sm:$0xf]
      %v265 = vld [vmem:[%s230 + $0x10] sm:$0xf]
      %v266 = vld [vmem:[%s230 + $0x14] sm:$0xf]
      %v267 = vld [vmem:[%s230 + $0x18] sm:$0xf]
      %v268 = vld [vmem:[%s230 + $0x1c] sm:$0xf]
      %v269 = vld [vmem:[%s233] sm:$0x1]
      %v271 = vperm.slane %v269, 0
      %v289 = vunpack.c.l.b16 %v245
      %v290 = vunpack.c.l.b16 %v246
      %v291 = vunpack.c.l.b16 %v247
      %v292 = vunpack.c.l.b16 %v248
      %v293 = vunpack.c.l.b16 %v249
      %v294 = vunpack.c.l.b16 %v250
      %v295 = vunpack.c.l.b16 %v251
      %v296 = vunpack.c.l.b16 %v252
      %v297 = vunpack.c.l.b16 %v253
      %v298 = vunpack.c.l.b16 %v254
      %v299 = vunpack.c.l.b16 %v255
      %v300 = vunpack.c.l.b16 %v256
      %v301 = vunpack.c.l.b16 %v257
      %v302 = vunpack.c.l.b16 %v258
      %v303 = vunpack.c.l.b16 %v259
      %v304 = vunpack.c.l.b16 %v260
      %v305 = vpack.c.b16 %v290, %v289
      %v306 = vpack.c.b16 %v292, %v291
      %v307 = vpack.c.b16 %v294, %v293
      %v308 = vpack.c.b16 %v296, %v295
      %v309 = vpack.c.b16 %v298, %v297
      %v310 = vpack.c.b16 %v300, %v299
      %v311 = vpack.c.b16 %v302, %v301
      %v312 = vpack.c.b16 %v304, %v303
      %v321 = vunpack.c.l.b16 %v261
      %v322 = vunpack.c.l.b16 %v262
      %v323 = vunpack.c.l.b16 %v263
      %v324 = vunpack.c.l.b16 %v264
      %v325 = vunpack.c.l.b16 %v265
      %v326 = vunpack.c.l.b16 %v266
      %v327 = vunpack.c.l.b16 %v267
      %v328 = vunpack.c.l.b16 %v268
      %v329 = vpack.c.b16 %v322, %v321
      %v330 = vpack.c.b16 %v324, %v323
      %v331 = vpack.c.b16 %v326, %v325
      %v332 = vpack.c.b16 %v328, %v327
      %vm337 = vcmask 523264
      %v339 = vsel %vm337, %v305, 0
      %v342 = vsel %vm337, %v306, 0
      %v345 = vsel %vm337, %v307, 0
      %v348 = vsel %vm337, %v308, 0
      %v351 = vsel %vm337, %v309, 0
      %v354 = vsel %vm337, %v310, 0
      %v357 = vsel %vm337, %v311, 0
      %v360 = vsel %vm337, %v312, 0
      %362 = vmatpush.bf16.msra.mxu0 0
      %363 = vmatpush.bf16.msra.mxu0 0
      %364 = vmatpush.bf16.msra.mxu0 0
      %365 = vmatpush.bf16.msra.mxu0 0
      %366 = vmatpush.bf16.msra.mxu0 %v332
      %367 = vmatpush.bf16.msra.mxu0 %v331
      %368 = vmatpush.bf16.msra.mxu0 %v330
      %369 = vmatpush.bf16.msra.mxu0 %v329
      %370 = vmatmul.bf16.gmra.mxu0 %v339
      %v371 = vpop.f32.mrf.mxu0
      %v372 = vadd.f32 %v271, %v371
      %v373 = vpop.f32.mrf.mxu0
      %v374 = vadd.f32 %v271, %v373
      %375 = vmatmul.bf16.gmra.mxu0 %v342
      %v376 = vpop.f32.mrf.mxu0
      %v377 = vadd.f32 %v271, %v376
      %v378 = vpop.f32.mrf.mxu0
      %v379 = vadd.f32 %v271, %v378
      %380 = vmatmul.bf16.gmra.mxu0 %v345
      %v381 = vpop.f32.mrf.mxu0
      %v382 = vadd.f32 %v271, %v381
      %v383 = vpop.f32.mrf.mxu0
      %v384 = vadd.f32 %v271, %v383
      %385 = vmatmul.bf16.gmra.mxu0 %v348
      %v386 = vpop.f32.mrf.mxu0
      %v387 = vadd.f32 %v271, %v386
      %v388 = vpop.f32.mrf.mxu0
      %v389 = vadd.f32 %v271, %v388
      %390 = vmatmul.bf16.gmra.mxu0 %v351
      %v391 = vpop.f32.mrf.mxu0
      %v392 = vadd.f32 %v271, %v391
      %v393 = vpop.f32.mrf.mxu0
      %v394 = vadd.f32 %v271, %v393
      %395 = vmatmul.bf16.gmra.mxu0 %v354
      %v396 = vpop.f32.mrf.mxu0
      %v397 = vadd.f32 %v271, %v396
      %v398 = vpop.f32.mrf.mxu0
      %v399 = vadd.f32 %v271, %v398
      %400 = vmatmul.bf16.gmra.mxu0 %v357
      %v401 = vpop.f32.mrf.mxu0
      %v402 = vadd.f32 %v271, %v401
      %v403 = vpop.f32.mrf.mxu0
      %v404 = vadd.f32 %v271, %v403
      %405 = vmatmul.bf16.gmra.mxu0 %v360
      %v406 = vpop.f32.mrf.mxu0
      %v407 = vadd.f32 %v271, %v406
      %v408 = vpop.f32.mrf.mxu0
      %v409 = vadd.f32 %v271, %v408
      %410 = vdwg.mxu0
      %v411 = vmax.f32 %v372, 0.0
      %v412 = vmax.f32 %v374, 0.0
      %v413 = vmax.f32 %v377, 0.0
      %v414 = vmax.f32 %v379, 0.0
      %v415 = vmax.f32 %v382, 0.0
      %v416 = vmax.f32 %v384, 0.0
      %v417 = vmax.f32 %v387, 0.0
      %v418 = vmax.f32 %v389, 0.0
      %v419 = vmax.f32 %v392, 0.0
      %v420 = vmax.f32 %v394, 0.0
      %v421 = vmax.f32 %v397, 0.0
      %v422 = vmax.f32 %v399, 0.0
      %v423 = vmax.f32 %v402, 0.0
      %v424 = vmax.f32 %v404, 0.0
      %v425 = vmax.f32 %v407, 0.0
      %v426 = vmax.f32 %v409, 0.0
      %v427 = vpack.c.bf16 %v411, %v411
      %v428 = vpack.c.bf16 %v412, %v412
      %v429 = vpack.c.bf16 %v413, %v413
      %v430 = vpack.c.bf16 %v414, %v414
      %v431 = vpack.c.bf16 %v415, %v415
      %v432 = vpack.c.bf16 %v416, %v416
      %v433 = vpack.c.bf16 %v417, %v417
      %v434 = vpack.c.bf16 %v418, %v418
      %v435 = vpack.c.bf16 %v419, %v419
      %v436 = vpack.c.bf16 %v420, %v420
      %v437 = vpack.c.bf16 %v421, %v421
      %v438 = vpack.c.bf16 %v422, %v422
      %v439 = vpack.c.bf16 %v423, %v423
      %v440 = vpack.c.bf16 %v424, %v424
      %v441 = vpack.c.bf16 %v425, %v425
      %v442 = vpack.c.bf16 %v426, %v426
      %443 = vst [vmem:[%s242] sm:$0xf] %v427
      %444 = vst [vmem:[%s242 + $0x4] sm:$0xf] %v428
      %445 = vst [vmem:[%s242 + $0x8] sm:$0xf] %v429
      %446 = vst [vmem:[%s242 + $0xc] sm:$0xf] %v430
      %447 = vst [vmem:[%s242 + $0x10] sm:$0xf] %v431
      %448 = vst [vmem:[%s242 + $0x14] sm:$0xf] %v432
      %449 = vst [vmem:[%s242 + $0x18] sm:$0xf] %v433
      %450 = vst [vmem:[%s242 + $0x1c] sm:$0xf] %v434
      %451 = vst [vmem:[%s242 + $0x20] sm:$0xf] %v435
      %452 = vst [vmem:[%s242 + $0x24] sm:$0xf] %v436
      %453 = vst [vmem:[%s242 + $0x28] sm:$0xf] %v437
      %454 = vst [vmem:[%s242 + $0x2c] sm:$0xf] %v438
      %455 = vst [vmem:[%s242 + $0x30] sm:$0xf] %v439
      %456 = vst [vmem:[%s242 + $0x34] sm:$0xf] %v440
      %457 = vst [vmem:[%s242 + $0x38] sm:$0xf] %v441
      %458 = vst [vmem:[%s242 + $0x3c] sm:$0xf] %v442
      %s459 = smul.u32 16, %s19
      %p460 = scmp.lt.s32.totalorder %s18, 1
      %s461 = scalar_select %p460, %s18, 1
      %p462 = scmp.lt.s32.totalorder %s459, 15
      %s463 = scalar_select %p462, %s459, 15
      %s464 = smul.addr %s461, 16
      %s465 = sadd.s32 %s463, %s464
      %s466 = smul.addr %s465, 4
      %s467 = scalar_lea.vmem %s3, %s466
      // Predicated region
      $region33: #{_lambda_.4} parent=31 // pred_check
        %p468 = pneg %p126
      $region34: #{_lambda_.4} parent=31 // pred_check_branch
        %470 = sbr.rel (%p468) target = $region36
      $region35: #{_lambda_.4} parent=31 // pred_region
        %s471 = smul.u32 16, %s19
      $region36: #{_lambda_.4} parent=31 // pred_fallthru
        _
    $region32: #{_lambda_.4} parent=5 // pred_fallthru
      _
    %p472 = scmp.le.s32.totalorder 2, %s9
    // Predicated region
    $region37: #{_lambda_.4} parent=5 // pred_check
      %p473 = pneg %p472
    $region38: #{_lambda_.4} parent=5 // pred_check_branch
      %475 = sbr.rel (%p473) target = $region40
    $region39: #{_lambda_.4} parent=5 // pred_region
      %s476 = ssub.s32 %s9, 2
      // Predicated region
      $region41: #{_lambda_.4} parent=39 // pred_check
        %p477 = pneg %p132
      $region42: #{_lambda_.4} parent=39 // pred_check_branch
        %479 = sbr.rel (%p477) target = $region44
      $region43: #{_lambda_.4} parent=39 // pred_region
        %s480 = smul.u32 16, %s21
        %p481 = scmp.lt.s32.totalorder %s20, 1
        %s482 = scalar_select %p481, %s20, 1
        %p483 = scmp.lt.s32.totalorder %s480, 15
        %s484 = scalar_select %p483, %s480, 15
        %s485 = smul.addr %s482, 16
        %s486 = sadd.s32 %s484, %s485
        %s487 = smul.addr %s486, 4
        %s488 = scalar_lea.vmem %s3, %s487
      $region44: #{_lambda_.4} parent=39 // pred_fallthru
        _
    $region40: #{_lambda_.4} parent=5 // pred_fallthru
      _
  $region6: #{_lambda_.4} parent=0 // loop_footer
    %s13 = sadd.s32 1, %s9
  $region7: #{_lambda_.4} parent=0 // loop_footer_branch
    %8 = sbr.rel target = $region3
  $region8: #{_lambda_.4} parent=0 // loop_exit
    _

// kernel: _lambda_.5
$region0: #{_lambda_.5}
  #allocation0 [shape = 'u32[]', space=smem, size = 0x4, offset = 0x4, fixed_abs, tag = 'smem constant byte address 0x4 - core index']
  #allocation1 [shape = 'u32[72,128]{1,0:T(1,128)}', space=vmem, size = 0x9000, scoped, tag = 'internal scratch']
  #allocation2 [shape = 'f32[1,1]{1,0:T(1,128)S(6)}', space=smem, size = 0x200, scoped, tag = 'scoped memory for _lambda_.5']
  %s0 = inlined_call_operand.vmem [shape: f32[16,32], index: 0, kind: input, shape index: {}]
  %s1 = inlined_call_operand.vmem [shape: bf16[16,256], index: 1, kind: input, shape index: {}]
  %s2 = inlined_call_operand.vmem [shape: bf16[256,128], index: 2, kind: input, shape index: {}]
  %s3 = inlined_call_operand.vmem [shape: bf16[384,32], index: 3, kind: input, shape index: {}]
  %s4 = inlined_call_operand.vmem [shape: f32[1,32], index: 4, kind: input, shape index: {}]
  %s5 = inlined_call_operand.vmem [shape: f32[1,32], index: 5, kind: input, shape index: {}]
  %s6 = inlined_call_operand.vmem [shape: f32[1,32], index: 6, kind: input, shape index: {}]
  %s7 = inlined_call_operand.vmem [shape: bf16[32,64], index: 7, kind: input, shape index: {}]
  %s8 = inlined_call_operand.vmem [shape: f32[1,64], index: 8, kind: input, shape index: {}]
  %s9 = inlined_call_operand.vmem [shape: bf16[64,32], index: 9, kind: input, shape index: {}]
  %s10 = inlined_call_operand.vmem [shape: f32[1,32], index: 10, kind: input, shape index: {}]
  %s11 = inlined_call_operand.<no memory space> [shape: f32[1,1], index: 11, kind: input, shape index: {}]
  %s12 = inlined_call_operand.vmem [shape: f32[16,32], index: 12, kind: output, shape index: {}]
  %s13 = sld [smem:[#allocation0]]
  $region65: #{_lambda_.5} parent=0
    _
  %s15 = ssub.s32 1, %s13
  %s16 = scalar_select 0, %s15, %s13
  %17 = sst [smem:[#allocation2]] %s11
  // Predicated region
  $region2: #{_lambda_.5} parent=0 // pred_check
    _
  $region3: #{_lambda_.5} parent=0 // pred_check_branch
    %19 = sbr.rel (0) target = $region5
  $region4: #{_lambda_.5} parent=0 // pred_region
    _
  $region5: #{_lambda_.5} parent=0 // pred_fallthru
    _
  // Predicated region
  $region6: #{_lambda_.5} parent=0 // pred_check
    _
  $region7: #{_lambda_.5} parent=0 // pred_check_branch
    %21 = sbr.rel (0) target = $region9
  $region8: #{_lambda_.5} parent=0 // pred_region
    _
  $region9: #{_lambda_.5} parent=0 // pred_fallthru
    _
  // Predicated region
  $region10: #{_lambda_.5} parent=0 // pred_check
    _
  $region11: #{_lambda_.5} parent=0 // pred_check_branch
    %23 = sbr.rel (0) target = $region13
  $region12: #{_lambda_.5} parent=0 // pred_region
    _
  $region13: #{_lambda_.5} parent=0 // pred_fallthru
    _
  // Predicated region
  $region14: #{_lambda_.5} parent=0 // pred_check
    _
  $region15: #{_lambda_.5} parent=0 // pred_check_branch
    %25 = sbr.rel (0) target = $region17
  $region16: #{_lambda_.5} parent=0 // pred_region
    _
  $region17: #{_lambda_.5} parent=0 // pred_fallthru
    _
  // Predicated region
  $region18: #{_lambda_.5} parent=0 // pred_check
    _
  $region19: #{_lambda_.5} parent=0 // pred_check_branch
    %27 = sbr.rel (0) target = $region21
  $region20: #{_lambda_.5} parent=0 // pred_region
    _
  $region21: #{_lambda_.5} parent=0 // pred_fallthru
    _
  // Predicated region
  $region22: #{_lambda_.5} parent=0 // pred_check
    _
  $region23: #{_lambda_.5} parent=0 // pred_check_branch
    %29 = sbr.rel (0) target = $region25
  $region24: #{_lambda_.5} parent=0 // pred_region
    _
  $region25: #{_lambda_.5} parent=0 // pred_fallthru
    _
  // Predicated region
  $region26: #{_lambda_.5} parent=0 // pred_check
    _
  $region27: #{_lambda_.5} parent=0 // pred_check_branch
    %31 = sbr.rel (0) target = $region29
  $region28: #{_lambda_.5} parent=0 // pred_region
    _
  $region29: #{_lambda_.5} parent=0 // pred_fallthru
    _
  // Predicated region
  $region30: #{_lambda_.5} parent=0 // pred_check
    _
  $region31: #{_lambda_.5} parent=0 // pred_check_branch
    %33 = sbr.rel (0) target = $region33
  $region32: #{_lambda_.5} parent=0 // pred_region
    _
  $region33: #{_lambda_.5} parent=0 // pred_fallthru
    _
  // Predicated region
  $region34: #{_lambda_.5} parent=0 // pred_check
    _
  $region35: #{_lambda_.5} parent=0 // pred_check_branch
    %35 = sbr.rel (0) target = $region37
  $region36: #{_lambda_.5} parent=0 // pred_region
    _
  $region37: #{_lambda_.5} parent=0 // pred_fallthru
    _
  // Predicated region
  $region38: #{_lambda_.5} parent=0 // pred_check
    _
  $region39: #{_lambda_.5} parent=0 // pred_check_branch
    %37 = sbr.rel (0) target = $region41
  $region40: #{_lambda_.5} parent=0 // pred_region
    _
  $region41: #{_lambda_.5} parent=0 // pred_fallthru
    _
  // Predicated region
  $region42: #{_lambda_.5} parent=0 // pred_check
    _
  $region43: #{_lambda_.5} parent=0 // pred_check_branch
    %39 = sbr.rel (0) target = $region45
  $region44: #{_lambda_.5} parent=0 // pred_region
    _
  $region45: #{_lambda_.5} parent=0 // pred_fallthru
    _
  // Predicated region
  $region46: #{_lambda_.5} parent=0 // pred_check
    _
  $region47: #{_lambda_.5} parent=0 // pred_check_branch
    %41 = sbr.rel (0) target = $region49
  $region48: #{_lambda_.5} parent=0 // pred_region
    _
  $region49: #{_lambda_.5} parent=0 // pred_fallthru
    _
  %s43 = sld [smem:[#allocation2]]
  %v44 = vld [vmem:[%s1] sm:$0xff]
  %v45 = vld [vmem:[%s1 + $0x8] sm:$0xff]
  %v46 = vld [vmem:[%s2] sm:$0xf]
  %v47 = vld [vmem:[%s2 + $0x4] sm:$0xf]
  %v48 = vld [vmem:[%s2 + $0x8] sm:$0xf]
  %v49 = vld [vmem:[%s2 + $0xc] sm:$0xf]
  %v50 = vld [vmem:[%s2 + $0x10] sm:$0xf]
  %v51 = vld [vmem:[%s2 + $0x14] sm:$0xf]
  %v52 = vld [vmem:[%s2 + $0x18] sm:$0xf]
  %v53 = vld [vmem:[%s2 + $0x1c] sm:$0xf]
  %v54 = vld [vmem:[%s2 + $0x20] sm:$0xf]
  %v55 = vld [vmem:[%s2 + $0x24] sm:$0xf]
  %v56 = vld [vmem:[%s2 + $0x28] sm:$0xf]
  %v57 = vld [vmem:[%s2 + $0x2c] sm:$0xf]
  %v58 = vld [vmem:[%s2 + $0x30] sm:$0xf]
  %v59 = vld [vmem:[%s2 + $0x34] sm:$0xf]
  %v60 = vld [vmem:[%s2 + $0x38] sm:$0xf]
  %v61 = vld [vmem:[%s2 + $0x3c] sm:$0xf]
  %v62 = vld [vmem:[%s2 + $0x40] sm:$0xf]
  %v63 = vld [vmem:[%s2 + $0x44] sm:$0xf]
  %v64 = vld [vmem:[%s2 + $0x48] sm:$0xf]
  %v65 = vld [vmem:[%s2 + $0x4c] sm:$0xf]
  %v66 = vld [vmem:[%s2 + $0x50] sm:$0xf]
  %v67 = vld [vmem:[%s2 + $0x54] sm:$0xf]
  %v68 = vld [vmem:[%s2 + $0x58] sm:$0xf]
  %v69 = vld [vmem:[%s2 + $0x5c] sm:$0xf]
  %v70 = vld [vmem:[%s2 + $0x60] sm:$0xf]
  %v71 = vld [vmem:[%s2 + $0x64] sm:$0xf]
  %v72 = vld [vmem:[%s2 + $0x68] sm:$0xf]
  %v73 = vld [vmem:[%s2 + $0x6c] sm:$0xf]
  %v74 = vld [vmem:[%s2 + $0x70] sm:$0xf]
  %v75 = vld [vmem:[%s2 + $0x74] sm:$0xf]
  %v76 = vld [vmem:[%s2 + $0x78] sm:$0xf]
  %v77 = vld [vmem:[%s2 + $0x7c] sm:$0xf]
  %v80 = vunpack.c.l.b16 %v44
  %v81 = vunpack.c.h.b16 %v44
  %v82 = vunpack.c.l.b16 %v45
  %v83 = vunpack.c.h.b16 %v45
  %v84 = vpack.c.b16 %v82, %v80
  %v85 = vpack.c.b16 %v83, %v81
  %v120 = vunpack.c.l.b16 %v46
  %v121 = vunpack.c.l.b16 %v47
  %v122 = vunpack.c.l.b16 %v48
  %v123 = vunpack.c.l.b16 %v49
  %v124 = vunpack.c.l.b16 %v50
  %v125 = vunpack.c.l.b16 %v51
  %v126 = vunpack.c.l.b16 %v52
  %v127 = vunpack.c.l.b16 %v53
  %v128 = vunpack.c.l.b16 %v54
  %v129 = vunpack.c.l.b16 %v55
  %v130 = vunpack.c.l.b16 %v56
  %v131 = vunpack.c.l.b16 %v57
  %v132 = vunpack.c.l.b16 %v58
  %v133 = vunpack.c.l.b16 %v59
  %v134 = vunpack.c.l.b16 %v60
  %v135 = vunpack.c.l.b16 %v61
  %v136 = vunpack.c.l.b16 %v62
  %v137 = vunpack.c.l.b16 %v63
  %v138 = vunpack.c.l.b16 %v64
  %v139 = vunpack.c.l.b16 %v65
  %v140 = vunpack.c.l.b16 %v66
  %v141 = vunpack.c.l.b16 %v67
  %v142 = vunpack.c.l.b16 %v68
  %v143 = vunpack.c.l.b16 %v69
  %v144 = vunpack.c.l.b16 %v70
  %v145 = vunpack.c.l.b16 %v71
  %v146 = vunpack.c.l.b16 %v72
  %v147 = vunpack.c.l.b16 %v73
  %v148 = vunpack.c.l.b16 %v74
  %v149 = vunpack.c.l.b16 %v75
  %v150 = vunpack.c.l.b16 %v76
  %v151 = vunpack.c.l.b16 %v77
  %v152 = vpack.c.b16 %v121, %v120
  %v153 = vpack.c.b16 %v123, %v122
  %v154 = vpack.c.b16 %v125, %v124
  %v155 = vpack.c.b16 %v127, %v126
  %v156 = vpack.c.b16 %v129, %v128
  %v157 = vpack.c.b16 %v131, %v130
  %v158 = vpack.c.b16 %v133, %v132
  %v159 = vpack.c.b16 %v135, %v134
  %v160 = vpack.c.b16 %v137, %v136
  %v161 = vpack.c.b16 %v139, %v138
  %v162 = vpack.c.b16 %v141, %v140
  %v163 = vpack.c.b16 %v143, %v142
  %v164 = vpack.c.b16 %v145, %v144
  %v165 = vpack.c.b16 %v147, %v146
  %v166 = vpack.c.b16 %v149, %v148
  %v167 = vpack.c.b16 %v151, %v150
  %184 = vmatpush.bf16.msra.mxu0 %v159
  %185 = vmatpush.bf16.msra.mxu0 %v158
  %186 = vmatpush.bf16.msra.mxu0 %v157
  %187 = vmatpush.bf16.msra.mxu0 %v156
  %188 = vmatpush.bf16.msra.mxu0 %v155
  %189 = vmatpush.bf16.msra.mxu0 %v154
  %190 = vmatpush.bf16.msra.mxu0 %v153
  %191 = vmatpush.bf16.msra.mxu0 %v152
  %192 = vmatmul.bf16.gmra.mxu0 %v84
  %v193 = vpop.f32.mrf.mxu0
  %v194 = vadd.f32 0.0, %v193
  %v195 = vpop.f32.mrf.mxu0
  %v196 = vadd.f32 0.0, %v195
  %197 = vdwg.mxu0
  %198 = vmatpush.bf16.msra.mxu0 %v167
  %199 = vmatpush.bf16.msra.mxu0 %v166
  %200 = vmatpush.bf16.msra.mxu0 %v165
  %201 = vmatpush.bf16.msra.mxu0 %v164
  %202 = vmatpush.bf16.msra.mxu0 %v163
  %203 = vmatpush.bf16.msra.mxu0 %v162
  %204 = vmatpush.bf16.msra.mxu0 %v161
  %205 = vmatpush.bf16.msra.mxu0 %v160
  %206 = vmatmul.bf16.gmra.mxu0 %v85
  %v207 = vpop.f32.mrf.mxu0
  %v208 = vadd.f32 %v194, %v207
  %v209 = vpop.f32.mrf.mxu0
  %v210 = vadd.f32 %v196, %v209
  %211 = vdwg.mxu0
  %v212 = vmax.f32 %v208, 1.0
  %v213 = vmax.f32 %v210, 1.0
  %215 = vset.pattern.permute.xlu0 96
  %216 = vperm.xlu0 %215, %v212
  %v217 = vpop.permute.xlu0 %216
  %220 = vset.pattern.permute.xlu0 96
  %221 = vperm.xlu0 %220, %v213
  %v222 = vpop.permute.xlu0 %221
  %v224 = vrcp.pop %v217
  %v225 = vmul.f32 %v217, %v224
  %v226 = vsub.f32 1.0, %v225
  %v227 = vmul.f32 %v224, %v226
  %v228 = vadd.f32 %v224, %v227
  %vm229 = vweird.f32 %v217
  %vm230 = vweird.f32 %v224
  %vm231 = vmor %vm229, %vm230
  %v232 = vsel %vm231, %v224, %v228
  %v233 = vand.u32 2147483647, %v217
  %vm234 = vcmp.eq.f32.partialorder %v233, 8.507059e+37
  %v235 = vand.u32 %v217, 2147483648
  %v236 = vor.u32 1.1754944e-38, %v235
  %v237 = vsel %vm234, %v236, %v232
  %v238 = vmul.f32 %v208, %v237
  %v239 = vrcp.pop %v222
  %v240 = vmul.f32 %v222, %v239
  %v241 = vsub.f32 1.0, %v240
  %v242 = vmul.f32 %v239, %v241
  %v243 = vadd.f32 %v239, %v242
  %vm244 = vweird.f32 %v222
  %vm245 = vweird.f32 %v239
  %vm246 = vmor %vm244, %vm245
  %v247 = vsel %vm246, %v239, %v243
  %v248 = vand.u32 2147483647, %v222
  %vm249 = vcmp.eq.f32.partialorder %v248, 8.507059e+37
  %v250 = vand.u32 %v222, 2147483648
  %v251 = vor.u32 1.1754944e-38, %v250
  %v252 = vsel %vm249, %v251, %v247
  %v253 = vmul.f32 %v210, %v252
  %v254 = vunpack.c.l.bf16 %v44
  %v255 = vunpack.c.h.bf16 %v44
  %v256 = vunpack.c.l.bf16 %v45
  %v257 = vunpack.c.h.bf16 %v45
  %258 = vxpose.xlu0.b32.start [1/16] %v254, 128
  %259 = vxpose.xlu0.b32.cont [2/16] %v256, 128
  %260 = vxpose.xlu0.b32.cont [3/16] 0.0, 128
  %261 = vxpose.xlu0.b32.cont [4/16] 0.0, 128
  %262 = vxpose.xlu0.b32.cont [5/16] 0.0, 128
  %263 = vxpose.xlu0.b32.cont [6/16] 0.0, 128
  %264 = vxpose.xlu0.b32.cont [7/16] 0.0, 128
  %265 = vxpose.xlu0.b32.cont [8/16] 0.0, 128
  %266 = vxpose.xlu0.b32.cont [9/16] 0.0, 128
  %267 = vxpose.xlu0.b32.cont [10/16] 0.0, 128
  %268 = vxpose.xlu0.b32.cont [11/16] 0.0, 128
  %269 = vxpose.xlu0.b32.cont [12/16] 0.0, 128
  %270 = vxpose.xlu0.b32.cont [13/16] 0.0, 128
  %271 = vxpose.xlu0.b32.cont [14/16] 0.0, 128
  %272 = vxpose.xlu0.b32.cont [15/16] 0.0, 128
  %273 = vxpose.xlu0.b32.end [16/16] 0.0, 128
  %v274 = vpop.trf.xlu0
  %v275 = vpop.trf.xlu0
  %v276 = vpop.trf.xlu0
  %v277 = vpop.trf.xlu0
  %v278 = vpop.trf.xlu0
  %v279 = vpop.trf.xlu0
  %v280 = vpop.trf.xlu0
  %v281 = vpop.trf.xlu0
  %v282 = vpop.trf.xlu0
  %v283 = vpop.trf.xlu0
  %v284 = vpop.trf.xlu0
  %v285 = vpop.trf.xlu0
  %v286 = vpop.trf.xlu0
  %v287 = vpop.trf.xlu0
  %v288 = vpop.trf.xlu0
  %v289 = vpop.trf.xlu0
  %290 = vxpose.xlu0.b32.start [1/16] %v255, 128
  %291 = vxpose.xlu0.b32.cont [2/16] %v257, 128
  %292 = vxpose.xlu0.b32.cont [3/16] 0.0, 128
  %293 = vxpose.xlu0.b32.cont [4/16] 0.0, 128
  %294 = vxpose.xlu0.b32.cont [5/16] 0.0, 128
  %295 = vxpose.xlu0.b32.cont [6/16] 0.0, 128
  %296 = vxpose.xlu0.b32.cont [7/16] 0.0, 128
  %297 = vxpose.xlu0.b32.cont [8/16] 0.0, 128
  %298 = vxpose.xlu0.b32.cont [9/16] 0.0, 128
  %299 = vxpose.xlu0.b32.cont [10/16] 0.0, 128
  %300 = vxpose.xlu0.b32.cont [11/16] 0.0, 128
  %301 = vxpose.xlu0.b32.cont [12/16] 0.0, 128
  %302 = vxpose.xlu0.b32.cont [13/16] 0.0, 128
  %303 = vxpose.xlu0.b32.cont [14/16] 0.0, 128
  %304 = vxpose.xlu0.b32.cont [15/16] 0.0, 128
  %305 = vxpose.xlu0.b32.end [16/16] 0.0, 128
  %v306 = vpop.trf.xlu0
  %v307 = vpop.trf.xlu0
  %v308 = vpop.trf.xlu0
  %v309 = vpop.trf.xlu0
  %v310 = vpop.trf.xlu0
  %v311 = vpop.trf.xlu0
  %v312 = vpop.trf.xlu0
  %v313 = vpop.trf.xlu0
  %v314 = vpop.trf.xlu0
  %v315 = vpop.trf.xlu0
  %v316 = vpop.trf.xlu0
  %v317 = vpop.trf.xlu0
  %v318 = vpop.trf.xlu0
  %v319 = vpop.trf.xlu0
  %v320 = vpop.trf.xlu0
  %v321 = vpop.trf.xlu0
  %324 = vrot.lane.b32.xlu0 %v238, 96
  %v325 = vpop.permute.xlu0 %324
  %326 = vrot.lane.b32.xlu0 %v253, 96
  %v327 = vpop.permute.xlu0 %326
  %vm330 = vcmask 130048
  %v332 = vsel %vm330, %v274, 0
  %v335 = vsel %vm330, %v275, 0
  %v338 = vsel %vm330, %v276, 0
  %v341 = vsel %vm330, %v277, 0
  %v344 = vsel %vm330, %v278, 0
  %v347 = vsel %vm330, %v279, 0
  %v350 = vsel %vm330, %v280, 0
  %v353 = vsel %vm330, %v281, 0
  %v356 = vsel %vm330, %v282, 0
  %v359 = vsel %vm330, %v283, 0
  %v362 = vsel %vm330, %v284, 0
  %v365 = vsel %vm330, %v285, 0
  %v368 = vsel %vm330, %v286, 0
  %v371 = vsel %vm330, %v287, 0
  %v374 = vsel %vm330, %v288, 0
  %v377 = vsel %vm330, %v289, 0
  %v380 = vsel %vm330, %v306, 0
  %v383 = vsel %vm330, %v307, 0
  %v386 = vsel %vm330, %v308, 0
  %v389 = vsel %vm330, %v309, 0
  %v392 = vsel %vm330, %v310, 0
  %v395 = vsel %vm330, %v311, 0
  %v398 = vsel %vm330, %v312, 0
  %v401 = vsel %vm330, %v313, 0
  %v404 = vsel %vm330, %v314, 0
  %v407 = vsel %vm330, %v315, 0
  %v410 = vsel %vm330, %v316, 0
  %v413 = vsel %vm330, %v317, 0
  %v416 = vsel %vm330, %v318, 0
  %v419 = vsel %vm330, %v319, 0
  %v422 = vsel %vm330, %v320, 0
  %v425 = vsel %vm330, %v321, 0
  %427 = vmatpush.msra.mxu0 0.0
  %428 = vmatpush.msra.mxu0 0.0
  %429 = vmatpush.msra.mxu0 0.0
  %430 = vmatpush.msra.mxu0 0.0
  %431 = vmatpush.msra.mxu0 0.0
  %432 = vmatpush.msra.mxu0 0.0
  %433 = vmatpush.msra.mxu0 0.0
  %434 = vmatpush.msra.mxu0 0.0
  %435 = vmatpush.msra.mxu0 0.0
  %436 = vmatpush.msra.mxu0 0.0
  %437 = vmatpush.msra.mxu0 0.0
  %438 = vmatpush.msra.mxu0 0.0
  %439 = vmatpush.msra.mxu0 0.0
  %440 = vmatpush.msra.mxu0 0.0
  %441 = vmatpush.msra.mxu0 %v327
  %442 = vmatpush.msra.mxu0 %v325
  %443 = vmatmul.f32.gmra.mxu0 %v332
  %v444 = vpop.f32.mrf.mxu0
  %v445 = vadd.f32 0.0, %v444
  %446 = vmatmul.f32.gmra.mxu0 %v335
  %v447 = vpop.f32.mrf.mxu0
  %v448 = vadd.f32 0.0, %v447
  %449 = vmatmul.f32.gmra.mxu0 %v338
  %v450 = vpop.f32.mrf.mxu0
  %v451 = vadd.f32 0.0, %v450
  %452 = vmatmul.f32.gmra.mxu0 %v341
  %v453 = vpop.f32.mrf.mxu0
  %v454 = vadd.f32 0.0, %v453
  %455 = vmatmul.f32.gmra.mxu0 %v344
  %v456 = vpop.f32.mrf.mxu0
  %v457 = vadd.f32 0.0, %v456
  %458 = vmatmul.f32.gmra.mxu0 %v347
  %v459 = vpop.f32.mrf.mxu0
  %v460 = vadd.f32 0.0, %v459
  %461 = vmatmul.f32.gmra.mxu0 %v350
  %v462 = vpop.f32.mrf.mxu0
  %v463 = vadd.f32 0.0, %v462
  %464 = vmatmul.f32.gmra.mxu0 %v353
  %v465 = vpop.f32.mrf.mxu0
  %v466 = vadd.f32 0.0, %v465
  %467 = vmatmul.f32.gmra.mxu0 %v356
  %v468 = vpop.f32.mrf.mxu0
  %v469 = vadd.f32 0.0, %v468
  %470 = vmatmul.f32.gmra.mxu0 %v359
  %v471 = vpop.f32.mrf.mxu0
  %v472 = vadd.f32 0.0, %v471
  %473 = vmatmul.f32.gmra.mxu0 %v362
  %v474 = vpop.f32.mrf.mxu0
  %v475 = vadd.f32 0.0, %v474
  %476 = vmatmul.f32.gmra.mxu0 %v365
  %v477 = vpop.f32.mrf.mxu0
  %v478 = vadd.f32 0.0, %v477
  %479 = vmatmul.f32.gmra.mxu0 %v368
  %v480 = vpop.f32.mrf.mxu0
  %v481 = vadd.f32 0.0, %v480
  %482 = vmatmul.f32.gmra.mxu0 %v371
  %v483 = vpop.f32.mrf.mxu0
  %v484 = vadd.f32 0.0, %v483
  %485 = vmatmul.f32.gmra.mxu0 %v374
  %v486 = vpop.f32.mrf.mxu0
  %v487 = vadd.f32 0.0, %v486
  %488 = vmatmul.f32.gmra.mxu0 %v377
  %v489 = vpop.f32.mrf.mxu0
  %v490 = vadd.f32 0.0, %v489
  %491 = vmatmul.f32.gmra.mxu0 %v380
  %v492 = vpop.f32.mrf.mxu0
  %v493 = vadd.f32 0.0, %v492
  %494 = vmatmul.f32.gmra.mxu0 %v383
  %v495 = vpop.f32.mrf.mxu0
  %v496 = vadd.f32 0.0, %v495
  %497 = vmatmul.f32.gmra.mxu0 %v386
  %v498 = vpop.f32.mrf.mxu0
  %v499 = vadd.f32 0.0, %v498
  %500 = vmatmul.f32.gmra.mxu0 %v389
  %v501 = vpop.f32.mrf.mxu0
  %v502 = vadd.f32 0.0, %v501
  %503 = vmatmul.f32.gmra.mxu0 %v392
  %v504 = vpop.f32.mrf.mxu0
  %v505 = vadd.f32 0.0, %v504
  %506 = vmatmul.f32.gmra.mxu0 %v395
  %v507 = vpop.f32.mrf.mxu0
  %v508 = vadd.f32 0.0, %v507
  %509 = vmatmul.f32.gmra.mxu0 %v398
  %v510 = vpop.f32.mrf.mxu0
  %v511 = vadd.f32 0.0, %v510
  %512 = vmatmul.f32.gmra.mxu0 %v401
  %v513 = vpop.f32.mrf.mxu0
  %v514 = vadd.f32 0.0, %v513
  %515 = vmatmul.f32.gmra.mxu0 %v404
  %v516 = vpop.f32.mrf.mxu0
  %v517 = vadd.f32 0.0, %v516
  %518 = vmatmul.f32.gmra.mxu0 %v407
  %v519 = vpop.f32.mrf.mxu0
  %v520 = vadd.f32 0.0, %v519
  %521 = vmatmul.f32.gmra.mxu0 %v410
  %v522 = vpop.f32.mrf.mxu0
  %v523 = vadd.f32 0.0, %v522
  %524 = vmatmul.f32.gmra.mxu0 %v413
  %v525 = vpop.f32.mrf.mxu0
  %v526 = vadd.f32 0.0, %v525
  %527 = vmatmul.f32.gmra.mxu0 %v416
  %v528 = vpop.f32.mrf.mxu0
  %v529 = vadd.f32 0.0, %v528
  %530 = vmatmul.f32.gmra.mxu0 %v419
  %v531 = vpop.f32.mrf.mxu0
  %v532 = vadd.f32 0.0, %v531
  %533 = vmatmul.f32.gmra.mxu0 %v422
  %v534 = vpop.f32.mrf.mxu0
  %v535 = vadd.f32 0.0, %v534
  %536 = vmatmul.f32.gmra.mxu0 %v425
  %v537 = vpop.f32.mrf.mxu0
  %v538 = vadd.f32 0.0, %v537
  %539 = vdwg.mxu0
  %v540 = vunpack.c.l.bf16 %v46
  %v541 = vunpack.c.l.bf16 %v47
  %v542 = vunpack.c.l.bf16 %v48
  %v543 = vunpack.c.l.bf16 %v49
  %v544 = vunpack.c.l.bf16 %v50
  %v545 = vunpack.c.l.bf16 %v51
  %v546 = vunpack.c.l.bf16 %v52
  %v547 = vunpack.c.l.bf16 %v53
  %v548 = vunpack.c.l.bf16 %v54
  %v549 = vunpack.c.l.bf16 %v55
  %v550 = vunpack.c.l.bf16 %v56
  %v551 = vunpack.c.l.bf16 %v57
  %v552 = vunpack.c.l.bf16 %v58
  %v553 = vunpack.c.l.bf16 %v59
  %v554 = vunpack.c.l.bf16 %v60
  %v555 = vunpack.c.l.bf16 %v61
  %v556 = vunpack.c.l.bf16 %v62
  %v557 = vunpack.c.l.bf16 %v63
  %v558 = vunpack.c.l.bf16 %v64
  %v559 = vunpack.c.l.bf16 %v65
  %v560 = vunpack.c.l.bf16 %v66
  %v561 = vunpack.c.l.bf16 %v67
  %v562 = vunpack.c.l.bf16 %v68
  %v563 = vunpack.c.l.bf16 %v69
  %v564 = vunpack.c.l.bf16 %v70
  %v565 = vunpack.c.l.bf16 %v71
  %v566 = vunpack.c.l.bf16 %v72
  %v567 = vunpack.c.l.bf16 %v73
  %v568 = vunpack.c.l.bf16 %v74
  %v569 = vunpack.c.l.bf16 %v75
  %v570 = vunpack.c.l.bf16 %v76
  %v571 = vunpack.c.l.bf16 %v77
  %v572 = vmul.f32 %v540, %v540
  %v573 = vmul.f32 %v541, %v541
  %v574 = vmul.f32 %v542, %v542
  %v575 = vmul.f32 %v543, %v543
  %v576 = vmul.f32 %v544, %v544
  %v577 = vmul.f32 %v545, %v545
  %v578 = vmul.f32 %v546, %v546
  %v579 = vmul.f32 %v547, %v547
  %v580 = vmul.f32 %v548, %v548
  %v581 = vmul.f32 %v549, %v549
  %v582 = vmul.f32 %v550, %v550
  %v583 = vmul.f32 %v551, %v551
  %v584 = vmul.f32 %v552, %v552
  %v585 = vmul.f32 %v553, %v553
  %v586 = vmul.f32 %v554, %v554
  %v587 = vmul.f32 %v555, %v555
  %v588 = vmul.f32 %v556, %v556
  %v589 = vmul.f32 %v557, %v557
  %v590 = vmul.f32 %v558, %v558
  %v591 = vmul.f32 %v559, %v559
  %v592 = vmul.f32 %v560, %v560
  %v593 = vmul.f32 %v561, %v561
  %v594 = vmul.f32 %v562, %v562
  %v595 = vmul.f32 %v563, %v563
  %v596 = vmul.f32 %v564, %v564
  %v597 = vmul.f32 %v565, %v565
  %v598 = vmul.f32 %v566, %v566
  %v599 = vmul.f32 %v567, %v567
  %v600 = vmul.f32 %v568, %v568
  %v601 = vmul.f32 %v569, %v569
  %v602 = vmul.f32 %v570, %v570
  %v603 = vmul.f32 %v571, %v571
  %v604 = vmul.f32 %v445, %v445
  %v605 = vmul.f32 %v448, %v448
  %v606 = vmul.f32 %v451, %v451
  %v607 = vmul.f32 %v454, %v454
  %v608 = vmul.f32 %v457, %v457
  %v609 = vmul.f32 %v460, %v460
  %v610 = vmul.f32 %v463, %v463
  %v611 = vmul.f32 %v466, %v466
  %v612 = vmul.f32 %v469, %v469
  %v613 = vmul.f32 %v472, %v472
  %v614 = vmul.f32 %v475, %v475
  %v615 = vmul.f32 %v478, %v478
  %v616 = vmul.f32 %v481, %v481
  %v617 = vmul.f32 %v484, %v484
  %v618 = vmul.f32 %v487, %v487
  %v619 = vmul.f32 %v490, %v490
  %v620 = vmul.f32 %v493, %v493
  %v621 = vmul.f32 %v496, %v496
  %v622 = vmul.f32 %v499, %v499
  %v623 = vmul.f32 %v502, %v502
  %v624 = vmul.f32 %v505, %v505
  %v625 = vmul.f32 %v508, %v508
  %v626 = vmul.f32 %v511, %v511
  %v627 = vmul.f32 %v514, %v514
  %v628 = vmul.f32 %v517, %v517
  %v629 = vmul.f32 %v520, %v520
  %v630 = vmul.f32 %v523, %v523
  %v631 = vmul.f32 %v526, %v526
  %v632 = vmul.f32 %v529, %v529
  %v633 = vmul.f32 %v532, %v532
  %v634 = vmul.f32 %v535, %v535
  %v635 = vmul.f32 %v538, %v538
  %668 = vrot.lane.b32.xlu0 %v604, 32
  %v669 = vpop.permute.xlu0 %668
  %670 = vrot.lane.b32.xlu0 %v605, 32
  %v671 = vpop.permute.xlu0 %670
  %672 = vrot.lane.b32.xlu0 %v606, 32
  %v673 = vpop.permute.xlu0 %672
  %674 = vrot.lane.b32.xlu0 %v607, 32
  %v675 = vpop.permute.xlu0 %674
  %676 = vrot.lane.b32.xlu0 %v608, 32
  %v677 = vpop.permute.xlu0 %676
  %678 = vrot.lane.b32.xlu0 %v609, 32
  %v679 = vpop.permute.xlu0 %678
  %680 = vrot.lane.b32.xlu0 %v610, 32
  %v681 = vpop.permute.xlu0 %680
  %682 = vrot.lane.b32.xlu0 %v611, 32
  %v683 = vpop.permute.xlu0 %682
  %684 = vrot.lane.b32.xlu0 %v612, 32
  %v685 = vpop.permute.xlu0 %684
  %686 = vrot.lane.b32.xlu0 %v613, 32
  %v687 = vpop.permute.xlu0 %686
  %688 = vrot.lane.b32.xlu0 %v614, 32
  %v689 = vpop.permute.xlu0 %688
  %690 = vrot.lane.b32.xlu0 %v615, 32
  %v691 = vpop.permute.xlu0 %690
  %692 = vrot.lane.b32.xlu0 %v616, 32
  %v693 = vpop.permute.xlu0 %692
  %694 = vrot.lane.b32.xlu0 %v617, 32
  %v695 = vpop.permute.xlu0 %694
  %696 = vrot.lane.b32.xlu0 %v618, 32
  %v697 = vpop.permute.xlu0 %696
  %698 = vrot.lane.b32.xlu0 %v619, 32
  %v699 = vpop.permute.xlu0 %698
  %700 = vrot.lane.b32.xlu0 %v620, 32
  %v701 = vpop.permute.xlu0 %700
  %702 = vrot.lane.b32.xlu0 %v621, 32
  %v703 = vpop.permute.xlu0 %702
  %704 = vrot.lane.b32.xlu0 %v622, 32
  %v705 = vpop.permute.xlu0 %704
  %706 = vrot.lane.b32.xlu0 %v623, 32
  %v707 = vpop.permute.xlu0 %706
  %708 = vrot.lane.b32.xlu0 %v624, 32
  %v709 = vpop.permute.xlu0 %708
  %710 = vrot.lane.b32.xlu0 %v625, 32
  %v711 = vpop.permute.xlu0 %710
  %712 = vrot.lane.b32.xlu0 %v626, 32
  %v713 = vpop.permute.xlu0 %712
  %714 = vrot.lane.b32.xlu0 %v627, 32
  %v715 = vpop.permute.xlu0 %714
  %716 = vrot.lane.b32.xlu0 %v628, 32
  %v717 = vpop.permute.xlu0 %716
  %718 = vrot.lane.b32.xlu0 %v629, 32
  %v719 = vpop.permute.xlu0 %718
  %720 = vrot.lane.b32.xlu0 %v630, 32
  %v721 = vpop.permute.xlu0 %720
  %722 = vrot.lane.b32.xlu0 %v631, 32
  %v723 = vpop.permute.xlu0 %722
  %724 = vrot.lane.b32.xlu0 %v632, 32
  %v725 = vpop.permute.xlu0 %724
  %726 = vrot.lane.b32.xlu0 %v633, 32
  %v727 = vpop.permute.xlu0 %726
  %728 = vrot.lane.b32.xlu0 %v634, 32
  %v729 = vpop.permute.xlu0 %728
  %730 = vrot.lane.b32.xlu0 %v635, 32
  %v731 = vpop.permute.xlu0 %730
  %v764 = vsub.f32 %v572, %v669
  %v765 = vsub.f32 %v573, %v671
  %v766 = vsub.f32 %v574, %v673
  %v767 = vsub.f32 %v575, %v675
  %v768 = vsub.f32 %v576, %v677
  %v769 = vsub.f32 %v577, %v679
  %v770 = vsub.f32 %v578, %v681
  %v771 = vsub.f32 %v579, %v683
  %v772 = vsub.f32 %v580, %v685
  %v773 = vsub.f32 %v581, %v687
  %v774 = vsub.f32 %v582, %v689
  %v775 = vsub.f32 %v583, %v691
  %v776 = vsub.f32 %v584, %v693
  %v777 = vsub.f32 %v585, %v695
  %v778 = vsub.f32 %v586, %v697
  %v779 = vsub.f32 %v587, %v699
  %v780 = vsub.f32 %v588, %v701
  %v781 = vsub.f32 %v589, %v703
  %v782 = vsub.f32 %v590, %v705
  %v783 = vsub.f32 %v591, %v707
  %v784 = vsub.f32 %v592, %v709
  %v785 = vsub.f32 %v593, %v711
  %v786 = vsub.f32 %v594, %v713
  %v787 = vsub.f32 %v595, %v715
  %v788 = vsub.f32 %v596, %v717
  %v789 = vsub.f32 %v597, %v719
  %v790 = vsub.f32 %v598, %v721
  %v791 = vsub.f32 %v599, %v723
  %v792 = vsub.f32 %v600, %v725
  %v793 = vsub.f32 %v601, %v727
  %v794 = vsub.f32 %v602, %v729
  %v795 = vsub.f32 %v603, %v731
  %v796 = vmax.f32 %v764, 0.0
  %v797 = vmax.f32 %v765, 0.0
  %v798 = vmax.f32 %v766, 0.0
  %v799 = vmax.f32 %v767, 0.0
  %v800 = vmax.f32 %v768, 0.0
  %v801 = vmax.f32 %v769, 0.0
  %v802 = vmax.f32 %v770, 0.0
  %v803 = vmax.f32 %v771, 0.0
  %v804 = vmax.f32 %v772, 0.0
  %v805 = vmax.f32 %v773, 0.0
  %v806 = vmax.f32 %v774, 0.0
  %v807 = vmax.f32 %v775, 0.0
  %v808 = vmax.f32 %v776, 0.0
  %v809 = vmax.f32 %v777, 0.0
  %v810 = vmax.f32 %v778, 0.0
  %v811 = vmax.f32 %v779, 0.0
  %v812 = vmax.f32 %v780, 0.0
  %v813 = vmax.f32 %v781, 0.0
  %v814 = vmax.f32 %v782, 0.0
  %v815 = vmax.f32 %v783, 0.0
  %v816 = vmax.f32 %v784, 0.0
  %v817 = vmax.f32 %v785, 0.0
  %v818 = vmax.f32 %v786, 0.0
  %v819 = vmax.f32 %v787, 0.0
  %v820 = vmax.f32 %v788, 0.0
  %v821 = vmax.f32 %v789, 0.0
  %v822 = vmax.f32 %v790, 0.0
  %v823 = vmax.f32 %v791, 0.0
  %v824 = vmax.f32 %v792, 0.0
  %v825 = vmax.f32 %v793, 0.0
  %v826 = vmax.f32 %v794, 0.0
  %v827 = vmax.f32 %v795, 0.0
  %v828 = vadd.f32 %v796, 1e-07
  %v829 = vadd.f32 %v797, 1e-07
  %v830 = vadd.f32 %v798, 1e-07
  %v831 = vadd.f32 %v799, 1e-07
  %v832 = vadd.f32 %v800, 1e-07
  %v833 = vadd.f32 %v801, 1e-07
  %v834 = vadd.f32 %v802, 1e-07
  %v835 = vadd.f32 %v803, 1e-07
  %v836 = vadd.f32 %v804, 1e-07
  %v837 = vadd.f32 %v805, 1e-07
  %v838 = vadd.f32 %v806, 1e-07
  %v839 = vadd.f32 %v807, 1e-07
  %v840 = vadd.f32 %v808, 1e-07
  %v841 = vadd.f32 %v809, 1e-07
  %v842 = vadd.f32 %v810, 1e-07
  %v843 = vadd.f32 %v811, 1e-07
  %v844 = vadd.f32 %v812, 1e-07
  %v845 = vadd.f32 %v813, 1e-07
  %v846 = vadd.f32 %v814, 1e-07
  %v847 = vadd.f32 %v815, 1e-07
  %v848 = vadd.f32 %v816, 1e-07
  %v849 = vadd.f32 %v817, 1e-07
  %v850 = vadd.f32 %v818, 1e-07
  %v851 = vadd.f32 %v819, 1e-07
  %v852 = vadd.f32 %v820, 1e-07
  %v853 = vadd.f32 %v821, 1e-07
  %v854 = vadd.f32 %v822, 1e-07
  %v855 = vadd.f32 %v823, 1e-07
  %v856 = vadd.f32 %v824, 1e-07
  %v857 = vadd.f32 %v825, 1e-07
  %v858 = vadd.f32 %v826, 1e-07
  %v859 = vadd.f32 %v827, 1e-07
  %892 = vrot.lane.b32.xlu0 %v828, 96
  %v893 = vpop.permute.xlu0 %892
  %894 = vrot.lane.b32.xlu0 %v829, 96
  %v895 = vpop.permute.xlu0 %894
  %896 = vrot.lane.b32.xlu0 %v830, 96
  %v897 = vpop.permute.xlu0 %896
  %898 = vrot.lane.b32.xlu0 %v831, 96
  %v899 = vpop.permute.xlu0 %898
  %900 = vrot.lane.b32.xlu0 %v832, 96
  %v901 = vpop.permute.xlu0 %900
  %902 = vrot.lane.b32.xlu0 %v833, 96
  %v903 = vpop.permute.xlu0 %902
  %904 = vrot.lane.b32.xlu0 %v834, 96
  %v905 = vpop.permute.xlu0 %904
  %906 = vrot.lane.b32.xlu0 %v835, 96
  %v907 = vpop.permute.xlu0 %906
  %908 = vrot.lane.b32.xlu0 %v836, 96
  %v909 = vpop.permute.xlu0 %908
  %910 = vrot.lane.b32.xlu0 %v837, 96
  %v911 = vpop.permute.xlu0 %910
  %912 = vrot.lane.b32.xlu0 %v838, 96
  %v913 = vpop.permute.xlu0 %912
  %914 = vrot.lane.b32.xlu0 %v839, 96
  %v915 = vpop.permute.xlu0 %914
  %916 = vrot.lane.b32.xlu0 %v840, 96
  %v917 = vpop.permute.xlu0 %916
  %918 = vrot.lane.b32.xlu0 %v841, 96
  %v919 = vpop.permute.xlu0 %918
  %920 = vrot.lane.b32.xlu0 %v842, 96
  %v921 = vpop.permute.xlu0 %920
  %922 = vrot.lane.b32.xlu0 %v843, 96
  %v923 = vpop.permute.xlu0 %922
  %924 = vrot.lane.b32.xlu0 %v844, 96
  %v925 = vpop.permute.xlu0 %924
  %926 = vrot.lane.b32.xlu0 %v845, 96
  %v927 = vpop.permute.xlu0 %926
  %928 = vrot.lane.b32.xlu0 %v846, 96
  %v929 = vpop.permute.xlu0 %928
  %930 = vrot.lane.b32.xlu0 %v847, 96
  %v931 = vpop.permute.xlu0 %930
  %932 = vrot.lane.b32.xlu0 %v848, 96
  %v933 = vpop.permute.xlu0 %932
  %934 = vrot.lane.b32.xlu0 %v849, 96
  %v935 = vpop.permute.xlu0 %934
  %936 = vrot.lane.b32.xlu0 %v850, 96
  %v937 = vpop.permute.xlu0 %936
  %938 = vrot.lane.b32.xlu0 %v851, 96
  %v939 = vpop.permute.xlu0 %938
  %940 = vrot.lane.b32.xlu0 %v852, 96
  %v941 = vpop.permute.xlu0 %940
  %942 = vrot.lane.b32.xlu0 %v853, 96
  %v943 = vpop.permute.xlu0 %942
  %944 = vrot.lane.b32.xlu0 %v854, 96
  %v945 = vpop.permute.xlu0 %944
  %946 = vrot.lane.b32.xlu0 %v855, 96
  %v947 = vpop.permute.xlu0 %946
  %948 = vrot.lane.b32.xlu0 %v856, 96
  %v949 = vpop.permute.xlu0 %948
  %950 = vrot.lane.b32.xlu0 %v857, 96
  %v951 = vpop.permute.xlu0 %950
  %952 = vrot.lane.b32.xlu0 %v858, 96
  %v953 = vpop.permute.xlu0 %952
  %954 = vrot.lane.b32.xlu0 %v859, 96
  %v955 = vpop.permute.xlu0 %954
  %988 = vmatpush.msra.mxu0 %v923
  %989 = vmatpush.msra.mxu0 %v921
  %990 = vmatpush.msra.mxu0 %v919
  %991 = vmatpush.msra.mxu0 %v917
  %992 = vmatpush.msra.mxu0 %v915
  %993 = vmatpush.msra.mxu0 %v913
  %994 = vmatpush.msra.mxu0 %v911
  %995 = vmatpush.msra.mxu0 %v909
  %996 = vmatpush.msra.mxu0 %v907
  %997 = vmatpush.msra.mxu0 %v905
  %998 = vmatpush.msra.mxu0 %v903
  %999 = vmatpush.msra.mxu0 %v901
  %1000 = vmatpush.msra.mxu0 %v899
  %1001 = vmatpush.msra.mxu0 %v897
  %1002 = vmatpush.msra.mxu0 %v895
  %1003 = vmatpush.msra.mxu0 %v893
  %1004 = vmatmul.f32.gmra.mxu0 %v254
  %v1005 = vpop.f32.mrf.mxu0
  %v1006 = vadd.f32 0.0, %v1005
  %1007 = vmatmul.f32.gmra.mxu0 %v256
  %v1008 = vpop.f32.mrf.mxu0
  %v1009 = vadd.f32 0.0, %v1008
  %1010 = vdwg.mxu0
  %1011 = vmatpush.msra.mxu0 %v955
  %1012 = vmatpush.msra.mxu0 %v953
  %1013 = vmatpush.msra.mxu0 %v951
  %1014 = vmatpush.msra.mxu0 %v949
  %1015 = vmatpush.msra.mxu0 %v947
  %1016 = vmatpush.msra.mxu0 %v945
  %1017 = vmatpush.msra.mxu0 %v943
  %1018 = vmatpush.msra.mxu0 %v941
  %1019 = vmatpush.msra.mxu0 %v939
  %1020 = vmatpush.msra.mxu0 %v937
  %1021 = vmatpush.msra.mxu0 %v935
  %1022 = vmatpush.msra.mxu0 %v933
  %1023 = vmatpush.msra.mxu0 %v931
  %1024 = vmatpush.msra.mxu0 %v929
  %1025 = vmatpush.msra.mxu0 %v927
  %1026 = vmatpush.msra.mxu0 %v925
  %1027 = vmatmul.f32.gmra.mxu0 %v255
  %v1028 = vpop.f32.mrf.mxu0
  %v1029 = vadd.f32 %v1006, %v1028
  %1030 = vmatmul.f32.gmra.mxu0 %v257
  %v1031 = vpop.f32.mrf.mxu0
  %v1032 = vadd.f32 %v1009, %v1031
  %1033 = vdwg.mxu0
  %v1034 = vrsqrt.pop %v1029
  %v1035 = vmul.f32 %v1034, %v1029
  %v1036 = vmul.f32 %v1035, %v1034
  %v1037 = vmul.f32 0.5, %v1036
  %v1038 = vsub.f32 1.5, %v1037
  %v1039 = vmul.f32 %v1034, %v1038
  %v1040 = vmul.f32 %v1029, %v1039
  %vm1041 = vcmp.eq.f32.partialorder %v1029, inf
  %v1042 = vsel %vm1041, %v1029, %v1040
  %vm1043 = vcmp.eq.f32.partialorder %v1029, 0.0
  %v1044 = vand.u32 %v1029, 2147483648
  %v1045 = vsel %vm1043, %v1044, %v1042
  %v1046 = vrsqrt.pop %v1032
  %v1047 = vmul.f32 %v1046, %v1032
  %v1048 = vmul.f32 %v1047, %v1046
  %v1049 = vmul.f32 0.5, %v1048
  %v1050 = vsub.f32 1.5, %v1049
  %v1051 = vmul.f32 %v1046, %v1050
  %v1052 = vmul.f32 %v1032, %v1051
  %vm1053 = vcmp.eq.f32.partialorder %v1032, inf
  %v1054 = vsel %vm1053, %v1032, %v1052
  %vm1055 = vcmp.eq.f32.partialorder %v1032, 0.0
  %v1056 = vand.u32 %v1032, 2147483648
  %v1057 = vsel %vm1055, %v1056, %v1054
  loop: start=0, step=1, limit=2
  $region50: #{_lambda_.5} parent=0 // loop_pre_header
    _
  $region51: #{_lambda_.5} parent=0 // loop_header
    %s1059 = sphi 0, %s1063
    %p1060 = scmp.ge.s32.totalorder %s1059, 2
    %v1064 = vphi 0.0, %v3526
    %v1065 = vphi 0.0, %v3527
    %v1066 = vphi 0.0, %v3528
    %v1067 = vphi 0.0, %v3529
    %v1068 = vphi 0.0, %v3530
    %v1069 = vphi 0.0, %v3531
    %v1070 = vphi 0.0, %v3532
    %v1071 = vphi 0.0, %v3533
    %v1072 = vphi 0.0, %v3534
    %v1073 = vphi 0.0, %v3535
    %v1074 = vphi 0.0, %v3536
    %v1075 = vphi 0.0, %v3537
    %v1076 = vphi 0.0, %v3538
    %v1077 = vphi 0.0, %v3539
    %v1078 = vphi 0.0, %v3540
    %v1079 = vphi 0.0, %v3541
  $region52: #{_lambda_.5} parent=0 // loop_header_branch
    %1062 = sbr.rel (%p1060) target = $region56
  $region53: #{_lambda_.5} parent=0 // loop_body
    %s1080 = smul.u32 %s1059, 128
    %s1081 = sshra.s32 %s1080, 7
    %s1082 = sand.u32 %s1080, 127
    %s1083 = smul.addr %s1081, 4
    %s1084 = scalar_lea.vmem %s1, %s1083
    %v1085 = vld [vmem:[%s1084] sm:$0xf]
    %v1086 = vld [vmem:[%s1084 + $0x8] sm:$0xf]
    %v1087 = vunpack.c.l.bf16 %v1085
    %v1088 = vunpack.c.l.bf16 %v1086
    %s1089 = sshra.s32 %s1080, 3
    %s1090 = sand.u32 %s1080, 7
    %s1091 = smul.addr %s1089, 4
    %s1092 = scalar_lea.vmem %s2, %s1091
    %v1093 = vld [vmem:[%s1092] sm:$0xf]
    %v1094 = vld [vmem:[%s1092 + $0x4] sm:$0xf]
    %v1095 = vld [vmem:[%s1092 + $0x8] sm:$0xf]
    %v1096 = vld [vmem:[%s1092 + $0xc] sm:$0xf]
    %v1097 = vld [vmem:[%s1092 + $0x10] sm:$0xf]
    %v1098 = vld [vmem:[%s1092 + $0x14] sm:$0xf]
    %v1099 = vld [vmem:[%s1092 + $0x18] sm:$0xf]
    %v1100 = vld [vmem:[%s1092 + $0x1c] sm:$0xf]
    %v1101 = vld [vmem:[%s1092 + $0x20] sm:$0xf]
    %v1102 = vld [vmem:[%s1092 + $0x24] sm:$0xf]
    %v1103 = vld [vmem:[%s1092 + $0x28] sm:$0xf]
    %v1104 = vld [vmem:[%s1092 + $0x2c] sm:$0xf]
    %v1105 = vld [vmem:[%s1092 + $0x30] sm:$0xf]
    %v1106 = vld [vmem:[%s1092 + $0x34] sm:$0xf]
    %v1107 = vld [vmem:[%s1092 + $0x38] sm:$0xf]
    %v1108 = vld [vmem:[%s1092 + $0x3c] sm:$0xf]
    %v1109 = vunpack.c.l.bf16 %v1093
    %v1110 = vunpack.c.l.bf16 %v1094
    %v1111 = vunpack.c.l.bf16 %v1095
    %v1112 = vunpack.c.l.bf16 %v1096
    %v1113 = vunpack.c.l.bf16 %v1097
    %v1114 = vunpack.c.l.bf16 %v1098
    %v1115 = vunpack.c.l.bf16 %v1099
    %v1116 = vunpack.c.l.bf16 %v1100
    %v1117 = vunpack.c.l.bf16 %v1101
    %v1118 = vunpack.c.l.bf16 %v1102
    %v1119 = vunpack.c.l.bf16 %v1103
    %v1120 = vunpack.c.l.bf16 %v1104
    %v1121 = vunpack.c.l.bf16 %v1105
    %v1122 = vunpack.c.l.bf16 %v1106
    %v1123 = vunpack.c.l.bf16 %v1107
    %v1124 = vunpack.c.l.bf16 %v1108
    %v1125 = vperm.slane %v1087, 0
    %v1126 = vlaneseq
    %v1127 = vshrl.u32 %v1126, 7
    %1129 = vset.pattern.permute.xlu0 %v1127
    %1130 = vperm.xlu0 %1129, %v1125
    %v1131 = vpop.permute.xlu0 %1130
    %v1132 = vlaneseq
    %v1133 = vshrl.u32 %v1132, 7
    %v1134 = vadd.s32 %v1133, 8
    %1135 = vset.pattern.permute.xlu0 %v1134
    %1136 = vperm.xlu0 %1135, %v1125
    %v1137 = vpop.permute.xlu0 %1136
    %v1138 = vlaneseq
    %v1139 = vshrl.u32 %v1138, 7
    %v1140 = vadd.s32 %v1139, 16
    %1141 = vset.pattern.permute.xlu0 %v1140
    %1142 = vperm.xlu0 %1141, %v1125
    %v1143 = vpop.permute.xlu0 %1142
    %v1144 = vlaneseq
    %v1145 = vshrl.u32 %v1144, 7
    %v1146 = vadd.s32 %v1145, 24
    %1147 = vset.pattern.permute.xlu0 %v1146
    %1148 = vperm.xlu0 %1147, %v1125
    %v1149 = vpop.permute.xlu0 %1148
    %v1150 = vlaneseq
    %v1151 = vshrl.u32 %v1150, 7
    %v1152 = vadd.s32 %v1151, 32
    %1153 = vset.pattern.permute.xlu0 %v1152
    %1154 = vperm.xlu0 %1153, %v1125
    %v1155 = vpop.permute.xlu0 %1154
    %v1156 = vlaneseq
    %v1157 = vshrl.u32 %v1156, 7
    %v1158 = vadd.s32 %v1157, 40
    %1159 = vset.pattern.permute.xlu0 %v1158
    %1160 = vperm.xlu0 %1159, %v1125
    %v1161 = vpop.permute.xlu0 %1160
    %v1162 = vlaneseq
    %v1163 = vshrl.u32 %v1162, 7
    %v1164 = vadd.s32 %v1163, 48
    %1165 = vset.pattern.permute.xlu0 %v1164
    %1166 = vperm.xlu0 %1165, %v1125
    %v1167 = vpop.permute.xlu0 %1166
    %v1168 = vlaneseq
    %v1169 = vshrl.u32 %v1168, 7
    %v1170 = vadd.s32 %v1169, 56
    %1171 = vset.pattern.permute.xlu0 %v1170
    %1172 = vperm.xlu0 %1171, %v1125
    %v1173 = vpop.permute.xlu0 %1172
    %v1174 = vlaneseq
    %v1175 = vshrl.u32 %v1174, 7
    %v1176 = vadd.s32 %v1175, 64
    %1177 = vset.pattern.permute.xlu0 %v1176
    %1178 = vperm.xlu0 %1177, %v1125
    %v1179 = vpop.permute.xlu0 %1178
    %v1180 = vlaneseq
    %v1181 = vshrl.u32 %v1180, 7
    %v1182 = vadd.s32 %v1181, 72
    %1183 = vset.pattern.permute.xlu0 %v1182
    %1184 = vperm.xlu0 %1183, %v1125
    %v1185 = vpop.permute.xlu0 %1184
    %v1186 = vlaneseq
    %v1187 = vshrl.u32 %v1186, 7
    %v1188 = vadd.s32 %v1187, 80
    %1189 = vset.pattern.permute.xlu0 %v1188
    %1190 = vperm.xlu0 %1189, %v1125
    %v1191 = vpop.permute.xlu0 %1190
    %v1192 = vlaneseq
    %v1193 = vshrl.u32 %v1192, 7
    %v1194 = vadd.s32 %v1193, 88
    %1195 = vset.pattern.permute.xlu0 %v1194
    %1196 = vperm.xlu0 %1195, %v1125
    %v1197 = vpop.permute.xlu0 %1196
    %v1198 = vlaneseq
    %v1199 = vshrl.u32 %v1198, 7
    %v1200 = vadd.s32 %v1199, 96
    %1201 = vset.pattern.permute.xlu0 %v1200
    %1202 = vperm.xlu0 %1201, %v1125
    %v1203 = vpop.permute.xlu0 %1202
    %v1204 = vlaneseq
    %v1205 = vshrl.u32 %v1204, 7
    %v1206 = vadd.s32 %v1205, 104
    %1207 = vset.pattern.permute.xlu0 %v1206
    %1208 = vperm.xlu0 %1207, %v1125
    %v1209 = vpop.permute.xlu0 %1208
    %v1210 = vlaneseq
    %v1211 = vshrl.u32 %v1210, 7
    %v1212 = vadd.s32 %v1211, 112
    %1213 = vset.pattern.permute.xlu0 %v1212
    %1214 = vperm.xlu0 %1213, %v1125
    %v1215 = vpop.permute.xlu0 %1214
    %v1216 = vlaneseq
    %v1217 = vshrl.u32 %v1216, 7
    %v1218 = vadd.s32 %v1217, 120
    %1219 = vset.pattern.permute.xlu0 %v1218
    %1220 = vperm.xlu0 %1219, %v1125
    %v1221 = vpop.permute.xlu0 %1220
    %v1222 = vperm.slane %v1087, 1
    %v1223 = vlaneseq
    %v1224 = vshrl.u32 %v1223, 7
    %1226 = vset.pattern.permute.xlu0 %v1224
    %1227 = vperm.xlu0 %1226, %v1222
    %v1228 = vpop.permute.xlu0 %1227
    %v1229 = vlaneseq
    %v1230 = vshrl.u32 %v1229, 7
    %v1231 = vadd.s32 %v1230, 8
    %1232 = vset.pattern.permute.xlu0 %v1231
    %1233 = vperm.xlu0 %1232, %v1222
    %v1234 = vpop.permute.xlu0 %1233
    %v1235 = vlaneseq
    %v1236 = vshrl.u32 %v1235, 7
    %v1237 = vadd.s32 %v1236, 16
    %1238 = vset.pattern.permute.xlu0 %v1237
    %1239 = vperm.xlu0 %1238, %v1222
    %v1240 = vpop.permute.xlu0 %1239
    %v1241 = vlaneseq
    %v1242 = vshrl.u32 %v1241, 7
    %v1243 = vadd.s32 %v1242, 24
    %1244 = vset.pattern.permute.xlu0 %v1243
    %1245 = vperm.xlu0 %1244, %v1222
    %v1246 = vpop.permute.xlu0 %1245
    %v1247 = vlaneseq
    %v1248 = vshrl.u32 %v1247, 7
    %v1249 = vadd.s32 %v1248, 32
    %1250 = vset.pattern.permute.xlu0 %v1249
    %1251 = vperm.xlu0 %1250, %v1222
    %v1252 = vpop.permute.xlu0 %1251
    %v1253 = vlaneseq
    %v1254 = vshrl.u32 %v1253, 7
    %v1255 = vadd.s32 %v1254, 40
    %1256 = vset.pattern.permute.xlu0 %v1255
    %1257 = vperm.xlu0 %1256, %v1222
    %v1258 = vpop.permute.xlu0 %1257
    %v1259 = vlaneseq
    %v1260 = vshrl.u32 %v1259, 7
    %v1261 = vadd.s32 %v1260, 48
    %1262 = vset.pattern.permute.xlu0 %v1261
    %1263 = vperm.xlu0 %1262, %v1222
    %v1264 = vpop.permute.xlu0 %1263
    %v1265 = vlaneseq
    %v1266 = vshrl.u32 %v1265, 7
    %v1267 = vadd.s32 %v1266, 56
    %1268 = vset.pattern.permute.xlu0 %v1267
    %1269 = vperm.xlu0 %1268, %v1222
    %v1270 = vpop.permute.xlu0 %1269
    %v1271 = vlaneseq
    %v1272 = vshrl.u32 %v1271, 7
    %v1273 = vadd.s32 %v1272, 64
    %1274 = vset.pattern.permute.xlu0 %v1273
    %1275 = vperm.xlu0 %1274, %v1222
    %v1276 = vpop.permute.xlu0 %1275
    %v1277 = vlaneseq
    %v1278 = vshrl.u32 %v1277, 7
    %v1279 = vadd.s32 %v1278, 72
    %1280 = vset.pattern.permute.xlu0 %v1279
    %1281 = vperm.xlu0 %1280, %v1222
    %v1282 = vpop.permute.xlu0 %1281
    %v1283 = vlaneseq
    %v1284 = vshrl.u32 %v1283, 7
    %v1285 = vadd.s32 %v1284, 80
    %1286 = vset.pattern.permute.xlu0 %v1285
    %1287 = vperm.xlu0 %1286, %v1222
    %v1288 = vpop.permute.xlu0 %1287
    %v1289 = vlaneseq
    %v1290 = vshrl.u32 %v1289, 7
    %v1291 = vadd.s32 %v1290, 88
    %1292 = vset.pattern.permute.xlu0 %v1291
    %1293 = vperm.xlu0 %1292, %v1222
    %v1294 = vpop.permute.xlu0 %1293
    %v1295 = vlaneseq
    %v1296 = vshrl.u32 %v1295, 7
    %v1297 = vadd.s32 %v1296, 96
    %1298 = vset.pattern.permute.xlu0 %v1297
    %1299 = vperm.xlu0 %1298, %v1222
    %v1300 = vpop.permute.xlu0 %1299
    %v1301 = vlaneseq
    %v1302 = vshrl.u32 %v1301, 7
    %v1303 = vadd.s32 %v1302, 104
    %1304 = vset.pattern.permute.xlu0 %v1303
    %1305 = vperm.xlu0 %1304, %v1222
    %v1306 = vpop.permute.xlu0 %1305
    %v1307 = vlaneseq
    %v1308 = vshrl.u32 %v1307, 7
    %v1309 = vadd.s32 %v1308, 112
    %1310 = vset.pattern.permute.xlu0 %v1309
    %1311 = vperm.xlu0 %1310, %v1222
    %v1312 = vpop.permute.xlu0 %1311
    %v1313 = vlaneseq
    %v1314 = vshrl.u32 %v1313, 7
    %v1315 = vadd.s32 %v1314, 120
    %1316 = vset.pattern.permute.xlu0 %v1315
    %1317 = vperm.xlu0 %1316, %v1222
    %v1318 = vpop.permute.xlu0 %1317
    %v1319 = vperm.slane %v1087, 2
    %v1320 = vlaneseq
    %v1321 = vshrl.u32 %v1320, 7
    %1323 = vset.pattern.permute.xlu0 %v1321
    %1324 = vperm.xlu0 %1323, %v1319
    %v1325 = vpop.permute.xlu0 %1324
    %v1326 = vlaneseq
    %v1327 = vshrl.u32 %v1326, 7
    %v1328 = vadd.s32 %v1327, 8
    %1329 = vset.pattern.permute.xlu0 %v1328
    %1330 = vperm.xlu0 %1329, %v1319
    %v1331 = vpop.permute.xlu0 %1330
    %v1332 = vlaneseq
    %v1333 = vshrl.u32 %v1332, 7
    %v1334 = vadd.s32 %v1333, 16
    %1335 = vset.pattern.permute.xlu0 %v1334
    %1336 = vperm.xlu0 %1335, %v1319
    %v1337 = vpop.permute.xlu0 %1336
    %v1338 = vlaneseq
    %v1339 = vshrl.u32 %v1338, 7
    %v1340 = vadd.s32 %v1339, 24
    %1341 = vset.pattern.permute.xlu0 %v1340
    %1342 = vperm.xlu0 %1341, %v1319
    %v1343 = vpop.permute.xlu0 %1342
    %v1344 = vlaneseq
    %v1345 = vshrl.u32 %v1344, 7
    %v1346 = vadd.s32 %v1345, 32
    %1347 = vset.pattern.permute.xlu0 %v1346
    %1348 = vperm.xlu0 %1347, %v1319
    %v1349 = vpop.permute.xlu0 %1348
    %v1350 = vlaneseq
    %v1351 = vshrl.u32 %v1350, 7
    %v1352 = vadd.s32 %v1351, 40
    %1353 = vset.pattern.permute.xlu0 %v1352
    %1354 = vperm.xlu0 %1353, %v1319
    %v1355 = vpop.permute.xlu0 %1354
    %v1356 = vlaneseq
    %v1357 = vshrl.u32 %v1356, 7
    %v1358 = vadd.s32 %v1357, 48
    %1359 = vset.pattern.permute.xlu0 %v1358
    %1360 = vperm.xlu0 %1359, %v1319
    %v1361 = vpop.permute.xlu0 %1360
    %v1362 = vlaneseq
    %v1363 = vshrl.u32 %v1362, 7
    %v1364 = vadd.s32 %v1363, 56
    %1365 = vset.pattern.permute.xlu0 %v1364
    %1366 = vperm.xlu0 %1365, %v1319
    %v1367 = vpop.permute.xlu0 %1366
    %v1368 = vlaneseq
    %v1369 = vshrl.u32 %v1368, 7
    %v1370 = vadd.s32 %v1369, 64
    %1371 = vset.pattern.permute.xlu0 %v1370
    %1372 = vperm.xlu0 %1371, %v1319
    %v1373 = vpop.permute.xlu0 %1372
    %v1374 = vlaneseq
    %v1375 = vshrl.u32 %v1374, 7
    %v1376 = vadd.s32 %v1375, 72
    %1377 = vset.pattern.permute.xlu0 %v1376
    %1378 = vperm.xlu0 %1377, %v1319
    %v1379 = vpop.permute.xlu0 %1378
    %v1380 = vlaneseq
    %v1381 = vshrl.u32 %v1380, 7
    %v1382 = vadd.s32 %v1381, 80
    %1383 = vset.pattern.permute.xlu0 %v1382
    %1384 = vperm.xlu0 %1383, %v1319
    %v1385 = vpop.permute.xlu0 %1384
    %v1386 = vlaneseq
    %v1387 = vshrl.u32 %v1386, 7
    %v1388 = vadd.s32 %v1387, 88
    %1389 = vset.pattern.permute.xlu0 %v1388
    %1390 = vperm.xlu0 %1389, %v1319
    %v1391 = vpop.permute.xlu0 %1390
    %v1392 = vlaneseq
    %v1393 = vshrl.u32 %v1392, 7
    %v1394 = vadd.s32 %v1393, 96
    %1395 = vset.pattern.permute.xlu0 %v1394
    %1396 = vperm.xlu0 %1395, %v1319
    %v1397 = vpop.permute.xlu0 %1396
    %v1398 = vlaneseq
    %v1399 = vshrl.u32 %v1398, 7
    %v1400 = vadd.s32 %v1399, 104
    %1401 = vset.pattern.permute.xlu0 %v1400
    %1402 = vperm.xlu0 %1401, %v1319
    %v1403 = vpop.permute.xlu0 %1402
    %v1404 = vlaneseq
    %v1405 = vshrl.u32 %v1404, 7
    %v1406 = vadd.s32 %v1405, 112
    %1407 = vset.pattern.permute.xlu0 %v1406
    %1408 = vperm.xlu0 %1407, %v1319
    %v1409 = vpop.permute.xlu0 %1408
    %v1410 = vlaneseq
    %v1411 = vshrl.u32 %v1410, 7
    %v1412 = vadd.s32 %v1411, 120
    %1413 = vset.pattern.permute.xlu0 %v1412
    %1414 = vperm.xlu0 %1413, %v1319
    %v1415 = vpop.permute.xlu0 %1414
    %v1416 = vperm.slane %v1087, 3
    %v1417 = vlaneseq
    %v1418 = vshrl.u32 %v1417, 7
    %1420 = vset.pattern.permute.xlu0 %v1418
    %1421 = vperm.xlu0 %1420, %v1416
    %v1422 = vpop.permute.xlu0 %1421
    %v1423 = vlaneseq
    %v1424 = vshrl.u32 %v1423, 7
    %v1425 = vadd.s32 %v1424, 8
    %1426 = vset.pattern.permute.xlu0 %v1425
    %1427 = vperm.xlu0 %1426, %v1416
    %v1428 = vpop.permute.xlu0 %1427
    %v1429 = vlaneseq
    %v1430 = vshrl.u32 %v1429, 7
    %v1431 = vadd.s32 %v1430, 16
    %1432 = vset.pattern.permute.xlu0 %v1431
    %1433 = vperm.xlu0 %1432, %v1416
    %v1434 = vpop.permute.xlu0 %1433
    %v1435 = vlaneseq
    %v1436 = vshrl.u32 %v1435, 7
    %v1437 = vadd.s32 %v1436, 24
    %1438 = vset.pattern.permute.xlu0 %v1437
    %1439 = vperm.xlu0 %1438, %v1416
    %v1440 = vpop.permute.xlu0 %1439
    %v1441 = vlaneseq
    %v1442 = vshrl.u32 %v1441, 7
    %v1443 = vadd.s32 %v1442, 32
    %1444 = vset.pattern.permute.xlu0 %v1443
    %1445 = vperm.xlu0 %1444, %v1416
    %v1446 = vpop.permute.xlu0 %1445
    %v1447 = vlaneseq
    %v1448 = vshrl.u32 %v1447, 7
    %v1449 = vadd.s32 %v1448, 40
    %1450 = vset.pattern.permute.xlu0 %v1449
    %1451 = vperm.xlu0 %1450, %v1416
    %v1452 = vpop.permute.xlu0 %1451
    %v1453 = vlaneseq
    %v1454 = vshrl.u32 %v1453, 7
    %v1455 = vadd.s32 %v1454, 48
    %1456 = vset.pattern.permute.xlu0 %v1455
    %1457 = vperm.xlu0 %1456, %v1416
    %v1458 = vpop.permute.xlu0 %1457
    %v1459 = vlaneseq
    %v1460 = vshrl.u32 %v1459, 7
    %v1461 = vadd.s32 %v1460, 56
    %1462 = vset.pattern.permute.xlu0 %v1461
    %1463 = vperm.xlu0 %1462, %v1416
    %v1464 = vpop.permute.xlu0 %1463
    %v1465 = vlaneseq
    %v1466 = vshrl.u32 %v1465, 7
    %v1467 = vadd.s32 %v1466, 64
    %1468 = vset.pattern.permute.xlu0 %v1467
    %1469 = vperm.xlu0 %1468, %v1416
    %v1470 = vpop.permute.xlu0 %1469
    %v1471 = vlaneseq
    %v1472 = vshrl.u32 %v1471, 7
    %v1473 = vadd.s32 %v1472, 72
    %1474 = vset.pattern.permute.xlu0 %v1473
    %1475 = vperm.xlu0 %1474, %v1416
    %v1476 = vpop.permute.xlu0 %1475
    %v1477 = vlaneseq
    %v1478 = vshrl.u32 %v1477, 7
    %v1479 = vadd.s32 %v1478, 80
    %1480 = vset.pattern.permute.xlu0 %v1479
    %1481 = vperm.xlu0 %1480, %v1416
    %v1482 = vpop.permute.xlu0 %1481
    %v1483 = vlaneseq
    %v1484 = vshrl.u32 %v1483, 7
    %v1485 = vadd.s32 %v1484, 88
    %1486 = vset.pattern.permute.xlu0 %v1485
    %1487 = vperm.xlu0 %1486, %v1416
    %v1488 = vpop.permute.xlu0 %1487
    %v1489 = vlaneseq
    %v1490 = vshrl.u32 %v1489, 7
    %v1491 = vadd.s32 %v1490, 96
    %1492 = vset.pattern.permute.xlu0 %v1491
    %1493 = vperm.xlu0 %1492, %v1416
    %v1494 = vpop.permute.xlu0 %1493
    %v1495 = vlaneseq
    %v1496 = vshrl.u32 %v1495, 7
    %v1497 = vadd.s32 %v1496, 104
    %1498 = vset.pattern.permute.xlu0 %v1497
    %1499 = vperm.xlu0 %1498, %v1416
    %v1500 = vpop.permute.xlu0 %1499
    %v1501 = vlaneseq
    %v1502 = vshrl.u32 %v1501, 7
    %v1503 = vadd.s32 %v1502, 112
    %1504 = vset.pattern.permute.xlu0 %v1503
    %1505 = vperm.xlu0 %1504, %v1416
    %v1506 = vpop.permute.xlu0 %1505
    %v1507 = vlaneseq
    %v1508 = vshrl.u32 %v1507, 7
    %v1509 = vadd.s32 %v1508, 120
    %1510 = vset.pattern.permute.xlu0 %v1509
    %1511 = vperm.xlu0 %1510, %v1416
    %v1512 = vpop.permute.xlu0 %1511
    %v1513 = vperm.slane %v1087, 4
    %v1514 = vlaneseq
    %v1515 = vshrl.u32 %v1514, 7
    %1517 = vset.pattern.permute.xlu0 %v1515
    %1518 = vperm.xlu0 %1517, %v1513
    %v1519 = vpop.permute.xlu0 %1518
    %v1520 = vlaneseq
    %v1521 = vshrl.u32 %v1520, 7
    %v1522 = vadd.s32 %v1521, 8
    %1523 = vset.pattern.permute.xlu0 %v1522
    %1524 = vperm.xlu0 %1523, %v1513
    %v1525 = vpop.permute.xlu0 %1524
    %v1526 = vlaneseq
    %v1527 = vshrl.u32 %v1526, 7
    %v1528 = vadd.s32 %v1527, 16
    %1529 = vset.pattern.permute.xlu0 %v1528
    %1530 = vperm.xlu0 %1529, %v1513
    %v1531 = vpop.permute.xlu0 %1530
    %v1532 = vlaneseq
    %v1533 = vshrl.u32 %v1532, 7
    %v1534 = vadd.s32 %v1533, 24
    %1535 = vset.pattern.permute.xlu0 %v1534
    %1536 = vperm.xlu0 %1535, %v1513
    %v1537 = vpop.permute.xlu0 %1536
    %v1538 = vlaneseq
    %v1539 = vshrl.u32 %v1538, 7
    %v1540 = vadd.s32 %v1539, 32
    %1541 = vset.pattern.permute.xlu0 %v1540
    %1542 = vperm.xlu0 %1541, %v1513
    %v1543 = vpop.permute.xlu0 %1542
    %v1544 = vlaneseq
    %v1545 = vshrl.u32 %v1544, 7
    %v1546 = vadd.s32 %v1545, 40
    %1547 = vset.pattern.permute.xlu0 %v1546
    %1548 = vperm.xlu0 %1547, %v1513
    %v1549 = vpop.permute.xlu0 %1548
    %v1550 = vlaneseq
    %v1551 = vshrl.u32 %v1550, 7
    %v1552 = vadd.s32 %v1551, 48
    %1553 = vset.pattern.permute.xlu0 %v1552
    %1554 = vperm.xlu0 %1553, %v1513
    %v1555 = vpop.permute.xlu0 %1554
    %v1556 = vlaneseq
    %v1557 = vshrl.u32 %v1556, 7
    %v1558 = vadd.s32 %v1557, 56
    %1559 = vset.pattern.permute.xlu0 %v1558
    %1560 = vperm.xlu0 %1559, %v1513
    %v1561 = vpop.permute.xlu0 %1560
    %v1562 = vlaneseq
    %v1563 = vshrl.u32 %v1562, 7
    %v1564 = vadd.s32 %v1563, 64
    %1565 = vset.pattern.permute.xlu0 %v1564
    %1566 = vperm.xlu0 %1565, %v1513
    %v1567 = vpop.permute.xlu0 %1566
    %v1568 = vlaneseq
    %v1569 = vshrl.u32 %v1568, 7
    %v1570 = vadd.s32 %v1569, 72
    %1571 = vset.pattern.permute.xlu0 %v1570
    %1572 = vperm.xlu0 %1571, %v1513
    %v1573 = vpop.permute.xlu0 %1572
    %v1574 = vlaneseq
    %v1575 = vshrl.u32 %v1574, 7
    %v1576 = vadd.s32 %v1575, 80
    %1577 = vset.pattern.permute.xlu0 %v1576
    %1578 = vperm.xlu0 %1577, %v1513
    %v1579 = vpop.permute.xlu0 %1578
    %v1580 = vlaneseq
    %v1581 = vshrl.u32 %v1580, 7
    %v1582 = vadd.s32 %v1581, 88
    %1583 = vset.pattern.permute.xlu0 %v1582
    %1584 = vperm.xlu0 %1583, %v1513
    %v1585 = vpop.permute.xlu0 %1584
    %v1586 = vlaneseq
    %v1587 = vshrl.u32 %v1586, 7
    %v1588 = vadd.s32 %v1587, 96
    %1589 = vset.pattern.permute.xlu0 %v1588
    %1590 = vperm.xlu0 %1589, %v1513
    %v1591 = vpop.permute.xlu0 %1590
    %v1592 = vlaneseq
    %v1593 = vshrl.u32 %v1592, 7
    %v1594 = vadd.s32 %v1593, 104
    %1595 = vset.pattern.permute.xlu0 %v1594
    %1596 = vperm.xlu0 %1595, %v1513
    %v1597 = vpop.permute.xlu0 %1596
    %v1598 = vlaneseq
    %v1599 = vshrl.u32 %v1598, 7
    %v1600 = vadd.s32 %v1599, 112
    %1601 = vset.pattern.permute.xlu0 %v1600
    %1602 = vperm.xlu0 %1601, %v1513
    %v1603 = vpop.permute.xlu0 %1602
    %v1604 = vlaneseq
    %v1605 = vshrl.u32 %v1604, 7
    %v1606 = vadd.s32 %v1605, 120
    %1607 = vset.pattern.permute.xlu0 %v1606
    %1608 = vperm.xlu0 %1607, %v1513
    %v1609 = vpop.permute.xlu0 %1608
    %v1610 = vperm.slane %v1087, 5
    %v1611 = vlaneseq
    %v1612 = vshrl.u32 %v1611, 7
    %1614 = vset.pattern.permute.xlu0 %v1612
    %1615 = vperm.xlu0 %1614, %v1610
    %v1616 = vpop.permute.xlu0 %1615
    %v1617 = vlaneseq
    %v1618 = vshrl.u32 %v1617, 7
    %v1619 = vadd.s32 %v1618, 8
    %1620 = vset.pattern.permute.xlu0 %v1619
    %1621 = vperm.xlu0 %1620, %v1610
    %v1622 = vpop.permute.xlu0 %1621
    %v1623 = vlaneseq
    %v1624 = vshrl.u32 %v1623, 7
    %v1625 = vadd.s32 %v1624, 16
    %1626 = vset.pattern.permute.xlu0 %v1625
    %1627 = vperm.xlu0 %1626, %v1610
    %v1628 = vpop.permute.xlu0 %1627
    %v1629 = vlaneseq
    %v1630 = vshrl.u32 %v1629, 7
    %v1631 = vadd.s32 %v1630, 24
    %1632 = vset.pattern.permute.xlu0 %v1631
    %1633 = vperm.xlu0 %1632, %v1610
    %v1634 = vpop.permute.xlu0 %1633
    %v1635 = vlaneseq
    %v1636 = vshrl.u32 %v1635, 7
    %v1637 = vadd.s32 %v1636, 32
    %1638 = vset.pattern.permute.xlu0 %v1637
    %1639 = vperm.xlu0 %1638, %v1610
    %v1640 = vpop.permute.xlu0 %1639
    %v1641 = vlaneseq
    %v1642 = vshrl.u32 %v1641, 7
    %v1643 = vadd.s32 %v1642, 40
    %1644 = vset.pattern.permute.xlu0 %v1643
    %1645 = vperm.xlu0 %1644, %v1610
    %v1646 = vpop.permute.xlu0 %1645
    %v1647 = vlaneseq
    %v1648 = vshrl.u32 %v1647, 7
    %v1649 = vadd.s32 %v1648, 48
    %1650 = vset.pattern.permute.xlu0 %v1649
    %1651 = vperm.xlu0 %1650, %v1610
    %v1652 = vpop.permute.xlu0 %1651
    %v1653 = vlaneseq
    %v1654 = vshrl.u32 %v1653, 7
    %v1655 = vadd.s32 %v1654, 56
    %1656 = vset.pattern.permute.xlu0 %v1655
    %1657 = vperm.xlu0 %1656, %v1610
    %v1658 = vpop.permute.xlu0 %1657
    %v1659 = vlaneseq
    %v1660 = vshrl.u32 %v1659, 7
    %v1661 = vadd.s32 %v1660, 64
    %1662 = vset.pattern.permute.xlu0 %v1661
    %1663 = vperm.xlu0 %1662, %v1610
    %v1664 = vpop.permute.xlu0 %1663
    %v1665 = vlaneseq
    %v1666 = vshrl.u32 %v1665, 7
    %v1667 = vadd.s32 %v1666, 72
    %1668 = vset.pattern.permute.xlu0 %v1667
    %1669 = vperm.xlu0 %1668, %v1610
    %v1670 = vpop.permute.xlu0 %1669
    %v1671 = vlaneseq
    %v1672 = vshrl.u32 %v1671, 7
    %v1673 = vadd.s32 %v1672, 80
    %1674 = vset.pattern.permute.xlu0 %v1673
    %1675 = vperm.xlu0 %1674, %v1610
    %v1676 = vpop.permute.xlu0 %1675
    %v1677 = vlaneseq
    %v1678 = vshrl.u32 %v1677, 7
    %v1679 = vadd.s32 %v1678, 88
    %1680 = vset.pattern.permute.xlu0 %v1679
    %1681 = vperm.xlu0 %1680, %v1610
    %v1682 = vpop.permute.xlu0 %1681
    %v1683 = vlaneseq
    %v1684 = vshrl.u32 %v1683, 7
    %v1685 = vadd.s32 %v1684, 96
    %1686 = vset.pattern.permute.xlu0 %v1685
    %1687 = vperm.xlu0 %1686, %v1610
    %v1688 = vpop.permute.xlu0 %1687
    %v1689 = vlaneseq
    %v1690 = vshrl.u32 %v1689, 7
    %v1691 = vadd.s32 %v1690, 104
    %1692 = vset.pattern.permute.xlu0 %v1691
    %1693 = vperm.xlu0 %1692, %v1610
    %v1694 = vpop.permute.xlu0 %1693
    %v1695 = vlaneseq
    %v1696 = vshrl.u32 %v1695, 7
    %v1697 = vadd.s32 %v1696, 112
    %1698 = vset.pattern.permute.xlu0 %v1697
    %1699 = vperm.xlu0 %1698, %v1610
    %v1700 = vpop.permute.xlu0 %1699
    %v1701 = vlaneseq
    %v1702 = vshrl.u32 %v1701, 7
    %v1703 = vadd.s32 %v1702, 120
    %1704 = vset.pattern.permute.xlu0 %v1703
    %1705 = vperm.xlu0 %1704, %v1610
    %v1706 = vpop.permute.xlu0 %1705
    %v1707 = vperm.slane %v1087, 6
    %v1708 = vlaneseq
    %v1709 = vshrl.u32 %v1708, 7
    %1711 = vset.pattern.permute.xlu0 %v1709
    %1712 = vperm.xlu0 %1711, %v1707
    %v1713 = vpop.permute.xlu0 %1712
    %v1714 = vlaneseq
    %v1715 = vshrl.u32 %v1714, 7
    %v1716 = vadd.s32 %v1715, 8
    %1717 = vset.pattern.permute.xlu0 %v1716
    %1718 = vperm.xlu0 %1717, %v1707
    %v1719 = vpop.permute.xlu0 %1718
    %v1720 = vlaneseq
    %v1721 = vshrl.u32 %v1720, 7
    %v1722 = vadd.s32 %v1721, 16
    %1723 = vset.pattern.permute.xlu0 %v1722
    %1724 = vperm.xlu0 %1723, %v1707
    %v1725 = vpop.permute.xlu0 %1724
    %v1726 = vlaneseq
    %v1727 = vshrl.u32 %v1726, 7
    %v1728 = vadd.s32 %v1727, 24
    %1729 = vset.pattern.permute.xlu0 %v1728
    %1730 = vperm.xlu0 %1729, %v1707
    %v1731 = vpop.permute.xlu0 %1730
    %v1732 = vlaneseq
    %v1733 = vshrl.u32 %v1732, 7
    %v1734 = vadd.s32 %v1733, 32
    %1735 = vset.pattern.permute.xlu0 %v1734
    %1736 = vperm.xlu0 %1735, %v1707
    %v1737 = vpop.permute.xlu0 %1736
    %v1738 = vlaneseq
    %v1739 = vshrl.u32 %v1738, 7
    %v1740 = vadd.s32 %v1739, 40
    %1741 = vset.pattern.permute.xlu0 %v1740
    %1742 = vperm.xlu0 %1741, %v1707
    %v1743 = vpop.permute.xlu0 %1742
    %v1744 = vlaneseq
    %v1745 = vshrl.u32 %v1744, 7
    %v1746 = vadd.s32 %v1745, 48
    %1747 = vset.pattern.permute.xlu0 %v1746
    %1748 = vperm.xlu0 %1747, %v1707
    %v1749 = vpop.permute.xlu0 %1748
    %v1750 = vlaneseq
    %v1751 = vshrl.u32 %v1750, 7
    %v1752 = vadd.s32 %v1751, 56
    %1753 = vset.pattern.permute.xlu0 %v1752
    %1754 = vperm.xlu0 %1753, %v1707
    %v1755 = vpop.permute.xlu0 %1754
    %v1756 = vlaneseq
    %v1757 = vshrl.u32 %v1756, 7
    %v1758 = vadd.s32 %v1757, 64
    %1759 = vset.pattern.permute.xlu0 %v1758
    %1760 = vperm.xlu0 %1759, %v1707
    %v1761 = vpop.permute.xlu0 %1760
    %v1762 = vlaneseq
    %v1763 = vshrl.u32 %v1762, 7
    %v1764 = vadd.s32 %v1763, 72
    %1765 = vset.pattern.permute.xlu0 %v1764
    %1766 = vperm.xlu0 %1765, %v1707
    %v1767 = vpop.permute.xlu0 %1766
    %v1768 = vlaneseq
    %v1769 = vshrl.u32 %v1768, 7
    %v1770 = vadd.s32 %v1769, 80
    %1771 = vset.pattern.permute.xlu0 %v1770
    %1772 = vperm.xlu0 %1771, %v1707
    %v1773 = vpop.permute.xlu0 %1772
    %v1774 = vlaneseq
    %v1775 = vshrl.u32 %v1774, 7
    %v1776 = vadd.s32 %v1775, 88
    %1777 = vset.pattern.permute.xlu0 %v1776
    %1778 = vperm.xlu0 %1777, %v1707
    %v1779 = vpop.permute.xlu0 %1778
    %v1780 = vlaneseq
    %v1781 = vshrl.u32 %v1780, 7
    %v1782 = vadd.s32 %v1781, 96
    %1783 = vset.pattern.permute.xlu0 %v1782
    %1784 = vperm.xlu0 %1783, %v1707
    %v1785 = vpop.permute.xlu0 %1784
    %v1786 = vlaneseq
    %v1787 = vshrl.u32 %v1786, 7
    %v1788 = vadd.s32 %v1787, 104
    %1789 = vset.pattern.permute.xlu0 %v1788
    %1790 = vperm.xlu0 %1789, %v1707
    %v1791 = vpop.permute.xlu0 %1790
    %v1792 = vlaneseq
    %v1793 = vshrl.u32 %v1792, 7
    %v1794 = vadd.s32 %v1793, 112
    %1795 = vset.pattern.permute.xlu0 %v1794
    %1796 = vperm.xlu0 %1795, %v1707
    %v1797 = vpop.permute.xlu0 %1796
    %v1798 = vlaneseq
    %v1799 = vshrl.u32 %v1798, 7
    %v1800 = vadd.s32 %v1799, 120
    %1801 = vset.pattern.permute.xlu0 %v1800
    %1802 = vperm.xlu0 %1801, %v1707
    %v1803 = vpop.permute.xlu0 %1802
    %v1804 = vperm.slane %v1087, 7
    %v1805 = vlaneseq
    %v1806 = vshrl.u32 %v1805, 7
    %1808 = vset.pattern.permute.xlu0 %v1806
    %1809 = vperm.xlu0 %1808, %v1804
    %v1810 = vpop.permute.xlu0 %1809
    %v1811 = vlaneseq
    %v1812 = vshrl.u32 %v1811, 7
    %v1813 = vadd.s32 %v1812, 8
    %1814 = vset.pattern.permute.xlu0 %v1813
    %1815 = vperm.xlu0 %1814, %v1804
    %v1816 = vpop.permute.xlu0 %1815
    %v1817 = vlaneseq
    %v1818 = vshrl.u32 %v1817, 7
    %v1819 = vadd.s32 %v1818, 16
    %1820 = vset.pattern.permute.xlu0 %v1819
    %1821 = vperm.xlu0 %1820, %v1804
    %v1822 = vpop.permute.xlu0 %1821
    %v1823 = vlaneseq
    %v1824 = vshrl.u32 %v1823, 7
    %v1825 = vadd.s32 %v1824, 24
    %1826 = vset.pattern.permute.xlu0 %v1825
    %1827 = vperm.xlu0 %1826, %v1804
    %v1828 = vpop.permute.xlu0 %1827
    %v1829 = vlaneseq
    %v1830 = vshrl.u32 %v1829, 7
    %v1831 = vadd.s32 %v1830, 32
    %1832 = vset.pattern.permute.xlu0 %v1831
    %1833 = vperm.xlu0 %1832, %v1804
    %v1834 = vpop.permute.xlu0 %1833
    %v1835 = vlaneseq
    %v1836 = vshrl.u32 %v1835, 7
    %v1837 = vadd.s32 %v1836, 40
    %1838 = vset.pattern.permute.xlu0 %v1837
    %1839 = vperm.xlu0 %1838, %v1804
    %v1840 = vpop.permute.xlu0 %1839
    %v1841 = vlaneseq
    %v1842 = vshrl.u32 %v1841, 7
    %v1843 = vadd.s32 %v1842, 48
    %1844 = vset.pattern.permute.xlu0 %v1843
    %1845 = vperm.xlu0 %1844, %v1804
    %v1846 = vpop.permute.xlu0 %1845
    %v1847 = vlaneseq
    %v1848 = vshrl.u32 %v1847, 7
    %v1849 = vadd.s32 %v1848, 56
    %1850 = vset.pattern.permute.xlu0 %v1849
    %1851 = vperm.xlu0 %1850, %v1804
    %v1852 = vpop.permute.xlu0 %1851
    %v1853 = vlaneseq
    %v1854 = vshrl.u32 %v1853, 7
    %v1855 = vadd.s32 %v1854, 64
    %1856 = vset.pattern.permute.xlu0 %v1855
    %1857 = vperm.xlu0 %1856, %v1804
    %v1858 = vpop.permute.xlu0 %1857
    %v1859 = vlaneseq
    %v1860 = vshrl.u32 %v1859, 7
    %v1861 = vadd.s32 %v1860, 72
    %1862 = vset.pattern.permute.xlu0 %v1861
    %1863 = vperm.xlu0 %1862, %v1804
    %v1864 = vpop.permute.xlu0 %1863
    %v1865 = vlaneseq
    %v1866 = vshrl.u32 %v1865, 7
    %v1867 = vadd.s32 %v1866, 80
    %1868 = vset.pattern.permute.xlu0 %v1867
    %1869 = vperm.xlu0 %1868, %v1804
    %v1870 = vpop.permute.xlu0 %1869
    %v1871 = vlaneseq
    %v1872 = vshrl.u32 %v1871, 7
    %v1873 = vadd.s32 %v1872, 88
    %1874 = vset.pattern.permute.xlu0 %v1873
    %1875 = vperm.xlu0 %1874, %v1804
    %v1876 = vpop.permute.xlu0 %1875
    %v1877 = vlaneseq
    %v1878 = vshrl.u32 %v1877, 7
    %v1879 = vadd.s32 %v1878, 96
    %1880 = vset.pattern.permute.xlu0 %v1879
    %1881 = vperm.xlu0 %1880, %v1804
    %v1882 = vpop.permute.xlu0 %1881
    %v1883 = vlaneseq
    %v1884 = vshrl.u32 %v1883, 7
    %v1885 = vadd.s32 %v1884, 104
    %1886 = vset.pattern.permute.xlu0 %v1885
    %1887 = vperm.xlu0 %1886, %v1804
    %v1888 = vpop.permute.xlu0 %1887
    %v1889 = vlaneseq
    %v1890 = vshrl.u32 %v1889, 7
    %v1891 = vadd.s32 %v1890, 112
    %1892 = vset.pattern.permute.xlu0 %v1891
    %1893 = vperm.xlu0 %1892, %v1804
    %v1894 = vpop.permute.xlu0 %1893
    %v1895 = vlaneseq
    %v1896 = vshrl.u32 %v1895, 7
    %v1897 = vadd.s32 %v1896, 120
    %1898 = vset.pattern.permute.xlu0 %v1897
    %1899 = vperm.xlu0 %1898, %v1804
    %v1900 = vpop.permute.xlu0 %1899
    %v1901 = vperm.slane %v1088, 0
    %v1902 = vlaneseq
    %v1903 = vshrl.u32 %v1902, 7
    %1905 = vset.pattern.permute.xlu0 %v1903
    %1906 = vperm.xlu0 %1905, %v1901
    %v1907 = vpop.permute.xlu0 %1906
    %v1908 = vlaneseq
    %v1909 = vshrl.u32 %v1908, 7
    %v1910 = vadd.s32 %v1909, 8
    %1911 = vset.pattern.permute.xlu0 %v1910
    %1912 = vperm.xlu0 %1911, %v1901
    %v1913 = vpop.permute.xlu0 %1912
    %v1914 = vlaneseq
    %v1915 = vshrl.u32 %v1914, 7
    %v1916 = vadd.s32 %v1915, 16
    %1917 = vset.pattern.permute.xlu0 %v1916
    %1918 = vperm.xlu0 %1917, %v1901
    %v1919 = vpop.permute.xlu0 %1918
    %v1920 = vlaneseq
    %v1921 = vshrl.u32 %v1920, 7
    %v1922 = vadd.s32 %v1921, 24
    %1923 = vset.pattern.permute.xlu0 %v1922
    %1924 = vperm.xlu0 %1923, %v1901
    %v1925 = vpop.permute.xlu0 %1924
    %v1926 = vlaneseq
    %v1927 = vshrl.u32 %v1926, 7
    %v1928 = vadd.s32 %v1927, 32
    %1929 = vset.pattern.permute.xlu0 %v1928
    %1930 = vperm.xlu0 %1929, %v1901
    %v1931 = vpop.permute.xlu0 %1930
    %v1932 = vlaneseq
    %v1933 = vshrl.u32 %v1932, 7
    %v1934 = vadd.s32 %v1933, 40
    %1935 = vset.pattern.permute.xlu0 %v1934
    %1936 = vperm.xlu0 %1935, %v1901
    %v1937 = vpop.permute.xlu0 %1936
    %v1938 = vlaneseq
    %v1939 = vshrl.u32 %v1938, 7
    %v1940 = vadd.s32 %v1939, 48
    %1941 = vset.pattern.permute.xlu0 %v1940
    %1942 = vperm.xlu0 %1941, %v1901
    %v1943 = vpop.permute.xlu0 %1942
    %v1944 = vlaneseq
    %v1945 = vshrl.u32 %v1944, 7
    %v1946 = vadd.s32 %v1945, 56
    %1947 = vset.pattern.permute.xlu0 %v1946
    %1948 = vperm.xlu0 %1947, %v1901
    %v1949 = vpop.permute.xlu0 %1948
    %v1950 = vlaneseq
    %v1951 = vshrl.u32 %v1950, 7
    %v1952 = vadd.s32 %v1951, 64
    %1953 = vset.pattern.permute.xlu0 %v1952
    %1954 = vperm.xlu0 %1953, %v1901
    %v1955 = vpop.permute.xlu0 %1954
    %v1956 = vlaneseq
    %v1957 = vshrl.u32 %v1956, 7
    %v1958 = vadd.s32 %v1957, 72
    %1959 = vset.pattern.permute.xlu0 %v1958
    %1960 = vperm.xlu0 %1959, %v1901
    %v1961 = vpop.permute.xlu0 %1960
    %v1962 = vlaneseq
    %v1963 = vshrl.u32 %v1962, 7
    %v1964 = vadd.s32 %v1963, 80
    %1965 = vset.pattern.permute.xlu0 %v1964
    %1966 = vperm.xlu0 %1965, %v1901
    %v1967 = vpop.permute.xlu0 %1966
    %v1968 = vlaneseq
    %v1969 = vshrl.u32 %v1968, 7
    %v1970 = vadd.s32 %v1969, 88
    %1971 = vset.pattern.permute.xlu0 %v1970
    %1972 = vperm.xlu0 %1971, %v1901
    %v1973 = vpop.permute.xlu0 %1972
    %v1974 = vlaneseq
    %v1975 = vshrl.u32 %v1974, 7
    %v1976 = vadd.s32 %v1975, 96
    %1977 = vset.pattern.permute.xlu0 %v1976
    %1978 = vperm.xlu0 %1977, %v1901
    %v1979 = vpop.permute.xlu0 %1978
    %v1980 = vlaneseq
    %v1981 = vshrl.u32 %v1980, 7
    %v1982 = vadd.s32 %v1981, 104
    %1983 = vset.pattern.permute.xlu0 %v1982
    %1984 = vperm.xlu0 %1983, %v1901
    %v1985 = vpop.permute.xlu0 %1984
    %v1986 = vlaneseq
    %v1987 = vshrl.u32 %v1986, 7
    %v1988 = vadd.s32 %v1987, 112
    %1989 = vset.pattern.permute.xlu0 %v1988
    %1990 = vperm.xlu0 %1989, %v1901
    %v1991 = vpop.permute.xlu0 %1990
    %v1992 = vlaneseq
    %v1993 = vshrl.u32 %v1992, 7
    %v1994 = vadd.s32 %v1993, 120
    %1995 = vset.pattern.permute.xlu0 %v1994
    %1996 = vperm.xlu0 %1995, %v1901
    %v1997 = vpop.permute.xlu0 %1996
    %v1998 = vperm.slane %v1088, 1
    %v1999 = vlaneseq
    %v2000 = vshrl.u32 %v1999, 7
    %2002 = vset.pattern.permute.xlu0 %v2000
    %2003 = vperm.xlu0 %2002, %v1998
    %v2004 = vpop.permute.xlu0 %2003
    %v2005 = vlaneseq
    %v2006 = vshrl.u32 %v2005, 7
    %v2007 = vadd.s32 %v2006, 8
    %2008 = vset.pattern.permute.xlu0 %v2007
    %2009 = vperm.xlu0 %2008, %v1998
    %v2010 = vpop.permute.xlu0 %2009
    %v2011 = vlaneseq
    %v2012 = vshrl.u32 %v2011, 7
    %v2013 = vadd.s32 %v2012, 16
    %2014 = vset.pattern.permute.xlu0 %v2013
    %2015 = vperm.xlu0 %2014, %v1998
    %v2016 = vpop.permute.xlu0 %2015
    %v2017 = vlaneseq
    %v2018 = vshrl.u32 %v2017, 7
    %v2019 = vadd.s32 %v2018, 24
    %2020 = vset.pattern.permute.xlu0 %v2019
    %2021 = vperm.xlu0 %2020, %v1998
    %v2022 = vpop.permute.xlu0 %2021
    %v2023 = vlaneseq
    %v2024 = vshrl.u32 %v2023, 7
    %v2025 = vadd.s32 %v2024, 32
    %2026 = vset.pattern.permute.xlu0 %v2025
    %2027 = vperm.xlu0 %2026, %v1998
    %v2028 = vpop.permute.xlu0 %2027
    %v2029 = vlaneseq
    %v2030 = vshrl.u32 %v2029, 7
    %v2031 = vadd.s32 %v2030, 40
    %2032 = vset.pattern.permute.xlu0 %v2031
    %2033 = vperm.xlu0 %2032, %v1998
    %v2034 = vpop.permute.xlu0 %2033
    %v2035 = vlaneseq
    %v2036 = vshrl.u32 %v2035, 7
    %v2037 = vadd.s32 %v2036, 48
    %2038 = vset.pattern.permute.xlu0 %v2037
    %2039 = vperm.xlu0 %2038, %v1998
    %v2040 = vpop.permute.xlu0 %2039
    %v2041 = vlaneseq
    %v2042 = vshrl.u32 %v2041, 7
    %v2043 = vadd.s32 %v2042, 56
    %2044 = vset.pattern.permute.xlu0 %v2043
    %2045 = vperm.xlu0 %2044, %v1998
    %v2046 = vpop.permute.xlu0 %2045
    %v2047 = vlaneseq
    %v2048 = vshrl.u32 %v2047, 7
    %v2049 = vadd.s32 %v2048, 64
    %2050 = vset.pattern.permute.xlu0 %v2049
    %2051 = vperm.xlu0 %2050, %v1998
    %v2052 = vpop.permute.xlu0 %2051
    %v2053 = vlaneseq
    %v2054 = vshrl.u32 %v2053, 7
    %v2055 = vadd.s32 %v2054, 72
    %2056 = vset.pattern.permute.xlu0 %v2055
    %2057 = vperm.xlu0 %2056, %v1998
    %v2058 = vpop.permute.xlu0 %2057
    %v2059 = vlaneseq
    %v2060 = vshrl.u32 %v2059, 7
    %v2061 = vadd.s32 %v2060, 80
    %2062 = vset.pattern.permute.xlu0 %v2061
    %2063 = vperm.xlu0 %2062, %v1998
    %v2064 = vpop.permute.xlu0 %2063
    %v2065 = vlaneseq
    %v2066 = vshrl.u32 %v2065, 7
    %v2067 = vadd.s32 %v2066, 88
    %2068 = vset.pattern.permute.xlu0 %v2067
    %2069 = vperm.xlu0 %2068, %v1998
    %v2070 = vpop.permute.xlu0 %2069
    %v2071 = vlaneseq
    %v2072 = vshrl.u32 %v2071, 7
    %v2073 = vadd.s32 %v2072, 96
    %2074 = vset.pattern.permute.xlu0 %v2073
    %2075 = vperm.xlu0 %2074, %v1998
    %v2076 = vpop.permute.xlu0 %2075
    %v2077 = vlaneseq
    %v2078 = vshrl.u32 %v2077, 7
    %v2079 = vadd.s32 %v2078, 104
    %2080 = vset.pattern.permute.xlu0 %v2079
    %2081 = vperm.xlu0 %2080, %v1998
    %v2082 = vpop.permute.xlu0 %2081
    %v2083 = vlaneseq
    %v2084 = vshrl.u32 %v2083, 7
    %v2085 = vadd.s32 %v2084, 112
    %2086 = vset.pattern.permute.xlu0 %v2085
    %2087 = vperm.xlu0 %2086, %v1998
    %v2088 = vpop.permute.xlu0 %2087
    %v2089 = vlaneseq
    %v2090 = vshrl.u32 %v2089, 7
    %v2091 = vadd.s32 %v2090, 120
    %2092 = vset.pattern.permute.xlu0 %v2091
    %2093 = vperm.xlu0 %2092, %v1998
    %v2094 = vpop.permute.xlu0 %2093
    %v2095 = vperm.slane %v1088, 2
    %v2096 = vlaneseq
    %v2097 = vshrl.u32 %v2096, 7
    %2099 = vset.pattern.permute.xlu0 %v2097
    %2100 = vperm.xlu0 %2099, %v2095
    %v2101 = vpop.permute.xlu0 %2100
    %v2102 = vlaneseq
    %v2103 = vshrl.u32 %v2102, 7
    %v2104 = vadd.s32 %v2103, 8
    %2105 = vset.pattern.permute.xlu0 %v2104
    %2106 = vperm.xlu0 %2105, %v2095
    %v2107 = vpop.permute.xlu0 %2106
    %v2108 = vlaneseq
    %v2109 = vshrl.u32 %v2108, 7
    %v2110 = vadd.s32 %v2109, 16
    %2111 = vset.pattern.permute.xlu0 %v2110
    %2112 = vperm.xlu0 %2111, %v2095
    %v2113 = vpop.permute.xlu0 %2112
    %v2114 = vlaneseq
    %v2115 = vshrl.u32 %v2114, 7
    %v2116 = vadd.s32 %v2115, 24
    %2117 = vset.pattern.permute.xlu0 %v2116
    %2118 = vperm.xlu0 %2117, %v2095
    %v2119 = vpop.permute.xlu0 %2118
    %v2120 = vlaneseq
    %v2121 = vshrl.u32 %v2120, 7
    %v2122 = vadd.s32 %v2121, 32
    %2123 = vset.pattern.permute.xlu0 %v2122
    %2124 = vperm.xlu0 %2123, %v2095
    %v2125 = vpop.permute.xlu0 %2124
    %v2126 = vlaneseq
    %v2127 = vshrl.u32 %v2126, 7
    %v2128 = vadd.s32 %v2127, 40
    %2129 = vset.pattern.permute.xlu0 %v2128
    %2130 = vperm.xlu0 %2129, %v2095
    %v2131 = vpop.permute.xlu0 %2130
    %v2132 = vlaneseq
    %v2133 = vshrl.u32 %v2132, 7
    %v2134 = vadd.s32 %v2133, 48
    %2135 = vset.pattern.permute.xlu0 %v2134
    %2136 = vperm.xlu0 %2135, %v2095
    %v2137 = vpop.permute.xlu0 %2136
    %v2138 = vlaneseq
    %v2139 = vshrl.u32 %v2138, 7
    %v2140 = vadd.s32 %v2139, 56
    %2141 = vset.pattern.permute.xlu0 %v2140
    %2142 = vperm.xlu0 %2141, %v2095
    %v2143 = vpop.permute.xlu0 %2142
    %v2144 = vlaneseq
    %v2145 = vshrl.u32 %v2144, 7
    %v2146 = vadd.s32 %v2145, 64
    %2147 = vset.pattern.permute.xlu0 %v2146
    %2148 = vperm.xlu0 %2147, %v2095
    %v2149 = vpop.permute.xlu0 %2148
    %v2150 = vlaneseq
    %v2151 = vshrl.u32 %v2150, 7
    %v2152 = vadd.s32 %v2151, 72
    %2153 = vset.pattern.permute.xlu0 %v2152
    %2154 = vperm.xlu0 %2153, %v2095
    %v2155 = vpop.permute.xlu0 %2154
    %v2156 = vlaneseq
    %v2157 = vshrl.u32 %v2156, 7
    %v2158 = vadd.s32 %v2157, 80
    %2159 = vset.pattern.permute.xlu0 %v2158
    %2160 = vperm.xlu0 %2159, %v2095
    %v2161 = vpop.permute.xlu0 %2160
    %v2162 = vlaneseq
    %v2163 = vshrl.u32 %v2162, 7
    %v2164 = vadd.s32 %v2163, 88
    %2165 = vset.pattern.permute.xlu0 %v2164
    %2166 = vperm.xlu0 %2165, %v2095
    %v2167 = vpop.permute.xlu0 %2166
    %v2168 = vlaneseq
    %v2169 = vshrl.u32 %v2168, 7
    %v2170 = vadd.s32 %v2169, 96
    %2171 = vset.pattern.permute.xlu0 %v2170
    %2172 = vperm.xlu0 %2171, %v2095
    %v2173 = vpop.permute.xlu0 %2172
    %v2174 = vlaneseq
    %v2175 = vshrl.u32 %v2174, 7
    %v2176 = vadd.s32 %v2175, 104
    %2177 = vset.pattern.permute.xlu0 %v2176
    %2178 = vperm.xlu0 %2177, %v2095
    %v2179 = vpop.permute.xlu0 %2178
    %v2180 = vlaneseq
    %v2181 = vshrl.u32 %v2180, 7
    %v2182 = vadd.s32 %v2181, 112
    %2183 = vset.pattern.permute.xlu0 %v2182
    %2184 = vperm.xlu0 %2183, %v2095
    %v2185 = vpop.permute.xlu0 %2184
    %v2186 = vlaneseq
    %v2187 = vshrl.u32 %v2186, 7
    %v2188 = vadd.s32 %v2187, 120
    %2189 = vset.pattern.permute.xlu0 %v2188
    %2190 = vperm.xlu0 %2189, %v2095
    %v2191 = vpop.permute.xlu0 %2190
    %v2192 = vperm.slane %v1088, 3
    %v2193 = vlaneseq
    %v2194 = vshrl.u32 %v2193, 7
    %2196 = vset.pattern.permute.xlu0 %v2194
    %2197 = vperm.xlu0 %2196, %v2192
    %v2198 = vpop.permute.xlu0 %2197
    %v2199 = vlaneseq
    %v2200 = vshrl.u32 %v2199, 7
    %v2201 = vadd.s32 %v2200, 8
    %2202 = vset.pattern.permute.xlu0 %v2201
    %2203 = vperm.xlu0 %2202, %v2192
    %v2204 = vpop.permute.xlu0 %2203
    %v2205 = vlaneseq
    %v2206 = vshrl.u32 %v2205, 7
    %v2207 = vadd.s32 %v2206, 16
    %2208 = vset.pattern.permute.xlu0 %v2207
    %2209 = vperm.xlu0 %2208, %v2192
    %v2210 = vpop.permute.xlu0 %2209
    %v2211 = vlaneseq
    %v2212 = vshrl.u32 %v2211, 7
    %v2213 = vadd.s32 %v2212, 24
    %2214 = vset.pattern.permute.xlu0 %v2213
    %2215 = vperm.xlu0 %2214, %v2192
    %v2216 = vpop.permute.xlu0 %2215
    %v2217 = vlaneseq
    %v2218 = vshrl.u32 %v2217, 7
    %v2219 = vadd.s32 %v2218, 32
    %2220 = vset.pattern.permute.xlu0 %v2219
    %2221 = vperm.xlu0 %2220, %v2192
    %v2222 = vpop.permute.xlu0 %2221
    %v2223 = vlaneseq
    %v2224 = vshrl.u32 %v2223, 7
    %v2225 = vadd.s32 %v2224, 40
    %2226 = vset.pattern.permute.xlu0 %v2225
    %2227 = vperm.xlu0 %2226, %v2192
    %v2228 = vpop.permute.xlu0 %2227
    %v2229 = vlaneseq
    %v2230 = vshrl.u32 %v2229, 7
    %v2231 = vadd.s32 %v2230, 48
    %2232 = vset.pattern.permute.xlu0 %v2231
    %2233 = vperm.xlu0 %2232, %v2192
    %v2234 = vpop.permute.xlu0 %2233
    %v2235 = vlaneseq
    %v2236 = vshrl.u32 %v2235, 7
    %v2237 = vadd.s32 %v2236, 56
    %2238 = vset.pattern.permute.xlu0 %v2237
    %2239 = vperm.xlu0 %2238, %v2192
    %v2240 = vpop.permute.xlu0 %2239
    %v2241 = vlaneseq
    %v2242 = vshrl.u32 %v2241, 7
    %v2243 = vadd.s32 %v2242, 64
    %2244 = vset.pattern.permute.xlu0 %v2243
    %2245 = vperm.xlu0 %2244, %v2192
    %v2246 = vpop.permute.xlu0 %2245
    %v2247 = vlaneseq
    %v2248 = vshrl.u32 %v2247, 7
    %v2249 = vadd.s32 %v2248, 72
    %2250 = vset.pattern.permute.xlu0 %v2249
    %2251 = vperm.xlu0 %2250, %v2192
    %v2252 = vpop.permute.xlu0 %2251
    %v2253 = vlaneseq
    %v2254 = vshrl.u32 %v2253, 7
    %v2255 = vadd.s32 %v2254, 80
    %2256 = vset.pattern.permute.xlu0 %v2255
    %2257 = vperm.xlu0 %2256, %v2192
    %v2258 = vpop.permute.xlu0 %2257
    %v2259 = vlaneseq
    %v2260 = vshrl.u32 %v2259, 7
    %v2261 = vadd.s32 %v2260, 88
    %2262 = vset.pattern.permute.xlu0 %v2261
    %2263 = vperm.xlu0 %2262, %v2192
    %v2264 = vpop.permute.xlu0 %2263
    %v2265 = vlaneseq
    %v2266 = vshrl.u32 %v2265, 7
    %v2267 = vadd.s32 %v2266, 96
    %2268 = vset.pattern.permute.xlu0 %v2267
    %2269 = vperm.xlu0 %2268, %v2192
    %v2270 = vpop.permute.xlu0 %2269
    %v2271 = vlaneseq
    %v2272 = vshrl.u32 %v2271, 7
    %v2273 = vadd.s32 %v2272, 104
    %2274 = vset.pattern.permute.xlu0 %v2273
    %2275 = vperm.xlu0 %2274, %v2192
    %v2276 = vpop.permute.xlu0 %2275
    %v2277 = vlaneseq
    %v2278 = vshrl.u32 %v2277, 7
    %v2279 = vadd.s32 %v2278, 112
    %2280 = vset.pattern.permute.xlu0 %v2279
    %2281 = vperm.xlu0 %2280, %v2192
    %v2282 = vpop.permute.xlu0 %2281
    %v2283 = vlaneseq
    %v2284 = vshrl.u32 %v2283, 7
    %v2285 = vadd.s32 %v2284, 120
    %2286 = vset.pattern.permute.xlu0 %v2285
    %2287 = vperm.xlu0 %2286, %v2192
    %v2288 = vpop.permute.xlu0 %2287
    %v2289 = vperm.slane %v1088, 4
    %v2290 = vlaneseq
    %v2291 = vshrl.u32 %v2290, 7
    %2293 = vset.pattern.permute.xlu0 %v2291
    %2294 = vperm.xlu0 %2293, %v2289
    %v2295 = vpop.permute.xlu0 %2294
    %v2296 = vlaneseq
    %v2297 = vshrl.u32 %v2296, 7
    %v2298 = vadd.s32 %v2297, 8
    %2299 = vset.pattern.permute.xlu0 %v2298
    %2300 = vperm.xlu0 %2299, %v2289
    %v2301 = vpop.permute.xlu0 %2300
    %v2302 = vlaneseq
    %v2303 = vshrl.u32 %v2302, 7
    %v2304 = vadd.s32 %v2303, 16
    %2305 = vset.pattern.permute.xlu0 %v2304
    %2306 = vperm.xlu0 %2305, %v2289
    %v2307 = vpop.permute.xlu0 %2306
    %v2308 = vlaneseq
    %v2309 = vshrl.u32 %v2308, 7
    %v2310 = vadd.s32 %v2309, 24
    %2311 = vset.pattern.permute.xlu0 %v2310
    %2312 = vperm.xlu0 %2311, %v2289
    %v2313 = vpop.permute.xlu0 %2312
    %v2314 = vlaneseq
    %v2315 = vshrl.u32 %v2314, 7
    %v2316 = vadd.s32 %v2315, 32
    %2317 = vset.pattern.permute.xlu0 %v2316
    %2318 = vperm.xlu0 %2317, %v2289
    %v2319 = vpop.permute.xlu0 %2318
    %v2320 = vlaneseq
    %v2321 = vshrl.u32 %v2320, 7
    %v2322 = vadd.s32 %v2321, 40
    %2323 = vset.pattern.permute.xlu0 %v2322
    %2324 = vperm.xlu0 %2323, %v2289
    %v2325 = vpop.permute.xlu0 %2324
    %v2326 = vlaneseq
    %v2327 = vshrl.u32 %v2326, 7
    %v2328 = vadd.s32 %v2327, 48
    %2329 = vset.pattern.permute.xlu0 %v2328
    %2330 = vperm.xlu0 %2329, %v2289
    %v2331 = vpop.permute.xlu0 %2330
    %v2332 = vlaneseq
    %v2333 = vshrl.u32 %v2332, 7
    %v2334 = vadd.s32 %v2333, 56
    %2335 = vset.pattern.permute.xlu0 %v2334
    %2336 = vperm.xlu0 %2335, %v2289
    %v2337 = vpop.permute.xlu0 %2336
    %v2338 = vlaneseq
    %v2339 = vshrl.u32 %v2338, 7
    %v2340 = vadd.s32 %v2339, 64
    %2341 = vset.pattern.permute.xlu0 %v2340
    %2342 = vperm.xlu0 %2341, %v2289
    %v2343 = vpop.permute.xlu0 %2342
    %v2344 = vlaneseq
    %v2345 = vshrl.u32 %v2344, 7
    %v2346 = vadd.s32 %v2345, 72
    %2347 = vset.pattern.permute.xlu0 %v2346
    %2348 = vperm.xlu0 %2347, %v2289
    %v2349 = vpop.permute.xlu0 %2348
    %v2350 = vlaneseq
    %v2351 = vshrl.u32 %v2350, 7
    %v2352 = vadd.s32 %v2351, 80
    %2353 = vset.pattern.permute.xlu0 %v2352
    %2354 = vperm.xlu0 %2353, %v2289
    %v2355 = vpop.permute.xlu0 %2354
    %v2356 = vlaneseq
    %v2357 = vshrl.u32 %v2356, 7
    %v2358 = vadd.s32 %v2357, 88
    %2359 = vset.pattern.permute.xlu0 %v2358
    %2360 = vperm.xlu0 %2359, %v2289
    %v2361 = vpop.permute.xlu0 %2360
    %v2362 = vlaneseq
    %v2363 = vshrl.u32 %v2362, 7
    %v2364 = vadd.s32 %v2363, 96
    %2365 = vset.pattern.permute.xlu0 %v2364
    %2366 = vperm.xlu0 %2365, %v2289
    %v2367 = vpop.permute.xlu0 %2366
    %v2368 = vlaneseq
    %v2369 = vshrl.u32 %v2368, 7
    %v2370 = vadd.s32 %v2369, 104
    %2371 = vset.pattern.permute.xlu0 %v2370
    %2372 = vperm.xlu0 %2371, %v2289
    %v2373 = vpop.permute.xlu0 %2372
    %v2374 = vlaneseq
    %v2375 = vshrl.u32 %v2374, 7
    %v2376 = vadd.s32 %v2375, 112
    %2377 = vset.pattern.permute.xlu0 %v2376
    %2378 = vperm.xlu0 %2377, %v2289
    %v2379 = vpop.permute.xlu0 %2378
    %v2380 = vlaneseq
    %v2381 = vshrl.u32 %v2380, 7
    %v2382 = vadd.s32 %v2381, 120
    %2383 = vset.pattern.permute.xlu0 %v2382
    %2384 = vperm.xlu0 %2383, %v2289
    %v2385 = vpop.permute.xlu0 %2384
    %v2386 = vperm.slane %v1088, 5
    %v2387 = vlaneseq
    %v2388 = vshrl.u32 %v2387, 7
    %2390 = vset.pattern.permute.xlu0 %v2388
    %2391 = vperm.xlu0 %2390, %v2386
    %v2392 = vpop.permute.xlu0 %2391
    %v2393 = vlaneseq
    %v2394 = vshrl.u32 %v2393, 7
    %v2395 = vadd.s32 %v2394, 8
    %2396 = vset.pattern.permute.xlu0 %v2395
    %2397 = vperm.xlu0 %2396, %v2386
    %v2398 = vpop.permute.xlu0 %2397
    %v2399 = vlaneseq
    %v2400 = vshrl.u32 %v2399, 7
    %v2401 = vadd.s32 %v2400, 16
    %2402 = vset.pattern.permute.xlu0 %v2401
    %2403 = vperm.xlu0 %2402, %v2386
    %v2404 = vpop.permute.xlu0 %2403
    %v2405 = vlaneseq
    %v2406 = vshrl.u32 %v2405, 7
    %v2407 = vadd.s32 %v2406, 24
    %2408 = vset.pattern.permute.xlu0 %v2407
    %2409 = vperm.xlu0 %2408, %v2386
    %v2410 = vpop.permute.xlu0 %2409
    %v2411 = vlaneseq
    %v2412 = vshrl.u32 %v2411, 7
    %v2413 = vadd.s32 %v2412, 32
    %2414 = vset.pattern.permute.xlu0 %v2413
    %2415 = vperm.xlu0 %2414, %v2386
    %v2416 = vpop.permute.xlu0 %2415
    %v2417 = vlaneseq
    %v2418 = vshrl.u32 %v2417, 7
    %v2419 = vadd.s32 %v2418, 40
    %2420 = vset.pattern.permute.xlu0 %v2419
    %2421 = vperm.xlu0 %2420, %v2386
    %v2422 = vpop.permute.xlu0 %2421
    %v2423 = vlaneseq
    %v2424 = vshrl.u32 %v2423, 7
    %v2425 = vadd.s32 %v2424, 48
    %2426 = vset.pattern.permute.xlu0 %v2425
    %2427 = vperm.xlu0 %2426, %v2386
    %v2428 = vpop.permute.xlu0 %2427
    %v2429 = vlaneseq
    %v2430 = vshrl.u32 %v2429, 7
    %v2431 = vadd.s32 %v2430, 56
    %2432 = vset.pattern.permute.xlu0 %v2431
    %2433 = vperm.xlu0 %2432, %v2386
    %v2434 = vpop.permute.xlu0 %2433
    %v2435 = vlaneseq
    %v2436 = vshrl.u32 %v2435, 7
    %v2437 = vadd.s32 %v2436, 64
    %2438 = vset.pattern.permute.xlu0 %v2437
    %2439 = vperm.xlu0 %2438, %v2386
    %v2440 = vpop.permute.xlu0 %2439
    %v2441 = vlaneseq
    %v2442 = vshrl.u32 %v2441, 7
    %v2443 = vadd.s32 %v2442, 72
    %2444 = vset.pattern.permute.xlu0 %v2443
    %2445 = vperm.xlu0 %2444, %v2386
    %v2446 = vpop.permute.xlu0 %2445
    %v2447 = vlaneseq
    %v2448 = vshrl.u32 %v2447, 7
    %v2449 = vadd.s32 %v2448, 80
    %2450 = vset.pattern.permute.xlu0 %v2449
    %2451 = vperm.xlu0 %2450, %v2386
    %v2452 = vpop.permute.xlu0 %2451
    %v2453 = vlaneseq
    %v2454 = vshrl.u32 %v2453, 7
    %v2455 = vadd.s32 %v2454, 88
    %2456 = vset.pattern.permute.xlu0 %v2455
    %2457 = vperm.xlu0 %2456, %v2386
    %v2458 = vpop.permute.xlu0 %2457
    %v2459 = vlaneseq
    %v2460 = vshrl.u32 %v2459, 7
    %v2461 = vadd.s32 %v2460, 96
    %2462 = vset.pattern.permute.xlu0 %v2461
    %2463 = vperm.xlu0 %2462, %v2386
    %v2464 = vpop.permute.xlu0 %2463
    %v2465 = vlaneseq
    %v2466 = vshrl.u32 %v2465, 7
    %v2467 = vadd.s32 %v2466, 104
    %2468 = vset.pattern.permute.xlu0 %v2467
    %2469 = vperm.xlu0 %2468, %v2386
    %v2470 = vpop.permute.xlu0 %2469
    %v2471 = vlaneseq
    %v2472 = vshrl.u32 %v2471, 7
    %v2473 = vadd.s32 %v2472, 112
    %2474 = vset.pattern.permute.xlu0 %v2473
    %2475 = vperm.xlu0 %2474, %v2386
    %v2476 = vpop.permute.xlu0 %2475
    %v2477 = vlaneseq
    %v2478 = vshrl.u32 %v2477, 7
    %v2479 = vadd.s32 %v2478, 120
    %2480 = vset.pattern.permute.xlu0 %v2479
    %2481 = vperm.xlu0 %2480, %v2386
    %v2482 = vpop.permute.xlu0 %2481
    %v2483 = vperm.slane %v1088, 6
    %v2484 = vlaneseq
    %v2485 = vshrl.u32 %v2484, 7
    %2487 = vset.pattern.permute.xlu0 %v2485
    %2488 = vperm.xlu0 %2487, %v2483
    %v2489 = vpop.permute.xlu0 %2488
    %v2490 = vlaneseq
    %v2491 = vshrl.u32 %v2490, 7
    %v2492 = vadd.s32 %v2491, 8
    %2493 = vset.pattern.permute.xlu0 %v2492
    %2494 = vperm.xlu0 %2493, %v2483
    %v2495 = vpop.permute.xlu0 %2494
    %v2496 = vlaneseq
    %v2497 = vshrl.u32 %v2496, 7
    %v2498 = vadd.s32 %v2497, 16
    %2499 = vset.pattern.permute.xlu0 %v2498
    %2500 = vperm.xlu0 %2499, %v2483
    %v2501 = vpop.permute.xlu0 %2500
    %v2502 = vlaneseq
    %v2503 = vshrl.u32 %v2502, 7
    %v2504 = vadd.s32 %v2503, 24
    %2505 = vset.pattern.permute.xlu0 %v2504
    %2506 = vperm.xlu0 %2505, %v2483
    %v2507 = vpop.permute.xlu0 %2506
    %v2508 = vlaneseq
    %v2509 = vshrl.u32 %v2508, 7
    %v2510 = vadd.s32 %v2509, 32
    %2511 = vset.pattern.permute.xlu0 %v2510
    %2512 = vperm.xlu0 %2511, %v2483
    %v2513 = vpop.permute.xlu0 %2512
    %v2514 = vlaneseq
    %v2515 = vshrl.u32 %v2514, 7
    %v2516 = vadd.s32 %v2515, 40
    %2517 = vset.pattern.permute.xlu0 %v2516
    %2518 = vperm.xlu0 %2517, %v2483
    %v2519 = vpop.permute.xlu0 %2518
    %v2520 = vlaneseq
    %v2521 = vshrl.u32 %v2520, 7
    %v2522 = vadd.s32 %v2521, 48
    %2523 = vset.pattern.permute.xlu0 %v2522
    %2524 = vperm.xlu0 %2523, %v2483
    %v2525 = vpop.permute.xlu0 %2524
    %v2526 = vlaneseq
    %v2527 = vshrl.u32 %v2526, 7
    %v2528 = vadd.s32 %v2527, 56
    %2529 = vset.pattern.permute.xlu0 %v2528
    %2530 = vperm.xlu0 %2529, %v2483
    %v2531 = vpop.permute.xlu0 %2530
    %v2532 = vlaneseq
    %v2533 = vshrl.u32 %v2532, 7
    %v2534 = vadd.s32 %v2533, 64
    %2535 = vset.pattern.permute.xlu0 %v2534
    %2536 = vperm.xlu0 %2535, %v2483
    %v2537 = vpop.permute.xlu0 %2536
    %v2538 = vlaneseq
    %v2539 = vshrl.u32 %v2538, 7
    %v2540 = vadd.s32 %v2539, 72
    %2541 = vset.pattern.permute.xlu0 %v2540
    %2542 = vperm.xlu0 %2541, %v2483
    %v2543 = vpop.permute.xlu0 %2542
    %v2544 = vlaneseq
    %v2545 = vshrl.u32 %v2544, 7
    %v2546 = vadd.s32 %v2545, 80
    %2547 = vset.pattern.permute.xlu0 %v2546
    %2548 = vperm.xlu0 %2547, %v2483
    %v2549 = vpop.permute.xlu0 %2548
    %v2550 = vlaneseq
    %v2551 = vshrl.u32 %v2550, 7
    %v2552 = vadd.s32 %v2551, 88
    %2553 = vset.pattern.permute.xlu0 %v2552
    %2554 = vperm.xlu0 %2553, %v2483
    %v2555 = vpop.permute.xlu0 %2554
    %v2556 = vlaneseq
    %v2557 = vshrl.u32 %v2556, 7
    %v2558 = vadd.s32 %v2557, 96
    %2559 = vset.pattern.permute.xlu0 %v2558
    %2560 = vperm.xlu0 %2559, %v2483
    %v2561 = vpop.permute.xlu0 %2560
    %v2562 = vlaneseq
    %v2563 = vshrl.u32 %v2562, 7
    %v2564 = vadd.s32 %v2563, 104
    %2565 = vset.pattern.permute.xlu0 %v2564
    %2566 = vperm.xlu0 %2565, %v2483
    %v2567 = vpop.permute.xlu0 %2566
    %v2568 = vlaneseq
    %v2569 = vshrl.u32 %v2568, 7
    %v2570 = vadd.s32 %v2569, 112
    %2571 = vset.pattern.permute.xlu0 %v2570
    %2572 = vperm.xlu0 %2571, %v2483
    %v2573 = vpop.permute.xlu0 %2572
    %v2574 = vlaneseq
    %v2575 = vshrl.u32 %v2574, 7
    %v2576 = vadd.s32 %v2575, 120
    %2577 = vset.pattern.permute.xlu0 %v2576
    %2578 = vperm.xlu0 %2577, %v2483
    %v2579 = vpop.permute.xlu0 %2578
    %v2580 = vperm.slane %v1088, 7
    %v2581 = vlaneseq
    %v2582 = vshrl.u32 %v2581, 7
    %2584 = vset.pattern.permute.xlu0 %v2582
    %2585 = vperm.xlu0 %2584, %v2580
    %v2586 = vpop.permute.xlu0 %2585
    %v2587 = vlaneseq
    %v2588 = vshrl.u32 %v2587, 7
    %v2589 = vadd.s32 %v2588, 8
    %2590 = vset.pattern.permute.xlu0 %v2589
    %2591 = vperm.xlu0 %2590, %v2580
    %v2592 = vpop.permute.xlu0 %2591
    %v2593 = vlaneseq
    %v2594 = vshrl.u32 %v2593, 7
    %v2595 = vadd.s32 %v2594, 16
    %2596 = vset.pattern.permute.xlu0 %v2595
    %2597 = vperm.xlu0 %2596, %v2580
    %v2598 = vpop.permute.xlu0 %2597
    %v2599 = vlaneseq
    %v2600 = vshrl.u32 %v2599, 7
    %v2601 = vadd.s32 %v2600, 24
    %2602 = vset.pattern.permute.xlu0 %v2601
    %2603 = vperm.xlu0 %2602, %v2580
    %v2604 = vpop.permute.xlu0 %2603
    %v2605 = vlaneseq
    %v2606 = vshrl.u32 %v2605, 7
    %v2607 = vadd.s32 %v2606, 32
    %2608 = vset.pattern.permute.xlu0 %v2607
    %2609 = vperm.xlu0 %2608, %v2580
    %v2610 = vpop.permute.xlu0 %2609
    %v2611 = vlaneseq
    %v2612 = vshrl.u32 %v2611, 7
    %v2613 = vadd.s32 %v2612, 40
    %2614 = vset.pattern.permute.xlu0 %v2613
    %2615 = vperm.xlu0 %2614, %v2580
    %v2616 = vpop.permute.xlu0 %2615
    %v2617 = vlaneseq
    %v2618 = vshrl.u32 %v2617, 7
    %v2619 = vadd.s32 %v2618, 48
    %2620 = vset.pattern.permute.xlu0 %v2619
    %2621 = vperm.xlu0 %2620, %v2580
    %v2622 = vpop.permute.xlu0 %2621
    %v2623 = vlaneseq
    %v2624 = vshrl.u32 %v2623, 7
    %v2625 = vadd.s32 %v2624, 56
    %2626 = vset.pattern.permute.xlu0 %v2625
    %2627 = vperm.xlu0 %2626, %v2580
    %v2628 = vpop.permute.xlu0 %2627
    %v2629 = vlaneseq
    %v2630 = vshrl.u32 %v2629, 7
    %v2631 = vadd.s32 %v2630, 64
    %2632 = vset.pattern.permute.xlu0 %v2631
    %2633 = vperm.xlu0 %2632, %v2580
    %v2634 = vpop.permute.xlu0 %2633
    %v2635 = vlaneseq
    %v2636 = vshrl.u32 %v2635, 7
    %v2637 = vadd.s32 %v2636, 72
    %2638 = vset.pattern.permute.xlu0 %v2637
    %2639 = vperm.xlu0 %2638, %v2580
    %v2640 = vpop.permute.xlu0 %2639
    %v2641 = vlaneseq
    %v2642 = vshrl.u32 %v2641, 7
    %v2643 = vadd.s32 %v2642, 80
    %2644 = vset.pattern.permute.xlu0 %v2643
    %2645 = vperm.xlu0 %2644, %v2580
    %v2646 = vpop.permute.xlu0 %2645
    %v2647 = vlaneseq
    %v2648 = vshrl.u32 %v2647, 7
    %v2649 = vadd.s32 %v2648, 88
    %2650 = vset.pattern.permute.xlu0 %v2649
    %2651 = vperm.xlu0 %2650, %v2580
    %v2652 = vpop.permute.xlu0 %2651
    %v2653 = vlaneseq
    %v2654 = vshrl.u32 %v2653, 7
    %v2655 = vadd.s32 %v2654, 96
    %2656 = vset.pattern.permute.xlu0 %v2655
    %2657 = vperm.xlu0 %2656, %v2580
    %v2658 = vpop.permute.xlu0 %2657
    %v2659 = vlaneseq
    %v2660 = vshrl.u32 %v2659, 7
    %v2661 = vadd.s32 %v2660, 104
    %2662 = vset.pattern.permute.xlu0 %v2661
    %2663 = vperm.xlu0 %2662, %v2580
    %v2664 = vpop.permute.xlu0 %2663
    %v2665 = vlaneseq
    %v2666 = vshrl.u32 %v2665, 7
    %v2667 = vadd.s32 %v2666, 112
    %2668 = vset.pattern.permute.xlu0 %v2667
    %2669 = vperm.xlu0 %2668, %v2580
    %v2670 = vpop.permute.xlu0 %2669
    %v2671 = vlaneseq
    %v2672 = vshrl.u32 %v2671, 7
    %v2673 = vadd.s32 %v2672, 120
    %2674 = vset.pattern.permute.xlu0 %v2673
    %2675 = vperm.xlu0 %2674, %v2580
    %v2676 = vpop.permute.xlu0 %2675
    %v2677 = vmul.f32 %v1131, %v1109
    %v2678 = vmul.f32 %v1137, %v1110
    %v2679 = vmul.f32 %v1143, %v1111
    %v2680 = vmul.f32 %v1149, %v1112
    %v2681 = vmul.f32 %v1155, %v1113
    %v2682 = vmul.f32 %v1161, %v1114
    %v2683 = vmul.f32 %v1167, %v1115
    %v2684 = vmul.f32 %v1173, %v1116
    %v2685 = vmul.f32 %v1179, %v1117
    %v2686 = vmul.f32 %v1185, %v1118
    %v2687 = vmul.f32 %v1191, %v1119
    %v2688 = vmul.f32 %v1197, %v1120
    %v2689 = vmul.f32 %v1203, %v1121
    %v2690 = vmul.f32 %v1209, %v1122
    %v2691 = vmul.f32 %v1215, %v1123
    %v2692 = vmul.f32 %v1221, %v1124
    %v2693 = vmul.f32 %v1228, %v1109
    %v2694 = vmul.f32 %v1234, %v1110
    %v2695 = vmul.f32 %v1240, %v1111
    %v2696 = vmul.f32 %v1246, %v1112
    %v2697 = vmul.f32 %v1252, %v1113
    %v2698 = vmul.f32 %v1258, %v1114
    %v2699 = vmul.f32 %v1264, %v1115
    %v2700 = vmul.f32 %v1270, %v1116
    %v2701 = vmul.f32 %v1276, %v1117
    %v2702 = vmul.f32 %v1282, %v1118
    %v2703 = vmul.f32 %v1288, %v1119
    %v2704 = vmul.f32 %v1294, %v1120
    %v2705 = vmul.f32 %v1300, %v1121
    %v2706 = vmul.f32 %v1306, %v1122
    %v2707 = vmul.f32 %v1312, %v1123
    %v2708 = vmul.f32 %v1318, %v1124
    %v2709 = vmul.f32 %v1325, %v1109
    %v2710 = vmul.f32 %v1331, %v1110
    %v2711 = vmul.f32 %v1337, %v1111
    %v2712 = vmul.f32 %v1343, %v1112
    %v2713 = vmul.f32 %v1349, %v1113
    %v2714 = vmul.f32 %v1355, %v1114
    %v2715 = vmul.f32 %v1361, %v1115
    %v2716 = vmul.f32 %v1367, %v1116
    %v2717 = vmul.f32 %v1373, %v1117
    %v2718 = vmul.f32 %v1379, %v1118
    %v2719 = vmul.f32 %v1385, %v1119
    %v2720 = vmul.f32 %v1391, %v1120
    %v2721 = vmul.f32 %v1397, %v1121
    %v2722 = vmul.f32 %v1403, %v1122
    %v2723 = vmul.f32 %v1409, %v1123
    %v2724 = vmul.f32 %v1415, %v1124
    %v2725 = vmul.f32 %v1422, %v1109
    %v2726 = vmul.f32 %v1428, %v1110
    %v2727 = vmul.f32 %v1434, %v1111
    %v2728 = vmul.f32 %v1440, %v1112
    %v2729 = vmul.f32 %v1446, %v1113
    %v2730 = vmul.f32 %v1452, %v1114
    %v2731 = vmul.f32 %v1458, %v1115
    %v2732 = vmul.f32 %v1464, %v1116
    %v2733 = vmul.f32 %v1470, %v1117
    %v2734 = vmul.f32 %v1476, %v1118
    %v2735 = vmul.f32 %v1482, %v1119
    %v2736 = vmul.f32 %v1488, %v1120
    %v2737 = vmul.f32 %v1494, %v1121
    %v2738 = vmul.f32 %v1500, %v1122
    %v2739 = vmul.f32 %v1506, %v1123
    %v2740 = vmul.f32 %v1512, %v1124
    %v2741 = vmul.f32 %v1519, %v1109
    %v2742 = vmul.f32 %v1525, %v1110
    %v2743 = vmul.f32 %v1531, %v1111
    %v2744 = vmul.f32 %v1537, %v1112
    %v2745 = vmul.f32 %v1543, %v1113
    %v2746 = vmul.f32 %v1549, %v1114
    %v2747 = vmul.f32 %v1555, %v1115
    %v2748 = vmul.f32 %v1561, %v1116
    %v2749 = vmul.f32 %v1567, %v1117
    %v2750 = vmul.f32 %v1573, %v1118
    %v2751 = vmul.f32 %v1579, %v1119
    %v2752 = vmul.f32 %v1585, %v1120
    %v2753 = vmul.f32 %v1591, %v1121
    %v2754 = vmul.f32 %v1597, %v1122
    %v2755 = vmul.f32 %v1603, %v1123
    %v2756 = vmul.f32 %v1609, %v1124
    %v2757 = vmul.f32 %v1616, %v1109
    %v2758 = vmul.f32 %v1622, %v1110
    %v2759 = vmul.f32 %v1628, %v1111
    %v2760 = vmul.f32 %v1634, %v1112
    %v2761 = vmul.f32 %v1640, %v1113
    %v2762 = vmul.f32 %v1646, %v1114
    %v2763 = vmul.f32 %v1652, %v1115
    %v2764 = vmul.f32 %v1658, %v1116
    %v2765 = vmul.f32 %v1664, %v1117
    %v2766 = vmul.f32 %v1670, %v1118
    %v2767 = vmul.f32 %v1676, %v1119
    %v2768 = vmul.f32 %v1682, %v1120
    %v2769 = vmul.f32 %v1688, %v1121
    %v2770 = vmul.f32 %v1694, %v1122
    %v2771 = vmul.f32 %v1700, %v1123
    %v2772 = vmul.f32 %v1706, %v1124
    %v2773 = vmul.f32 %v1713, %v1109
    %v2774 = vmul.f32 %v1719, %v1110
    %v2775 = vmul.f32 %v1725, %v1111
    %v2776 = vmul.f32 %v1731, %v1112
    %v2777 = vmul.f32 %v1737, %v1113
    %v2778 = vmul.f32 %v1743, %v1114
    %v2779 = vmul.f32 %v1749, %v1115
    %v2780 = vmul.f32 %v1755, %v1116
    %v2781 = vmul.f32 %v1761, %v1117
    %v2782 = vmul.f32 %v1767, %v1118
    %v2783 = vmul.f32 %v1773, %v1119
    %v2784 = vmul.f32 %v1779, %v1120
    %v2785 = vmul.f32 %v1785, %v1121
    %v2786 = vmul.f32 %v1791, %v1122
    %v2787 = vmul.f32 %v1797, %v1123
    %v2788 = vmul.f32 %v1803, %v1124
    %v2789 = vmul.f32 %v1810, %v1109
    %v2790 = vmul.f32 %v1816, %v1110
    %v2791 = vmul.f32 %v1822, %v1111
    %v2792 = vmul.f32 %v1828, %v1112
    %v2793 = vmul.f32 %v1834, %v1113
    %v2794 = vmul.f32 %v1840, %v1114
    %v2795 = vmul.f32 %v1846, %v1115
    %v2796 = vmul.f32 %v1852, %v1116
    %v2797 = vmul.f32 %v1858, %v1117
    %v2798 = vmul.f32 %v1864, %v1118
    %v2799 = vmul.f32 %v1870, %v1119
    %v2800 = vmul.f32 %v1876, %v1120
    %v2801 = vmul.f32 %v1882, %v1121
    %v2802 = vmul.f32 %v1888, %v1122
    %v2803 = vmul.f32 %v1894, %v1123
    %v2804 = vmul.f32 %v1900, %v1124
    %v2805 = vmul.f32 %v1907, %v1109
    %v2806 = vmul.f32 %v1913, %v1110
    %v2807 = vmul.f32 %v1919, %v1111
    %v2808 = vmul.f32 %v1925, %v1112
    %v2809 = vmul.f32 %v1931, %v1113
    %v2810 = vmul.f32 %v1937, %v1114
    %v2811 = vmul.f32 %v1943, %v1115
    %v2812 = vmul.f32 %v1949, %v1116
    %v2813 = vmul.f32 %v1955, %v1117
    %v2814 = vmul.f32 %v1961, %v1118
    %v2815 = vmul.f32 %v1967, %v1119
    %v2816 = vmul.f32 %v1973, %v1120
    %v2817 = vmul.f32 %v1979, %v1121
    %v2818 = vmul.f32 %v1985, %v1122
    %v2819 = vmul.f32 %v1991, %v1123
    %v2820 = vmul.f32 %v1997, %v1124
    %v2821 = vmul.f32 %v2004, %v1109
    %v2822 = vmul.f32 %v2010, %v1110
    %v2823 = vmul.f32 %v2016, %v1111
    %v2824 = vmul.f32 %v2022, %v1112
    %v2825 = vmul.f32 %v2028, %v1113
    %v2826 = vmul.f32 %v2034, %v1114
    %v2827 = vmul.f32 %v2040, %v1115
    %v2828 = vmul.f32 %v2046, %v1116
    %v2829 = vmul.f32 %v2052, %v1117
    %v2830 = vmul.f32 %v2058, %v1118
    %v2831 = vmul.f32 %v2064, %v1119
    %v2832 = vmul.f32 %v2070, %v1120
    %v2833 = vmul.f32 %v2076, %v1121
    %v2834 = vmul.f32 %v2082, %v1122
    %v2835 = vmul.f32 %v2088, %v1123
    %v2836 = vmul.f32 %v2094, %v1124
    %v2837 = vmul.f32 %v2101, %v1109
    %v2838 = vmul.f32 %v2107, %v1110
    %v2839 = vmul.f32 %v2113, %v1111
    %v2840 = vmul.f32 %v2119, %v1112
    %v2841 = vmul.f32 %v2125, %v1113
    %v2842 = vmul.f32 %v2131, %v1114
    %v2843 = vmul.f32 %v2137, %v1115
    %v2844 = vmul.f32 %v2143, %v1116
    %v2845 = vmul.f32 %v2149, %v1117
    %v2846 = vmul.f32 %v2155, %v1118
    %v2847 = vmul.f32 %v2161, %v1119
    %v2848 = vmul.f32 %v2167, %v1120
    %v2849 = vmul.f32 %v2173, %v1121
    %v2850 = vmul.f32 %v2179, %v1122
    %v2851 = vmul.f32 %v2185, %v1123
    %v2852 = vmul.f32 %v2191, %v1124
    %v2853 = vmul.f32 %v2198, %v1109
    %v2854 = vmul.f32 %v2204, %v1110
    %v2855 = vmul.f32 %v2210, %v1111
    %v2856 = vmul.f32 %v2216, %v1112
    %v2857 = vmul.f32 %v2222, %v1113
    %v2858 = vmul.f32 %v2228, %v1114
    %v2859 = vmul.f32 %v2234, %v1115
    %v2860 = vmul.f32 %v2240, %v1116
    %v2861 = vmul.f32 %v2246, %v1117
    %v2862 = vmul.f32 %v2252, %v1118
    %v2863 = vmul.f32 %v2258, %v1119
    %v2864 = vmul.f32 %v2264, %v1120
    %v2865 = vmul.f32 %v2270, %v1121
    %v2866 = vmul.f32 %v2276, %v1122
    %v2867 = vmul.f32 %v2282, %v1123
    %v2868 = vmul.f32 %v2288, %v1124
    %v2869 = vmul.f32 %v2295, %v1109
    %v2870 = vmul.f32 %v2301, %v1110
    %v2871 = vmul.f32 %v2307, %v1111
    %v2872 = vmul.f32 %v2313, %v1112
    %v2873 = vmul.f32 %v2319, %v1113
    %v2874 = vmul.f32 %v2325, %v1114
    %v2875 = vmul.f32 %v2331, %v1115
    %v2876 = vmul.f32 %v2337, %v1116
    %v2877 = vmul.f32 %v2343, %v1117
    %v2878 = vmul.f32 %v2349, %v1118
    %v2879 = vmul.f32 %v2355, %v1119
    %v2880 = vmul.f32 %v2361, %v1120
    %v2881 = vmul.f32 %v2367, %v1121
    %v2882 = vmul.f32 %v2373, %v1122
    %v2883 = vmul.f32 %v2379, %v1123
    %v2884 = vmul.f32 %v2385, %v1124
    %v2885 = vmul.f32 %v2392, %v1109
    %v2886 = vmul.f32 %v2398, %v1110
    %v2887 = vmul.f32 %v2404, %v1111
    %v2888 = vmul.f32 %v2410, %v1112
    %v2889 = vmul.f32 %v2416, %v1113
    %v2890 = vmul.f32 %v2422, %v1114
    %v2891 = vmul.f32 %v2428, %v1115
    %v2892 = vmul.f32 %v2434, %v1116
    %v2893 = vmul.f32 %v2440, %v1117
    %v2894 = vmul.f32 %v2446, %v1118
    %v2895 = vmul.f32 %v2452, %v1119
    %v2896 = vmul.f32 %v2458, %v1120
    %v2897 = vmul.f32 %v2464, %v1121
    %v2898 = vmul.f32 %v2470, %v1122
    %v2899 = vmul.f32 %v2476, %v1123
    %v2900 = vmul.f32 %v2482, %v1124
    %v2901 = vmul.f32 %v2489, %v1109
    %v2902 = vmul.f32 %v2495, %v1110
    %v2903 = vmul.f32 %v2501, %v1111
    %v2904 = vmul.f32 %v2507, %v1112
    %v2905 = vmul.f32 %v2513, %v1113
    %v2906 = vmul.f32 %v2519, %v1114
    %v2907 = vmul.f32 %v2525, %v1115
    %v2908 = vmul.f32 %v2531, %v1116
    %v2909 = vmul.f32 %v2537, %v1117
    %v2910 = vmul.f32 %v2543, %v1118
    %v2911 = vmul.f32 %v2549, %v1119
    %v2912 = vmul.f32 %v2555, %v1120
    %v2913 = vmul.f32 %v2561, %v1121
    %v2914 = vmul.f32 %v2567, %v1122
    %v2915 = vmul.f32 %v2573, %v1123
    %v2916 = vmul.f32 %v2579, %v1124
    %v2917 = vmul.f32 %v2586, %v1109
    %v2918 = vmul.f32 %v2592, %v1110
    %v2919 = vmul.f32 %v2598, %v1111
    %v2920 = vmul.f32 %v2604, %v1112
    %v2921 = vmul.f32 %v2610, %v1113
    %v2922 = vmul.f32 %v2616, %v1114
    %v2923 = vmul.f32 %v2622, %v1115
    %v2924 = vmul.f32 %v2628, %v1116
    %v2925 = vmul.f32 %v2634, %v1117
    %v2926 = vmul.f32 %v2640, %v1118
    %v2927 = vmul.f32 %v2646, %v1119
    %v2928 = vmul.f32 %v2652, %v1120
    %v2929 = vmul.f32 %v2658, %v1121
    %v2930 = vmul.f32 %v2664, %v1122
    %v2931 = vmul.f32 %v2670, %v1123
    %v2932 = vmul.f32 %v2676, %v1124
    %vm2933 = vcmask 785920
    %v2934 = vsel %vm2933, %v2677, -inf
    %v2935 = vsel %vm2933, %v2678, -inf
    %v2936 = vmax.f32 %v2934, %v2935
    %v2937 = vsel %vm2933, %v2679, -inf
    %v2938 = vmax.f32 %v2936, %v2937
    %v2939 = vsel %vm2933, %v2680, -inf
    %v2940 = vmax.f32 %v2938, %v2939
    %v2941 = vsel %vm2933, %v2681, -inf
    %v2942 = vmax.f32 %v2940, %v2941
    %v2943 = vsel %vm2933, %v2682, -inf
    %v2944 = vmax.f32 %v2942, %v2943
    %v2945 = vsel %vm2933, %v2683, -inf
    %v2946 = vmax.f32 %v2944, %v2945
    %v2947 = vsel %vm2933, %v2684, -inf
    %v2948 = vmax.f32 %v2946, %v2947
    %v2949 = vsel %vm2933, %v2685, -inf
    %v2950 = vmax.f32 %v2948, %v2949
    %v2951 = vsel %vm2933, %v2686, -inf
    %v2952 = vmax.f32 %v2950, %v2951
    %v2953 = vsel %vm2933, %v2687, -inf
    %v2954 = vmax.f32 %v2952, %v2953
    %v2955 = vsel %vm2933, %v2688, -inf
    %v2956 = vmax.f32 %v2954, %v2955
    %v2957 = vsel %vm2933, %v2689, -inf
    %v2958 = vmax.f32 %v2956, %v2957
    %v2959 = vsel %vm2933, %v2690, -inf
    %v2960 = vmax.f32 %v2958, %v2959
    %v2961 = vsel %vm2933, %v2691, -inf
    %v2962 = vmax.f32 %v2960, %v2961
    %v2963 = vsel %vm2933, %v2692, -inf
    %v2964 = vmax.f32 %v2962, %v2963
    %v2965 = vrot.slane %v2964, 4
    %v2966 = vmax.f32 %v2964, %v2965
    %v2967 = vrot.slane %v2966, 2
    %v2968 = vmax.f32 %v2966, %v2967
    %v2969 = vrot.slane %v2968, 1
    %v2970 = vmax.f32 %v2968, %v2969
    %v2971 = vsel %vm2933, %v2693, -inf
    %v2972 = vsel %vm2933, %v2694, -inf
    %v2973 = vmax.f32 %v2971, %v2972
    %v2974 = vsel %vm2933, %v2695, -inf
    %v2975 = vmax.f32 %v2973, %v2974
    %v2976 = vsel %vm2933, %v2696, -inf
    %v2977 = vmax.f32 %v2975, %v2976
    %v2978 = vsel %vm2933, %v2697, -inf
    %v2979 = vmax.f32 %v2977, %v2978
    %v2980 = vsel %vm2933, %v2698, -inf
    %v2981 = vmax.f32 %v2979, %v2980
    %v2982 = vsel %vm2933, %v2699, -inf
    %v2983 = vmax.f32 %v2981, %v2982
    %v2984 = vsel %vm2933, %v2700, -inf
    %v2985 = vmax.f32 %v2983, %v2984
    %v2986 = vsel %vm2933, %v2701, -inf
    %v2987 = vmax.f32 %v2985, %v2986
    %v2988 = vsel %vm2933, %v2702, -inf
    %v2989 = vmax.f32 %v2987, %v2988
    %v2990 = vsel %vm2933, %v2703, -inf
    %v2991 = vmax.f32 %v2989, %v2990
    %v2992 = vsel %vm2933, %v2704, -inf
    %v2993 = vmax.f32 %v2991, %v2992
    %v2994 = vsel %vm2933, %v2705, -inf
    %v2995 = vmax.f32 %v2993, %v2994
    %v2996 = vsel %vm2933, %v2706, -inf
    %v2997 = vmax.f32 %v2995, %v2996
    %v2998 = vsel %vm2933, %v2707, -inf
    %v2999 = vmax.f32 %v2997, %v2998
    %v3000 = vsel %vm2933, %v2708, -inf
    %v3001 = vmax.f32 %v2999, %v3000
    %v3002 = vrot.slane %v3001, 4
    %v3003 = vmax.f32 %v3001, %v3002
    %v3004 = vrot.slane %v3003, 2
    %v3005 = vmax.f32 %v3003, %v3004
    %v3006 = vrot.slane %v3005, 1
    %v3007 = vmax.f32 %v3005, %v3006
    %v3008 = vsel %vm2933, %v2709, -inf
    %v3009 = vsel %vm2933, %v2710, -inf
    %v3010 = vmax.f32 %v3008, %v3009
    %v3011 = vsel %vm2933, %v2711, -inf
    %v3012 = vmax.f32 %v3010, %v3011
    %v3013 = vsel %vm2933, %v2712, -inf
    %v3014 = vmax.f32 %v3012, %v3013
    %v3015 = vsel %vm2933, %v2713, -inf
    %v3016 = vmax.f32 %v3014, %v3015
    %v3017 = vsel %vm2933, %v2714, -inf
    %v3018 = vmax.f32 %v3016, %v3017
    %v3019 = vsel %vm2933, %v2715, -inf
    %v3020 = vmax.f32 %v3018, %v3019
    %v3021 = vsel %vm2933, %v2716, -inf
    %v3022 = vmax.f32 %v3020, %v3021
    %v3023 = vsel %vm2933, %v2717, -inf
    %v3024 = vmax.f32 %v3022, %v3023
    %v3025 = vsel %vm2933, %v2718, -inf
    %v3026 = vmax.f32 %v3024, %v3025
    %v3027 = vsel %vm2933, %v2719, -inf
    %v3028 = vmax.f32 %v3026, %v3027
    %v3029 = vsel %vm2933, %v2720, -inf
    %v3030 = vmax.f32 %v3028, %v3029
    %v3031 = vsel %vm2933, %v2721, -inf
    %v3032 = vmax.f32 %v3030, %v3031
    %v3033 = vsel %vm2933, %v2722, -inf
    %v3034 = vmax.f32 %v3032, %v3033
    %v3035 = vsel %vm2933, %v2723, -inf
    %v3036 = vmax.f32 %v3034, %v3035
    %v3037 = vsel %vm2933, %v2724, -inf
    %v3038 = vmax.f32 %v3036, %v3037
    %v3039 = vrot.slane %v3038, 4
    %v3040 = vmax.f32 %v3038, %v3039
    %v3041 = vrot.slane %v3040, 2
    %v3042 = vmax.f32 %v3040, %v3041
    %v3043 = vrot.slane %v3042, 1
    %v3044 = vmax.f32 %v3042, %v3043
    %v3045 = vsel %vm2933, %v2725, -inf
    %v3046 = vsel %vm2933, %v2726, -inf
    %v3047 = vmax.f32 %v3045, %v3046
    %v3048 = vsel %vm2933, %v2727, -inf
    %v3049 = vmax.f32 %v3047, %v3048
    %v3050 = vsel %vm2933, %v2728, -inf
    %v3051 = vmax.f32 %v3049, %v3050
    %v3052 = vsel %vm2933, %v2729, -inf
    %v3053 = vmax.f32 %v3051, %v3052
    %v3054 = vsel %vm2933, %v2730, -inf
    %v3055 = vmax.f32 %v3053, %v3054
    %v3056 = vsel %vm2933, %v2731, -inf
    %v3057 = vmax.f32 %v3055, %v3056
    %v3058 = vsel %vm2933, %v2732, -inf
    %v3059 = vmax.f32 %v3057, %v3058
    %v3060 = vsel %vm2933, %v2733, -inf
    %v3061 = vmax.f32 %v3059, %v3060
    %v3062 = vsel %vm2933, %v2734, -inf
    %v3063 = vmax.f32 %v3061, %v3062
    %v3064 = vsel %vm2933, %v2735, -inf
    %v3065 = vmax.f32 %v3063, %v3064
    %v3066 = vsel %vm2933, %v2736, -inf
    %v3067 = vmax.f32 %v3065, %v3066
    %v3068 = vsel %vm2933, %v2737, -inf
    %v3069 = vmax.f32 %v3067, %v3068
    %v3070 = vsel %vm2933, %v2738, -inf
    %v3071 = vmax.f32 %v3069, %v3070
    %v3072 = vsel %vm2933, %v2739, -inf
    %v3073 = vmax.f32 %v3071, %v3072
    %v3074 = vsel %vm2933, %v2740, -inf
    %v3075 = vmax.f32 %v3073, %v3074
    %v3076 = vrot.slane %v3075, 4
    %v3077 = vmax.f32 %v3075, %v3076
    %v3078 = vrot.slane %v3077, 2
    %v3079 = vmax.f32 %v3077, %v3078
    %v3080 = vrot.slane %v3079, 1
    %v3081 = vmax.f32 %v3079, %v3080
    %v3082 = vsel %vm2933, %v2741, -inf
    %v3083 = vsel %vm2933, %v2742, -inf
    %v3084 = vmax.f32 %v3082, %v3083
    %v3085 = vsel %vm2933, %v2743, -inf
    %v3086 = vmax.f32 %v3084, %v3085
    %v3087 = vsel %vm2933, %v2744, -inf
    %v3088 = vmax.f32 %v3086, %v3087
    %v3089 = vsel %vm2933, %v2745, -inf
    %v3090 = vmax.f32 %v3088, %v3089
    %v3091 = vsel %vm2933, %v2746, -inf
    %v3092 = vmax.f32 %v3090, %v3091
    %v3093 = vsel %vm2933, %v2747, -inf
    %v3094 = vmax.f32 %v3092, %v3093
    %v3095 = vsel %vm2933, %v2748, -inf
    %v3096 = vmax.f32 %v3094, %v3095
    %v3097 = vsel %vm2933, %v2749, -inf
    %v3098 = vmax.f32 %v3096, %v3097
    %v3099 = vsel %vm2933, %v2750, -inf
    %v3100 = vmax.f32 %v3098, %v3099
    %v3101 = vsel %vm2933, %v2751, -inf
    %v3102 = vmax.f32 %v3100, %v3101
    %v3103 = vsel %vm2933, %v2752, -inf
    %v3104 = vmax.f32 %v3102, %v3103
    %v3105 = vsel %vm2933, %v2753, -inf
    %v3106 = vmax.f32 %v3104, %v3105
    %v3107 = vsel %vm2933, %v2754, -inf
    %v3108 = vmax.f32 %v3106, %v3107
    %v3109 = vsel %vm2933, %v2755, -inf
    %v3110 = vmax.f32 %v3108, %v3109
    %v3111 = vsel %vm2933, %v2756, -inf
    %v3112 = vmax.f32 %v3110, %v3111
    %v3113 = vrot.slane %v3112, 4
    %v3114 = vmax.f32 %v3112, %v3113
    %v3115 = vrot.slane %v3114, 2
    %v3116 = vmax.f32 %v3114, %v3115
    %v3117 = vrot.slane %v3116, 1
    %v3118 = vmax.f32 %v3116, %v3117
    %v3119 = vsel %vm2933, %v2757, -inf
    %v3120 = vsel %vm2933, %v2758, -inf
    %v3121 = vmax.f32 %v3119, %v3120
    %v3122 = vsel %vm2933, %v2759, -inf
    %v3123 = vmax.f32 %v3121, %v3122
    %v3124 = vsel %vm2933, %v2760, -inf
    %v3125 = vmax.f32 %v3123, %v3124
    %v3126 = vsel %vm2933, %v2761, -inf
    %v3127 = vmax.f32 %v3125, %v3126
    %v3128 = vsel %vm2933, %v2762, -inf
    %v3129 = vmax.f32 %v3127, %v3128
    %v3130 = vsel %vm2933, %v2763, -inf
    %v3131 = vmax.f32 %v3129, %v3130
    %v3132 = vsel %vm2933, %v2764, -inf
    %v3133 = vmax.f32 %v3131, %v3132
    %v3134 = vsel %vm2933, %v2765, -inf
    %v3135 = vmax.f32 %v3133, %v3134
    %v3136 = vsel %vm2933, %v2766, -inf
    %v3137 = vmax.f32 %v3135, %v3136
    %v3138 = vsel %vm2933, %v2767, -inf
    %v3139 = vmax.f32 %v3137, %v3138
    %v3140 = vsel %vm2933, %v2768, -inf
    %v3141 = vmax.f32 %v3139, %v3140
    %v3142 = vsel %vm2933, %v2769, -inf
    %v3143 = vmax.f32 %v3141, %v3142
    %v3144 = vsel %vm2933, %v2770, -inf
    %v3145 = vmax.f32 %v3143, %v3144
    %v3146 = vsel %vm2933, %v2771, -inf
    %v3147 = vmax.f32 %v3145, %v3146
    %v3148 = vsel %vm2933, %v2772, -inf
    %v3149 = vmax.f32 %v3147, %v3148
    %v3150 = vrot.slane %v3149, 4
    %v3151 = vmax.f32 %v3149, %v3150
    %v3152 = vrot.slane %v3151, 2
    %v3153 = vmax.f32 %v3151, %v3152
    %v3154 = vrot.slane %v3153, 1
    %v3155 = vmax.f32 %v3153, %v3154
    %v3156 = vsel %vm2933, %v2773, -inf
    %v3157 = vsel %vm2933, %v2774, -inf
    %v3158 = vmax.f32 %v3156, %v3157
    %v3159 = vsel %vm2933, %v2775, -inf
    %v3160 = vmax.f32 %v3158, %v3159
    %v3161 = vsel %vm2933, %v2776, -inf
    %v3162 = vmax.f32 %v3160, %v3161
    %v3163 = vsel %vm2933, %v2777, -inf
    %v3164 = vmax.f32 %v3162, %v3163
    %v3165 = vsel %vm2933, %v2778, -inf
    %v3166 = vmax.f32 %v3164, %v3165
    %v3167 = vsel %vm2933, %v2779, -inf
    %v3168 = vmax.f32 %v3166, %v3167
    %v3169 = vsel %vm2933, %v2780, -inf
    %v3170 = vmax.f32 %v3168, %v3169
    %v3171 = vsel %vm2933, %v2781, -inf
    %v3172 = vmax.f32 %v3170, %v3171
    %v3173 = vsel %vm2933, %v2782, -inf
    %v3174 = vmax.f32 %v3172, %v3173
    %v3175 = vsel %vm2933, %v2783, -inf
    %v3176 = vmax.f32 %v3174, %v3175
    %v3177 = vsel %vm2933, %v2784, -inf
    %v3178 = vmax.f32 %v3176, %v3177
    %v3179 = vsel %vm2933, %v2785, -inf
    %v3180 = vmax.f32 %v3178, %v3179
    %v3181 = vsel %vm2933, %v2786, -inf
    %v3182 = vmax.f32 %v3180, %v3181
    %v3183 = vsel %vm2933, %v2787, -inf
    %v3184 = vmax.f32 %v3182, %v3183
    %v3185 = vsel %vm2933, %v2788, -inf
    %v3186 = vmax.f32 %v3184, %v3185
    %v3187 = vrot.slane %v3186, 4
    %v3188 = vmax.f32 %v3186, %v3187
    %v3189 = vrot.slane %v3188, 2
    %v3190 = vmax.f32 %v3188, %v3189
    %v3191 = vrot.slane %v3190, 1
    %v3192 = vmax.f32 %v3190, %v3191
    %v3193 = vsel %vm2933, %v2789, -inf
    %v3194 = vsel %vm2933, %v2790, -inf
    %v3195 = vmax.f32 %v3193, %v3194
    %v3196 = vsel %vm2933, %v2791, -inf
    %v3197 = vmax.f32 %v3195, %v3196
    %v3198 = vsel %vm2933, %v2792, -inf
    %v3199 = vmax.f32 %v3197, %v3198
    %v3200 = vsel %vm2933, %v2793, -inf
    %v3201 = vmax.f32 %v3199, %v3200
    %v3202 = vsel %vm2933, %v2794, -inf
    %v3203 = vmax.f32 %v3201, %v3202
    %v3204 = vsel %vm2933, %v2795, -inf
    %v3205 = vmax.f32 %v3203, %v3204
    %v3206 = vsel %vm2933, %v2796, -inf
    %v3207 = vmax.f32 %v3205, %v3206
    %v3208 = vsel %vm2933, %v2797, -inf
    %v3209 = vmax.f32 %v3207, %v3208
    %v3210 = vsel %vm2933, %v2798, -inf
    %v3211 = vmax.f32 %v3209, %v3210
    %v3212 = vsel %vm2933, %v2799, -inf
    %v3213 = vmax.f32 %v3211, %v3212
    %v3214 = vsel %vm2933, %v2800, -inf
    %v3215 = vmax.f32 %v3213, %v3214
    %v3216 = vsel %vm2933, %v2801, -inf
    %v3217 = vmax.f32 %v3215, %v3216
    %v3218 = vsel %vm2933, %v2802, -inf
    %v3219 = vmax.f32 %v3217, %v3218
    %v3220 = vsel %vm2933, %v2803, -inf
    %v3221 = vmax.f32 %v3219, %v3220
    %v3222 = vsel %vm2933, %v2804, -inf
    %v3223 = vmax.f32 %v3221, %v3222
    %v3224 = vrot.slane %v3223, 4
    %v3225 = vmax.f32 %v3223, %v3224
    %v3226 = vrot.slane %v3225, 2
    %v3227 = vmax.f32 %v3225, %v3226
    %v3228 = vrot.slane %v3227, 1
    %v3229 = vmax.f32 %v3227, %v3228
    %v3230 = vsel %vm2933, %v2805, -inf
    %v3231 = vsel %vm2933, %v2806, -inf
    %v3232 = vmax.f32 %v3230, %v3231
    %v3233 = vsel %vm2933, %v2807, -inf
    %v3234 = vmax.f32 %v3232, %v3233
    %v3235 = vsel %vm2933, %v2808, -inf
    %v3236 = vmax.f32 %v3234, %v3235
    %v3237 = vsel %vm2933, %v2809, -inf
    %v3238 = vmax.f32 %v3236, %v3237
    %v3239 = vsel %vm2933, %v2810, -inf
    %v3240 = vmax.f32 %v3238, %v3239
    %v3241 = vsel %vm2933, %v2811, -inf
    %v3242 = vmax.f32 %v3240, %v3241
    %v3243 = vsel %vm2933, %v2812, -inf
    %v3244 = vmax.f32 %v3242, %v3243
    %v3245 = vsel %vm2933, %v2813, -inf
    %v3246 = vmax.f32 %v3244, %v3245
    %v3247 = vsel %vm2933, %v2814, -inf
    %v3248 = vmax.f32 %v3246, %v3247
    %v3249 = vsel %vm2933, %v2815, -inf
    %v3250 = vmax.f32 %v3248, %v3249
    %v3251 = vsel %vm2933, %v2816, -inf
    %v3252 = vmax.f32 %v3250, %v3251
    %v3253 = vsel %vm2933, %v2817, -inf
    %v3254 = vmax.f32 %v3252, %v3253
    %v3255 = vsel %vm2933, %v2818, -inf
    %v3256 = vmax.f32 %v3254, %v3255
    %v3257 = vsel %vm2933, %v2819, -inf
    %v3258 = vmax.f32 %v3256, %v3257
    %v3259 = vsel %vm2933, %v2820, -inf
    %v3260 = vmax.f32 %v3258, %v3259
    %v3261 = vrot.slane %v3260, 4
    %v3262 = vmax.f32 %v3260, %v3261
    %v3263 = vrot.slane %v3262, 2
    %v3264 = vmax.f32 %v3262, %v3263
    %v3265 = vrot.slane %v3264, 1
    %v3266 = vmax.f32 %v3264, %v3265
    %v3267 = vsel %vm2933, %v2821, -inf
    %v3268 = vsel %vm2933, %v2822, -inf
    %v3269 = vmax.f32 %v3267, %v3268
    %v3270 = vsel %vm2933, %v2823, -inf
    %v3271 = vmax.f32 %v3269, %v3270
    %v3272 = vsel %vm2933, %v2824, -inf
    %v3273 = vmax.f32 %v3271, %v3272
    %v3274 = vsel %vm2933, %v2825, -inf
    %v3275 = vmax.f32 %v3273, %v3274
    %v3276 = vsel %vm2933, %v2826, -inf
    %v3277 = vmax.f32 %v3275, %v3276
    %v3278 = vsel %vm2933, %v2827, -inf
    %v3279 = vmax.f32 %v3277, %v3278
    %v3280 = vsel %vm2933, %v2828, -inf
    %v3281 = vmax.f32 %v3279, %v3280
    %v3282 = vsel %vm2933, %v2829, -inf
    %v3283 = vmax.f32 %v3281, %v3282
    %v3284 = vsel %vm2933, %v2830, -inf
    %v3285 = vmax.f32 %v3283, %v3284
    %v3286 = vsel %vm2933, %v2831, -inf
    %v3287 = vmax.f32 %v3285, %v3286
    %v3288 = vsel %vm2933, %v2832, -inf
    %v3289 = vmax.f32 %v3287, %v3288
    %v3290 = vsel %vm2933, %v2833, -inf
    %v3291 = vmax.f32 %v3289, %v3290
    %v3292 = vsel %vm2933, %v2834, -inf
    %v3293 = vmax.f32 %v3291, %v3292
    %v3294 = vsel %vm2933, %v2835, -inf
    %v3295 = vmax.f32 %v3293, %v3294
    %v3296 = vsel %vm2933, %v2836, -inf
    %v3297 = vmax.f32 %v3295, %v3296
    %v3298 = vrot.slane %v3297, 4
    %v3299 = vmax.f32 %v3297, %v3298
    %v3300 = vrot.slane %v3299, 2
    %v3301 = vmax.f32 %v3299, %v3300
    %v3302 = vrot.slane %v3301, 1
    %v3303 = vmax.f32 %v3301, %v3302
    %v3304 = vsel %vm2933, %v2837, -inf
    %v3305 = vsel %vm2933, %v2838, -inf
    %v3306 = vmax.f32 %v3304, %v3305
    %v3307 = vsel %vm2933, %v2839, -inf
    %v3308 = vmax.f32 %v3306, %v3307
    %v3309 = vsel %vm2933, %v2840, -inf
    %v3310 = vmax.f32 %v3308, %v3309
    %v3311 = vsel %vm2933, %v2841, -inf
    %v3312 = vmax.f32 %v3310, %v3311
    %v3313 = vsel %vm2933, %v2842, -inf
    %v3314 = vmax.f32 %v3312, %v3313
    %v3315 = vsel %vm2933, %v2843, -inf
    %v3316 = vmax.f32 %v3314, %v3315
    %v3317 = vsel %vm2933, %v2844, -inf
    %v3318 = vmax.f32 %v3316, %v3317
    %v3319 = vsel %vm2933, %v2845, -inf
    %v3320 = vmax.f32 %v3318, %v3319
    %v3321 = vsel %vm2933, %v2846, -inf
    %v3322 = vmax.f32 %v3320, %v3321
    %v3323 = vsel %vm2933, %v2847, -inf
    %v3324 = vmax.f32 %v3322, %v3323
    %v3325 = vsel %vm2933, %v2848, -inf
    %v3326 = vmax.f32 %v3324, %v3325
    %v3327 = vsel %vm2933, %v2849, -inf
    %v3328 = vmax.f32 %v3326, %v3327
    %v3329 = vsel %vm2933, %v2850, -inf
    %v3330 = vmax.f32 %v3328, %v3329
    %v3331 = vsel %vm2933, %v2851, -inf
    %v3332 = vmax.f32 %v3330, %v3331
    %v3333 = vsel %vm2933, %v2852, -inf
    %v3334 = vmax.f32 %v3332, %v3333
    %v3335 = vrot.slane %v3334, 4
    %v3336 = vmax.f32 %v3334, %v3335
    %v3337 = vrot.slane %v3336, 2
    %v3338 = vmax.f32 %v3336, %v3337
    %v3339 = vrot.slane %v3338, 1
    %v3340 = vmax.f32 %v3338, %v3339
    %v3341 = vsel %vm2933, %v2853, -inf
    %v3342 = vsel %vm2933, %v2854, -inf
    %v3343 = vmax.f32 %v3341, %v3342
    %v3344 = vsel %vm2933, %v2855, -inf
    %v3345 = vmax.f32 %v3343, %v3344
    %v3346 = vsel %vm2933, %v2856, -inf
    %v3347 = vmax.f32 %v3345, %v3346
    %v3348 = vsel %vm2933, %v2857, -inf
    %v3349 = vmax.f32 %v3347, %v3348
    %v3350 = vsel %vm2933, %v2858, -inf
    %v3351 = vmax.f32 %v3349, %v3350
    %v3352 = vsel %vm2933, %v2859, -inf
    %v3353 = vmax.f32 %v3351, %v3352
    %v3354 = vsel %vm2933, %v2860, -inf
    %v3355 = vmax.f32 %v3353, %v3354
    %v3356 = vsel %vm2933, %v2861, -inf
    %v3357 = vmax.f32 %v3355, %v3356
    %v3358 = vsel %vm2933, %v2862, -inf
    %v3359 = vmax.f32 %v3357, %v3358
    %v3360 = vsel %vm2933, %v2863, -inf
    %v3361 = vmax.f32 %v3359, %v3360
    %v3362 = vsel %vm2933, %v2864, -inf
    %v3363 = vmax.f32 %v3361, %v3362
    %v3364 = vsel %vm2933, %v2865, -inf
    %v3365 = vmax.f32 %v3363, %v3364
    %v3366 = vsel %vm2933, %v2866, -inf
    %v3367 = vmax.f32 %v3365, %v3366
    %v3368 = vsel %vm2933, %v2867, -inf
    %v3369 = vmax.f32 %v3367, %v3368
    %v3370 = vsel %vm2933, %v2868, -inf
    %v3371 = vmax.f32 %v3369, %v3370
    %v3372 = vrot.slane %v3371, 4
    %v3373 = vmax.f32 %v3371, %v3372
    %v3374 = vrot.slane %v3373, 2
    %v3375 = vmax.f32 %v3373, %v3374
    %v3376 = vrot.slane %v3375, 1
    %v3377 = vmax.f32 %v3375, %v3376
    %v3378 = vsel %vm2933, %v2869, -inf
    %v3379 = vsel %vm2933, %v2870, -inf
    %v3380 = vmax.f32 %v3378, %v3379
    %v3381 = vsel %vm2933, %v2871, -inf
    %v3382 = vmax.f32 %v3380, %v3381
    %v3383 = vsel %vm2933, %v2872, -inf
    %v3384 = vmax.f32 %v3382, %v3383
    %v3385 = vsel %vm2933, %v2873, -inf
    %v3386 = vmax.f32 %v3384, %v3385
    %v3387 = vsel %vm2933, %v2874, -inf
    %v3388 = vmax.f32 %v3386, %v3387
    %v3389 = vsel %vm2933, %v2875, -inf
    %v3390 = vmax.f32 %v3388, %v3389
    %v3391 = vsel %vm2933, %v2876, -inf
    %v3392 = vmax.f32 %v3390, %v3391
    %v3393 = vsel %vm2933, %v2877, -inf
    %v3394 = vmax.f32 %v3392, %v3393
    %v3395 = vsel %vm2933, %v2878, -inf
    %v3396 = vmax.f32 %v3394, %v3395
    %v3397 = vsel %vm2933, %v2879, -inf
    %v3398 = vmax.f32 %v3396, %v3397
    %v3399 = vsel %vm2933, %v2880, -inf
    %v3400 = vmax.f32 %v3398, %v3399
    %v3401 = vsel %vm2933, %v2881, -inf
    %v3402 = vmax.f32 %v3400, %v3401
    %v3403 = vsel %vm2933, %v2882, -inf
    %v3404 = vmax.f32 %v3402, %v3403
    %v3405 = vsel %vm2933, %v2883, -inf
    %v3406 = vmax.f32 %v3404, %v3405
    %v3407 = vsel %vm2933, %v2884, -inf
    %v3408 = vmax.f32 %v3406, %v3407
    %v3409 = vrot.slane %v3408, 4
    %v3410 = vmax.f32 %v3408, %v3409
    %v3411 = vrot.slane %v3410, 2
    %v3412 = vmax.f32 %v3410, %v3411
    %v3413 = vrot.slane %v3412, 1
    %v3414 = vmax.f32 %v3412, %v3413
    %v3415 = vsel %vm2933, %v2885, -inf
    %v3416 = vsel %vm2933, %v2886, -inf
    %v3417 = vmax.f32 %v3415, %v3416
    %v3418 = vsel %vm2933, %v2887, -inf
    %v3419 = vmax.f32 %v3417, %v3418
    %v3420 = vsel %vm2933, %v2888, -inf
    %v3421 = vmax.f32 %v3419, %v3420
    %v3422 = vsel %vm2933, %v2889, -inf
    %v3423 = vmax.f32 %v3421, %v3422
    %v3424 = vsel %vm2933, %v2890, -inf
    %v3425 = vmax.f32 %v3423, %v3424
    %v3426 = vsel %vm2933, %v2891, -inf
    %v3427 = vmax.f32 %v3425, %v3426
    %v3428 = vsel %vm2933, %v2892, -inf
    %v3429 = vmax.f32 %v3427, %v3428
    %v3430 = vsel %vm2933, %v2893, -inf
    %v3431 = vmax.f32 %v3429, %v3430
    %v3432 = vsel %vm2933, %v2894, -inf
    %v3433 = vmax.f32 %v3431, %v3432
    %v3434 = vsel %vm2933, %v2895, -inf
    %v3435 = vmax.f32 %v3433, %v3434
    %v3436 = vsel %vm2933, %v2896, -inf
    %v3437 = vmax.f32 %v3435, %v3436
    %v3438 = vsel %vm2933, %v2897, -inf
    %v3439 = vmax.f32 %v3437, %v3438
    %v3440 = vsel %vm2933, %v2898, -inf
    %v3441 = vmax.f32 %v3439, %v3440
    %v3442 = vsel %vm2933, %v2899, -inf
    %v3443 = vmax.f32 %v3441, %v3442
    %v3444 = vsel %vm2933, %v2900, -inf
    %v3445 = vmax.f32 %v3443, %v3444
    %v3446 = vrot.slane %v3445, 4
    %v3447 = vmax.f32 %v3445, %v3446
    %v3448 = vrot.slane %v3447, 2
    %v3449 = vmax.f32 %v3447, %v3448
    %v3450 = vrot.slane %v3449, 1
    %v3451 = vmax.f32 %v3449, %v3450
    %v3452 = vsel %vm2933, %v2901, -inf
    %v3453 = vsel %vm2933, %v2902, -inf
    %v3454 = vmax.f32 %v3452, %v3453
    %v3455 = vsel %vm2933, %v2903, -inf
    %v3456 = vmax.f32 %v3454, %v3455
    %v3457 = vsel %vm2933, %v2904, -inf
    %v3458 = vmax.f32 %v3456, %v3457
    %v3459 = vsel %vm2933, %v2905, -inf
    %v3460 = vmax.f32 %v3458, %v3459
    %v3461 = vsel %vm2933, %v2906, -inf
    %v3462 = vmax.f32 %v3460, %v3461
    %v3463 = vsel %vm2933, %v2907, -inf
    %v3464 = vmax.f32 %v3462, %v3463
    %v3465 = vsel %vm2933, %v2908, -inf
    %v3466 = vmax.f32 %v3464, %v3465
    %v3467 = vsel %vm2933, %v2909, -inf
    %v3468 = vmax.f32 %v3466, %v3467
    %v3469 = vsel %vm2933, %v2910, -inf
    %v3470 = vmax.f32 %v3468, %v3469
    %v3471 = vsel %vm2933, %v2911, -inf
    %v3472 = vmax.f32 %v3470, %v3471
    %v3473 = vsel %vm2933, %v2912, -inf
    %v3474 = vmax.f32 %v3472, %v3473
    %v3475 = vsel %vm2933, %v2913, -inf
    %v3476 = vmax.f32 %v3474, %v3475
    %v3477 = vsel %vm2933, %v2914, -inf
    %v3478 = vmax.f32 %v3476, %v3477
    %v3479 = vsel %vm2933, %v2915, -inf
    %v3480 = vmax.f32 %v3478, %v3479
    %v3481 = vsel %vm2933, %v2916, -inf
    %v3482 = vmax.f32 %v3480, %v3481
    %v3483 = vrot.slane %v3482, 4
    %v3484 = vmax.f32 %v3482, %v3483
    %v3485 = vrot.slane %v3484, 2
    %v3486 = vmax.f32 %v3484, %v3485
    %v3487 = vrot.slane %v3486, 1
    %v3488 = vmax.f32 %v3486, %v3487
    %v3489 = vsel %vm2933, %v2917, -inf
    %v3490 = vsel %vm2933, %v2918, -inf
    %v3491 = vmax.f32 %v3489, %v3490
    %v3492 = vsel %vm2933, %v2919, -inf
    %v3493 = vmax.f32 %v3491, %v3492
    %v3494 = vsel %vm2933, %v2920, -inf
    %v3495 = vmax.f32 %v3493, %v3494
    %v3496 = vsel %vm2933, %v2921, -inf
    %v3497 = vmax.f32 %v3495, %v3496
    %v3498 = vsel %vm2933, %v2922, -inf
    %v3499 = vmax.f32 %v3497, %v3498
    %v3500 = vsel %vm2933, %v2923, -inf
    %v3501 = vmax.f32 %v3499, %v3500
    %v3502 = vsel %vm2933, %v2924, -inf
    %v3503 = vmax.f32 %v3501, %v3502
    %v3504 = vsel %vm2933, %v2925, -inf
    %v3505 = vmax.f32 %v3503, %v3504
    %v3506 = vsel %vm2933, %v2926, -inf
    %v3507 = vmax.f32 %v3505, %v3506
    %v3508 = vsel %vm2933, %v2927, -inf
    %v3509 = vmax.f32 %v3507, %v3508
    %v3510 = vsel %vm2933, %v2928, -inf
    %v3511 = vmax.f32 %v3509, %v3510
    %v3512 = vsel %vm2933, %v2929, -inf
    %v3513 = vmax.f32 %v3511, %v3512
    %v3514 = vsel %vm2933, %v2930, -inf
    %v3515 = vmax.f32 %v3513, %v3514
    %v3516 = vsel %vm2933, %v2931, -inf
    %v3517 = vmax.f32 %v3515, %v3516
    %v3518 = vsel %vm2933, %v2932, -inf
    %v3519 = vmax.f32 %v3517, %v3518
    %v3520 = vrot.slane %v3519, 4
    %v3521 = vmax.f32 %v3519, %v3520
    %v3522 = vrot.slane %v3521, 2
    %v3523 = vmax.f32 %v3521, %v3522
    %v3524 = vrot.slane %v3523, 1
    %v3525 = vmax.f32 %v3523, %v3524
    %v3526 = vmax.f32 %v1064, %v2970
    %v3527 = vmax.f32 %v1065, %v3007
    %v3528 = vmax.f32 %v1066, %v3044
    %v3529 = vmax.f32 %v1067, %v3081
    %v3530 = vmax.f32 %v1068, %v3118
    %v3531 = vmax.f32 %v1069, %v3155
    %v3532 = vmax.f32 %v1070, %v3192
    %v3533 = vmax.f32 %v1071, %v3229
    %v3534 = vmax.f32 %v1072, %v3266
    %v3535 = vmax.f32 %v1073, %v3303
    %v3536 = vmax.f32 %v1074, %v3340
    %v3537 = vmax.f32 %v1075, %v3377
    %v3538 = vmax.f32 %v1076, %v3414
    %v3539 = vmax.f32 %v1077, %v3451
    %v3540 = vmax.f32 %v1078, %v3488
    %v3541 = vmax.f32 %v1079, %v3525
  $region54: #{_lambda_.5} parent=0 // loop_footer
    %s1063 = sadd.s32 1, %s1059
  $region55: #{_lambda_.5} parent=0 // loop_footer_branch
    %1058 = sbr.rel target = $region51
  $region56: #{_lambda_.5} parent=0 // loop_exit
    _
  %3544 = vrot.lane.b32.xlu0 %v1045, 64
  %v3545 = vpop.permute.xlu0 %3544
  %3546 = vrot.lane.b32.xlu0 %v1057, 64
  %v3547 = vpop.permute.xlu0 %3546
  %vm3566 = vcmask 1041409
  %v3567 = vsel %vm3566, %v1065, %v1064
  %vm3568 = vcmask 1042434
  %v3569 = vsel %vm3568, %v1066, %v3567
  %vm3570 = vcmask 1043459
  %v3571 = vsel %vm3570, %v1067, %v3569
  %vm3572 = vcmask 1044484
  %v3573 = vsel %vm3572, %v1068, %v3571
  %vm3574 = vcmask 1045509
  %v3575 = vsel %vm3574, %v1069, %v3573
  %vm3576 = vcmask 1046534
  %v3577 = vsel %vm3576, %v1070, %v3575
  %vm3578 = vcmask 1047559
  %v3579 = vsel %vm3578, %v1071, %v3577
  %v3580 = vsel %vm3566, %v1073, %v1072
  %v3581 = vsel %vm3568, %v1074, %v3580
  %v3582 = vsel %vm3570, %v1075, %v3581
  %v3583 = vsel %vm3572, %v1076, %v3582
  %v3584 = vsel %vm3574, %v1077, %v3583
  %v3585 = vsel %vm3576, %v1078, %v3584
  %v3586 = vsel %vm3578, %v1079, %v3585
  %3587 = vrot.lane.b32.xlu0 %v3579, 32
  %v3588 = vpop.permute.xlu0 %3587
  %3589 = vrot.lane.b32.xlu0 %v3586, 32
  %v3590 = vpop.permute.xlu0 %3589
  %vm3593 = vcmask 261120
  %v3594 = vsel %vm3593, %v208, %v238
  %v3595 = vsel %vm3593, %v210, %v253
  %vm3596 = vcmask 523264
  %v3597 = vsel %vm3596, %v3594, %v3545
  %v3598 = vsel %vm3596, %v3595, %v3547
  %vm3599 = vcmask 785408
  %v3600 = vsel %vm3599, %v3597, %v3588
  %v3601 = vsel %vm3599, %v3598, %v3590
  %v3602 = vadd.f32 %v208, 1.0
  %v3603 = vadd.f32 %v210, 1.0
  %v3604 = vlog2.pop %v3602
  %v3605 = vmul.f32 %v3604, 0.6931472
  %v3606 = vlog2.pop %v3603
  %v3607 = vmul.f32 %v3606, 0.6931472
  %v3608 = vmul.f32 %v3605, 0.86843246
  %v3609 = vmul.f32 %v3607, 0.86843246
  %vm3610 = vcmp.gt.f32.partialorder %v208, 0.0
  %vm3611 = vcmp.gt.f32.partialorder %v210, 0.0
  %v3612 = vadd.f32 %v3605, 1e-07
  %v3613 = vadd.f32 %v3607, 1e-07
  %v3614 = vrcp.pop %v3612
  %v3615 = vmul.f32 %v3612, %v3614
  %v3616 = vsub.f32 1.0, %v3615
  %v3617 = vmul.f32 %v3614, %v3616
  %v3618 = vadd.f32 %v3614, %v3617
  %vm3619 = vweird.f32 %v3612
  %vm3620 = vweird.f32 %v3614
  %vm3621 = vmor %vm3619, %vm3620
  %v3622 = vsel %vm3621, %v3614, %v3618
  %v3623 = vand.u32 2147483647, %v3612
  %vm3624 = vcmp.eq.f32.partialorder %v3623, 8.507059e+37
  %v3625 = vand.u32 %v3612, 2147483648
  %v3626 = vor.u32 1.1754944e-38, %v3625
  %v3627 = vsel %vm3624, %v3626, %v3622
  %v3628 = vmul.f32 1.1515, %v3627
  %v3629 = vrcp.pop %v3613
  %v3630 = vmul.f32 %v3613, %v3629
  %v3631 = vsub.f32 1.0, %v3630
  %v3632 = vmul.f32 %v3629, %v3631
  %v3633 = vadd.f32 %v3629, %v3632
  %vm3634 = vweird.f32 %v3613
  %vm3635 = vweird.f32 %v3629
  %vm3636 = vmor %vm3634, %vm3635
  %v3637 = vsel %vm3636, %v3629, %v3633
  %v3638 = vand.u32 2147483647, %v3613
  %vm3639 = vcmp.eq.f32.partialorder %v3638, 8.507059e+37
  %v3640 = vand.u32 %v3613, 2147483648
  %v3641 = vor.u32 1.1754944e-38, %v3640
  %v3642 = vsel %vm3639, %v3641, %v3637
  %v3643 = vmul.f32 1.1515, %v3642
  %v3644 = vsel %vm3610, %v3628, 0.0
  %v3645 = vsel %vm3611, %v3643, 0.0
  %3647 = vset.pattern.permute.xlu0 96
  %3648 = vperm.xlu0 %3647, %v3608
  %v3649 = vpop.permute.xlu0 %3648
  %3652 = vset.pattern.permute.xlu0 96
  %3653 = vperm.xlu0 %3652, %v3609
  %v3654 = vpop.permute.xlu0 %3653
  %v3656 = vmul.f32 %v3649, %v3600
  %v3657 = vmul.f32 %v3654, %v3601
  %3659 = vset.pattern.permute.xlu0 96
  %3660 = vperm.xlu0 %3659, %v3644
  %v3661 = vpop.permute.xlu0 %3660
  %3664 = vset.pattern.permute.xlu0 96
  %3665 = vperm.xlu0 %3664, %v3645
  %v3666 = vpop.permute.xlu0 %3665
  %v3668 = vmul.f32 %v3661, %v3600
  %v3669 = vmul.f32 %v3666, %v3601
  %v3670 = vpack.c.bf16 %v3601, %v3600
  %v3671 = vpack.c.bf16 %v3657, %v3656
  %v3672 = vpack.c.bf16 %v3669, %v3668
  %v3673 = vld [vmem:[%s3] sm:$0xf]
  %v3674 = vld [vmem:[%s3 + $0x4] sm:$0xf]
  %v3675 = vld [vmem:[%s3 + $0x8] sm:$0xf]
  %v3676 = vld [vmem:[%s3 + $0xc] sm:$0xf]
  %v3677 = vld [vmem:[%s3 + $0x10] sm:$0xf]
  %v3678 = vld [vmem:[%s3 + $0x14] sm:$0xf]
  %v3679 = vld [vmem:[%s3 + $0x18] sm:$0xf]
  %v3680 = vld [vmem:[%s3 + $0x1c] sm:$0xf]
  %v3681 = vld [vmem:[%s3 + $0x20] sm:$0xf]
  %v3682 = vld [vmem:[%s3 + $0x24] sm:$0xf]
  %v3683 = vld [vmem:[%s3 + $0x28] sm:$0xf]
  %v3684 = vld [vmem:[%s3 + $0x2c] sm:$0xf]
  %v3685 = vld [vmem:[%s3 + $0x30] sm:$0xf]
  %v3686 = vld [vmem:[%s3 + $0x34] sm:$0xf]
  %v3687 = vld [vmem:[%s3 + $0x38] sm:$0xf]
  %v3688 = vld [vmem:[%s3 + $0x3c] sm:$0xf]
  %v3689 = vld [vmem:[%s3 + $0x40] sm:$0xf]
  %v3690 = vld [vmem:[%s3 + $0x44] sm:$0xf]
  %v3691 = vld [vmem:[%s3 + $0x48] sm:$0xf]
  %v3692 = vld [vmem:[%s3 + $0x4c] sm:$0xf]
  %v3693 = vld [vmem:[%s3 + $0x50] sm:$0xf]
  %v3694 = vld [vmem:[%s3 + $0x54] sm:$0xf]
  %v3695 = vld [vmem:[%s3 + $0x58] sm:$0xf]
  %v3696 = vld [vmem:[%s3 + $0x5c] sm:$0xf]
  %v3697 = vld [vmem:[%s3 + $0x60] sm:$0xf]
  %v3698 = vld [vmem:[%s3 + $0x64] sm:$0xf]
  %v3699 = vld [vmem:[%s3 + $0x68] sm:$0xf]
  %v3700 = vld [vmem:[%s3 + $0x6c] sm:$0xf]
  %v3701 = vld [vmem:[%s3 + $0x70] sm:$0xf]
  %v3702 = vld [vmem:[%s3 + $0x74] sm:$0xf]
  %v3703 = vld [vmem:[%s3 + $0x78] sm:$0xf]
  %v3704 = vld [vmem:[%s3 + $0x7c] sm:$0xf]
  %v3705 = vld [vmem:[%s3 + $0x80] sm:$0xf]
  %v3706 = vld [vmem:[%s3 + $0x84] sm:$0xf]
  %v3707 = vld [vmem:[%s3 + $0x88] sm:$0xf]
  %v3708 = vld [vmem:[%s3 + $0x8c] sm:$0xf]
  %v3709 = vld [vmem:[%s3 + $0x90] sm:$0xf]
  %v3710 = vld [vmem:[%s3 + $0x94] sm:$0xf]
  %v3711 = vld [vmem:[%s3 + $0x98] sm:$0xf]
  %v3712 = vld [vmem:[%s3 + $0x9c] sm:$0xf]
  %v3713 = vld [vmem:[%s3 + $0xa0] sm:$0xf]
  %v3714 = vld [vmem:[%s3 + $0xa4] sm:$0xf]
  %v3715 = vld [vmem:[%s3 + $0xa8] sm:$0xf]
  %v3716 = vld [vmem:[%s3 + $0xac] sm:$0xf]
  %v3717 = vld [vmem:[%s3 + $0xb0] sm:$0xf]
  %v3718 = vld [vmem:[%s3 + $0xb4] sm:$0xf]
  %v3719 = vld [vmem:[%s3 + $0xb8] sm:$0xf]
  %v3720 = vld [vmem:[%s3 + $0xbc] sm:$0xf]
  %v3721 = vld [vmem:[%s4] sm:$0x1]
  %v3723 = vperm.slane %v3721, 0
  %v3773 = vunpack.c.l.b16 %v3673
  %v3774 = vunpack.c.l.b16 %v3674
  %v3775 = vunpack.c.l.b16 %v3675
  %v3776 = vunpack.c.l.b16 %v3676
  %v3777 = vunpack.c.l.b16 %v3677
  %v3778 = vunpack.c.l.b16 %v3678
  %v3779 = vunpack.c.l.b16 %v3679
  %v3780 = vunpack.c.l.b16 %v3680
  %v3781 = vunpack.c.l.b16 %v3681
  %v3782 = vunpack.c.l.b16 %v3682
  %v3783 = vunpack.c.l.b16 %v3683
  %v3784 = vunpack.c.l.b16 %v3684
  %v3785 = vunpack.c.l.b16 %v3685
  %v3786 = vunpack.c.l.b16 %v3686
  %v3787 = vunpack.c.l.b16 %v3687
  %v3788 = vunpack.c.l.b16 %v3688
  %v3789 = vunpack.c.l.b16 %v3689
  %v3790 = vunpack.c.l.b16 %v3690
  %v3791 = vunpack.c.l.b16 %v3691
  %v3792 = vunpack.c.l.b16 %v3692
  %v3793 = vunpack.c.l.b16 %v3693
  %v3794 = vunpack.c.l.b16 %v3694
  %v3795 = vunpack.c.l.b16 %v3695
  %v3796 = vunpack.c.l.b16 %v3696
  %v3797 = vunpack.c.l.b16 %v3697
  %v3798 = vunpack.c.l.b16 %v3698
  %v3799 = vunpack.c.l.b16 %v3699
  %v3800 = vunpack.c.l.b16 %v3700
  %v3801 = vunpack.c.l.b16 %v3701
  %v3802 = vunpack.c.l.b16 %v3702
  %v3803 = vunpack.c.l.b16 %v3703
  %v3804 = vunpack.c.l.b16 %v3704
  %v3805 = vunpack.c.l.b16 %v3705
  %v3806 = vunpack.c.l.b16 %v3706
  %v3807 = vunpack.c.l.b16 %v3707
  %v3808 = vunpack.c.l.b16 %v3708
  %v3809 = vunpack.c.l.b16 %v3709
  %v3810 = vunpack.c.l.b16 %v3710
  %v3811 = vunpack.c.l.b16 %v3711
  %v3812 = vunpack.c.l.b16 %v3712
  %v3813 = vunpack.c.l.b16 %v3713
  %v3814 = vunpack.c.l.b16 %v3714
  %v3815 = vunpack.c.l.b16 %v3715
  %v3816 = vunpack.c.l.b16 %v3716
  %v3817 = vunpack.c.l.b16 %v3717
  %v3818 = vunpack.c.l.b16 %v3718
  %v3819 = vunpack.c.l.b16 %v3719
  %v3820 = vunpack.c.l.b16 %v3720
  %v3821 = vpack.c.b16 %v3774, %v3773
  %v3822 = vpack.c.b16 %v3776, %v3775
  %v3823 = vpack.c.b16 %v3778, %v3777
  %v3824 = vpack.c.b16 %v3780, %v3779
  %v3825 = vpack.c.b16 %v3782, %v3781
  %v3826 = vpack.c.b16 %v3784, %v3783
  %v3827 = vpack.c.b16 %v3786, %v3785
  %v3828 = vpack.c.b16 %v3788, %v3787
  %v3829 = vpack.c.b16 %v3790, %v3789
  %v3830 = vpack.c.b16 %v3792, %v3791
  %v3831 = vpack.c.b16 %v3794, %v3793
  %v3832 = vpack.c.b16 %v3796, %v3795
  %v3833 = vpack.c.b16 %v3798, %v3797
  %v3834 = vpack.c.b16 %v3800, %v3799
  %v3835 = vpack.c.b16 %v3802, %v3801
  %v3836 = vpack.c.b16 %v3804, %v3803
  %v3837 = vpack.c.b16 %v3806, %v3805
  %v3838 = vpack.c.b16 %v3808, %v3807
  %v3839 = vpack.c.b16 %v3810, %v3809
  %v3840 = vpack.c.b16 %v3812, %v3811
  %v3841 = vpack.c.b16 %v3814, %v3813
  %v3842 = vpack.c.b16 %v3816, %v3815
  %v3843 = vpack.c.b16 %v3818, %v3817
  %v3844 = vpack.c.b16 %v3820, %v3819
  %3869 = vmatpush.bf16.msra.mxu0 %v3828
  %3870 = vmatpush.bf16.msra.mxu0 %v3827
  %3871 = vmatpush.bf16.msra.mxu0 %v3826
  %3872 = vmatpush.bf16.msra.mxu0 %v3825
  %3873 = vmatpush.bf16.msra.mxu0 %v3824
  %3874 = vmatpush.bf16.msra.mxu0 %v3823
  %3875 = vmatpush.bf16.msra.mxu0 %v3822
  %3876 = vmatpush.bf16.msra.mxu0 %v3821
  %3877 = vmatmul.bf16.gmra.mxu0 %v3670
  %v3878 = vpop.f32.mrf.mxu0
  %v3879 = vadd.f32 %v3723, %v3878
  %v3880 = vpop.f32.mrf.mxu0
  %v3881 = vadd.f32 %v3723, %v3880
  %3882 = vdwg.mxu0
  %3883 = vmatpush.bf16.msra.mxu0 %v3836
  %3884 = vmatpush.bf16.msra.mxu0 %v3835
  %3885 = vmatpush.bf16.msra.mxu0 %v3834
  %3886 = vmatpush.bf16.msra.mxu0 %v3833
  %3887 = vmatpush.bf16.msra.mxu0 %v3832
  %3888 = vmatpush.bf16.msra.mxu0 %v3831
  %3889 = vmatpush.bf16.msra.mxu0 %v3830
  %3890 = vmatpush.bf16.msra.mxu0 %v3829
  %3891 = vmatmul.bf16.gmra.mxu0 %v3671
  %v3892 = vpop.f32.mrf.mxu0
  %v3893 = vadd.f32 %v3879, %v3892
  %v3894 = vpop.f32.mrf.mxu0
  %v3895 = vadd.f32 %v3881, %v3894
  %3896 = vdwg.mxu0
  %3897 = vmatpush.bf16.msra.mxu0 %v3844
  %3898 = vmatpush.bf16.msra.mxu0 %v3843
  %3899 = vmatpush.bf16.msra.mxu0 %v3842
  %3900 = vmatpush.bf16.msra.mxu0 %v3841
  %3901 = vmatpush.bf16.msra.mxu0 %v3840
  %3902 = vmatpush.bf16.msra.mxu0 %v3839
  %3903 = vmatpush.bf16.msra.mxu0 %v3838
  %3904 = vmatpush.bf16.msra.mxu0 %v3837
  %3905 = vmatmul.bf16.gmra.mxu0 %v3672
  %v3906 = vpop.f32.mrf.mxu0
  %v3907 = vadd.f32 %v3893, %v3906
  %v3908 = vpop.f32.mrf.mxu0
  %v3909 = vadd.f32 %v3895, %v3908
  %3910 = vdwg.mxu0
  %v3911 = vld [vmem:[%s0] sm:$0xff]
  %v3912 = vld [vmem:[%s0 + $0x8] sm:$0xff]
  %v3913 = vstv %s43
  %v3914 = vmul.f32 %v3913, %v3907
  %v3915 = vmul.f32 %v3913, %v3909
  %v3916 = vadd.f32 %v3911, %v3914
  %v3917 = vadd.f32 %v3912, %v3915
  %v3918 = vsel %vm3593, %v3916, 0.0
  %3919 = vadd.xlane.f32.xlu0 %v3918
  %v3920 = vpop.xlane.xlu0 %3919
  %v3921 = vsel %vm3593, %v3917, 0.0
  %3922 = vadd.xlane.f32.xlu0 %v3921
  %v3923 = vpop.xlane.xlu0 %3922
  %v3924 = vrcp.pop 32.0
  %v3925 = vmul.f32 32.0, %v3924
  %v3926 = vsub.f32 1.0, %v3925
  %v3927 = vmul.f32 %v3924, %v3926
  %v3928 = vadd.f32 %v3924, %v3927
  %vm3929 = vweird.f32 %v3924
  %v3930 = vsel %vm3929, %v3924, %v3928
  %v3931 = vmul.f32 %v3920, %v3930
  %v3932 = vmul.f32 %v3923, %v3930
  %v3933 = vsub.f32 %v3916, %v3931
  %v3934 = vsub.f32 %v3917, %v3932
  %v3935 = vmul.f32 %v3933, %v3933
  %v3936 = vmul.f32 %v3934, %v3934
  %v3937 = vsel %vm3593, %v3935, 0.0
  %3938 = vadd.xlane.f32.xlu0 %v3937
  %v3939 = vpop.xlane.xlu0 %3938
  %v3940 = vsel %vm3593, %v3936, 0.0
  %3941 = vadd.xlane.f32.xlu0 %v3940
  %v3942 = vpop.xlane.xlu0 %3941
  %v3943 = vmul.f32 %v3939, %v3930
  %v3944 = vmul.f32 %v3942, %v3930
  %v3945 = vadd.f32 %v3943, 1e-05
  %v3946 = vadd.f32 %v3944, 1e-05
  %v3947 = vrsqrt.pop %v3945
  %v3948 = vmul.f32 %v3947, %v3945
  %v3949 = vmul.f32 %v3948, %v3947
  %v3950 = vmul.f32 0.5, %v3949
  %v3951 = vsub.f32 1.5, %v3950
  %v3952 = vmul.f32 %v3947, %v3951
  %vm3953 = vweird.f32 %v3945
  %vm3954 = vweird.f32 %v3947
  %vm3955 = vmor %vm3953, %vm3954
  %v3956 = vsel %vm3955, %v3947, %v3952
  %v3957 = vrsqrt.pop %v3946
  %v3958 = vmul.f32 %v3957, %v3946
  %v3959 = vmul.f32 %v3958, %v3957
  %v3960 = vmul.f32 0.5, %v3959
  %v3961 = vsub.f32 1.5, %v3960
  %v3962 = vmul.f32 %v3957, %v3961
  %vm3963 = vweird.f32 %v3946
  %vm3964 = vweird.f32 %v3957
  %vm3965 = vmor %vm3963, %vm3964
  %v3966 = vsel %vm3965, %v3957, %v3962
  %v3967 = vmul.f32 %v3933, %v3956
  %v3968 = vmul.f32 %v3934, %v3966
  %v3969 = vld [vmem:[%s5] sm:$0x1]
  %v3971 = vperm.slane %v3969, 0
  %v3973 = vmul.f32 %v3967, %v3971
  %v3974 = vmul.f32 %v3968, %v3971
  %v3975 = vld [vmem:[%s6] sm:$0x1]
  %v3977 = vperm.slane %v3975, 0
  %v3979 = vadd.f32 %v3973, %v3977
  %v3980 = vadd.f32 %v3974, %v3977
  %v3981 = vpack.c.bf16 %v3980, %v3979
  %v3982 = vld [vmem:[%s7] sm:$0xf]
  %v3983 = vld [vmem:[%s7 + $0x4] sm:$0xf]
  %v3984 = vld [vmem:[%s7 + $0x8] sm:$0xf]
  %v3985 = vld [vmem:[%s7 + $0xc] sm:$0xf]
  %v3986 = vld [vmem:[%s8] sm:$0x1]
  %v3988 = vperm.slane %v3986, 0
  %v3994 = vunpack.c.l.b16 %v3982
  %v3995 = vunpack.c.l.b16 %v3983
  %v3996 = vunpack.c.l.b16 %v3984
  %v3997 = vunpack.c.l.b16 %v3985
  %v3998 = vpack.c.b16 %v3995, %v3994
  %v3999 = vpack.c.b16 %v3997, %v3996
  %v4003 = vsel %vm3593, %v3981, 0
  %4005 = vmatpush.bf16.msra.mxu0 0
  %4006 = vmatpush.bf16.msra.mxu0 0
  %4007 = vmatpush.bf16.msra.mxu0 0
  %4008 = vmatpush.bf16.msra.mxu0 0
  %4009 = vmatpush.bf16.msra.mxu0 0
  %4010 = vmatpush.bf16.msra.mxu0 0
  %4011 = vmatpush.bf16.msra.mxu0 %v3999
  %4012 = vmatpush.bf16.msra.mxu0 %v3998
  %4013 = vmatmul.bf16.gmra.mxu0 %v4003
  %v4014 = vpop.f32.mrf.mxu0
  %v4015 = vadd.f32 %v3988, %v4014
  %v4016 = vpop.f32.mrf.mxu0
  %v4017 = vadd.f32 %v3988, %v4016
  %4018 = vdwg.mxu0
  %vm4019 = vcmp.ge.f32.partialorder %v4015, 0.0
  %vm4020 = vcmp.ge.f32.partialorder %v4017, 0.0
  %v4021 = vmul.f32 %v4015, 0.01
  %v4022 = vmul.f32 %v4017, 0.01
  %v4023 = vsel %vm4019, %v4015, %v4021
  %v4024 = vsel %vm4020, %v4017, %v4022
  %v4025 = vpack.c.bf16 %v4024, %v4023
  %v4026 = vld [vmem:[%s9] sm:$0xf]
  %v4027 = vld [vmem:[%s9 + $0x4] sm:$0xf]
  %v4028 = vld [vmem:[%s9 + $0x8] sm:$0xf]
  %v4029 = vld [vmem:[%s9 + $0xc] sm:$0xf]
  %v4030 = vld [vmem:[%s9 + $0x10] sm:$0xf]
  %v4031 = vld [vmem:[%s9 + $0x14] sm:$0xf]
  %v4032 = vld [vmem:[%s9 + $0x18] sm:$0xf]
  %v4033 = vld [vmem:[%s9 + $0x1c] sm:$0xf]
  %v4034 = vld [vmem:[%s10] sm:$0x1]
  %v4036 = vperm.slane %v4034, 0
  %v4046 = vunpack.c.l.b16 %v4026
  %v4047 = vunpack.c.l.b16 %v4027
  %v4048 = vunpack.c.l.b16 %v4028
  %v4049 = vunpack.c.l.b16 %v4029
  %v4050 = vunpack.c.l.b16 %v4030
  %v4051 = vunpack.c.l.b16 %v4031
  %v4052 = vunpack.c.l.b16 %v4032
  %v4053 = vunpack.c.l.b16 %v4033
  %v4054 = vpack.c.b16 %v4047, %v4046
  %v4055 = vpack.c.b16 %v4049, %v4048
  %v4056 = vpack.c.b16 %v4051, %v4050
  %v4057 = vpack.c.b16 %v4053, %v4052
  %v4063 = vsel %vm3596, %v4025, 0
  %4065 = vmatpush.bf16.msra.mxu0 0
  %4066 = vmatpush.bf16.msra.mxu0 0
  %4067 = vmatpush.bf16.msra.mxu0 0
  %4068 = vmatpush.bf16.msra.mxu0 0
  %4069 = vmatpush.bf16.msra.mxu0 %v4057
  %4070 = vmatpush.bf16.msra.mxu0 %v4056
  %4071 = vmatpush.bf16.msra.mxu0 %v4055
  %4072 = vmatpush.bf16.msra.mxu0 %v4054
  %4073 = vmatmul.bf16.gmra.mxu0 %v4063
  %v4074 = vpop.f32.mrf.mxu0
  %v4075 = vadd.f32 %v4036, %v4074
  %v4076 = vpop.f32.mrf.mxu0
  %v4077 = vadd.f32 %v4036, %v4076
  %4078 = vdwg.mxu0
  %v4079 = vmul.f32 %v3913, %v4075
  %v4080 = vmul.f32 %v3913, %v4077
  %v4081 = vadd.f32 %v3916, %v4079
  %v4082 = vadd.f32 %v3917, %v4080
  %4083 = vst.msk [vmem:[%s12] sm:$0xff] %vm3593, %v4081
  %4084 = vst.msk [vmem:[%s12 + $0x8] sm:$0xff] %vm3593, %v4082
  // Predicated region
  $region57: #{_lambda_.5} parent=0 // pred_check
    _
  $region58: #{_lambda_.5} parent=0 // pred_check_branch
    %4086 = sbr.rel (0) target = $region60
  $region59: #{_lambda_.5} parent=0 // pred_region
    _
  $region60: #{_lambda_.5} parent=0 // pred_fallthru
    _
  // Predicated region
  $region61: #{_lambda_.5} parent=0 // pred_check
    _
  $region62: #{_lambda_.5} parent=0 // pred_check_branch
    %4088 = sbr.rel (0) target = $region64
  $region63: #{_lambda_.5} parent=0 // pred_region
    _
  $region64: #{_lambda_.5} parent=0 // pred_fallthru
    _

// kernel: _lambda_.7
$region0: #{_lambda_.7}
  #allocation0 [shape = 'u32[]', space=smem, size = 0x4, offset = 0x4, fixed_abs, tag = 'smem constant byte address 0x4 - core index']
  #allocation1 [shape = 'u32[72,128]{1,0:T(1,128)}', space=vmem, size = 0x9000, scoped, tag = 'internal scratch']
  #allocation2 [shape = 'f32[1,1]{1,0:T(1,128)S(6)}', space=smem, size = 0x200, scoped, tag = 'scoped memory for _lambda_.7']
  %s0 = inlined_call_operand.vmem [shape: f32[16,32], index: 0, kind: input, shape index: {}]
  %s1 = inlined_call_operand.vmem [shape: bf16[16,256], index: 1, kind: input, shape index: {}]
  %s2 = inlined_call_operand.vmem [shape: bf16[256,128], index: 2, kind: input, shape index: {}]
  %s3 = inlined_call_operand.vmem [shape: bf16[384,32], index: 3, kind: input, shape index: {}]
  %s4 = inlined_call_operand.vmem [shape: f32[1,32], index: 4, kind: input, shape index: {}]
  %s5 = inlined_call_operand.vmem [shape: f32[1,32], index: 5, kind: input, shape index: {}]
  %s6 = inlined_call_operand.vmem [shape: f32[1,32], index: 6, kind: input, shape index: {}]
  %s7 = inlined_call_operand.vmem [shape: bf16[32,64], index: 7, kind: input, shape index: {}]
  %s8 = inlined_call_operand.vmem [shape: f32[1,64], index: 8, kind: input, shape index: {}]
  %s9 = inlined_call_operand.vmem [shape: bf16[64,32], index: 9, kind: input, shape index: {}]
  %s10 = inlined_call_operand.vmem [shape: f32[1,32], index: 10, kind: input, shape index: {}]
  %s11 = inlined_call_operand.<no memory space> [shape: f32[1,1], index: 11, kind: input, shape index: {}]
  %s12 = inlined_call_operand.hbm [shape: f32[16,32], index: 12, kind: output, shape index: {}]
  %s13 = sld [smem:[#allocation0]]
  $region65: #{_lambda_.7} parent=0
    _
  %s15 = ssub.s32 1, %s13
  %s16 = scalar_select 0, %s15, %s13
  %17 = sst [smem:[#allocation2]] %s11
  $region1: #{_lambda_.7} parent=0
    #allocation3 [shape = 'u8[8192]{0}', space=vmem, size = 0x2000, scoped, tag = 'output window, operand 0, single buffered']
    #allocation4 [shape = 's32[1]{0}', space=sflag, size = 0x4, scoped, tag = 'scoped memory for _lambda_.7']
    %18 = vsyncpa [#allocation4], 0
    // Predicated region
    $region2: #{_lambda_.7} parent=1 // pred_check
      _
    $region3: #{_lambda_.7} parent=1 // pred_check_branch
      %20 = sbr.rel (0) target = $region5
    $region4: #{_lambda_.7} parent=1 // pred_region
      _
    $region5: #{_lambda_.7} parent=1 // pred_fallthru
      _
    // Predicated region
    $region6: #{_lambda_.7} parent=1 // pred_check
      _
    $region7: #{_lambda_.7} parent=1 // pred_check_branch
      %22 = sbr.rel (0) target = $region9
    $region8: #{_lambda_.7} parent=1 // pred_region
      _
    $region9: #{_lambda_.7} parent=1 // pred_fallthru
      _
    // Predicated region
    $region10: #{_lambda_.7} parent=1 // pred_check
      _
    $region11: #{_lambda_.7} parent=1 // pred_check_branch
      %24 = sbr.rel (0) target = $region13
    $region12: #{_lambda_.7} parent=1 // pred_region
      _
    $region13: #{_lambda_.7} parent=1 // pred_fallthru
      _
    // Predicated region
    $region14: #{_lambda_.7} parent=1 // pred_check
      _
    $region15: #{_lambda_.7} parent=1 // pred_check_branch
      %26 = sbr.rel (0) target = $region17
    $region16: #{_lambda_.7} parent=1 // pred_region
      _
    $region17: #{_lambda_.7} parent=1 // pred_fallthru
      _
    // Predicated region
    $region18: #{_lambda_.7} parent=1 // pred_check
      _
    $region19: #{_lambda_.7} parent=1 // pred_check_branch
      %28 = sbr.rel (0) target = $region21
    $region20: #{_lambda_.7} parent=1 // pred_region
      _
    $region21: #{_lambda_.7} parent=1 // pred_fallthru
      _
    // Predicated region
    $region22: #{_lambda_.7} parent=1 // pred_check
      _
    $region23: #{_lambda_.7} parent=1 // pred_check_branch
      %30 = sbr.rel (0) target = $region25
    $region24: #{_lambda_.7} parent=1 // pred_region
      _
    $region25: #{_lambda_.7} parent=1 // pred_fallthru
      _
    // Predicated region
    $region26: #{_lambda_.7} parent=1 // pred_check
      _
    $region27: #{_lambda_.7} parent=1 // pred_check_branch
      %32 = sbr.rel (0) target = $region29
    $region28: #{_lambda_.7} parent=1 // pred_region
      _
    $region29: #{_lambda_.7} parent=1 // pred_fallthru
      _
    // Predicated region
    $region30: #{_lambda_.7} parent=1 // pred_check
      _
    $region31: #{_lambda_.7} parent=1 // pred_check_branch
      %34 = sbr.rel (0) target = $region33
    $region32: #{_lambda_.7} parent=1 // pred_region
      _
    $region33: #{_lambda_.7} parent=1 // pred_fallthru
      _
    // Predicated region
    $region34: #{_lambda_.7} parent=1 // pred_check
      _
    $region35: #{_lambda_.7} parent=1 // pred_check_branch
      %36 = sbr.rel (0) target = $region37
    $region36: #{_lambda_.7} parent=1 // pred_region
      _
    $region37: #{_lambda_.7} parent=1 // pred_fallthru
      _
    // Predicated region
    $region38: #{_lambda_.7} parent=1 // pred_check
      _
    $region39: #{_lambda_.7} parent=1 // pred_check_branch
      %38 = sbr.rel (0) target = $region41
    $region40: #{_lambda_.7} parent=1 // pred_region
      _
    $region41: #{_lambda_.7} parent=1 // pred_fallthru
      _
    // Predicated region
    $region42: #{_lambda_.7} parent=1 // pred_check
      _
    $region43: #{_lambda_.7} parent=1 // pred_check_branch
      %40 = sbr.rel (0) target = $region45
    $region44: #{_lambda_.7} parent=1 // pred_region
      _
    $region45: #{_lambda_.7} parent=1 // pred_fallthru
      _
    // Predicated region
    $region46: #{_lambda_.7} parent=1 // pred_check
      _
    $region47: #{_lambda_.7} parent=1 // pred_check_branch
      %42 = sbr.rel (0) target = $region49
    $region48: #{_lambda_.7} parent=1 // pred_region
      _
    $region49: #{_lambda_.7} parent=1 // pred_fallthru
      _
    %s44 = sld [smem:[#allocation2]]
    %v45 = vld [vmem:[%s1] sm:$0xff]
    %v46 = vld [vmem:[%s1 + $0x8] sm:$0xff]
    %v47 = vld [vmem:[%s2] sm:$0xf]
    %v48 = vld [vmem:[%s2 + $0x4] sm:$0xf]
    %v49 = vld [vmem:[%s2 + $0x8] sm:$0xf]
    %v50 = vld [vmem:[%s2 + $0xc] sm:$0xf]
    %v51 = vld [vmem:[%s2 + $0x10] sm:$0xf]
    %v52 = vld [vmem:[%s2 + $0x14] sm:$0xf]
    %v53 = vld [vmem:[%s2 + $0x18] sm:$0xf]
    %v54 = vld [vmem:[%s2 + $0x1c] sm:$0xf]
    %v55 = vld [vmem:[%s2 + $0x20] sm:$0xf]
    %v56 = vld [vmem:[%s2 + $0x24] sm:$0xf]
    %v57 = vld [vmem:[%s2 + $0x28] sm:$0xf]
    %v58 = vld [vmem:[%s2 + $0x2c] sm:$0xf]
    %v59 = vld [vmem:[%s2 + $0x30] sm:$0xf]
    %v60 = vld [vmem:[%s2 + $0x34] sm:$0xf]
    %v61 = vld [vmem:[%s2 + $0x38] sm:$0xf]
    %v62 = vld [vmem:[%s2 + $0x3c] sm:$0xf]
    %v63 = vld [vmem:[%s2 + $0x40] sm:$0xf]
    %v64 = vld [vmem:[%s2 + $0x44] sm:$0xf]
    %v65 = vld [vmem:[%s2 + $0x48] sm:$0xf]
    %v66 = vld [vmem:[%s2 + $0x4c] sm:$0xf]
    %v67 = vld [vmem:[%s2 + $0x50] sm:$0xf]
    %v68 = vld [vmem:[%s2 + $0x54] sm:$0xf]
    %v69 = vld [vmem:[%s2 + $0x58] sm:$0xf]
    %v70 = vld [vmem:[%s2 + $0x5c] sm:$0xf]
    %v71 = vld [vmem:[%s2 + $0x60] sm:$0xf]
    %v72 = vld [vmem:[%s2 + $0x64] sm:$0xf]
    %v73 = vld [vmem:[%s2 + $0x68] sm:$0xf]
    %v74 = vld [vmem:[%s2 + $0x6c] sm:$0xf]
    %v75 = vld [vmem:[%s2 + $0x70] sm:$0xf]
    %v76 = vld [vmem:[%s2 + $0x74] sm:$0xf]
    %v77 = vld [vmem:[%s2 + $0x78] sm:$0xf]
    %v78 = vld [vmem:[%s2 + $0x7c] sm:$0xf]
    %v81 = vunpack.c.l.b16 %v45
    %v82 = vunpack.c.h.b16 %v45
    %v83 = vunpack.c.l.b16 %v46
    %v84 = vunpack.c.h.b16 %v46
    %v85 = vpack.c.b16 %v83, %v81
    %v86 = vpack.c.b16 %v84, %v82
    %v121 = vunpack.c.l.b16 %v47
    %v122 = vunpack.c.l.b16 %v48
    %v123 = vunpack.c.l.b16 %v49
    %v124 = vunpack.c.l.b16 %v50
    %v125 = vunpack.c.l.b16 %v51
    %v126 = vunpack.c.l.b16 %v52
    %v127 = vunpack.c.l.b16 %v53
    %v128 = vunpack.c.l.b16 %v54
    %v129 = vunpack.c.l.b16 %v55
    %v130 = vunpack.c.l.b16 %v56
    %v131 = vunpack.c.l.b16 %v57
    %v132 = vunpack.c.l.b16 %v58
    %v133 = vunpack.c.l.b16 %v59
    %v134 = vunpack.c.l.b16 %v60
    %v135 = vunpack.c.l.b16 %v61
    %v136 = vunpack.c.l.b16 %v62
    %v137 = vunpack.c.l.b16 %v63
    %v138 = vunpack.c.l.b16 %v64
    %v139 = vunpack.c.l.b16 %v65
    %v140 = vunpack.c.l.b16 %v66
    %v141 = vunpack.c.l.b16 %v67
    %v142 = vunpack.c.l.b16 %v68
    %v143 = vunpack.c.l.b16 %v69
    %v144 = vunpack.c.l.b16 %v70
    %v145 = vunpack.c.l.b16 %v71
    %v146 = vunpack.c.l.b16 %v72
    %v147 = vunpack.c.l.b16 %v73
    %v148 = vunpack.c.l.b16 %v74
    %v149 = vunpack.c.l.b16 %v75
    %v150 = vunpack.c.l.b16 %v76
    %v151 = vunpack.c.l.b16 %v77
    %v152 = vunpack.c.l.b16 %v78
    %v153 = vpack.c.b16 %v122, %v121
    %v154 = vpack.c.b16 %v124, %v123
    %v155 = vpack.c.b16 %v126, %v125
    %v156 = vpack.c.b16 %v128, %v127
    %v157 = vpack.c.b16 %v130, %v129
    %v158 = vpack.c.b16 %v132, %v131
    %v159 = vpack.c.b16 %v134, %v133
    %v160 = vpack.c.b16 %v136, %v135
    %v161 = vpack.c.b16 %v138, %v137
    %v162 = vpack.c.b16 %v140, %v139
    %v163 = vpack.c.b16 %v142, %v141
    %v164 = vpack.c.b16 %v144, %v143
    %v165 = vpack.c.b16 %v146, %v145
    %v166 = vpack.c.b16 %v148, %v147
    %v167 = vpack.c.b16 %v150, %v149
    %v168 = vpack.c.b16 %v152, %v151
    %185 = vmatpush.bf16.msra.mxu0 %v160
    %186 = vmatpush.bf16.msra.mxu0 %v159
    %187 = vmatpush.bf16.msra.mxu0 %v158
    %188 = vmatpush.bf16.msra.mxu0 %v157
    %189 = vmatpush.bf16.msra.mxu0 %v156
    %190 = vmatpush.bf16.msra.mxu0 %v155
    %191 = vmatpush.bf16.msra.mxu0 %v154
    %192 = vmatpush.bf16.msra.mxu0 %v153
    %193 = vmatmul.bf16.gmra.mxu0 %v85
    %v194 = vpop.f32.mrf.mxu0
    %v195 = vadd.f32 0.0, %v194
    %v196 = vpop.f32.mrf.mxu0
    %v197 = vadd.f32 0.0, %v196
    %198 = vdwg.mxu0
    %199 = vmatpush.bf16.msra.mxu0 %v168
    %200 = vmatpush.bf16.msra.mxu0 %v167
    %201 = vmatpush.bf16.msra.mxu0 %v166
    %202 = vmatpush.bf16.msra.mxu0 %v165
    %203 = vmatpush.bf16.msra.mxu0 %v164
    %204 = vmatpush.bf16.msra.mxu0 %v163
    %205 = vmatpush.bf16.msra.mxu0 %v162
    %206 = vmatpush.bf16.msra.mxu0 %v161
    %207 = vmatmul.bf16.gmra.mxu0 %v86
    %v208 = vpop.f32.mrf.mxu0
    %v209 = vadd.f32 %v195, %v208
    %v210 = vpop.f32.mrf.mxu0
    %v211 = vadd.f32 %v197, %v210
    %212 = vdwg.mxu0
    %v213 = vmax.f32 %v209, 1.0
    %v214 = vmax.f32 %v211, 1.0
    %216 = vset.pattern.permute.xlu0 96
    %217 = vperm.xlu0 %216, %v213
    %v218 = vpop.permute.xlu0 %217
    %221 = vset.pattern.permute.xlu0 96
    %222 = vperm.xlu0 %221, %v214
    %v223 = vpop.permute.xlu0 %222
    %v225 = vrcp.pop %v218
    %v226 = vmul.f32 %v218, %v225
    %v227 = vsub.f32 1.0, %v226
    %v228 = vmul.f32 %v225, %v227
    %v229 = vadd.f32 %v225, %v228
    %vm230 = vweird.f32 %v218
    %vm231 = vweird.f32 %v225
    %vm232 = vmor %vm230, %vm231
    %v233 = vsel %vm232, %v225, %v229
    %v234 = vand.u32 2147483647, %v218
    %vm235 = vcmp.eq.f32.partialorder %v234, 8.507059e+37
    %v236 = vand.u32 %v218, 2147483648
    %v237 = vor.u32 1.1754944e-38, %v236
    %v238 = vsel %vm235, %v237, %v233
    %v239 = vmul.f32 %v209, %v238
    %v240 = vrcp.pop %v223
    %v241 = vmul.f32 %v223, %v240
    %v242 = vsub.f32 1.0, %v241
    %v243 = vmul.f32 %v240, %v242
    %v244 = vadd.f32 %v240, %v243
    %vm245 = vweird.f32 %v223
    %vm246 = vweird.f32 %v240
    %vm247 = vmor %vm245, %vm246
    %v248 = vsel %vm247, %v240, %v244
    %v249 = vand.u32 2147483647, %v223
    %vm250 = vcmp.eq.f32.partialorder %v249, 8.507059e+37
    %v251 = vand.u32 %v223, 2147483648
    %v252 = vor.u32 1.1754944e-38, %v251
    %v253 = vsel %vm250, %v252, %v248
    %v254 = vmul.f32 %v211, %v253
    %v255 = vunpack.c.l.bf16 %v45
    %v256 = vunpack.c.h.bf16 %v45
    %v257 = vunpack.c.l.bf16 %v46
    %v258 = vunpack.c.h.bf16 %v46
    %259 = vxpose.xlu0.b32.start [1/16] %v255, 128
    %260 = vxpose.xlu0.b32.cont [2/16] %v257, 128
    %261 = vxpose.xlu0.b32.cont [3/16] 0.0, 128
    %262 = vxpose.xlu0.b32.cont [4/16] 0.0, 128
    %263 = vxpose.xlu0.b32.cont [5/16] 0.0, 128
    %264 = vxpose.xlu0.b32.cont [6/16] 0.0, 128
    %265 = vxpose.xlu0.b32.cont [7/16] 0.0, 128
    %266 = vxpose.xlu0.b32.cont [8/16] 0.0, 128
    %267 = vxpose.xlu0.b32.cont [9/16] 0.0, 128
    %268 = vxpose.xlu0.b32.cont [10/16] 0.0, 128
    %269 = vxpose.xlu0.b32.cont [11/16] 0.0, 128
    %270 = vxpose.xlu0.b32.cont [12/16] 0.0, 128
    %271 = vxpose.xlu0.b32.cont [13/16] 0.0, 128
    %272 = vxpose.xlu0.b32.cont [14/16] 0.0, 128
    %273 = vxpose.xlu0.b32.cont [15/16] 0.0, 128
    %274 = vxpose.xlu0.b32.end [16/16] 0.0, 128
    %v275 = vpop.trf.xlu0
    %v276 = vpop.trf.xlu0
    %v277 = vpop.trf.xlu0
    %v278 = vpop.trf.xlu0
    %v279 = vpop.trf.xlu0
    %v280 = vpop.trf.xlu0
    %v281 = vpop.trf.xlu0
    %v282 = vpop.trf.xlu0
    %v283 = vpop.trf.xlu0
    %v284 = vpop.trf.xlu0
    %v285 = vpop.trf.xlu0
    %v286 = vpop.trf.xlu0
    %v287 = vpop.trf.xlu0
    %v288 = vpop.trf.xlu0
    %v289 = vpop.trf.xlu0
    %v290 = vpop.trf.xlu0
    %291 = vxpose.xlu0.b32.start [1/16] %v256, 128
    %292 = vxpose.xlu0.b32.cont [2/16] %v258, 128
    %293 = vxpose.xlu0.b32.cont [3/16] 0.0, 128
    %294 = vxpose.xlu0.b32.cont [4/16] 0.0, 128
    %295 = vxpose.xlu0.b32.cont [5/16] 0.0, 128
    %296 = vxpose.xlu0.b32.cont [6/16] 0.0, 128
    %297 = vxpose.xlu0.b32.cont [7/16] 0.0, 128
    %298 = vxpose.xlu0.b32.cont [8/16] 0.0, 128
    %299 = vxpose.xlu0.b32.cont [9/16] 0.0, 128
    %300 = vxpose.xlu0.b32.cont [10/16] 0.0, 128
    %301 = vxpose.xlu0.b32.cont [11/16] 0.0, 128
    %302 = vxpose.xlu0.b32.cont [12/16] 0.0, 128
    %303 = vxpose.xlu0.b32.cont [13/16] 0.0, 128
    %304 = vxpose.xlu0.b32.cont [14/16] 0.0, 128
    %305 = vxpose.xlu0.b32.cont [15/16] 0.0, 128
    %306 = vxpose.xlu0.b32.end [16/16] 0.0, 128
    %v307 = vpop.trf.xlu0
    %v308 = vpop.trf.xlu0
    %v309 = vpop.trf.xlu0
    %v310 = vpop.trf.xlu0
    %v311 = vpop.trf.xlu0
    %v312 = vpop.trf.xlu0
    %v313 = vpop.trf.xlu0
    %v314 = vpop.trf.xlu0
    %v315 = vpop.trf.xlu0
    %v316 = vpop.trf.xlu0
    %v317 = vpop.trf.xlu0
    %v318 = vpop.trf.xlu0
    %v319 = vpop.trf.xlu0
    %v320 = vpop.trf.xlu0
    %v321 = vpop.trf.xlu0
    %v322 = vpop.trf.xlu0
    %325 = vrot.lane.b32.xlu0 %v239, 96
    %v326 = vpop.permute.xlu0 %325
    %327 = vrot.lane.b32.xlu0 %v254, 96
    %v328 = vpop.permute.xlu0 %327
    %vm331 = vcmask 130048
    %v333 = vsel %vm331, %v275, 0
    %v336 = vsel %vm331, %v276, 0
    %v339 = vsel %vm331, %v277, 0
    %v342 = vsel %vm331, %v278, 0
    %v345 = vsel %vm331, %v279, 0
    %v348 = vsel %vm331, %v280, 0
    %v351 = vsel %vm331, %v281, 0
    %v354 = vsel %vm331, %v282, 0
    %v357 = vsel %vm331, %v283, 0
    %v360 = vsel %vm331, %v284, 0
    %v363 = vsel %vm331, %v285, 0
    %v366 = vsel %vm331, %v286, 0
    %v369 = vsel %vm331, %v287, 0
    %v372 = vsel %vm331, %v288, 0
    %v375 = vsel %vm331, %v289, 0
    %v378 = vsel %vm331, %v290, 0
    %v381 = vsel %vm331, %v307, 0
    %v384 = vsel %vm331, %v308, 0
    %v387 = vsel %vm331, %v309, 0
    %v390 = vsel %vm331, %v310, 0
    %v393 = vsel %vm331, %v311, 0
    %v396 = vsel %vm331, %v312, 0
    %v399 = vsel %vm331, %v313, 0
    %v402 = vsel %vm331, %v314, 0
    %v405 = vsel %vm331, %v315, 0
    %v408 = vsel %vm331, %v316, 0
    %v411 = vsel %vm331, %v317, 0
    %v414 = vsel %vm331, %v318, 0
    %v417 = vsel %vm331, %v319, 0
    %v420 = vsel %vm331, %v320, 0
    %v423 = vsel %vm331, %v321, 0
    %v426 = vsel %vm331, %v322, 0
    %428 = vmatpush.msra.mxu0 0.0
    %429 = vmatpush.msra.mxu0 0.0
    %430 = vmatpush.msra.mxu0 0.0
    %431 = vmatpush.msra.mxu0 0.0
    %432 = vmatpush.msra.mxu0 0.0
    %433 = vmatpush.msra.mxu0 0.0
    %434 = vmatpush.msra.mxu0 0.0
    %435 = vmatpush.msra.mxu0 0.0
    %436 = vmatpush.msra.mxu0 0.0
    %437 = vmatpush.msra.mxu0 0.0
    %438 = vmatpush.msra.mxu0 0.0
    %439 = vmatpush.msra.mxu0 0.0
    %440 = vmatpush.msra.mxu0 0.0
    %441 = vmatpush.msra.mxu0 0.0
    %442 = vmatpush.msra.mxu0 %v328
    %443 = vmatpush.msra.mxu0 %v326
    %444 = vmatmul.f32.gmra.mxu0 %v333
    %v445 = vpop.f32.mrf.mxu0
    %v446 = vadd.f32 0.0, %v445
    %447 = vmatmul.f32.gmra.mxu0 %v336
    %v448 = vpop.f32.mrf.mxu0
    %v449 = vadd.f32 0.0, %v448
    %450 = vmatmul.f32.gmra.mxu0 %v339
    %v451 = vpop.f32.mrf.mxu0
    %v452 = vadd.f32 0.0, %v451
    %453 = vmatmul.f32.gmra.mxu0 %v342
    %v454 = vpop.f32.mrf.mxu0
    %v455 = vadd.f32 0.0, %v454
    %456 = vmatmul.f32.gmra.mxu0 %v345
    %v457 = vpop.f32.mrf.mxu0
    %v458 = vadd.f32 0.0, %v457
    %459 = vmatmul.f32.gmra.mxu0 %v348
    %v460 = vpop.f32.mrf.mxu0
    %v461 = vadd.f32 0.0, %v460
    %462 = vmatmul.f32.gmra.mxu0 %v351
    %v463 = vpop.f32.mrf.mxu0
    %v464 = vadd.f32 0.0, %v463
    %465 = vmatmul.f32.gmra.mxu0 %v354
    %v466 = vpop.f32.mrf.mxu0
    %v467 = vadd.f32 0.0, %v466
    %468 = vmatmul.f32.gmra.mxu0 %v357
    %v469 = vpop.f32.mrf.mxu0
    %v470 = vadd.f32 0.0, %v469
    %471 = vmatmul.f32.gmra.mxu0 %v360
    %v472 = vpop.f32.mrf.mxu0
    %v473 = vadd.f32 0.0, %v472
    %474 = vmatmul.f32.gmra.mxu0 %v363
    %v475 = vpop.f32.mrf.mxu0
    %v476 = vadd.f32 0.0, %v475
    %477 = vmatmul.f32.gmra.mxu0 %v366
    %v478 = vpop.f32.mrf.mxu0
    %v479 = vadd.f32 0.0, %v478
    %480 = vmatmul.f32.gmra.mxu0 %v369
    %v481 = vpop.f32.mrf.mxu0
    %v482 = vadd.f32 0.0, %v481
    %483 = vmatmul.f32.gmra.mxu0 %v372
    %v484 = vpop.f32.mrf.mxu0
    %v485 = vadd.f32 0.0, %v484
    %486 = vmatmul.f32.gmra.mxu0 %v375
    %v487 = vpop.f32.mrf.mxu0
    %v488 = vadd.f32 0.0, %v487
    %489 = vmatmul.f32.gmra.mxu0 %v378
    %v490 = vpop.f32.mrf.mxu0
    %v491 = vadd.f32 0.0, %v490
    %492 = vmatmul.f32.gmra.mxu0 %v381
    %v493 = vpop.f32.mrf.mxu0
    %v494 = vadd.f32 0.0, %v493
    %495 = vmatmul.f32.gmra.mxu0 %v384
    %v496 = vpop.f32.mrf.mxu0
    %v497 = vadd.f32 0.0, %v496
    %498 = vmatmul.f32.gmra.mxu0 %v387
    %v499 = vpop.f32.mrf.mxu0
    %v500 = vadd.f32 0.0, %v499
    %501 = vmatmul.f32.gmra.mxu0 %v390
    %v502 = vpop.f32.mrf.mxu0
    %v503 = vadd.f32 0.0, %v502
    %504 = vmatmul.f32.gmra.mxu0 %v393
    %v505 = vpop.f32.mrf.mxu0
    %v506 = vadd.f32 0.0, %v505
    %507 = vmatmul.f32.gmra.mxu0 %v396
    %v508 = vpop.f32.mrf.mxu0
    %v509 = vadd.f32 0.0, %v508
    %510 = vmatmul.f32.gmra.mxu0 %v399
    %v511 = vpop.f32.mrf.mxu0
    %v512 = vadd.f32 0.0, %v511
    %513 = vmatmul.f32.gmra.mxu0 %v402
    %v514 = vpop.f32.mrf.mxu0
    %v515 = vadd.f32 0.0, %v514
    %516 = vmatmul.f32.gmra.mxu0 %v405
    %v517 = vpop.f32.mrf.mxu0
    %v518 = vadd.f32 0.0, %v517
    %519 = vmatmul.f32.gmra.mxu0 %v408
    %v520 = vpop.f32.mrf.mxu0
    %v521 = vadd.f32 0.0, %v520
    %522 = vmatmul.f32.gmra.mxu0 %v411
    %v523 = vpop.f32.mrf.mxu0
    %v524 = vadd.f32 0.0, %v523
    %525 = vmatmul.f32.gmra.mxu0 %v414
    %v526 = vpop.f32.mrf.mxu0
    %v527 = vadd.f32 0.0, %v526
    %528 = vmatmul.f32.gmra.mxu0 %v417
    %v529 = vpop.f32.mrf.mxu0
    %v530 = vadd.f32 0.0, %v529
    %531 = vmatmul.f32.gmra.mxu0 %v420
    %v532 = vpop.f32.mrf.mxu0
    %v533 = vadd.f32 0.0, %v532
    %534 = vmatmul.f32.gmra.mxu0 %v423
    %v535 = vpop.f32.mrf.mxu0
    %v536 = vadd.f32 0.0, %v535
    %537 = vmatmul.f32.gmra.mxu0 %v426
    %v538 = vpop.f32.mrf.mxu0
    %v539 = vadd.f32 0.0, %v538
    %540 = vdwg.mxu0
    %v541 = vunpack.c.l.bf16 %v47
    %v542 = vunpack.c.l.bf16 %v48
    %v543 = vunpack.c.l.bf16 %v49
    %v544 = vunpack.c.l.bf16 %v50
    %v545 = vunpack.c.l.bf16 %v51
    %v546 = vunpack.c.l.bf16 %v52
    %v547 = vunpack.c.l.bf16 %v53
    %v548 = vunpack.c.l.bf16 %v54
    %v549 = vunpack.c.l.bf16 %v55
    %v550 = vunpack.c.l.bf16 %v56
    %v551 = vunpack.c.l.bf16 %v57
    %v552 = vunpack.c.l.bf16 %v58
    %v553 = vunpack.c.l.bf16 %v59
    %v554 = vunpack.c.l.bf16 %v60
    %v555 = vunpack.c.l.bf16 %v61
    %v556 = vunpack.c.l.bf16 %v62
    %v557 = vunpack.c.l.bf16 %v63
    %v558 = vunpack.c.l.bf16 %v64
    %v559 = vunpack.c.l.bf16 %v65
    %v560 = vunpack.c.l.bf16 %v66
    %v561 = vunpack.c.l.bf16 %v67
    %v562 = vunpack.c.l.bf16 %v68
    %v563 = vunpack.c.l.bf16 %v69
    %v564 = vunpack.c.l.bf16 %v70
    %v565 = vunpack.c.l.bf16 %v71
    %v566 = vunpack.c.l.bf16 %v72
    %v567 = vunpack.c.l.bf16 %v73
    %v568 = vunpack.c.l.bf16 %v74
    %v569 = vunpack.c.l.bf16 %v75
    %v570 = vunpack.c.l.bf16 %v76
    %v571 = vunpack.c.l.bf16 %v77
    %v572 = vunpack.c.l.bf16 %v78
    %v573 = vmul.f32 %v541, %v541
    %v574 = vmul.f32 %v542, %v542
    %v575 = vmul.f32 %v543, %v543
    %v576 = vmul.f32 %v544, %v544
    %v577 = vmul.f32 %v545, %v545
    %v578 = vmul.f32 %v546, %v546
    %v579 = vmul.f32 %v547, %v547
    %v580 = vmul.f32 %v548, %v548
    %v581 = vmul.f32 %v549, %v549
    %v582 = vmul.f32 %v550, %v550
    %v583 = vmul.f32 %v551, %v551
    %v584 = vmul.f32 %v552, %v552
    %v585 = vmul.f32 %v553, %v553
    %v586 = vmul.f32 %v554, %v554
    %v587 = vmul.f32 %v555, %v555
    %v588 = vmul.f32 %v556, %v556
    %v589 = vmul.f32 %v557, %v557
    %v590 = vmul.f32 %v558, %v558
    %v591 = vmul.f32 %v559, %v559
    %v592 = vmul.f32 %v560, %v560
    %v593 = vmul.f32 %v561, %v561
    %v594 = vmul.f32 %v562, %v562
    %v595 = vmul.f32 %v563, %v563
    %v596 = vmul.f32 %v564, %v564
    %v597 = vmul.f32 %v565, %v565
    %v598 = vmul.f32 %v566, %v566
    %v599 = vmul.f32 %v567, %v567
    %v600 = vmul.f32 %v568, %v568
    %v601 = vmul.f32 %v569, %v569
    %v602 = vmul.f32 %v570, %v570
    %v603 = vmul.f32 %v571, %v571
    %v604 = vmul.f32 %v572, %v572
    %v605 = vmul.f32 %v446, %v446
    %v606 = vmul.f32 %v449, %v449
    %v607 = vmul.f32 %v452, %v452
    %v608 = vmul.f32 %v455, %v455
    %v609 = vmul.f32 %v458, %v458
    %v610 = vmul.f32 %v461, %v461
    %v611 = vmul.f32 %v464, %v464
    %v612 = vmul.f32 %v467, %v467
    %v613 = vmul.f32 %v470, %v470
    %v614 = vmul.f32 %v473, %v473
    %v615 = vmul.f32 %v476, %v476
    %v616 = vmul.f32 %v479, %v479
    %v617 = vmul.f32 %v482, %v482
    %v618 = vmul.f32 %v485, %v485
    %v619 = vmul.f32 %v488, %v488
    %v620 = vmul.f32 %v491, %v491
    %v621 = vmul.f32 %v494, %v494
    %v622 = vmul.f32 %v497, %v497
    %v623 = vmul.f32 %v500, %v500
    %v624 = vmul.f32 %v503, %v503
    %v625 = vmul.f32 %v506, %v506
    %v626 = vmul.f32 %v509, %v509
    %v627 = vmul.f32 %v512, %v512
    %v628 = vmul.f32 %v515, %v515
    %v629 = vmul.f32 %v518, %v518
    %v630 = vmul.f32 %v521, %v521
    %v631 = vmul.f32 %v524, %v524
    %v632 = vmul.f32 %v527, %v527
    %v633 = vmul.f32 %v530, %v530
    %v634 = vmul.f32 %v533, %v533
    %v635 = vmul.f32 %v536, %v536
    %v636 = vmul.f32 %v539, %v539
    %669 = vrot.lane.b32.xlu0 %v605, 32
    %v670 = vpop.permute.xlu0 %669
    %671 = vrot.lane.b32.xlu0 %v606, 32
    %v672 = vpop.permute.xlu0 %671
    %673 = vrot.lane.b32.xlu0 %v607, 32
    %v674 = vpop.permute.xlu0 %673
    %675 = vrot.lane.b32.xlu0 %v608, 32
    %v676 = vpop.permute.xlu0 %675
    %677 = vrot.lane.b32.xlu0 %v609, 32
    %v678 = vpop.permute.xlu0 %677
    %679 = vrot.lane.b32.xlu0 %v610, 32
    %v680 = vpop.permute.xlu0 %679
    %681 = vrot.lane.b32.xlu0 %v611, 32
    %v682 = vpop.permute.xlu0 %681
    %683 = vrot.lane.b32.xlu0 %v612, 32
    %v684 = vpop.permute.xlu0 %683
    %685 = vrot.lane.b32.xlu0 %v613, 32
    %v686 = vpop.permute.xlu0 %685
    %687 = vrot.lane.b32.xlu0 %v614, 32
    %v688 = vpop.permute.xlu0 %687
    %689 = vrot.lane.b32.xlu0 %v615, 32
    %v690 = vpop.permute.xlu0 %689
    %691 = vrot.lane.b32.xlu0 %v616, 32
    %v692 = vpop.permute.xlu0 %691
    %693 = vrot.lane.b32.xlu0 %v617, 32
    %v694 = vpop.permute.xlu0 %693
    %695 = vrot.lane.b32.xlu0 %v618, 32
    %v696 = vpop.permute.xlu0 %695
    %697 = vrot.lane.b32.xlu0 %v619, 32
    %v698 = vpop.permute.xlu0 %697
    %699 = vrot.lane.b32.xlu0 %v620, 32
    %v700 = vpop.permute.xlu0 %699
    %701 = vrot.lane.b32.xlu0 %v621, 32
    %v702 = vpop.permute.xlu0 %701
    %703 = vrot.lane.b32.xlu0 %v622, 32
    %v704 = vpop.permute.xlu0 %703
    %705 = vrot.lane.b32.xlu0 %v623, 32
    %v706 = vpop.permute.xlu0 %705
    %707 = vrot.lane.b32.xlu0 %v624, 32
    %v708 = vpop.permute.xlu0 %707
    %709 = vrot.lane.b32.xlu0 %v625, 32
    %v710 = vpop.permute.xlu0 %709
    %711 = vrot.lane.b32.xlu0 %v626, 32
    %v712 = vpop.permute.xlu0 %711
    %713 = vrot.lane.b32.xlu0 %v627, 32
    %v714 = vpop.permute.xlu0 %713
    %715 = vrot.lane.b32.xlu0 %v628, 32
    %v716 = vpop.permute.xlu0 %715
    %717 = vrot.lane.b32.xlu0 %v629, 32
    %v718 = vpop.permute.xlu0 %717
    %719 = vrot.lane.b32.xlu0 %v630, 32
    %v720 = vpop.permute.xlu0 %719
    %721 = vrot.lane.b32.xlu0 %v631, 32
    %v722 = vpop.permute.xlu0 %721
    %723 = vrot.lane.b32.xlu0 %v632, 32
    %v724 = vpop.permute.xlu0 %723
    %725 = vrot.lane.b32.xlu0 %v633, 32
    %v726 = vpop.permute.xlu0 %725
    %727 = vrot.lane.b32.xlu0 %v634, 32
    %v728 = vpop.permute.xlu0 %727
    %729 = vrot.lane.b32.xlu0 %v635, 32
    %v730 = vpop.permute.xlu0 %729
    %731 = vrot.lane.b32.xlu0 %v636, 32
    %v732 = vpop.permute.xlu0 %731
    %v765 = vsub.f32 %v573, %v670
    %v766 = vsub.f32 %v574, %v672
    %v767 = vsub.f32 %v575, %v674
    %v768 = vsub.f32 %v576, %v676
    %v769 = vsub.f32 %v577, %v678
    %v770 = vsub.f32 %v578, %v680
    %v771 = vsub.f32 %v579, %v682
    %v772 = vsub.f32 %v580, %v684
    %v773 = vsub.f32 %v581, %v686
    %v774 = vsub.f32 %v582, %v688
    %v775 = vsub.f32 %v583, %v690
    %v776 = vsub.f32 %v584, %v692
    %v777 = vsub.f32 %v585, %v694
    %v778 = vsub.f32 %v586, %v696
    %v779 = vsub.f32 %v587, %v698
    %v780 = vsub.f32 %v588, %v700
    %v781 = vsub.f32 %v589, %v702
    %v782 = vsub.f32 %v590, %v704
    %v783 = vsub.f32 %v591, %v706
    %v784 = vsub.f32 %v592, %v708
    %v785 = vsub.f32 %v593, %v710
    %v786 = vsub.f32 %v594, %v712
    %v787 = vsub.f32 %v595, %v714
    %v788 = vsub.f32 %v596, %v716
    %v789 = vsub.f32 %v597, %v718
    %v790 = vsub.f32 %v598, %v720
    %v791 = vsub.f32 %v599, %v722
    %v792 = vsub.f32 %v600, %v724
    %v793 = vsub.f32 %v601, %v726
    %v794 = vsub.f32 %v602, %v728
    %v795 = vsub.f32 %v603, %v730
    %v796 = vsub.f32 %v604, %v732
    %v797 = vmax.f32 %v765, 0.0
    %v798 = vmax.f32 %v766, 0.0
    %v799 = vmax.f32 %v767, 0.0
    %v800 = vmax.f32 %v768, 0.0
    %v801 = vmax.f32 %v769, 0.0
    %v802 = vmax.f32 %v770, 0.0
    %v803 = vmax.f32 %v771, 0.0
    %v804 = vmax.f32 %v772, 0.0
    %v805 = vmax.f32 %v773, 0.0
    %v806 = vmax.f32 %v774, 0.0
    %v807 = vmax.f32 %v775, 0.0
    %v808 = vmax.f32 %v776, 0.0
    %v809 = vmax.f32 %v777, 0.0
    %v810 = vmax.f32 %v778, 0.0
    %v811 = vmax.f32 %v779, 0.0
    %v812 = vmax.f32 %v780, 0.0
    %v813 = vmax.f32 %v781, 0.0
    %v814 = vmax.f32 %v782, 0.0
    %v815 = vmax.f32 %v783, 0.0
    %v816 = vmax.f32 %v784, 0.0
    %v817 = vmax.f32 %v785, 0.0
    %v818 = vmax.f32 %v786, 0.0
    %v819 = vmax.f32 %v787, 0.0
    %v820 = vmax.f32 %v788, 0.0
    %v821 = vmax.f32 %v789, 0.0
    %v822 = vmax.f32 %v790, 0.0
    %v823 = vmax.f32 %v791, 0.0
    %v824 = vmax.f32 %v792, 0.0
    %v825 = vmax.f32 %v793, 0.0
    %v826 = vmax.f32 %v794, 0.0
    %v827 = vmax.f32 %v795, 0.0
    %v828 = vmax.f32 %v796, 0.0
    %v829 = vadd.f32 %v797, 1e-07
    %v830 = vadd.f32 %v798, 1e-07
    %v831 = vadd.f32 %v799, 1e-07
    %v832 = vadd.f32 %v800, 1e-07
    %v833 = vadd.f32 %v801, 1e-07
    %v834 = vadd.f32 %v802, 1e-07
    %v835 = vadd.f32 %v803, 1e-07
    %v836 = vadd.f32 %v804, 1e-07
    %v837 = vadd.f32 %v805, 1e-07
    %v838 = vadd.f32 %v806, 1e-07
    %v839 = vadd.f32 %v807, 1e-07
    %v840 = vadd.f32 %v808, 1e-07
    %v841 = vadd.f32 %v809, 1e-07
    %v842 = vadd.f32 %v810, 1e-07
    %v843 = vadd.f32 %v811, 1e-07
    %v844 = vadd.f32 %v812, 1e-07
    %v845 = vadd.f32 %v813, 1e-07
    %v846 = vadd.f32 %v814, 1e-07
    %v847 = vadd.f32 %v815, 1e-07
    %v848 = vadd.f32 %v816, 1e-07
    %v849 = vadd.f32 %v817, 1e-07
    %v850 = vadd.f32 %v818, 1e-07
    %v851 = vadd.f32 %v819, 1e-07
    %v852 = vadd.f32 %v820, 1e-07
    %v853 = vadd.f32 %v821, 1e-07
    %v854 = vadd.f32 %v822, 1e-07
    %v855 = vadd.f32 %v823, 1e-07
    %v856 = vadd.f32 %v824, 1e-07
    %v857 = vadd.f32 %v825, 1e-07
    %v858 = vadd.f32 %v826, 1e-07
    %v859 = vadd.f32 %v827, 1e-07
    %v860 = vadd.f32 %v828, 1e-07
    %893 = vrot.lane.b32.xlu0 %v829, 96
    %v894 = vpop.permute.xlu0 %893
    %895 = vrot.lane.b32.xlu0 %v830, 96
    %v896 = vpop.permute.xlu0 %895
    %897 = vrot.lane.b32.xlu0 %v831, 96
    %v898 = vpop.permute.xlu0 %897
    %899 = vrot.lane.b32.xlu0 %v832, 96
    %v900 = vpop.permute.xlu0 %899
    %901 = vrot.lane.b32.xlu0 %v833, 96
    %v902 = vpop.permute.xlu0 %901
    %903 = vrot.lane.b32.xlu0 %v834, 96
    %v904 = vpop.permute.xlu0 %903
    %905 = vrot.lane.b32.xlu0 %v835, 96
    %v906 = vpop.permute.xlu0 %905
    %907 = vrot.lane.b32.xlu0 %v836, 96
    %v908 = vpop.permute.xlu0 %907
    %909 = vrot.lane.b32.xlu0 %v837, 96
    %v910 = vpop.permute.xlu0 %909
    %911 = vrot.lane.b32.xlu0 %v838, 96
    %v912 = vpop.permute.xlu0 %911
    %913 = vrot.lane.b32.xlu0 %v839, 96
    %v914 = vpop.permute.xlu0 %913
    %915 = vrot.lane.b32.xlu0 %v840, 96
    %v916 = vpop.permute.xlu0 %915
    %917 = vrot.lane.b32.xlu0 %v841, 96
    %v918 = vpop.permute.xlu0 %917
    %919 = vrot.lane.b32.xlu0 %v842, 96
    %v920 = vpop.permute.xlu0 %919
    %921 = vrot.lane.b32.xlu0 %v843, 96
    %v922 = vpop.permute.xlu0 %921
    %923 = vrot.lane.b32.xlu0 %v844, 96
    %v924 = vpop.permute.xlu0 %923
    %925 = vrot.lane.b32.xlu0 %v845, 96
    %v926 = vpop.permute.xlu0 %925
    %927 = vrot.lane.b32.xlu0 %v846, 96
    %v928 = vpop.permute.xlu0 %927
    %929 = vrot.lane.b32.xlu0 %v847, 96
    %v930 = vpop.permute.xlu0 %929
    %931 = vrot.lane.b32.xlu0 %v848, 96
    %v932 = vpop.permute.xlu0 %931
    %933 = vrot.lane.b32.xlu0 %v849, 96
    %v934 = vpop.permute.xlu0 %933
    %935 = vrot.lane.b32.xlu0 %v850, 96
    %v936 = vpop.permute.xlu0 %935
    %937 = vrot.lane.b32.xlu0 %v851, 96
    %v938 = vpop.permute.xlu0 %937
    %939 = vrot.lane.b32.xlu0 %v852, 96
    %v940 = vpop.permute.xlu0 %939
    %941 = vrot.lane.b32.xlu0 %v853, 96
    %v942 = vpop.permute.xlu0 %941
    %943 = vrot.lane.b32.xlu0 %v854, 96
    %v944 = vpop.permute.xlu0 %943
    %945 = vrot.lane.b32.xlu0 %v855, 96
    %v946 = vpop.permute.xlu0 %945
    %947 = vrot.lane.b32.xlu0 %v856, 96
    %v948 = vpop.permute.xlu0 %947
    %949 = vrot.lane.b32.xlu0 %v857, 96
    %v950 = vpop.permute.xlu0 %949
    %951 = vrot.lane.b32.xlu0 %v858, 96
    %v952 = vpop.permute.xlu0 %951
    %953 = vrot.lane.b32.xlu0 %v859, 96
    %v954 = vpop.permute.xlu0 %953
    %955 = vrot.lane.b32.xlu0 %v860, 96
    %v956 = vpop.permute.xlu0 %955
    %989 = vmatpush.msra.mxu0 %v924
    %990 = vmatpush.msra.mxu0 %v922
    %991 = vmatpush.msra.mxu0 %v920
    %992 = vmatpush.msra.mxu0 %v918
    %993 = vmatpush.msra.mxu0 %v916
    %994 = vmatpush.msra.mxu0 %v914
    %995 = vmatpush.msra.mxu0 %v912
    %996 = vmatpush.msra.mxu0 %v910
    %997 = vmatpush.msra.mxu0 %v908
    %998 = vmatpush.msra.mxu0 %v906
    %999 = vmatpush.msra.mxu0 %v904
    %1000 = vmatpush.msra.mxu0 %v902
    %1001 = vmatpush.msra.mxu0 %v900
    %1002 = vmatpush.msra.mxu0 %v898
    %1003 = vmatpush.msra.mxu0 %v896
    %1004 = vmatpush.msra.mxu0 %v894
    %1005 = vmatmul.f32.gmra.mxu0 %v255
    %v1006 = vpop.f32.mrf.mxu0
    %v1007 = vadd.f32 0.0, %v1006
    %1008 = vmatmul.f32.gmra.mxu0 %v257
    %v1009 = vpop.f32.mrf.mxu0
    %v1010 = vadd.f32 0.0, %v1009
    %1011 = vdwg.mxu0
    %1012 = vmatpush.msra.mxu0 %v956
    %1013 = vmatpush.msra.mxu0 %v954
    %1014 = vmatpush.msra.mxu0 %v952
    %1015 = vmatpush.msra.mxu0 %v950
    %1016 = vmatpush.msra.mxu0 %v948
    %1017 = vmatpush.msra.mxu0 %v946
    %1018 = vmatpush.msra.mxu0 %v944
    %1019 = vmatpush.msra.mxu0 %v942
    %1020 = vmatpush.msra.mxu0 %v940
    %1021 = vmatpush.msra.mxu0 %v938
    %1022 = vmatpush.msra.mxu0 %v936
    %1023 = vmatpush.msra.mxu0 %v934
    %1024 = vmatpush.msra.mxu0 %v932
    %1025 = vmatpush.msra.mxu0 %v930
    %1026 = vmatpush.msra.mxu0 %v928
    %1027 = vmatpush.msra.mxu0 %v926
    %1028 = vmatmul.f32.gmra.mxu0 %v256
    %v1029 = vpop.f32.mrf.mxu0
    %v1030 = vadd.f32 %v1007, %v1029
    %1031 = vmatmul.f32.gmra.mxu0 %v258
    %v1032 = vpop.f32.mrf.mxu0
    %v1033 = vadd.f32 %v1010, %v1032
    %1034 = vdwg.mxu0
    %v1035 = vrsqrt.pop %v1030
    %v1036 = vmul.f32 %v1035, %v1030
    %v1037 = vmul.f32 %v1036, %v1035
    %v1038 = vmul.f32 0.5, %v1037
    %v1039 = vsub.f32 1.5, %v1038
    %v1040 = vmul.f32 %v1035, %v1039
    %v1041 = vmul.f32 %v1030, %v1040
    %vm1042 = vcmp.eq.f32.partialorder %v1030, inf
    %v1043 = vsel %vm1042, %v1030, %v1041
    %vm1044 = vcmp.eq.f32.partialorder %v1030, 0.0
    %v1045 = vand.u32 %v1030, 2147483648
    %v1046 = vsel %vm1044, %v1045, %v1043
    %v1047 = vrsqrt.pop %v1033
    %v1048 = vmul.f32 %v1047, %v1033
    %v1049 = vmul.f32 %v1048, %v1047
    %v1050 = vmul.f32 0.5, %v1049
    %v1051 = vsub.f32 1.5, %v1050
    %v1052 = vmul.f32 %v1047, %v1051
    %v1053 = vmul.f32 %v1033, %v1052
    %vm1054 = vcmp.eq.f32.partialorder %v1033, inf
    %v1055 = vsel %vm1054, %v1033, %v1053
    %vm1056 = vcmp.eq.f32.partialorder %v1033, 0.0
    %v1057 = vand.u32 %v1033, 2147483648
    %v1058 = vsel %vm1056, %v1057, %v1055
    loop: start=0, step=1, limit=2
    $region50: #{_lambda_.7} parent=1 // loop_pre_header
      _
    $region51: #{_lambda_.7} parent=1 // loop_header
      %s1060 = sphi 0, %s1064
      %p1061 = scmp.ge.s32.totalorder %s1060, 2
      %v1065 = vphi 0.0, %v3527
      %v1066 = vphi 0.0, %v3528
      %v1067 = vphi 0.0, %v3529
      %v1068 = vphi 0.0, %v3530
      %v1069 = vphi 0.0, %v3531
      %v1070 = vphi 0.0, %v3532
      %v1071 = vphi 0.0, %v3533
      %v1072 = vphi 0.0, %v3534
      %v1073 = vphi 0.0, %v3535
      %v1074 = vphi 0.0, %v3536
      %v1075 = vphi 0.0, %v3537
      %v1076 = vphi 0.0, %v3538
      %v1077 = vphi 0.0, %v3539
      %v1078 = vphi 0.0, %v3540
      %v1079 = vphi 0.0, %v3541
      %v1080 = vphi 0.0, %v3542
    $region52: #{_lambda_.7} parent=1 // loop_header_branch
      %1063 = sbr.rel (%p1061) target = $region56
    $region53: #{_lambda_.7} parent=1 // loop_body
      %s1081 = smul.u32 %s1060, 128
      %s1082 = sshra.s32 %s1081, 7
      %s1083 = sand.u32 %s1081, 127
      %s1084 = smul.addr %s1082, 4
      %s1085 = scalar_lea.vmem %s1, %s1084
      %v1086 = vld [vmem:[%s1085] sm:$0xf]
      %v1087 = vld [vmem:[%s1085 + $0x8] sm:$0xf]
      %v1088 = vunpack.c.l.bf16 %v1086
      %v1089 = vunpack.c.l.bf16 %v1087
      %s1090 = sshra.s32 %s1081, 3
      %s1091 = sand.u32 %s1081, 7
      %s1092 = smul.addr %s1090, 4
      %s1093 = scalar_lea.vmem %s2, %s1092
      %v1094 = vld [vmem:[%s1093] sm:$0xf]
      %v1095 = vld [vmem:[%s1093 + $0x4] sm:$0xf]
      %v1096 = vld [vmem:[%s1093 + $0x8] sm:$0xf]
      %v1097 = vld [vmem:[%s1093 + $0xc] sm:$0xf]
      %v1098 = vld [vmem:[%s1093 + $0x10] sm:$0xf]
      %v1099 = vld [vmem:[%s1093 + $0x14] sm:$0xf]
      %v1100 = vld [vmem:[%s1093 + $0x18] sm:$0xf]
      %v1101 = vld [vmem:[%s1093 + $0x1c] sm:$0xf]
      %v1102 = vld [vmem:[%s1093 + $0x20] sm:$0xf]
      %v1103 = vld [vmem:[%s1093 + $0x24] sm:$0xf]
      %v1104 = vld [vmem:[%s1093 + $0x28] sm:$0xf]
      %v1105 = vld [vmem:[%s1093 + $0x2c] sm:$0xf]
      %v1106 = vld [vmem:[%s1093 + $0x30] sm:$0xf]
      %v1107 = vld [vmem:[%s1093 + $0x34] sm:$0xf]
      %v1108 = vld [vmem:[%s1093 + $0x38] sm:$0xf]
      %v1109 = vld [vmem:[%s1093 + $0x3c] sm:$0xf]
      %v1110 = vunpack.c.l.bf16 %v1094
      %v1111 = vunpack.c.l.bf16 %v1095
      %v1112 = vunpack.c.l.bf16 %v1096
      %v1113 = vunpack.c.l.bf16 %v1097
      %v1114 = vunpack.c.l.bf16 %v1098
      %v1115 = vunpack.c.l.bf16 %v1099
      %v1116 = vunpack.c.l.bf16 %v1100
      %v1117 = vunpack.c.l.bf16 %v1101
      %v1118 = vunpack.c.l.bf16 %v1102
      %v1119 = vunpack.c.l.bf16 %v1103
      %v1120 = vunpack.c.l.bf16 %v1104
      %v1121 = vunpack.c.l.bf16 %v1105
      %v1122 = vunpack.c.l.bf16 %v1106
      %v1123 = vunpack.c.l.bf16 %v1107
      %v1124 = vunpack.c.l.bf16 %v1108
      %v1125 = vunpack.c.l.bf16 %v1109
      %v1126 = vperm.slane %v1088, 0
      %v1127 = vlaneseq
      %v1128 = vshrl.u32 %v1127, 7
      %1130 = vset.pattern.permute.xlu0 %v1128
      %1131 = vperm.xlu0 %1130, %v1126
      %v1132 = vpop.permute.xlu0 %1131
      %v1133 = vlaneseq
      %v1134 = vshrl.u32 %v1133, 7
      %v1135 = vadd.s32 %v1134, 8
      %1136 = vset.pattern.permute.xlu0 %v1135
      %1137 = vperm.xlu0 %1136, %v1126
      %v1138 = vpop.permute.xlu0 %1137
      %v1139 = vlaneseq
      %v1140 = vshrl.u32 %v1139, 7
      %v1141 = vadd.s32 %v1140, 16
      %1142 = vset.pattern.permute.xlu0 %v1141
      %1143 = vperm.xlu0 %1142, %v1126
      %v1144 = vpop.permute.xlu0 %1143
      %v1145 = vlaneseq
      %v1146 = vshrl.u32 %v1145, 7
      %v1147 = vadd.s32 %v1146, 24
      %1148 = vset.pattern.permute.xlu0 %v1147
      %1149 = vperm.xlu0 %1148, %v1126
      %v1150 = vpop.permute.xlu0 %1149
      %v1151 = vlaneseq
      %v1152 = vshrl.u32 %v1151, 7
      %v1153 = vadd.s32 %v1152, 32
      %1154 = vset.pattern.permute.xlu0 %v1153
      %1155 = vperm.xlu0 %1154, %v1126
      %v1156 = vpop.permute.xlu0 %1155
      %v1157 = vlaneseq
      %v1158 = vshrl.u32 %v1157, 7
      %v1159 = vadd.s32 %v1158, 40
      %1160 = vset.pattern.permute.xlu0 %v1159
      %1161 = vperm.xlu0 %1160, %v1126
      %v1162 = vpop.permute.xlu0 %1161
      %v1163 = vlaneseq
      %v1164 = vshrl.u32 %v1163, 7
      %v1165 = vadd.s32 %v1164, 48
      %1166 = vset.pattern.permute.xlu0 %v1165
      %1167 = vperm.xlu0 %1166, %v1126
      %v1168 = vpop.permute.xlu0 %1167
      %v1169 = vlaneseq
      %v1170 = vshrl.u32 %v1169, 7
      %v1171 = vadd.s32 %v1170, 56
      %1172 = vset.pattern.permute.xlu0 %v1171
      %1173 = vperm.xlu0 %1172, %v1126
      %v1174 = vpop.permute.xlu0 %1173
      %v1175 = vlaneseq
      %v1176 = vshrl.u32 %v1175, 7
      %v1177 = vadd.s32 %v1176, 64
      %1178 = vset.pattern.permute.xlu0 %v1177
      %1179 = vperm.xlu0 %1178, %v1126
      %v1180 = vpop.permute.xlu0 %1179
      %v1181 = vlaneseq
      %v1182 = vshrl.u32 %v1181, 7
      %v1183 = vadd.s32 %v1182, 72
      %1184 = vset.pattern.permute.xlu0 %v1183
      %1185 = vperm.xlu0 %1184, %v1126
      %v1186 = vpop.permute.xlu0 %1185
      %v1187 = vlaneseq
      %v1188 = vshrl.u32 %v1187, 7
      %v1189 = vadd.s32 %v1188, 80
      %1190 = vset.pattern.permute.xlu0 %v1189
      %1191 = vperm.xlu0 %1190, %v1126
      %v1192 = vpop.permute.xlu0 %1191
      %v1193 = vlaneseq
      %v1194 = vshrl.u32 %v1193, 7
      %v1195 = vadd.s32 %v1194, 88
      %1196 = vset.pattern.permute.xlu0 %v1195
      %1197 = vperm.xlu0 %1196, %v1126
      %v1198 = vpop.permute.xlu0 %1197
      %v1199 = vlaneseq
      %v1200 = vshrl.u32 %v1199, 7
      %v1201 = vadd.s32 %v1200, 96
      %1202 = vset.pattern.permute.xlu0 %v1201
      %1203 = vperm.xlu0 %1202, %v1126
      %v1204 = vpop.permute.xlu0 %1203
      %v1205 = vlaneseq
      %v1206 = vshrl.u32 %v1205, 7
      %v1207 = vadd.s32 %v1206, 104
      %1208 = vset.pattern.permute.xlu0 %v1207
      %1209 = vperm.xlu0 %1208, %v1126
      %v1210 = vpop.permute.xlu0 %1209
      %v1211 = vlaneseq
      %v1212 = vshrl.u32 %v1211, 7
      %v1213 = vadd.s32 %v1212, 112
      %1214 = vset.pattern.permute.xlu0 %v1213
      %1215 = vperm.xlu0 %1214, %v1126
      %v1216 = vpop.permute.xlu0 %1215
      %v1217 = vlaneseq
      %v1218 = vshrl.u32 %v1217, 7
      %v1219 = vadd.s32 %v1218, 120
      %1220 = vset.pattern.permute.xlu0 %v1219
      %1221 = vperm.xlu0 %1220, %v1126
      %v1222 = vpop.permute.xlu0 %1221
      %v1223 = vperm.slane %v1088, 1
      %v1224 = vlaneseq
      %v1225 = vshrl.u32 %v1224, 7
      %1227 = vset.pattern.permute.xlu0 %v1225
      %1228 = vperm.xlu0 %1227, %v1223
      %v1229 = vpop.permute.xlu0 %1228
      %v1230 = vlaneseq
      %v1231 = vshrl.u32 %v1230, 7
      %v1232 = vadd.s32 %v1231, 8
      %1233 = vset.pattern.permute.xlu0 %v1232
      %1234 = vperm.xlu0 %1233, %v1223
      %v1235 = vpop.permute.xlu0 %1234
      %v1236 = vlaneseq
      %v1237 = vshrl.u32 %v1236, 7
      %v1238 = vadd.s32 %v1237, 16
      %1239 = vset.pattern.permute.xlu0 %v1238
      %1240 = vperm.xlu0 %1239, %v1223
      %v1241 = vpop.permute.xlu0 %1240
      %v1242 = vlaneseq
      %v1243 = vshrl.u32 %v1242, 7
      %v1244 = vadd.s32 %v1243, 24
      %1245 = vset.pattern.permute.xlu0 %v1244
      %1246 = vperm.xlu0 %1245, %v1223
      %v1247 = vpop.permute.xlu0 %1246
      %v1248 = vlaneseq
      %v1249 = vshrl.u32 %v1248, 7
      %v1250 = vadd.s32 %v1249, 32
      %1251 = vset.pattern.permute.xlu0 %v1250
      %1252 = vperm.xlu0 %1251, %v1223
      %v1253 = vpop.permute.xlu0 %1252
      %v1254 = vlaneseq
      %v1255 = vshrl.u32 %v1254, 7
      %v1256 = vadd.s32 %v1255, 40
      %1257 = vset.pattern.permute.xlu0 %v1256
      %1258 = vperm.xlu0 %1257, %v1223
      %v1259 = vpop.permute.xlu0 %1258
      %v1260 = vlaneseq
      %v1261 = vshrl.u32 %v1260, 7
      %v1262 = vadd.s32 %v1261, 48
      %1263 = vset.pattern.permute.xlu0 %v1262
      %1264 = vperm.xlu0 %1263, %v1223
      %v1265 = vpop.permute.xlu0 %1264
      %v1266 = vlaneseq
      %v1267 = vshrl.u32 %v1266, 7
      %v1268 = vadd.s32 %v1267, 56
      %1269 = vset.pattern.permute.xlu0 %v1268
      %1270 = vperm.xlu0 %1269, %v1223
      %v1271 = vpop.permute.xlu0 %1270
      %v1272 = vlaneseq
      %v1273 = vshrl.u32 %v1272, 7
      %v1274 = vadd.s32 %v1273, 64
      %1275 = vset.pattern.permute.xlu0 %v1274
      %1276 = vperm.xlu0 %1275, %v1223
      %v1277 = vpop.permute.xlu0 %1276
      %v1278 = vlaneseq
      %v1279 = vshrl.u32 %v1278, 7
      %v1280 = vadd.s32 %v1279, 72
      %1281 = vset.pattern.permute.xlu0 %v1280
      %1282 = vperm.xlu0 %1281, %v1223
      %v1283 = vpop.permute.xlu0 %1282
      %v1284 = vlaneseq
      %v1285 = vshrl.u32 %v1284, 7
      %v1286 = vadd.s32 %v1285, 80
      %1287 = vset.pattern.permute.xlu0 %v1286
      %1288 = vperm.xlu0 %1287, %v1223
      %v1289 = vpop.permute.xlu0 %1288
      %v1290 = vlaneseq
      %v1291 = vshrl.u32 %v1290, 7
      %v1292 = vadd.s32 %v1291, 88
      %1293 = vset.pattern.permute.xlu0 %v1292
      %1294 = vperm.xlu0 %1293, %v1223
      %v1295 = vpop.permute.xlu0 %1294
      %v1296 = vlaneseq
      %v1297 = vshrl.u32 %v1296, 7
      %v1298 = vadd.s32 %v1297, 96
      %1299 = vset.pattern.permute.xlu0 %v1298
      %1300 = vperm.xlu0 %1299, %v1223
      %v1301 = vpop.permute.xlu0 %1300
      %v1302 = vlaneseq
      %v1303 = vshrl.u32 %v1302, 7
      %v1304 = vadd.s32 %v1303, 104
      %1305 = vset.pattern.permute.xlu0 %v1304
      %1306 = vperm.xlu0 %1305, %v1223
      %v1307 = vpop.permute.xlu0 %1306
      %v1308 = vlaneseq
      %v1309 = vshrl.u32 %v1308, 7
      %v1310 = vadd.s32 %v1309, 112
      %1311 = vset.pattern.permute.xlu0 %v1310
      %1312 = vperm.xlu0 %1311, %v1223
      %v1313 = vpop.permute.xlu0 %1312
      %v1314 = vlaneseq
      %v1315 = vshrl.u32 %v1314, 7
      %v1316 = vadd.s32 %v1315, 120
      %1317 = vset.pattern.permute.xlu0 %v1316
      %1318 = vperm.xlu0 %1317, %v1223
      %v1319 = vpop.permute.xlu0 %1318
      %v1320 = vperm.slane %v1088, 2
      %v1321 = vlaneseq
      %v1322 = vshrl.u32 %v1321, 7
      %1324 = vset.pattern.permute.xlu0 %v1322
      %1325 = vperm.xlu0 %1324, %v1320
      %v1326 = vpop.permute.xlu0 %1325
      %v1327 = vlaneseq
      %v1328 = vshrl.u32 %v1327, 7
      %v1329 = vadd.s32 %v1328, 8
      %1330 = vset.pattern.permute.xlu0 %v1329
      %1331 = vperm.xlu0 %1330, %v1320
      %v1332 = vpop.permute.xlu0 %1331
      %v1333 = vlaneseq
      %v1334 = vshrl.u32 %v1333, 7
      %v1335 = vadd.s32 %v1334, 16
      %1336 = vset.pattern.permute.xlu0 %v1335
      %1337 = vperm.xlu0 %1336, %v1320
      %v1338 = vpop.permute.xlu0 %1337
      %v1339 = vlaneseq
      %v1340 = vshrl.u32 %v1339, 7
      %v1341 = vadd.s32 %v1340, 24
      %1342 = vset.pattern.permute.xlu0 %v1341
      %1343 = vperm.xlu0 %1342, %v1320
      %v1344 = vpop.permute.xlu0 %1343
      %v1345 = vlaneseq
      %v1346 = vshrl.u32 %v1345, 7
      %v1347 = vadd.s32 %v1346, 32
      %1348 = vset.pattern.permute.xlu0 %v1347
      %1349 = vperm.xlu0 %1348, %v1320
      %v1350 = vpop.permute.xlu0 %1349
      %v1351 = vlaneseq
      %v1352 = vshrl.u32 %v1351, 7
      %v1353 = vadd.s32 %v1352, 40
      %1354 = vset.pattern.permute.xlu0 %v1353
      %1355 = vperm.xlu0 %1354, %v1320
      %v1356 = vpop.permute.xlu0 %1355
      %v1357 = vlaneseq
      %v1358 = vshrl.u32 %v1357, 7
      %v1359 = vadd.s32 %v1358, 48
      %1360 = vset.pattern.permute.xlu0 %v1359
      %1361 = vperm.xlu0 %1360, %v1320
      %v1362 = vpop.permute.xlu0 %1361
      %v1363 = vlaneseq
      %v1364 = vshrl.u32 %v1363, 7
      %v1365 = vadd.s32 %v1364, 56
      %1366 = vset.pattern.permute.xlu0 %v1365
      %1367 = vperm.xlu0 %1366, %v1320
      %v1368 = vpop.permute.xlu0 %1367
      %v1369 = vlaneseq
      %v1370 = vshrl.u32 %v1369, 7
      %v1371 = vadd.s32 %v1370, 64
      %1372 = vset.pattern.permute.xlu0 %v1371
      %1373 = vperm.xlu0 %1372, %v1320
      %v1374 = vpop.permute.xlu0 %1373
      %v1375 = vlaneseq
      %v1376 = vshrl.u32 %v1375, 7
      %v1377 = vadd.s32 %v1376, 72
      %1378 = vset.pattern.permute.xlu0 %v1377
      %1379 = vperm.xlu0 %1378, %v1320
      %v1380 = vpop.permute.xlu0 %1379
      %v1381 = vlaneseq
      %v1382 = vshrl.u32 %v1381, 7
      %v1383 = vadd.s32 %v1382, 80
      %1384 = vset.pattern.permute.xlu0 %v1383
      %1385 = vperm.xlu0 %1384, %v1320
      %v1386 = vpop.permute.xlu0 %1385
      %v1387 = vlaneseq
      %v1388 = vshrl.u32 %v1387, 7
      %v1389 = vadd.s32 %v1388, 88
      %1390 = vset.pattern.permute.xlu0 %v1389
      %1391 = vperm.xlu0 %1390, %v1320
      %v1392 = vpop.permute.xlu0 %1391
      %v1393 = vlaneseq
      %v1394 = vshrl.u32 %v1393, 7
      %v1395 = vadd.s32 %v1394, 96
      %1396 = vset.pattern.permute.xlu0 %v1395
      %1397 = vperm.xlu0 %1396, %v1320
      %v1398 = vpop.permute.xlu0 %1397
      %v1399 = vlaneseq
      %v1400 = vshrl.u32 %v1399, 7
      %v1401 = vadd.s32 %v1400, 104
      %1402 = vset.pattern.permute.xlu0 %v1401
      %1403 = vperm.xlu0 %1402, %v1320
      %v1404 = vpop.permute.xlu0 %1403
      %v1405 = vlaneseq
      %v1406 = vshrl.u32 %v1405, 7
      %v1407 = vadd.s32 %v1406, 112
      %1408 = vset.pattern.permute.xlu0 %v1407
      %1409 = vperm.xlu0 %1408, %v1320
      %v1410 = vpop.permute.xlu0 %1409
      %v1411 = vlaneseq
      %v1412 = vshrl.u32 %v1411, 7
      %v1413 = vadd.s32 %v1412, 120
      %1414 = vset.pattern.permute.xlu0 %v1413
      %1415 = vperm.xlu0 %1414, %v1320
      %v1416 = vpop.permute.xlu0 %1415
      %v1417 = vperm.slane %v1088, 3
      %v1418 = vlaneseq
      %v1419 = vshrl.u32 %v1418, 7
      %1421 = vset.pattern.permute.xlu0 %v1419
      %1422 = vperm.xlu0 %1421, %v1417
      %v1423 = vpop.permute.xlu0 %1422
      %v1424 = vlaneseq
      %v1425 = vshrl.u32 %v1424, 7
      %v1426 = vadd.s32 %v1425, 8
      %1427 = vset.pattern.permute.xlu0 %v1426
      %1428 = vperm.xlu0 %1427, %v1417
      %v1429 = vpop.permute.xlu0 %1428
      %v1430 = vlaneseq
      %v1431 = vshrl.u32 %v1430, 7
      %v1432 = vadd.s32 %v1431, 16
      %1433 = vset.pattern.permute.xlu0 %v1432
      %1434 = vperm.xlu0 %1433, %v1417
      %v1435 = vpop.permute.xlu0 %1434
      %v1436 = vlaneseq
      %v1437 = vshrl.u32 %v1436, 7
      %v1438 = vadd.s32 %v1437, 24
      %1439 = vset.pattern.permute.xlu0 %v1438
      %1440 = vperm.xlu0 %1439, %v1417
      %v1441 = vpop.permute.xlu0 %1440
      %v1442 = vlaneseq
      %v1443 = vshrl.u32 %v1442, 7
      %v1444 = vadd.s32 %v1443, 32
      %1445 = vset.pattern.permute.xlu0 %v1444
      %1446 = vperm.xlu0 %1445, %v1417
      %v1447 = vpop.permute.xlu0 %1446
      %v1448 = vlaneseq
      %v1449 = vshrl.u32 %v1448, 7
      %v1450 = vadd.s32 %v1449, 40
      %1451 = vset.pattern.permute.xlu0 %v1450
      %1452 = vperm.xlu0 %1451, %v1417
      %v1453 = vpop.permute.xlu0 %1452
      %v1454 = vlaneseq
      %v1455 = vshrl.u32 %v1454, 7
      %v1456 = vadd.s32 %v1455, 48
      %1457 = vset.pattern.permute.xlu0 %v1456
      %1458 = vperm.xlu0 %1457, %v1417
      %v1459 = vpop.permute.xlu0 %1458
      %v1460 = vlaneseq
      %v1461 = vshrl.u32 %v1460, 7
      %v1462 = vadd.s32 %v1461, 56
      %1463 = vset.pattern.permute.xlu0 %v1462
      %1464 = vperm.xlu0 %1463, %v1417
      %v1465 = vpop.permute.xlu0 %1464
      %v1466 = vlaneseq
      %v1467 = vshrl.u32 %v1466, 7
      %v1468 = vadd.s32 %v1467, 64
      %1469 = vset.pattern.permute.xlu0 %v1468
      %1470 = vperm.xlu0 %1469, %v1417
      %v1471 = vpop.permute.xlu0 %1470
      %v1472 = vlaneseq
      %v1473 = vshrl.u32 %v1472, 7
      %v1474 = vadd.s32 %v1473, 72
      %1475 = vset.pattern.permute.xlu0 %v1474
      %1476 = vperm.xlu0 %1475, %v1417
      %v1477 = vpop.permute.xlu0 %1476
      %v1478 = vlaneseq
      %v1479 = vshrl.u32 %v1478, 7
      %v1480 = vadd.s32 %v1479, 80
      %1481 = vset.pattern.permute.xlu0 %v1480
      %1482 = vperm.xlu0 %1481, %v1417
      %v1483 = vpop.permute.xlu0 %1482
      %v1484 = vlaneseq
      %v1485 = vshrl.u32 %v1484, 7
      %v1486 = vadd.s32 %v1485, 88
      %1487 = vset.pattern.permute.xlu0 %v1486
      %1488 = vperm.xlu0 %1487, %v1417
      %v1489 = vpop.permute.xlu0 %1488
      %v1490 = vlaneseq
      %v1491 = vshrl.u32 %v1490, 7
      %v1492 = vadd.s32 %v1491, 96
      %1493 = vset.pattern.permute.xlu0 %v1492
      %1494 = vperm.xlu0 %1493, %v1417
      %v1495 = vpop.permute.xlu0 %1494
      %v1496 = vlaneseq
      %v1497 = vshrl.u32 %v1496, 7
      %v1498 = vadd.s32 %v1497, 104
      %1499 = vset.pattern.permute.xlu0 %v1498
      %1500 = vperm.xlu0 %1499, %v1417
      %v1501 = vpop.permute.xlu0 %1500
      %v1502 = vlaneseq
      %v1503 = vshrl.u32 %v1502, 7
      %v1504 = vadd.s32 %v1503, 112
      %1505 = vset.pattern.permute.xlu0 %v1504
      %1506 = vperm.xlu0 %1505, %v1417
      %v1507 = vpop.permute.xlu0 %1506
      %v1508 = vlaneseq
      %v1509 = vshrl.u32 %v1508, 7
      %v1510 = vadd.s32 %v1509, 120
      %1511 = vset.pattern.permute.xlu0 %v1510
      %1512 = vperm.xlu0 %1511, %v1417
      %v1513 = vpop.permute.xlu0 %1512
      %v1514 = vperm.slane %v1088, 4
      %v1515 = vlaneseq
      %v1516 = vshrl.u32 %v1515, 7
      %1518 = vset.pattern.permute.xlu0 %v1516
      %1519 = vperm.xlu0 %1518, %v1514
      %v1520 = vpop.permute.xlu0 %1519
      %v1521 = vlaneseq
      %v1522 = vshrl.u32 %v1521, 7
      %v1523 = vadd.s32 %v1522, 8
      %1524 = vset.pattern.permute.xlu0 %v1523
      %1525 = vperm.xlu0 %1524, %v1514
      %v1526 = vpop.permute.xlu0 %1525
      %v1527 = vlaneseq
      %v1528 = vshrl.u32 %v1527, 7
      %v1529 = vadd.s32 %v1528, 16
      %1530 = vset.pattern.permute.xlu0 %v1529
      %1531 = vperm.xlu0 %1530, %v1514
      %v1532 = vpop.permute.xlu0 %1531
      %v1533 = vlaneseq
      %v1534 = vshrl.u32 %v1533, 7
      %v1535 = vadd.s32 %v1534, 24
      %1536 = vset.pattern.permute.xlu0 %v1535
      %1537 = vperm.xlu0 %1536, %v1514
      %v1538 = vpop.permute.xlu0 %1537
      %v1539 = vlaneseq
      %v1540 = vshrl.u32 %v1539, 7
      %v1541 = vadd.s32 %v1540, 32
      %1542 = vset.pattern.permute.xlu0 %v1541
      %1543 = vperm.xlu0 %1542, %v1514
      %v1544 = vpop.permute.xlu0 %1543
      %v1545 = vlaneseq
      %v1546 = vshrl.u32 %v1545, 7
      %v1547 = vadd.s32 %v1546, 40
      %1548 = vset.pattern.permute.xlu0 %v1547
      %1549 = vperm.xlu0 %1548, %v1514
      %v1550 = vpop.permute.xlu0 %1549
      %v1551 = vlaneseq
      %v1552 = vshrl.u32 %v1551, 7
      %v1553 = vadd.s32 %v1552, 48
      %1554 = vset.pattern.permute.xlu0 %v1553
      %1555 = vperm.xlu0 %1554, %v1514
      %v1556 = vpop.permute.xlu0 %1555
      %v1557 = vlaneseq
      %v1558 = vshrl.u32 %v1557, 7
      %v1559 = vadd.s32 %v1558, 56
      %1560 = vset.pattern.permute.xlu0 %v1559
      %1561 = vperm.xlu0 %1560, %v1514
      %v1562 = vpop.permute.xlu0 %1561
      %v1563 = vlaneseq
      %v1564 = vshrl.u32 %v1563, 7
      %v1565 = vadd.s32 %v1564, 64
      %1566 = vset.pattern.permute.xlu0 %v1565
      %1567 = vperm.xlu0 %1566, %v1514
      %v1568 = vpop.permute.xlu0 %1567
      %v1569 = vlaneseq
      %v1570 = vshrl.u32 %v1569, 7
      %v1571 = vadd.s32 %v1570, 72
      %1572 = vset.pattern.permute.xlu0 %v1571
      %1573 = vperm.xlu0 %1572, %v1514
      %v1574 = vpop.permute.xlu0 %1573
      %v1575 = vlaneseq
      %v1576 = vshrl.u32 %v1575, 7
      %v1577 = vadd.s32 %v1576, 80
      %1578 = vset.pattern.permute.xlu0 %v1577
      %1579 = vperm.xlu0 %1578, %v1514
      %v1580 = vpop.permute.xlu0 %1579
      %v1581 = vlaneseq
      %v1582 = vshrl.u32 %v1581, 7
      %v1583 = vadd.s32 %v1582, 88
      %1584 = vset.pattern.permute.xlu0 %v1583
      %1585 = vperm.xlu0 %1584, %v1514
      %v1586 = vpop.permute.xlu0 %1585
      %v1587 = vlaneseq
      %v1588 = vshrl.u32 %v1587, 7
      %v1589 = vadd.s32 %v1588, 96
      %1590 = vset.pattern.permute.xlu0 %v1589
      %1591 = vperm.xlu0 %1590, %v1514
      %v1592 = vpop.permute.xlu0 %1591
      %v1593 = vlaneseq
      %v1594 = vshrl.u32 %v1593, 7
      %v1595 = vadd.s32 %v1594, 104
      %1596 = vset.pattern.permute.xlu0 %v1595
      %1597 = vperm.xlu0 %1596, %v1514
      %v1598 = vpop.permute.xlu0 %1597
      %v1599 = vlaneseq
      %v1600 = vshrl.u32 %v1599, 7
      %v1601 = vadd.s32 %v1600, 112
      %1602 = vset.pattern.permute.xlu0 %v1601
      %1603 = vperm.xlu0 %1602, %v1514
      %v1604 = vpop.permute.xlu0 %1603
      %v1605 = vlaneseq
      %v1606 = vshrl.u32 %v1605, 7
      %v1607 = vadd.s32 %v1606, 120
      %1608 = vset.pattern.permute.xlu0 %v1607
      %1609 = vperm.xlu0 %1608, %v1514
      %v1610 = vpop.permute.xlu0 %1609
      %v1611 = vperm.slane %v1088, 5
      %v1612 = vlaneseq
      %v1613 = vshrl.u32 %v1612, 7
      %1615 = vset.pattern.permute.xlu0 %v1613
      %1616 = vperm.xlu0 %1615, %v1611
      %v1617 = vpop.permute.xlu0 %1616
      %v1618 = vlaneseq
      %v1619 = vshrl.u32 %v1618, 7
      %v1620 = vadd.s32 %v1619, 8
      %1621 = vset.pattern.permute.xlu0 %v1620
      %1622 = vperm.xlu0 %1621, %v1611
      %v1623 = vpop.permute.xlu0 %1622
      %v1624 = vlaneseq
      %v1625 = vshrl.u32 %v1624, 7
      %v1626 = vadd.s32 %v1625, 16
      %1627 = vset.pattern.permute.xlu0 %v1626
      %1628 = vperm.xlu0 %1627, %v1611
      %v1629 = vpop.permute.xlu0 %1628
      %v1630 = vlaneseq
      %v1631 = vshrl.u32 %v1630, 7
      %v1632 = vadd.s32 %v1631, 24
      %1633 = vset.pattern.permute.xlu0 %v1632
      %1634 = vperm.xlu0 %1633, %v1611
      %v1635 = vpop.permute.xlu0 %1634
      %v1636 = vlaneseq
      %v1637 = vshrl.u32 %v1636, 7
      %v1638 = vadd.s32 %v1637, 32
      %1639 = vset.pattern.permute.xlu0 %v1638
      %1640 = vperm.xlu0 %1639, %v1611
      %v1641 = vpop.permute.xlu0 %1640
      %v1642 = vlaneseq
      %v1643 = vshrl.u32 %v1642, 7
      %v1644 = vadd.s32 %v1643, 40
      %1645 = vset.pattern.permute.xlu0 %v1644
      %1646 = vperm.xlu0 %1645, %v1611
      %v1647 = vpop.permute.xlu0 %1646
      %v1648 = vlaneseq
      %v1649 = vshrl.u32 %v1648, 7
      %v1650 = vadd.s32 %v1649, 48
      %1651 = vset.pattern.permute.xlu0 %v1650
      %1652 = vperm.xlu0 %1651, %v1611
      %v1653 = vpop.permute.xlu0 %1652
      %v1654 = vlaneseq
      %v1655 = vshrl.u32 %v1654, 7
      %v1656 = vadd.s32 %v1655, 56
      %1657 = vset.pattern.permute.xlu0 %v1656
      %1658 = vperm.xlu0 %1657, %v1611
      %v1659 = vpop.permute.xlu0 %1658
      %v1660 = vlaneseq
      %v1661 = vshrl.u32 %v1660, 7
      %v1662 = vadd.s32 %v1661, 64
      %1663 = vset.pattern.permute.xlu0 %v1662
      %1664 = vperm.xlu0 %1663, %v1611
      %v1665 = vpop.permute.xlu0 %1664
      %v1666 = vlaneseq
      %v1667 = vshrl.u32 %v1666, 7
      %v1668 = vadd.s32 %v1667, 72
      %1669 = vset.pattern.permute.xlu0 %v1668
      %1670 = vperm.xlu0 %1669, %v1611
      %v1671 = vpop.permute.xlu0 %1670
      %v1672 = vlaneseq
      %v1673 = vshrl.u32 %v1672, 7
      %v1674 = vadd.s32 %v1673, 80
      %1675 = vset.pattern.permute.xlu0 %v1674
      %1676 = vperm.xlu0 %1675, %v1611
      %v1677 = vpop.permute.xlu0 %1676
      %v1678 = vlaneseq
      %v1679 = vshrl.u32 %v1678, 7
      %v1680 = vadd.s32 %v1679, 88
      %1681 = vset.pattern.permute.xlu0 %v1680
      %1682 = vperm.xlu0 %1681, %v1611
      %v1683 = vpop.permute.xlu0 %1682
      %v1684 = vlaneseq
      %v1685 = vshrl.u32 %v1684, 7
      %v1686 = vadd.s32 %v1685, 96
      %1687 = vset.pattern.permute.xlu0 %v1686
      %1688 = vperm.xlu0 %1687, %v1611
      %v1689 = vpop.permute.xlu0 %1688
      %v1690 = vlaneseq
      %v1691 = vshrl.u32 %v1690, 7
      %v1692 = vadd.s32 %v1691, 104
      %1693 = vset.pattern.permute.xlu0 %v1692
      %1694 = vperm.xlu0 %1693, %v1611
      %v1695 = vpop.permute.xlu0 %1694
      %v1696 = vlaneseq
      %v1697 = vshrl.u32 %v1696, 7
      %v1698 = vadd.s32 %v1697, 112
      %1699 = vset.pattern.permute.xlu0 %v1698
      %1700 = vperm.xlu0 %1699, %v1611
      %v1701 = vpop.permute.xlu0 %1700
      %v1702 = vlaneseq
      %v1703 = vshrl.u32 %v1702, 7
      %v1704 = vadd.s32 %v1703, 120
      %1705 = vset.pattern.permute.xlu0 %v1704
      %1706 = vperm.xlu0 %1705, %v1611
      %v1707 = vpop.permute.xlu0 %1706
      %v1708 = vperm.slane %v1088, 6
      %v1709 = vlaneseq
      %v1710 = vshrl.u32 %v1709, 7
      %1712 = vset.pattern.permute.xlu0 %v1710
      %1713 = vperm.xlu0 %1712, %v1708
      %v1714 = vpop.permute.xlu0 %1713
      %v1715 = vlaneseq
      %v1716 = vshrl.u32 %v1715, 7
      %v1717 = vadd.s32 %v1716, 8
      %1718 = vset.pattern.permute.xlu0 %v1717
      %1719 = vperm.xlu0 %1718, %v1708
      %v1720 = vpop.permute.xlu0 %1719
      %v1721 = vlaneseq
      %v1722 = vshrl.u32 %v1721, 7
      %v1723 = vadd.s32 %v1722, 16
      %1724 = vset.pattern.permute.xlu0 %v1723
      %1725 = vperm.xlu0 %1724, %v1708
      %v1726 = vpop.permute.xlu0 %1725
      %v1727 = vlaneseq
      %v1728 = vshrl.u32 %v1727, 7
      %v1729 = vadd.s32 %v1728, 24
      %1730 = vset.pattern.permute.xlu0 %v1729
      %1731 = vperm.xlu0 %1730, %v1708
      %v1732 = vpop.permute.xlu0 %1731
      %v1733 = vlaneseq
      %v1734 = vshrl.u32 %v1733, 7
      %v1735 = vadd.s32 %v1734, 32
      %1736 = vset.pattern.permute.xlu0 %v1735
      %1737 = vperm.xlu0 %1736, %v1708
      %v1738 = vpop.permute.xlu0 %1737
      %v1739 = vlaneseq
      %v1740 = vshrl.u32 %v1739, 7
      %v1741 = vadd.s32 %v1740, 40
      %1742 = vset.pattern.permute.xlu0 %v1741
      %1743 = vperm.xlu0 %1742, %v1708
      %v1744 = vpop.permute.xlu0 %1743
      %v1745 = vlaneseq
      %v1746 = vshrl.u32 %v1745, 7
      %v1747 = vadd.s32 %v1746, 48
      %1748 = vset.pattern.permute.xlu0 %v1747
      %1749 = vperm.xlu0 %1748, %v1708
      %v1750 = vpop.permute.xlu0 %1749
      %v1751 = vlaneseq
      %v1752 = vshrl.u32 %v1751, 7
      %v1753 = vadd.s32 %v1752, 56
      %1754 = vset.pattern.permute.xlu0 %v1753
      %1755 = vperm.xlu0 %1754, %v1708
      %v1756 = vpop.permute.xlu0 %1755
      %v1757 = vlaneseq
      %v1758 = vshrl.u32 %v1757, 7
      %v1759 = vadd.s32 %v1758, 64
      %1760 = vset.pattern.permute.xlu0 %v1759
      %1761 = vperm.xlu0 %1760, %v1708
      %v1762 = vpop.permute.xlu0 %1761
      %v1763 = vlaneseq
      %v1764 = vshrl.u32 %v1763, 7
      %v1765 = vadd.s32 %v1764, 72
      %1766 = vset.pattern.permute.xlu0 %v1765
      %1767 = vperm.xlu0 %1766, %v1708
      %v1768 = vpop.permute.xlu0 %1767
      %v1769 = vlaneseq
      %v1770 = vshrl.u32 %v1769, 7
      %v1771 = vadd.s32 %v1770, 80
      %1772 = vset.pattern.permute.xlu0 %v1771
      %1773 = vperm.xlu0 %1772, %v1708
      %v1774 = vpop.permute.xlu0 %1773
      %v1775 = vlaneseq
      %v1776 = vshrl.u32 %v1775, 7
      %v1777 = vadd.s32 %v1776, 88
      %1778 = vset.pattern.permute.xlu0 %v1777
      %1779 = vperm.xlu0 %1778, %v1708
      %v1780 = vpop.permute.xlu0 %1779
      %v1781 = vlaneseq
      %v1782 = vshrl.u32 %v1781, 7
      %v1783 = vadd.s32 %v1782, 96
      %1784 = vset.pattern.permute.xlu0 %v1783
      %1785 = vperm.xlu0 %1784, %v1708
      %v1786 = vpop.permute.xlu0 %1785
      %v1787 = vlaneseq
      %v1788 = vshrl.u32 %v1787, 7
      %v1789 = vadd.s32 %v1788, 104
      %1790 = vset.pattern.permute.xlu0 %v1789
      %1791 = vperm.xlu0 %1790, %v1708
      %v1792 = vpop.permute.xlu0 %1791
      %v1793 = vlaneseq
      %v1794 = vshrl.u32 %v1793, 7
      %v1795 = vadd.s32 %v1794, 112
      %1796 = vset.pattern.permute.xlu0 %v1795
      %1797 = vperm.xlu0 %1796, %v1708
      %v1798 = vpop.permute.xlu0 %1797
      %v1799 = vlaneseq
      %v1800 = vshrl.u32 %v1799, 7
      %v1801 = vadd.s32 %v1800, 120
      %1802 = vset.pattern.permute.xlu0 %v1801
      %1803 = vperm.xlu0 %1802, %v1708
      %v1804 = vpop.permute.xlu0 %1803
      %v1805 = vperm.slane %v1088, 7
      %v1806 = vlaneseq
      %v1807 = vshrl.u32 %v1806, 7
      %1809 = vset.pattern.permute.xlu0 %v1807
      %1810 = vperm.xlu0 %1809, %v1805
      %v1811 = vpop.permute.xlu0 %1810
      %v1812 = vlaneseq
      %v1813 = vshrl.u32 %v1812, 7
      %v1814 = vadd.s32 %v1813, 8
      %1815 = vset.pattern.permute.xlu0 %v1814
      %1816 = vperm.xlu0 %1815, %v1805
      %v1817 = vpop.permute.xlu0 %1816
      %v1818 = vlaneseq
      %v1819 = vshrl.u32 %v1818, 7
      %v1820 = vadd.s32 %v1819, 16
      %1821 = vset.pattern.permute.xlu0 %v1820
      %1822 = vperm.xlu0 %1821, %v1805
      %v1823 = vpop.permute.xlu0 %1822
      %v1824 = vlaneseq
      %v1825 = vshrl.u32 %v1824, 7
      %v1826 = vadd.s32 %v1825, 24
      %1827 = vset.pattern.permute.xlu0 %v1826
      %1828 = vperm.xlu0 %1827, %v1805
      %v1829 = vpop.permute.xlu0 %1828
      %v1830 = vlaneseq
      %v1831 = vshrl.u32 %v1830, 7
      %v1832 = vadd.s32 %v1831, 32
      %1833 = vset.pattern.permute.xlu0 %v1832
      %1834 = vperm.xlu0 %1833, %v1805
      %v1835 = vpop.permute.xlu0 %1834
      %v1836 = vlaneseq
      %v1837 = vshrl.u32 %v1836, 7
      %v1838 = vadd.s32 %v1837, 40
      %1839 = vset.pattern.permute.xlu0 %v1838
      %1840 = vperm.xlu0 %1839, %v1805
      %v1841 = vpop.permute.xlu0 %1840
      %v1842 = vlaneseq
      %v1843 = vshrl.u32 %v1842, 7
      %v1844 = vadd.s32 %v1843, 48
      %1845 = vset.pattern.permute.xlu0 %v1844
      %1846 = vperm.xlu0 %1845, %v1805
      %v1847 = vpop.permute.xlu0 %1846
      %v1848 = vlaneseq
      %v1849 = vshrl.u32 %v1848, 7
      %v1850 = vadd.s32 %v1849, 56
      %1851 = vset.pattern.permute.xlu0 %v1850
      %1852 = vperm.xlu0 %1851, %v1805
      %v1853 = vpop.permute.xlu0 %1852
      %v1854 = vlaneseq
      %v1855 = vshrl.u32 %v1854, 7
      %v1856 = vadd.s32 %v1855, 64
      %1857 = vset.pattern.permute.xlu0 %v1856
      %1858 = vperm.xlu0 %1857, %v1805
      %v1859 = vpop.permute.xlu0 %1858
      %v1860 = vlaneseq
      %v1861 = vshrl.u32 %v1860, 7
      %v1862 = vadd.s32 %v1861, 72
      %1863 = vset.pattern.permute.xlu0 %v1862
      %1864 = vperm.xlu0 %1863, %v1805
      %v1865 = vpop.permute.xlu0 %1864
      %v1866 = vlaneseq
      %v1867 = vshrl.u32 %v1866, 7
      %v1868 = vadd.s32 %v1867, 80
      %1869 = vset.pattern.permute.xlu0 %v1868
      %1870 = vperm.xlu0 %1869, %v1805
      %v1871 = vpop.permute.xlu0 %1870
      %v1872 = vlaneseq
      %v1873 = vshrl.u32 %v1872, 7
      %v1874 = vadd.s32 %v1873, 88
      %1875 = vset.pattern.permute.xlu0 %v1874
      %1876 = vperm.xlu0 %1875, %v1805
      %v1877 = vpop.permute.xlu0 %1876
      %v1878 = vlaneseq
      %v1879 = vshrl.u32 %v1878, 7
      %v1880 = vadd.s32 %v1879, 96
      %1881 = vset.pattern.permute.xlu0 %v1880
      %1882 = vperm.xlu0 %1881, %v1805
      %v1883 = vpop.permute.xlu0 %1882
      %v1884 = vlaneseq
      %v1885 = vshrl.u32 %v1884, 7
      %v1886 = vadd.s32 %v1885, 104
      %1887 = vset.pattern.permute.xlu0 %v1886
      %1888 = vperm.xlu0 %1887, %v1805
      %v1889 = vpop.permute.xlu0 %1888
      %v1890 = vlaneseq
      %v1891 = vshrl.u32 %v1890, 7
      %v1892 = vadd.s32 %v1891, 112
      %1893 = vset.pattern.permute.xlu0 %v1892
      %1894 = vperm.xlu0 %1893, %v1805
      %v1895 = vpop.permute.xlu0 %1894
      %v1896 = vlaneseq
      %v1897 = vshrl.u32 %v1896, 7
      %v1898 = vadd.s32 %v1897, 120
      %1899 = vset.pattern.permute.xlu0 %v1898
      %1900 = vperm.xlu0 %1899, %v1805
      %v1901 = vpop.permute.xlu0 %1900
      %v1902 = vperm.slane %v1089, 0
      %v1903 = vlaneseq
      %v1904 = vshrl.u32 %v1903, 7
      %1906 = vset.pattern.permute.xlu0 %v1904
      %1907 = vperm.xlu0 %1906, %v1902
      %v1908 = vpop.permute.xlu0 %1907
      %v1909 = vlaneseq
      %v1910 = vshrl.u32 %v1909, 7
      %v1911 = vadd.s32 %v1910, 8
      %1912 = vset.pattern.permute.xlu0 %v1911
      %1913 = vperm.xlu0 %1912, %v1902
      %v1914 = vpop.permute.xlu0 %1913
      %v1915 = vlaneseq
      %v1916 = vshrl.u32 %v1915, 7
      %v1917 = vadd.s32 %v1916, 16
      %1918 = vset.pattern.permute.xlu0 %v1917
      %1919 = vperm.xlu0 %1918, %v1902
      %v1920 = vpop.permute.xlu0 %1919
      %v1921 = vlaneseq
      %v1922 = vshrl.u32 %v1921, 7
      %v1923 = vadd.s32 %v1922, 24
      %1924 = vset.pattern.permute.xlu0 %v1923
      %1925 = vperm.xlu0 %1924, %v1902
      %v1926 = vpop.permute.xlu0 %1925
      %v1927 = vlaneseq
      %v1928 = vshrl.u32 %v1927, 7
      %v1929 = vadd.s32 %v1928, 32
      %1930 = vset.pattern.permute.xlu0 %v1929
      %1931 = vperm.xlu0 %1930, %v1902
      %v1932 = vpop.permute.xlu0 %1931
      %v1933 = vlaneseq
      %v1934 = vshrl.u32 %v1933, 7
      %v1935 = vadd.s32 %v1934, 40
      %1936 = vset.pattern.permute.xlu0 %v1935
      %1937 = vperm.xlu0 %1936, %v1902
      %v1938 = vpop.permute.xlu0 %1937
      %v1939 = vlaneseq
      %v1940 = vshrl.u32 %v1939, 7
      %v1941 = vadd.s32 %v1940, 48
      %1942 = vset.pattern.permute.xlu0 %v1941
      %1943 = vperm.xlu0 %1942, %v1902
      %v1944 = vpop.permute.xlu0 %1943
      %v1945 = vlaneseq
      %v1946 = vshrl.u32 %v1945, 7
      %v1947 = vadd.s32 %v1946, 56
      %1948 = vset.pattern.permute.xlu0 %v1947
      %1949 = vperm.xlu0 %1948, %v1902
      %v1950 = vpop.permute.xlu0 %1949
      %v1951 = vlaneseq
      %v1952 = vshrl.u32 %v1951, 7
      %v1953 = vadd.s32 %v1952, 64
      %1954 = vset.pattern.permute.xlu0 %v1953
      %1955 = vperm.xlu0 %1954, %v1902
      %v1956 = vpop.permute.xlu0 %1955
      %v1957 = vlaneseq
      %v1958 = vshrl.u32 %v1957, 7
      %v1959 = vadd.s32 %v1958, 72
      %1960 = vset.pattern.permute.xlu0 %v1959
      %1961 = vperm.xlu0 %1960, %v1902
      %v1962 = vpop.permute.xlu0 %1961
      %v1963 = vlaneseq
      %v1964 = vshrl.u32 %v1963, 7
      %v1965 = vadd.s32 %v1964, 80
      %1966 = vset.pattern.permute.xlu0 %v1965
      %1967 = vperm.xlu0 %1966, %v1902
      %v1968 = vpop.permute.xlu0 %1967
      %v1969 = vlaneseq
      %v1970 = vshrl.u32 %v1969, 7
      %v1971 = vadd.s32 %v1970, 88
      %1972 = vset.pattern.permute.xlu0 %v1971
      %1973 = vperm.xlu0 %1972, %v1902
      %v1974 = vpop.permute.xlu0 %1973
      %v1975 = vlaneseq
      %v1976 = vshrl.u32 %v1975, 7
      %v1977 = vadd.s32 %v1976, 96
      %1978 = vset.pattern.permute.xlu0 %v1977
      %1979 = vperm.xlu0 %1978, %v1902
      %v1980 = vpop.permute.xlu0 %1979
      %v1981 = vlaneseq
      %v1982 = vshrl.u32 %v1981, 7
      %v1983 = vadd.s32 %v1982, 104
      %1984 = vset.pattern.permute.xlu0 %v1983
      %1985 = vperm.xlu0 %1984, %v1902
      %v1986 = vpop.permute.xlu0 %1985
      %v1987 = vlaneseq
      %v1988 = vshrl.u32 %v1987, 7
      %v1989 = vadd.s32 %v1988, 112
      %1990 = vset.pattern.permute.xlu0 %v1989
      %1991 = vperm.xlu0 %1990, %v1902
      %v1992 = vpop.permute.xlu0 %1991
      %v1993 = vlaneseq
      %v1994 = vshrl.u32 %v1993, 7
      %v1995 = vadd.s32 %v1994, 120
      %1996 = vset.pattern.permute.xlu0 %v1995
      %1997 = vperm.xlu0 %1996, %v1902
      %v1998 = vpop.permute.xlu0 %1997
      %v1999 = vperm.slane %v1089, 1
      %v2000 = vlaneseq
      %v2001 = vshrl.u32 %v2000, 7
      %2003 = vset.pattern.permute.xlu0 %v2001
      %2004 = vperm.xlu0 %2003, %v1999
      %v2005 = vpop.permute.xlu0 %2004
      %v2006 = vlaneseq
      %v2007 = vshrl.u32 %v2006, 7
      %v2008 = vadd.s32 %v2007, 8
      %2009 = vset.pattern.permute.xlu0 %v2008
      %2010 = vperm.xlu0 %2009, %v1999
      %v2011 = vpop.permute.xlu0 %2010
      %v2012 = vlaneseq
      %v2013 = vshrl.u32 %v2012, 7
      %v2014 = vadd.s32 %v2013, 16
      %2015 = vset.pattern.permute.xlu0 %v2014
      %2016 = vperm.xlu0 %2015, %v1999
      %v2017 = vpop.permute.xlu0 %2016
      %v2018 = vlaneseq
      %v2019 = vshrl.u32 %v2018, 7
      %v2020 = vadd.s32 %v2019, 24
      %2021 = vset.pattern.permute.xlu0 %v2020
      %2022 = vperm.xlu0 %2021, %v1999
      %v2023 = vpop.permute.xlu0 %2022
      %v2024 = vlaneseq
      %v2025 = vshrl.u32 %v2024, 7
      %v2026 = vadd.s32 %v2025, 32
      %2027 = vset.pattern.permute.xlu0 %v2026
      %2028 = vperm.xlu0 %2027, %v1999
      %v2029 = vpop.permute.xlu0 %2028
      %v2030 = vlaneseq
      %v2031 = vshrl.u32 %v2030, 7
      %v2032 = vadd.s32 %v2031, 40
      %2033 = vset.pattern.permute.xlu0 %v2032
      %2034 = vperm.xlu0 %2033, %v1999
      %v2035 = vpop.permute.xlu0 %2034
      %v2036 = vlaneseq
      %v2037 = vshrl.u32 %v2036, 7
      %v2038 = vadd.s32 %v2037, 48
      %2039 = vset.pattern.permute.xlu0 %v2038
      %2040 = vperm.xlu0 %2039, %v1999
      %v2041 = vpop.permute.xlu0 %2040
      %v2042 = vlaneseq
      %v2043 = vshrl.u32 %v2042, 7
      %v2044 = vadd.s32 %v2043, 56
      %2045 = vset.pattern.permute.xlu0 %v2044
      %2046 = vperm.xlu0 %2045, %v1999
      %v2047 = vpop.permute.xlu0 %2046
      %v2048 = vlaneseq
      %v2049 = vshrl.u32 %v2048, 7
      %v2050 = vadd.s32 %v2049, 64
      %2051 = vset.pattern.permute.xlu0 %v2050
      %2052 = vperm.xlu0 %2051, %v1999
      %v2053 = vpop.permute.xlu0 %2052
      %v2054 = vlaneseq
      %v2055 = vshrl.u32 %v2054, 7
      %v2056 = vadd.s32 %v2055, 72
      %2057 = vset.pattern.permute.xlu0 %v2056
      %2058 = vperm.xlu0 %2057, %v1999
      %v2059 = vpop.permute.xlu0 %2058
      %v2060 = vlaneseq
      %v2061 = vshrl.u32 %v2060, 7
      %v2062 = vadd.s32 %v2061, 80
      %2063 = vset.pattern.permute.xlu0 %v2062
      %2064 = vperm.xlu0 %2063, %v1999
      %v2065 = vpop.permute.xlu0 %2064
      %v2066 = vlaneseq
      %v2067 = vshrl.u32 %v2066, 7
      %v2068 = vadd.s32 %v2067, 88
      %2069 = vset.pattern.permute.xlu0 %v2068
      %2070 = vperm.xlu0 %2069, %v1999
      %v2071 = vpop.permute.xlu0 %2070
      %v2072 = vlaneseq
      %v2073 = vshrl.u32 %v2072, 7
      %v2074 = vadd.s32 %v2073, 96
      %2075 = vset.pattern.permute.xlu0 %v2074
      %2076 = vperm.xlu0 %2075, %v1999
      %v2077 = vpop.permute.xlu0 %2076
      %v2078 = vlaneseq
      %v2079 = vshrl.u32 %v2078, 7
      %v2080 = vadd.s32 %v2079, 104
      %2081 = vset.pattern.permute.xlu0 %v2080
      %2082 = vperm.xlu0 %2081, %v1999
      %v2083 = vpop.permute.xlu0 %2082
      %v2084 = vlaneseq
      %v2085 = vshrl.u32 %v2084, 7
      %v2086 = vadd.s32 %v2085, 112
      %2087 = vset.pattern.permute.xlu0 %v2086
      %2088 = vperm.xlu0 %2087, %v1999
      %v2089 = vpop.permute.xlu0 %2088
      %v2090 = vlaneseq
      %v2091 = vshrl.u32 %v2090, 7
      %v2092 = vadd.s32 %v2091, 120
      %2093 = vset.pattern.permute.xlu0 %v2092
      %2094 = vperm.xlu0 %2093, %v1999
      %v2095 = vpop.permute.xlu0 %2094
      %v2096 = vperm.slane %v1089, 2
      %v2097 = vlaneseq
      %v2098 = vshrl.u32 %v2097, 7
      %2100 = vset.pattern.permute.xlu0 %v2098
      %2101 = vperm.xlu0 %2100, %v2096
      %v2102 = vpop.permute.xlu0 %2101
      %v2103 = vlaneseq
      %v2104 = vshrl.u32 %v2103, 7
      %v2105 = vadd.s32 %v2104, 8
      %2106 = vset.pattern.permute.xlu0 %v2105
      %2107 = vperm.xlu0 %2106, %v2096
      %v2108 = vpop.permute.xlu0 %2107
      %v2109 = vlaneseq
      %v2110 = vshrl.u32 %v2109, 7
      %v2111 = vadd.s32 %v2110, 16
      %2112 = vset.pattern.permute.xlu0 %v2111
      %2113 = vperm.xlu0 %2112, %v2096
      %v2114 = vpop.permute.xlu0 %2113
      %v2115 = vlaneseq
      %v2116 = vshrl.u32 %v2115, 7
      %v2117 = vadd.s32 %v2116, 24
      %2118 = vset.pattern.permute.xlu0 %v2117
      %2119 = vperm.xlu0 %2118, %v2096
      %v2120 = vpop.permute.xlu0 %2119
      %v2121 = vlaneseq
      %v2122 = vshrl.u32 %v2121, 7
      %v2123 = vadd.s32 %v2122, 32
      %2124 = vset.pattern.permute.xlu0 %v2123
      %2125 = vperm.xlu0 %2124, %v2096
      %v2126 = vpop.permute.xlu0 %2125
      %v2127 = vlaneseq
      %v2128 = vshrl.u32 %v2127, 7
      %v2129 = vadd.s32 %v2128, 40
      %2130 = vset.pattern.permute.xlu0 %v2129
      %2131 = vperm.xlu0 %2130, %v2096
      %v2132 = vpop.permute.xlu0 %2131
      %v2133 = vlaneseq
      %v2134 = vshrl.u32 %v2133, 7
      %v2135 = vadd.s32 %v2134, 48
      %2136 = vset.pattern.permute.xlu0 %v2135
      %2137 = vperm.xlu0 %2136, %v2096
      %v2138 = vpop.permute.xlu0 %2137
      %v2139 = vlaneseq
      %v2140 = vshrl.u32 %v2139, 7
      %v2141 = vadd.s32 %v2140, 56
      %2142 = vset.pattern.permute.xlu0 %v2141
      %2143 = vperm.xlu0 %2142, %v2096
      %v2144 = vpop.permute.xlu0 %2143
      %v2145 = vlaneseq
      %v2146 = vshrl.u32 %v2145, 7
      %v2147 = vadd.s32 %v2146, 64
      %2148 = vset.pattern.permute.xlu0 %v2147
      %2149 = vperm.xlu0 %2148, %v2096
      %v2150 = vpop.permute.xlu0 %2149
      %v2151 = vlaneseq
      %v2152 = vshrl.u32 %v2151, 7
      %v2153 = vadd.s32 %v2152, 72
      %2154 = vset.pattern.permute.xlu0 %v2153
      %2155 = vperm.xlu0 %2154, %v2096
      %v2156 = vpop.permute.xlu0 %2155
      %v2157 = vlaneseq
      %v2158 = vshrl.u32 %v2157, 7
      %v2159 = vadd.s32 %v2158, 80
      %2160 = vset.pattern.permute.xlu0 %v2159
      %2161 = vperm.xlu0 %2160, %v2096
      %v2162 = vpop.permute.xlu0 %2161
      %v2163 = vlaneseq
      %v2164 = vshrl.u32 %v2163, 7
      %v2165 = vadd.s32 %v2164, 88
      %2166 = vset.pattern.permute.xlu0 %v2165
      %2167 = vperm.xlu0 %2166, %v2096
      %v2168 = vpop.permute.xlu0 %2167
      %v2169 = vlaneseq
      %v2170 = vshrl.u32 %v2169, 7
      %v2171 = vadd.s32 %v2170, 96
      %2172 = vset.pattern.permute.xlu0 %v2171
      %2173 = vperm.xlu0 %2172, %v2096
      %v2174 = vpop.permute.xlu0 %2173
      %v2175 = vlaneseq
      %v2176 = vshrl.u32 %v2175, 7
      %v2177 = vadd.s32 %v2176, 104
      %2178 = vset.pattern.permute.xlu0 %v2177
      %2179 = vperm.xlu0 %2178, %v2096
      %v2180 = vpop.permute.xlu0 %2179
      %v2181 = vlaneseq
      %v2182 = vshrl.u32 %v2181, 7
      %v2183 = vadd.s32 %v2182, 112
      %2184 = vset.pattern.permute.xlu0 %v2183
      %2185 = vperm.xlu0 %2184, %v2096
      %v2186 = vpop.permute.xlu0 %2185
      %v2187 = vlaneseq
      %v2188 = vshrl.u32 %v2187, 7
      %v2189 = vadd.s32 %v2188, 120
      %2190 = vset.pattern.permute.xlu0 %v2189
      %2191 = vperm.xlu0 %2190, %v2096
      %v2192 = vpop.permute.xlu0 %2191
      %v2193 = vperm.slane %v1089, 3
      %v2194 = vlaneseq
      %v2195 = vshrl.u32 %v2194, 7
      %2197 = vset.pattern.permute.xlu0 %v2195
      %2198 = vperm.xlu0 %2197, %v2193
      %v2199 = vpop.permute.xlu0 %2198
      %v2200 = vlaneseq
      %v2201 = vshrl.u32 %v2200, 7
      %v2202 = vadd.s32 %v2201, 8
      %2203 = vset.pattern.permute.xlu0 %v2202
      %2204 = vperm.xlu0 %2203, %v2193
      %v2205 = vpop.permute.xlu0 %2204
      %v2206 = vlaneseq
      %v2207 = vshrl.u32 %v2206, 7
      %v2208 = vadd.s32 %v2207, 16
      %2209 = vset.pattern.permute.xlu0 %v2208
      %2210 = vperm.xlu0 %2209, %v2193
      %v2211 = vpop.permute.xlu0 %2210
      %v2212 = vlaneseq
      %v2213 = vshrl.u32 %v2212, 7
      %v2214 = vadd.s32 %v2213, 24
      %2215 = vset.pattern.permute.xlu0 %v2214
      %2216 = vperm.xlu0 %2215, %v2193
      %v2217 = vpop.permute.xlu0 %2216
      %v2218 = vlaneseq
      %v2219 = vshrl.u32 %v2218, 7
      %v2220 = vadd.s32 %v2219, 32
      %2221 = vset.pattern.permute.xlu0 %v2220
      %2222 = vperm.xlu0 %2221, %v2193
      %v2223 = vpop.permute.xlu0 %2222
      %v2224 = vlaneseq
      %v2225 = vshrl.u32 %v2224, 7
      %v2226 = vadd.s32 %v2225, 40
      %2227 = vset.pattern.permute.xlu0 %v2226
      %2228 = vperm.xlu0 %2227, %v2193
      %v2229 = vpop.permute.xlu0 %2228
      %v2230 = vlaneseq
      %v2231 = vshrl.u32 %v2230, 7
      %v2232 = vadd.s32 %v2231, 48
      %2233 = vset.pattern.permute.xlu0 %v2232
      %2234 = vperm.xlu0 %2233, %v2193
      %v2235 = vpop.permute.xlu0 %2234
      %v2236 = vlaneseq
      %v2237 = vshrl.u32 %v2236, 7
      %v2238 = vadd.s32 %v2237, 56
      %2239 = vset.pattern.permute.xlu0 %v2238
      %2240 = vperm.xlu0 %2239, %v2193
      %v2241 = vpop.permute.xlu0 %2240
      %v2242 = vlaneseq
      %v2243 = vshrl.u32 %v2242, 7
      %v2244 = vadd.s32 %v2243, 64
      %2245 = vset.pattern.permute.xlu0 %v2244
      %2246 = vperm.xlu0 %2245, %v2193
      %v2247 = vpop.permute.xlu0 %2246
      %v2248 = vlaneseq
      %v2249 = vshrl.u32 %v2248, 7
      %v2250 = vadd.s32 %v2249, 72
      %2251 = vset.pattern.permute.xlu0 %v2250
      %2252 = vperm.xlu0 %2251, %v2193
      %v2253 = vpop.permute.xlu0 %2252
      %v2254 = vlaneseq
      %v2255 = vshrl.u32 %v2254, 7
      %v2256 = vadd.s32 %v2255, 80
      %2257 = vset.pattern.permute.xlu0 %v2256
      %2258 = vperm.xlu0 %2257, %v2193
      %v2259 = vpop.permute.xlu0 %2258
      %v2260 = vlaneseq
      %v2261 = vshrl.u32 %v2260, 7
      %v2262 = vadd.s32 %v2261, 88
      %2263 = vset.pattern.permute.xlu0 %v2262
      %2264 = vperm.xlu0 %2263, %v2193
      %v2265 = vpop.permute.xlu0 %2264
      %v2266 = vlaneseq
      %v2267 = vshrl.u32 %v2266, 7
      %v2268 = vadd.s32 %v2267, 96
      %2269 = vset.pattern.permute.xlu0 %v2268
      %2270 = vperm.xlu0 %2269, %v2193
      %v2271 = vpop.permute.xlu0 %2270
      %v2272 = vlaneseq
      %v2273 = vshrl.u32 %v2272, 7
      %v2274 = vadd.s32 %v2273, 104
      %2275 = vset.pattern.permute.xlu0 %v2274
      %2276 = vperm.xlu0 %2275, %v2193
      %v2277 = vpop.permute.xlu0 %2276
      %v2278 = vlaneseq
      %v2279 = vshrl.u32 %v2278, 7
      %v2280 = vadd.s32 %v2279, 112
      %2281 = vset.pattern.permute.xlu0 %v2280
      %2282 = vperm.xlu0 %2281, %v2193
      %v2283 = vpop.permute.xlu0 %2282
      %v2284 = vlaneseq
      %v2285 = vshrl.u32 %v2284, 7
      %v2286 = vadd.s32 %v2285, 120
      %2287 = vset.pattern.permute.xlu0 %v2286
      %2288 = vperm.xlu0 %2287, %v2193
      %v2289 = vpop.permute.xlu0 %2288
      %v2290 = vperm.slane %v1089, 4
      %v2291 = vlaneseq
      %v2292 = vshrl.u32 %v2291, 7
      %2294 = vset.pattern.permute.xlu0 %v2292
      %2295 = vperm.xlu0 %2294, %v2290
      %v2296 = vpop.permute.xlu0 %2295
      %v2297 = vlaneseq
      %v2298 = vshrl.u32 %v2297, 7
      %v2299 = vadd.s32 %v2298, 8
      %2300 = vset.pattern.permute.xlu0 %v2299
      %2301 = vperm.xlu0 %2300, %v2290
      %v2302 = vpop.permute.xlu0 %2301
      %v2303 = vlaneseq
      %v2304 = vshrl.u32 %v2303, 7
      %v2305 = vadd.s32 %v2304, 16
      %2306 = vset.pattern.permute.xlu0 %v2305
      %2307 = vperm.xlu0 %2306, %v2290
      %v2308 = vpop.permute.xlu0 %2307
      %v2309 = vlaneseq
      %v2310 = vshrl.u32 %v2309, 7
      %v2311 = vadd.s32 %v2310, 24
      %2312 = vset.pattern.permute.xlu0 %v2311
      %2313 = vperm.xlu0 %2312, %v2290
      %v2314 = vpop.permute.xlu0 %2313
      %v2315 = vlaneseq
      %v2316 = vshrl.u32 %v2315, 7
      %v2317 = vadd.s32 %v2316, 32
      %2318 = vset.pattern.permute.xlu0 %v2317
      %2319 = vperm.xlu0 %2318, %v2290
      %v2320 = vpop.permute.xlu0 %2319
      %v2321 = vlaneseq
      %v2322 = vshrl.u32 %v2321, 7
      %v2323 = vadd.s32 %v2322, 40
      %2324 = vset.pattern.permute.xlu0 %v2323
      %2325 = vperm.xlu0 %2324, %v2290
      %v2326 = vpop.permute.xlu0 %2325
      %v2327 = vlaneseq
      %v2328 = vshrl.u32 %v2327, 7
      %v2329 = vadd.s32 %v2328, 48
      %2330 = vset.pattern.permute.xlu0 %v2329
      %2331 = vperm.xlu0 %2330, %v2290
      %v2332 = vpop.permute.xlu0 %2331
      %v2333 = vlaneseq
      %v2334 = vshrl.u32 %v2333, 7
      %v2335 = vadd.s32 %v2334, 56
      %2336 = vset.pattern.permute.xlu0 %v2335
      %2337 = vperm.xlu0 %2336, %v2290
      %v2338 = vpop.permute.xlu0 %2337
      %v2339 = vlaneseq
      %v2340 = vshrl.u32 %v2339, 7
      %v2341 = vadd.s32 %v2340, 64
      %2342 = vset.pattern.permute.xlu0 %v2341
      %2343 = vperm.xlu0 %2342, %v2290
      %v2344 = vpop.permute.xlu0 %2343
      %v2345 = vlaneseq
      %v2346 = vshrl.u32 %v2345, 7
      %v2347 = vadd.s32 %v2346, 72
      %2348 = vset.pattern.permute.xlu0 %v2347
      %2349 = vperm.xlu0 %2348, %v2290
      %v2350 = vpop.permute.xlu0 %2349
      %v2351 = vlaneseq
      %v2352 = vshrl.u32 %v2351, 7
      %v2353 = vadd.s32 %v2352, 80
      %2354 = vset.pattern.permute.xlu0 %v2353
      %2355 = vperm.xlu0 %2354, %v2290
      %v2356 = vpop.permute.xlu0 %2355
      %v2357 = vlaneseq
      %v2358 = vshrl.u32 %v2357, 7
      %v2359 = vadd.s32 %v2358, 88
      %2360 = vset.pattern.permute.xlu0 %v2359
      %2361 = vperm.xlu0 %2360, %v2290
      %v2362 = vpop.permute.xlu0 %2361
      %v2363 = vlaneseq
      %v2364 = vshrl.u32 %v2363, 7
      %v2365 = vadd.s32 %v2364, 96
      %2366 = vset.pattern.permute.xlu0 %v2365
      %2367 = vperm.xlu0 %2366, %v2290
      %v2368 = vpop.permute.xlu0 %2367
      %v2369 = vlaneseq
      %v2370 = vshrl.u32 %v2369, 7
      %v2371 = vadd.s32 %v2370, 104
      %2372 = vset.pattern.permute.xlu0 %v2371
      %2373 = vperm.xlu0 %2372, %v2290
      %v2374 = vpop.permute.xlu0 %2373
      %v2375 = vlaneseq
      %v2376 = vshrl.u32 %v2375, 7
      %v2377 = vadd.s32 %v2376, 112
      %2378 = vset.pattern.permute.xlu0 %v2377
      %2379 = vperm.xlu0 %2378, %v2290
      %v2380 = vpop.permute.xlu0 %2379
      %v2381 = vlaneseq
      %v2382 = vshrl.u32 %v2381, 7
      %v2383 = vadd.s32 %v2382, 120
      %2384 = vset.pattern.permute.xlu0 %v2383
      %2385 = vperm.xlu0 %2384, %v2290
      %v2386 = vpop.permute.xlu0 %2385
      %v2387 = vperm.slane %v1089, 5
      %v2388 = vlaneseq
      %v2389 = vshrl.u32 %v2388, 7
      %2391 = vset.pattern.permute.xlu0 %v2389
      %2392 = vperm.xlu0 %2391, %v2387
      %v2393 = vpop.permute.xlu0 %2392
      %v2394 = vlaneseq
      %v2395 = vshrl.u32 %v2394, 7
      %v2396 = vadd.s32 %v2395, 8
      %2397 = vset.pattern.permute.xlu0 %v2396
      %2398 = vperm.xlu0 %2397, %v2387
      %v2399 = vpop.permute.xlu0 %2398
      %v2400 = vlaneseq
      %v2401 = vshrl.u32 %v2400, 7
      %v2402 = vadd.s32 %v2401, 16
      %2403 = vset.pattern.permute.xlu0 %v2402
      %2404 = vperm.xlu0 %2403, %v2387
      %v2405 = vpop.permute.xlu0 %2404
      %v2406 = vlaneseq
      %v2407 = vshrl.u32 %v2406, 7
      %v2408 = vadd.s32 %v2407, 24
      %2409 = vset.pattern.permute.xlu0 %v2408
      %2410 = vperm.xlu0 %2409, %v2387
      %v2411 = vpop.permute.xlu0 %2410
      %v2412 = vlaneseq
      %v2413 = vshrl.u32 %v2412, 7
      %v2414 = vadd.s32 %v2413, 32
      %2415 = vset.pattern.permute.xlu0 %v2414
      %2416 = vperm.xlu0 %2415, %v2387
      %v2417 = vpop.permute.xlu0 %2416
      %v2418 = vlaneseq
      %v2419 = vshrl.u32 %v2418, 7
      %v2420 = vadd.s32 %v2419, 40
      %2421 = vset.pattern.permute.xlu0 %v2420
      %2422 = vperm.xlu0 %2421, %v2387
      %v2423 = vpop.permute.xlu0 %2422
      %v2424 = vlaneseq
      %v2425 = vshrl.u32 %v2424, 7
      %v2426 = vadd.s32 %v2425, 48
      %2427 = vset.pattern.permute.xlu0 %v2426
      %2428 = vperm.xlu0 %2427, %v2387
      %v2429 = vpop.permute.xlu0 %2428
      %v2430 = vlaneseq
      %v2431 = vshrl.u32 %v2430, 7
      %v2432 = vadd.s32 %v2431, 56
      %2433 = vset.pattern.permute.xlu0 %v2432
      %2434 = vperm.xlu0 %2433, %v2387
      %v2435 = vpop.permute.xlu0 %2434
      %v2436 = vlaneseq
      %v2437 = vshrl.u32 %v2436, 7
      %v2438 = vadd.s32 %v2437, 64
      %2439 = vset.pattern.permute.xlu0 %v2438
      %2440 = vperm.xlu0 %2439, %v2387
      %v2441 = vpop.permute.xlu0 %2440
      %v2442 = vlaneseq
      %v2443 = vshrl.u32 %v2442, 7
      %v2444 = vadd.s32 %v2443, 72
      %2445 = vset.pattern.permute.xlu0 %v2444
      %2446 = vperm.xlu0 %2445, %v2387
      %v2447 = vpop.permute.xlu0 %2446
      %v2448 = vlaneseq
      %v2449 = vshrl.u32 %v2448, 7
      %v2450 = vadd.s32 %v2449, 80
      %2451 = vset.pattern.permute.xlu0 %v2450
      %2452 = vperm.xlu0 %2451, %v2387
      %v2453 = vpop.permute.xlu0 %2452
      %v2454 = vlaneseq
      %v2455 = vshrl.u32 %v2454, 7
      %v2456 = vadd.s32 %v2455, 88
      %2457 = vset.pattern.permute.xlu0 %v2456
      %2458 = vperm.xlu0 %2457, %v2387
      %v2459 = vpop.permute.xlu0 %2458
      %v2460 = vlaneseq
      %v2461 = vshrl.u32 %v2460, 7
      %v2462 = vadd.s32 %v2461, 96
      %2463 = vset.pattern.permute.xlu0 %v2462
      %2464 = vperm.xlu0 %2463, %v2387
      %v2465 = vpop.permute.xlu0 %2464
      %v2466 = vlaneseq
      %v2467 = vshrl.u32 %v2466, 7
      %v2468 = vadd.s32 %v2467, 104
      %2469 = vset.pattern.permute.xlu0 %v2468
      %2470 = vperm.xlu0 %2469, %v2387
      %v2471 = vpop.permute.xlu0 %2470
      %v2472 = vlaneseq
      %v2473 = vshrl.u32 %v2472, 7
      %v2474 = vadd.s32 %v2473, 112
      %2475 = vset.pattern.permute.xlu0 %v2474
      %2476 = vperm.xlu0 %2475, %v2387
      %v2477 = vpop.permute.xlu0 %2476
      %v2478 = vlaneseq
      %v2479 = vshrl.u32 %v2478, 7
      %v2480 = vadd.s32 %v2479, 120
      %2481 = vset.pattern.permute.xlu0 %v2480
      %2482 = vperm.xlu0 %2481, %v2387
      %v2483 = vpop.permute.xlu0 %2482
      %v2484 = vperm.slane %v1089, 6
      %v2485 = vlaneseq
      %v2486 = vshrl.u32 %v2485, 7
      %2488 = vset.pattern.permute.xlu0 %v2486
      %2489 = vperm.xlu0 %2488, %v2484
      %v2490 = vpop.permute.xlu0 %2489
      %v2491 = vlaneseq
      %v2492 = vshrl.u32 %v2491, 7
      %v2493 = vadd.s32 %v2492, 8
      %2494 = vset.pattern.permute.xlu0 %v2493
      %2495 = vperm.xlu0 %2494, %v2484
      %v2496 = vpop.permute.xlu0 %2495
      %v2497 = vlaneseq
      %v2498 = vshrl.u32 %v2497, 7
      %v2499 = vadd.s32 %v2498, 16
      %2500 = vset.pattern.permute.xlu0 %v2499
      %2501 = vperm.xlu0 %2500, %v2484
      %v2502 = vpop.permute.xlu0 %2501
      %v2503 = vlaneseq
      %v2504 = vshrl.u32 %v2503, 7
      %v2505 = vadd.s32 %v2504, 24
      %2506 = vset.pattern.permute.xlu0 %v2505
      %2507 = vperm.xlu0 %2506, %v2484
      %v2508 = vpop.permute.xlu0 %2507
      %v2509 = vlaneseq
      %v2510 = vshrl.u32 %v2509, 7
      %v2511 = vadd.s32 %v2510, 32
      %2512 = vset.pattern.permute.xlu0 %v2511
      %2513 = vperm.xlu0 %2512, %v2484
      %v2514 = vpop.permute.xlu0 %2513
      %v2515 = vlaneseq
      %v2516 = vshrl.u32 %v2515, 7
      %v2517 = vadd.s32 %v2516, 40
      %2518 = vset.pattern.permute.xlu0 %v2517
      %2519 = vperm.xlu0 %2518, %v2484
      %v2520 = vpop.permute.xlu0 %2519
      %v2521 = vlaneseq
      %v2522 = vshrl.u32 %v2521, 7
      %v2523 = vadd.s32 %v2522, 48
      %2524 = vset.pattern.permute.xlu0 %v2523
      %2525 = vperm.xlu0 %2524, %v2484
      %v2526 = vpop.permute.xlu0 %2525
      %v2527 = vlaneseq
      %v2528 = vshrl.u32 %v2527, 7
      %v2529 = vadd.s32 %v2528, 56
      %2530 = vset.pattern.permute.xlu0 %v2529
      %2531 = vperm.xlu0 %2530, %v2484
      %v2532 = vpop.permute.xlu0 %2531
      %v2533 = vlaneseq
      %v2534 = vshrl.u32 %v2533, 7
      %v2535 = vadd.s32 %v2534, 64
      %2536 = vset.pattern.permute.xlu0 %v2535
      %2537 = vperm.xlu0 %2536, %v2484
      %v2538 = vpop.permute.xlu0 %2537
      %v2539 = vlaneseq
      %v2540 = vshrl.u32 %v2539, 7
      %v2541 = vadd.s32 %v2540, 72
      %2542 = vset.pattern.permute.xlu0 %v2541
      %2543 = vperm.xlu0 %2542, %v2484
      %v2544 = vpop.permute.xlu0 %2543
      %v2545 = vlaneseq
      %v2546 = vshrl.u32 %v2545, 7
      %v2547 = vadd.s32 %v2546, 80
      %2548 = vset.pattern.permute.xlu0 %v2547
      %2549 = vperm.xlu0 %2548, %v2484
      %v2550 = vpop.permute.xlu0 %2549
      %v2551 = vlaneseq
      %v2552 = vshrl.u32 %v2551, 7
      %v2553 = vadd.s32 %v2552, 88
      %2554 = vset.pattern.permute.xlu0 %v2553
      %2555 = vperm.xlu0 %2554, %v2484
      %v2556 = vpop.permute.xlu0 %2555
      %v2557 = vlaneseq
      %v2558 = vshrl.u32 %v2557, 7
      %v2559 = vadd.s32 %v2558, 96
      %2560 = vset.pattern.permute.xlu0 %v2559
      %2561 = vperm.xlu0 %2560, %v2484
      %v2562 = vpop.permute.xlu0 %2561
      %v2563 = vlaneseq
      %v2564 = vshrl.u32 %v2563, 7
      %v2565 = vadd.s32 %v2564, 104
      %2566 = vset.pattern.permute.xlu0 %v2565
      %2567 = vperm.xlu0 %2566, %v2484
      %v2568 = vpop.permute.xlu0 %2567
      %v2569 = vlaneseq
      %v2570 = vshrl.u32 %v2569, 7
      %v2571 = vadd.s32 %v2570, 112
      %2572 = vset.pattern.permute.xlu0 %v2571
      %2573 = vperm.xlu0 %2572, %v2484
      %v2574 = vpop.permute.xlu0 %2573
      %v2575 = vlaneseq
      %v2576 = vshrl.u32 %v2575, 7
      %v2577 = vadd.s32 %v2576, 120
      %2578 = vset.pattern.permute.xlu0 %v2577
      %2579 = vperm.xlu0 %2578, %v2484
      %v2580 = vpop.permute.xlu0 %2579
      %v2581 = vperm.slane %v1089, 7
      %v2582 = vlaneseq
      %v2583 = vshrl.u32 %v2582, 7
      %2585 = vset.pattern.permute.xlu0 %v2583
      %2586 = vperm.xlu0 %2585, %v2581
      %v2587 = vpop.permute.xlu0 %2586
      %v2588 = vlaneseq
      %v2589 = vshrl.u32 %v2588, 7
      %v2590 = vadd.s32 %v2589, 8
      %2591 = vset.pattern.permute.xlu0 %v2590
      %2592 = vperm.xlu0 %2591, %v2581
      %v2593 = vpop.permute.xlu0 %2592
      %v2594 = vlaneseq
      %v2595 = vshrl.u32 %v2594, 7
      %v2596 = vadd.s32 %v2595, 16
      %2597 = vset.pattern.permute.xlu0 %v2596
      %2598 = vperm.xlu0 %2597, %v2581
      %v2599 = vpop.permute.xlu0 %2598
      %v2600 = vlaneseq
      %v2601 = vshrl.u32 %v2600, 7
      %v2602 = vadd.s32 %v2601, 24
      %2603 = vset.pattern.permute.xlu0 %v2602
      %2604 = vperm.xlu0 %2603, %v2581
      %v2605 = vpop.permute.xlu0 %2604
      %v2606 = vlaneseq
      %v2607 = vshrl.u32 %v2606, 7
      %v2608 = vadd.s32 %v2607, 32
      %2609 = vset.pattern.permute.xlu0 %v2608
      %2610 = vperm.xlu0 %2609, %v2581
      %v2611 = vpop.permute.xlu0 %2610
      %v2612 = vlaneseq
      %v2613 = vshrl.u32 %v2612, 7
      %v2614 = vadd.s32 %v2613, 40
      %2615 = vset.pattern.permute.xlu0 %v2614
      %2616 = vperm.xlu0 %2615, %v2581
      %v2617 = vpop.permute.xlu0 %2616
      %v2618 = vlaneseq
      %v2619 = vshrl.u32 %v2618, 7
      %v2620 = vadd.s32 %v2619, 48
      %2621 = vset.pattern.permute.xlu0 %v2620
      %2622 = vperm.xlu0 %2621, %v2581
      %v2623 = vpop.permute.xlu0 %2622
      %v2624 = vlaneseq
      %v2625 = vshrl.u32 %v2624, 7
      %v2626 = vadd.s32 %v2625, 56
      %2627 = vset.pattern.permute.xlu0 %v2626
      %2628 = vperm.xlu0 %2627, %v2581
      %v2629 = vpop.permute.xlu0 %2628
      %v2630 = vlaneseq
      %v2631 = vshrl.u32 %v2630, 7
      %v2632 = vadd.s32 %v2631, 64
      %2633 = vset.pattern.permute.xlu0 %v2632
      %2634 = vperm.xlu0 %2633, %v2581
      %v2635 = vpop.permute.xlu0 %2634
      %v2636 = vlaneseq
      %v2637 = vshrl.u32 %v2636, 7
      %v2638 = vadd.s32 %v2637, 72
      %2639 = vset.pattern.permute.xlu0 %v2638
      %2640 = vperm.xlu0 %2639, %v2581
      %v2641 = vpop.permute.xlu0 %2640
      %v2642 = vlaneseq
      %v2643 = vshrl.u32 %v2642, 7
      %v2644 = vadd.s32 %v2643, 80
      %2645 = vset.pattern.permute.xlu0 %v2644
      %2646 = vperm.xlu0 %2645, %v2581
      %v2647 = vpop.permute.xlu0 %2646
      %v2648 = vlaneseq
      %v2649 = vshrl.u32 %v2648, 7
      %v2650 = vadd.s32 %v2649, 88
      %2651 = vset.pattern.permute.xlu0 %v2650
      %2652 = vperm.xlu0 %2651, %v2581
      %v2653 = vpop.permute.xlu0 %2652
      %v2654 = vlaneseq
      %v2655 = vshrl.u32 %v2654, 7
      %v2656 = vadd.s32 %v2655, 96
      %2657 = vset.pattern.permute.xlu0 %v2656
      %2658 = vperm.xlu0 %2657, %v2581
      %v2659 = vpop.permute.xlu0 %2658
      %v2660 = vlaneseq
      %v2661 = vshrl.u32 %v2660, 7
      %v2662 = vadd.s32 %v2661, 104
      %2663 = vset.pattern.permute.xlu0 %v2662
      %2664 = vperm.xlu0 %2663, %v2581
      %v2665 = vpop.permute.xlu0 %2664
      %v2666 = vlaneseq
      %v2667 = vshrl.u32 %v2666, 7
      %v2668 = vadd.s32 %v2667, 112
      %2669 = vset.pattern.permute.xlu0 %v2668
      %2670 = vperm.xlu0 %2669, %v2581
      %v2671 = vpop.permute.xlu0 %2670
      %v2672 = vlaneseq
      %v2673 = vshrl.u32 %v2672, 7
      %v2674 = vadd.s32 %v2673, 120
      %2675 = vset.pattern.permute.xlu0 %v2674
      %2676 = vperm.xlu0 %2675, %v2581
      %v2677 = vpop.permute.xlu0 %2676
      %v2678 = vmul.f32 %v1132, %v1110
      %v2679 = vmul.f32 %v1138, %v1111
      %v2680 = vmul.f32 %v1144, %v1112
      %v2681 = vmul.f32 %v1150, %v1113
      %v2682 = vmul.f32 %v1156, %v1114
      %v2683 = vmul.f32 %v1162, %v1115
      %v2684 = vmul.f32 %v1168, %v1116
      %v2685 = vmul.f32 %v1174, %v1117
      %v2686 = vmul.f32 %v1180, %v1118
      %v2687 = vmul.f32 %v1186, %v1119
      %v2688 = vmul.f32 %v1192, %v1120
      %v2689 = vmul.f32 %v1198, %v1121
      %v2690 = vmul.f32 %v1204, %v1122
      %v2691 = vmul.f32 %v1210, %v1123
      %v2692 = vmul.f32 %v1216, %v1124
      %v2693 = vmul.f32 %v1222, %v1125
      %v2694 = vmul.f32 %v1229, %v1110
      %v2695 = vmul.f32 %v1235, %v1111
      %v2696 = vmul.f32 %v1241, %v1112
      %v2697 = vmul.f32 %v1247, %v1113
      %v2698 = vmul.f32 %v1253, %v1114
      %v2699 = vmul.f32 %v1259, %v1115
      %v2700 = vmul.f32 %v1265, %v1116
      %v2701 = vmul.f32 %v1271, %v1117
      %v2702 = vmul.f32 %v1277, %v1118
      %v2703 = vmul.f32 %v1283, %v1119
      %v2704 = vmul.f32 %v1289, %v1120
      %v2705 = vmul.f32 %v1295, %v1121
      %v2706 = vmul.f32 %v1301, %v1122
      %v2707 = vmul.f32 %v1307, %v1123
      %v2708 = vmul.f32 %v1313, %v1124
      %v2709 = vmul.f32 %v1319, %v1125
      %v2710 = vmul.f32 %v1326, %v1110
      %v2711 = vmul.f32 %v1332, %v1111
      %v2712 = vmul.f32 %v1338, %v1112
      %v2713 = vmul.f32 %v1344, %v1113
      %v2714 = vmul.f32 %v1350, %v1114
      %v2715 = vmul.f32 %v1356, %v1115
      %v2716 = vmul.f32 %v1362, %v1116
      %v2717 = vmul.f32 %v1368, %v1117
      %v2718 = vmul.f32 %v1374, %v1118
      %v2719 = vmul.f32 %v1380, %v1119
      %v2720 = vmul.f32 %v1386, %v1120
      %v2721 = vmul.f32 %v1392, %v1121
      %v2722 = vmul.f32 %v1398, %v1122
      %v2723 = vmul.f32 %v1404, %v1123
      %v2724 = vmul.f32 %v1410, %v1124
      %v2725 = vmul.f32 %v1416, %v1125
      %v2726 = vmul.f32 %v1423, %v1110
      %v2727 = vmul.f32 %v1429, %v1111
      %v2728 = vmul.f32 %v1435, %v1112
      %v2729 = vmul.f32 %v1441, %v1113
      %v2730 = vmul.f32 %v1447, %v1114
      %v2731 = vmul.f32 %v1453, %v1115
      %v2732 = vmul.f32 %v1459, %v1116
      %v2733 = vmul.f32 %v1465, %v1117
      %v2734 = vmul.f32 %v1471, %v1118
      %v2735 = vmul.f32 %v1477, %v1119
      %v2736 = vmul.f32 %v1483, %v1120
      %v2737 = vmul.f32 %v1489, %v1121
      %v2738 = vmul.f32 %v1495, %v1122
      %v2739 = vmul.f32 %v1501, %v1123
      %v2740 = vmul.f32 %v1507, %v1124
      %v2741 = vmul.f32 %v1513, %v1125
      %v2742 = vmul.f32 %v1520, %v1110
      %v2743 = vmul.f32 %v1526, %v1111
      %v2744 = vmul.f32 %v1532, %v1112
      %v2745 = vmul.f32 %v1538, %v1113
      %v2746 = vmul.f32 %v1544, %v1114
      %v2747 = vmul.f32 %v1550, %v1115
      %v2748 = vmul.f32 %v1556, %v1116
      %v2749 = vmul.f32 %v1562, %v1117
      %v2750 = vmul.f32 %v1568, %v1118
      %v2751 = vmul.f32 %v1574, %v1119
      %v2752 = vmul.f32 %v1580, %v1120
      %v2753 = vmul.f32 %v1586, %v1121
      %v2754 = vmul.f32 %v1592, %v1122
      %v2755 = vmul.f32 %v1598, %v1123
      %v2756 = vmul.f32 %v1604, %v1124
      %v2757 = vmul.f32 %v1610, %v1125
      %v2758 = vmul.f32 %v1617, %v1110
      %v2759 = vmul.f32 %v1623, %v1111
      %v2760 = vmul.f32 %v1629, %v1112
      %v2761 = vmul.f32 %v1635, %v1113
      %v2762 = vmul.f32 %v1641, %v1114
      %v2763 = vmul.f32 %v1647, %v1115
      %v2764 = vmul.f32 %v1653, %v1116
      %v2765 = vmul.f32 %v1659, %v1117
      %v2766 = vmul.f32 %v1665, %v1118
      %v2767 = vmul.f32 %v1671, %v1119
      %v2768 = vmul.f32 %v1677, %v1120
      %v2769 = vmul.f32 %v1683, %v1121
      %v2770 = vmul.f32 %v1689, %v1122
      %v2771 = vmul.f32 %v1695, %v1123
      %v2772 = vmul.f32 %v1701, %v1124
      %v2773 = vmul.f32 %v1707, %v1125
      %v2774 = vmul.f32 %v1714, %v1110
      %v2775 = vmul.f32 %v1720, %v1111
      %v2776 = vmul.f32 %v1726, %v1112
      %v2777 = vmul.f32 %v1732, %v1113
      %v2778 = vmul.f32 %v1738, %v1114
      %v2779 = vmul.f32 %v1744, %v1115
      %v2780 = vmul.f32 %v1750, %v1116
      %v2781 = vmul.f32 %v1756, %v1117
      %v2782 = vmul.f32 %v1762, %v1118
      %v2783 = vmul.f32 %v1768, %v1119
      %v2784 = vmul.f32 %v1774, %v1120
      %v2785 = vmul.f32 %v1780, %v1121
      %v2786 = vmul.f32 %v1786, %v1122
      %v2787 = vmul.f32 %v1792, %v1123
      %v2788 = vmul.f32 %v1798, %v1124
      %v2789 = vmul.f32 %v1804, %v1125
      %v2790 = vmul.f32 %v1811, %v1110
      %v2791 = vmul.f32 %v1817, %v1111
      %v2792 = vmul.f32 %v1823, %v1112
      %v2793 = vmul.f32 %v1829, %v1113
      %v2794 = vmul.f32 %v1835, %v1114
      %v2795 = vmul.f32 %v1841, %v1115
      %v2796 = vmul.f32 %v1847, %v1116
      %v2797 = vmul.f32 %v1853, %v1117
      %v2798 = vmul.f32 %v1859, %v1118
      %v2799 = vmul.f32 %v1865, %v1119
      %v2800 = vmul.f32 %v1871, %v1120
      %v2801 = vmul.f32 %v1877, %v1121
      %v2802 = vmul.f32 %v1883, %v1122
      %v2803 = vmul.f32 %v1889, %v1123
      %v2804 = vmul.f32 %v1895, %v1124
      %v2805 = vmul.f32 %v1901, %v1125
      %v2806 = vmul.f32 %v1908, %v1110
      %v2807 = vmul.f32 %v1914, %v1111
      %v2808 = vmul.f32 %v1920, %v1112
      %v2809 = vmul.f32 %v1926, %v1113
      %v2810 = vmul.f32 %v1932, %v1114
      %v2811 = vmul.f32 %v1938, %v1115
      %v2812 = vmul.f32 %v1944, %v1116
      %v2813 = vmul.f32 %v1950, %v1117
      %v2814 = vmul.f32 %v1956, %v1118
      %v2815 = vmul.f32 %v1962, %v1119
      %v2816 = vmul.f32 %v1968, %v1120
      %v2817 = vmul.f32 %v1974, %v1121
      %v2818 = vmul.f32 %v1980, %v1122
      %v2819 = vmul.f32 %v1986, %v1123
      %v2820 = vmul.f32 %v1992, %v1124
      %v2821 = vmul.f32 %v1998, %v1125
      %v2822 = vmul.f32 %v2005, %v1110
      %v2823 = vmul.f32 %v2011, %v1111
      %v2824 = vmul.f32 %v2017, %v1112
      %v2825 = vmul.f32 %v2023, %v1113
      %v2826 = vmul.f32 %v2029, %v1114
      %v2827 = vmul.f32 %v2035, %v1115
      %v2828 = vmul.f32 %v2041, %v1116
      %v2829 = vmul.f32 %v2047, %v1117
      %v2830 = vmul.f32 %v2053, %v1118
      %v2831 = vmul.f32 %v2059, %v1119
      %v2832 = vmul.f32 %v2065, %v1120
      %v2833 = vmul.f32 %v2071, %v1121
      %v2834 = vmul.f32 %v2077, %v1122
      %v2835 = vmul.f32 %v2083, %v1123
      %v2836 = vmul.f32 %v2089, %v1124
      %v2837 = vmul.f32 %v2095, %v1125
      %v2838 = vmul.f32 %v2102, %v1110
      %v2839 = vmul.f32 %v2108, %v1111
      %v2840 = vmul.f32 %v2114, %v1112
      %v2841 = vmul.f32 %v2120, %v1113
      %v2842 = vmul.f32 %v2126, %v1114
      %v2843 = vmul.f32 %v2132, %v1115
      %v2844 = vmul.f32 %v2138, %v1116
      %v2845 = vmul.f32 %v2144, %v1117
      %v2846 = vmul.f32 %v2150, %v1118
      %v2847 = vmul.f32 %v2156, %v1119
      %v2848 = vmul.f32 %v2162, %v1120
      %v2849 = vmul.f32 %v2168, %v1121
      %v2850 = vmul.f32 %v2174, %v1122
      %v2851 = vmul.f32 %v2180, %v1123
      %v2852 = vmul.f32 %v2186, %v1124
      %v2853 = vmul.f32 %v2192, %v1125
      %v2854 = vmul.f32 %v2199, %v1110
      %v2855 = vmul.f32 %v2205, %v1111
      %v2856 = vmul.f32 %v2211, %v1112
      %v2857 = vmul.f32 %v2217, %v1113
      %v2858 = vmul.f32 %v2223, %v1114
      %v2859 = vmul.f32 %v2229, %v1115
      %v2860 = vmul.f32 %v2235, %v1116
      %v2861 = vmul.f32 %v2241, %v1117
      %v2862 = vmul.f32 %v2247, %v1118
      %v2863 = vmul.f32 %v2253, %v1119
      %v2864 = vmul.f32 %v2259, %v1120
      %v2865 = vmul.f32 %v2265, %v1121
      %v2866 = vmul.f32 %v2271, %v1122
      %v2867 = vmul.f32 %v2277, %v1123
      %v2868 = vmul.f32 %v2283, %v1124
      %v2869 = vmul.f32 %v2289, %v1125
      %v2870 = vmul.f32 %v2296, %v1110
      %v2871 = vmul.f32 %v2302, %v1111
      %v2872 = vmul.f32 %v2308, %v1112
      %v2873 = vmul.f32 %v2314, %v1113
      %v2874 = vmul.f32 %v2320, %v1114
      %v2875 = vmul.f32 %v2326, %v1115
      %v2876 = vmul.f32 %v2332, %v1116
      %v2877 = vmul.f32 %v2338, %v1117
      %v2878 = vmul.f32 %v2344, %v1118
      %v2879 = vmul.f32 %v2350, %v1119
      %v2880 = vmul.f32 %v2356, %v1120
      %v2881 = vmul.f32 %v2362, %v1121
      %v2882 = vmul.f32 %v2368, %v1122
      %v2883 = vmul.f32 %v2374, %v1123
      %v2884 = vmul.f32 %v2380, %v1124
      %v2885 = vmul.f32 %v2386, %v1125
      %v2886 = vmul.f32 %v2393, %v1110
      %v2887 = vmul.f32 %v2399, %v1111
      %v2888 = vmul.f32 %v2405, %v1112
      %v2889 = vmul.f32 %v2411, %v1113
      %v2890 = vmul.f32 %v2417, %v1114
      %v2891 = vmul.f32 %v2423, %v1115
      %v2892 = vmul.f32 %v2429, %v1116
      %v2893 = vmul.f32 %v2435, %v1117
      %v2894 = vmul.f32 %v2441, %v1118
      %v2895 = vmul.f32 %v2447, %v1119
      %v2896 = vmul.f32 %v2453, %v1120
      %v2897 = vmul.f32 %v2459, %v1121
      %v2898 = vmul.f32 %v2465, %v1122
      %v2899 = vmul.f32 %v2471, %v1123
      %v2900 = vmul.f32 %v2477, %v1124
      %v2901 = vmul.f32 %v2483, %v1125
      %v2902 = vmul.f32 %v2490, %v1110
      %v2903 = vmul.f32 %v2496, %v1111
      %v2904 = vmul.f32 %v2502, %v1112
      %v2905 = vmul.f32 %v2508, %v1113
      %v2906 = vmul.f32 %v2514, %v1114
      %v2907 = vmul.f32 %v2520, %v1115
      %v2908 = vmul.f32 %v2526, %v1116
      %v2909 = vmul.f32 %v2532, %v1117
      %v2910 = vmul.f32 %v2538, %v1118
      %v2911 = vmul.f32 %v2544, %v1119
      %v2912 = vmul.f32 %v2550, %v1120
      %v2913 = vmul.f32 %v2556, %v1121
      %v2914 = vmul.f32 %v2562, %v1122
      %v2915 = vmul.f32 %v2568, %v1123
      %v2916 = vmul.f32 %v2574, %v1124
      %v2917 = vmul.f32 %v2580, %v1125
      %v2918 = vmul.f32 %v2587, %v1110
      %v2919 = vmul.f32 %v2593, %v1111
      %v2920 = vmul.f32 %v2599, %v1112
      %v2921 = vmul.f32 %v2605, %v1113
      %v2922 = vmul.f32 %v2611, %v1114
      %v2923 = vmul.f32 %v2617, %v1115
      %v2924 = vmul.f32 %v2623, %v1116
      %v2925 = vmul.f32 %v2629, %v1117
      %v2926 = vmul.f32 %v2635, %v1118
      %v2927 = vmul.f32 %v2641, %v1119
      %v2928 = vmul.f32 %v2647, %v1120
      %v2929 = vmul.f32 %v2653, %v1121
      %v2930 = vmul.f32 %v2659, %v1122
      %v2931 = vmul.f32 %v2665, %v1123
      %v2932 = vmul.f32 %v2671, %v1124
      %v2933 = vmul.f32 %v2677, %v1125
      %vm2934 = vcmask 785920
      %v2935 = vsel %vm2934, %v2678, -inf
      %v2936 = vsel %vm2934, %v2679, -inf
      %v2937 = vmax.f32 %v2935, %v2936
      %v2938 = vsel %vm2934, %v2680, -inf
      %v2939 = vmax.f32 %v2937, %v2938
      %v2940 = vsel %vm2934, %v2681, -inf
      %v2941 = vmax.f32 %v2939, %v2940
      %v2942 = vsel %vm2934, %v2682, -inf
      %v2943 = vmax.f32 %v2941, %v2942
      %v2944 = vsel %vm2934, %v2683, -inf
      %v2945 = vmax.f32 %v2943, %v2944
      %v2946 = vsel %vm2934, %v2684, -inf
      %v2947 = vmax.f32 %v2945, %v2946
      %v2948 = vsel %vm2934, %v2685, -inf
      %v2949 = vmax.f32 %v2947, %v2948
      %v2950 = vsel %vm2934, %v2686, -inf
      %v2951 = vmax.f32 %v2949, %v2950
      %v2952 = vsel %vm2934, %v2687, -inf
      %v2953 = vmax.f32 %v2951, %v2952
      %v2954 = vsel %vm2934, %v2688, -inf
      %v2955 = vmax.f32 %v2953, %v2954
      %v2956 = vsel %vm2934, %v2689, -inf
      %v2957 = vmax.f32 %v2955, %v2956
      %v2958 = vsel %vm2934, %v2690, -inf
      %v2959 = vmax.f32 %v2957, %v2958
      %v2960 = vsel %vm2934, %v2691, -inf
      %v2961 = vmax.f32 %v2959, %v2960
      %v2962 = vsel %vm2934, %v2692, -inf
      %v2963 = vmax.f32 %v2961, %v2962
      %v2964 = vsel %vm2934, %v2693, -inf
      %v2965 = vmax.f32 %v2963, %v2964
      %v2966 = vrot.slane %v2965, 4
      %v2967 = vmax.f32 %v2965, %v2966
      %v2968 = vrot.slane %v2967, 2
      %v2969 = vmax.f32 %v2967, %v2968
      %v2970 = vrot.slane %v2969, 1
      %v2971 = vmax.f32 %v2969, %v2970
      %v2972 = vsel %vm2934, %v2694, -inf
      %v2973 = vsel %vm2934, %v2695, -inf
      %v2974 = vmax.f32 %v2972, %v2973
      %v2975 = vsel %vm2934, %v2696, -inf
      %v2976 = vmax.f32 %v2974, %v2975
      %v2977 = vsel %vm2934, %v2697, -inf
      %v2978 = vmax.f32 %v2976, %v2977
      %v2979 = vsel %vm2934, %v2698, -inf
      %v2980 = vmax.f32 %v2978, %v2979
      %v2981 = vsel %vm2934, %v2699, -inf
      %v2982 = vmax.f32 %v2980, %v2981
      %v2983 = vsel %vm2934, %v2700, -inf
      %v2984 = vmax.f32 %v2982, %v2983
      %v2985 = vsel %vm2934, %v2701, -inf
      %v2986 = vmax.f32 %v2984, %v2985
      %v2987 = vsel %vm2934, %v2702, -inf
      %v2988 = vmax.f32 %v2986, %v2987
      %v2989 = vsel %vm2934, %v2703, -inf
      %v2990 = vmax.f32 %v2988, %v2989
      %v2991 = vsel %vm2934, %v2704, -inf
      %v2992 = vmax.f32 %v2990, %v2991
      %v2993 = vsel %vm2934, %v2705, -inf
      %v2994 = vmax.f32 %v2992, %v2993
      %v2995 = vsel %vm2934, %v2706, -inf
      %v2996 = vmax.f32 %v2994, %v2995
      %v2997 = vsel %vm2934, %v2707, -inf
      %v2998 = vmax.f32 %v2996, %v2997
      %v2999 = vsel %vm2934, %v2708, -inf
      %v3000 = vmax.f32 %v2998, %v2999
      %v3001 = vsel %vm2934, %v2709, -inf
      %v3002 = vmax.f32 %v3000, %v3001
      %v3003 = vrot.slane %v3002, 4
      %v3004 = vmax.f32 %v3002, %v3003
      %v3005 = vrot.slane %v3004, 2
      %v3006 = vmax.f32 %v3004, %v3005
      %v3007 = vrot.slane %v3006, 1
      %v3008 = vmax.f32 %v3006, %v3007
      %v3009 = vsel %vm2934, %v2710, -inf
      %v3010 = vsel %vm2934, %v2711, -inf
      %v3011 = vmax.f32 %v3009, %v3010
      %v3012 = vsel %vm2934, %v2712, -inf
      %v3013 = vmax.f32 %v3011, %v3012
      %v3014 = vsel %vm2934, %v2713, -inf
      %v3015 = vmax.f32 %v3013, %v3014
      %v3016 = vsel %vm2934, %v2714, -inf
      %v3017 = vmax.f32 %v3015, %v3016
      %v3018 = vsel %vm2934, %v2715, -inf
      %v3019 = vmax.f32 %v3017, %v3018
      %v3020 = vsel %vm2934, %v2716, -inf
      %v3021 = vmax.f32 %v3019, %v3020
      %v3022 = vsel %vm2934, %v2717, -inf
      %v3023 = vmax.f32 %v3021, %v3022
      %v3024 = vsel %vm2934, %v2718, -inf
      %v3025 = vmax.f32 %v3023, %v3024
      %v3026 = vsel %vm2934, %v2719, -inf
      %v3027 = vmax.f32 %v3025, %v3026
      %v3028 = vsel %vm2934, %v2720, -inf
      %v3029 = vmax.f32 %v3027, %v3028
      %v3030 = vsel %vm2934, %v2721, -inf
      %v3031 = vmax.f32 %v3029, %v3030
      %v3032 = vsel %vm2934, %v2722, -inf
      %v3033 = vmax.f32 %v3031, %v3032
      %v3034 = vsel %vm2934, %v2723, -inf
      %v3035 = vmax.f32 %v3033, %v3034
      %v3036 = vsel %vm2934, %v2724, -inf
      %v3037 = vmax.f32 %v3035, %v3036
      %v3038 = vsel %vm2934, %v2725, -inf
      %v3039 = vmax.f32 %v3037, %v3038
      %v3040 = vrot.slane %v3039, 4
      %v3041 = vmax.f32 %v3039, %v3040
      %v3042 = vrot.slane %v3041, 2
      %v3043 = vmax.f32 %v3041, %v3042
      %v3044 = vrot.slane %v3043, 1
      %v3045 = vmax.f32 %v3043, %v3044
      %v3046 = vsel %vm2934, %v2726, -inf
      %v3047 = vsel %vm2934, %v2727, -inf
      %v3048 = vmax.f32 %v3046, %v3047
      %v3049 = vsel %vm2934, %v2728, -inf
      %v3050 = vmax.f32 %v3048, %v3049
      %v3051 = vsel %vm2934, %v2729, -inf
      %v3052 = vmax.f32 %v3050, %v3051
      %v3053 = vsel %vm2934, %v2730, -inf
      %v3054 = vmax.f32 %v3052, %v3053
      %v3055 = vsel %vm2934, %v2731, -inf
      %v3056 = vmax.f32 %v3054, %v3055
      %v3057 = vsel %vm2934, %v2732, -inf
      %v3058 = vmax.f32 %v3056, %v3057
      %v3059 = vsel %vm2934, %v2733, -inf
      %v3060 = vmax.f32 %v3058, %v3059
      %v3061 = vsel %vm2934, %v2734, -inf
      %v3062 = vmax.f32 %v3060, %v3061
      %v3063 = vsel %vm2934, %v2735, -inf
      %v3064 = vmax.f32 %v3062, %v3063
      %v3065 = vsel %vm2934, %v2736, -inf
      %v3066 = vmax.f32 %v3064, %v3065
      %v3067 = vsel %vm2934, %v2737, -inf
      %v3068 = vmax.f32 %v3066, %v3067
      %v3069 = vsel %vm2934, %v2738, -inf
      %v3070 = vmax.f32 %v3068, %v3069
      %v3071 = vsel %vm2934, %v2739, -inf
      %v3072 = vmax.f32 %v3070, %v3071
      %v3073 = vsel %vm2934, %v2740, -inf
      %v3074 = vmax.f32 %v3072, %v3073
      %v3075 = vsel %vm2934, %v2741, -inf
      %v3076 = vmax.f32 %v3074, %v3075
      %v3077 = vrot.slane %v3076, 4
      %v3078 = vmax.f32 %v3076, %v3077
      %v3079 = vrot.slane %v3078, 2
      %v3080 = vmax.f32 %v3078, %v3079
      %v3081 = vrot.slane %v3080, 1
      %v3082 = vmax.f32 %v3080, %v3081
      %v3083 = vsel %vm2934, %v2742, -inf
      %v3084 = vsel %vm2934, %v2743, -inf
      %v3085 = vmax.f32 %v3083, %v3084
      %v3086 = vsel %vm2934, %v2744, -inf
      %v3087 = vmax.f32 %v3085, %v3086
      %v3088 = vsel %vm2934, %v2745, -inf
      %v3089 = vmax.f32 %v3087, %v3088
      %v3090 = vsel %vm2934, %v2746, -inf
      %v3091 = vmax.f32 %v3089, %v3090
      %v3092 = vsel %vm2934, %v2747, -inf
      %v3093 = vmax.f32 %v3091, %v3092
      %v3094 = vsel %vm2934, %v2748, -inf
      %v3095 = vmax.f32 %v3093, %v3094
      %v3096 = vsel %vm2934, %v2749, -inf
      %v3097 = vmax.f32 %v3095, %v3096
      %v3098 = vsel %vm2934, %v2750, -inf
      %v3099 = vmax.f32 %v3097, %v3098
      %v3100 = vsel %vm2934, %v2751, -inf
      %v3101 = vmax.f32 %v3099, %v3100
      %v3102 = vsel %vm2934, %v2752, -inf
      %v3103 = vmax.f32 %v3101, %v3102
      %v3104 = vsel %vm2934, %v2753, -inf
      %v3105 = vmax.f32 %v3103, %v3104
      %v3106 = vsel %vm2934, %v2754, -inf
      %v3107 = vmax.f32 %v3105, %v3106
      %v3108 = vsel %vm2934, %v2755, -inf
      %v3109 = vmax.f32 %v3107, %v3108
      %v3110 = vsel %vm2934, %v2756, -inf
      %v3111 = vmax.f32 %v3109, %v3110
      %v3112 = vsel %vm2934, %v2757, -inf
      %v3113 = vmax.f32 %v3111, %v3112
      %v3114 = vrot.slane %v3113, 4
      %v3115 = vmax.f32 %v3113, %v3114
      %v3116 = vrot.slane %v3115, 2
      %v3117 = vmax.f32 %v3115, %v3116
      %v3118 = vrot.slane %v3117, 1
      %v3119 = vmax.f32 %v3117, %v3118
      %v3120 = vsel %vm2934, %v2758, -inf
      %v3121 = vsel %vm2934, %v2759, -inf
      %v3122 = vmax.f32 %v3120, %v3121
      %v3123 = vsel %vm2934, %v2760, -inf
      %v3124 = vmax.f32 %v3122, %v3123
      %v3125 = vsel %vm2934, %v2761, -inf
      %v3126 = vmax.f32 %v3124, %v3125
      %v3127 = vsel %vm2934, %v2762, -inf
      %v3128 = vmax.f32 %v3126, %v3127
      %v3129 = vsel %vm2934, %v2763, -inf
      %v3130 = vmax.f32 %v3128, %v3129
      %v3131 = vsel %vm2934, %v2764, -inf
      %v3132 = vmax.f32 %v3130, %v3131
      %v3133 = vsel %vm2934, %v2765, -inf
      %v3134 = vmax.f32 %v3132, %v3133
      %v3135 = vsel %vm2934, %v2766, -inf
      %v3136 = vmax.f32 %v3134, %v3135
      %v3137 = vsel %vm2934, %v2767, -inf
      %v3138 = vmax.f32 %v3136, %v3137
      %v3139 = vsel %vm2934, %v2768, -inf
      %v3140 = vmax.f32 %v3138, %v3139
      %v3141 = vsel %vm2934, %v2769, -inf
      %v3142 = vmax.f32 %v3140, %v3141
      %v3143 = vsel %vm2934, %v2770, -inf
      %v3144 = vmax.f32 %v3142, %v3143
      %v3145 = vsel %vm2934, %v2771, -inf
      %v3146 = vmax.f32 %v3144, %v3145
      %v3147 = vsel %vm2934, %v2772, -inf
      %v3148 = vmax.f32 %v3146, %v3147
      %v3149 = vsel %vm2934, %v2773, -inf
      %v3150 = vmax.f32 %v3148, %v3149
      %v3151 = vrot.slane %v3150, 4
      %v3152 = vmax.f32 %v3150, %v3151
      %v3153 = vrot.slane %v3152, 2
      %v3154 = vmax.f32 %v3152, %v3153
      %v3155 = vrot.slane %v3154, 1
      %v3156 = vmax.f32 %v3154, %v3155
      %v3157 = vsel %vm2934, %v2774, -inf
      %v3158 = vsel %vm2934, %v2775, -inf
      %v3159 = vmax.f32 %v3157, %v3158
      %v3160 = vsel %vm2934, %v2776, -inf
      %v3161 = vmax.f32 %v3159, %v3160
      %v3162 = vsel %vm2934, %v2777, -inf
      %v3163 = vmax.f32 %v3161, %v3162
      %v3164 = vsel %vm2934, %v2778, -inf
      %v3165 = vmax.f32 %v3163, %v3164
      %v3166 = vsel %vm2934, %v2779, -inf
      %v3167 = vmax.f32 %v3165, %v3166
      %v3168 = vsel %vm2934, %v2780, -inf
      %v3169 = vmax.f32 %v3167, %v3168
      %v3170 = vsel %vm2934, %v2781, -inf
      %v3171 = vmax.f32 %v3169, %v3170
      %v3172 = vsel %vm2934, %v2782, -inf
      %v3173 = vmax.f32 %v3171, %v3172
      %v3174 = vsel %vm2934, %v2783, -inf
      %v3175 = vmax.f32 %v3173, %v3174
      %v3176 = vsel %vm2934, %v2784, -inf
      %v3177 = vmax.f32 %v3175, %v3176
      %v3178 = vsel %vm2934, %v2785, -inf
      %v3179 = vmax.f32 %v3177, %v3178
      %v3180 = vsel %vm2934, %v2786, -inf
      %v3181 = vmax.f32 %v3179, %v3180
      %v3182 = vsel %vm2934, %v2787, -inf
      %v3183 = vmax.f32 %v3181, %v3182
      %v3184 = vsel %vm2934, %v2788, -inf
      %v3185 = vmax.f32 %v3183, %v3184
      %v3186 = vsel %vm2934, %v2789, -inf
      %v3187 = vmax.f32 %v3185, %v3186
      %v3188 = vrot.slane %v3187, 4
      %v3189 = vmax.f32 %v3187, %v3188
      %v3190 = vrot.slane %v3189, 2
      %v3191 = vmax.f32 %v3189, %v3190
      %v3192 = vrot.slane %v3191, 1
      %v3193 = vmax.f32 %v3191, %v3192
      %v3194 = vsel %vm2934, %v2790, -inf
      %v3195 = vsel %vm2934, %v2791, -inf
      %v3196 = vmax.f32 %v3194, %v3195
      %v3197 = vsel %vm2934, %v2792, -inf
      %v3198 = vmax.f32 %v3196, %v3197
      %v3199 = vsel %vm2934, %v2793, -inf
      %v3200 = vmax.f32 %v3198, %v3199
      %v3201 = vsel %vm2934, %v2794, -inf
      %v3202 = vmax.f32 %v3200, %v3201
      %v3203 = vsel %vm2934, %v2795, -inf
      %v3204 = vmax.f32 %v3202, %v3203
      %v3205 = vsel %vm2934, %v2796, -inf
      %v3206 = vmax.f32 %v3204, %v3205
      %v3207 = vsel %vm2934, %v2797, -inf
      %v3208 = vmax.f32 %v3206, %v3207
      %v3209 = vsel %vm2934, %v2798, -inf
      %v3210 = vmax.f32 %v3208, %v3209
      %v3211 = vsel %vm2934, %v2799, -inf
      %v3212 = vmax.f32 %v3210, %v3211
      %v3213 = vsel %vm2934, %v2800, -inf
      %v3214 = vmax.f32 %v3212, %v3213
      %v3215 = vsel %vm2934, %v2801, -inf
      %v3216 = vmax.f32 %v3214, %v3215
      %v3217 = vsel %vm2934, %v2802, -inf
      %v3218 = vmax.f32 %v3216, %v3217
      %v3219 = vsel %vm2934, %v2803, -inf
      %v3220 = vmax.f32 %v3218, %v3219
      %v3221 = vsel %vm2934, %v2804, -inf
      %v3222 = vmax.f32 %v3220, %v3221
      %v3223 = vsel %vm2934, %v2805, -inf
      %v3224 = vmax.f32 %v3222, %v3223
      %v3225 = vrot.slane %v3224, 4
      %v3226 = vmax.f32 %v3224, %v3225
      %v3227 = vrot.slane %v3226, 2
      %v3228 = vmax.f32 %v3226, %v3227
      %v3229 = vrot.slane %v3228, 1
      %v3230 = vmax.f32 %v3228, %v3229
      %v3231 = vsel %vm2934, %v2806, -inf
      %v3232 = vsel %vm2934, %v2807, -inf
      %v3233 = vmax.f32 %v3231, %v3232
      %v3234 = vsel %vm2934, %v2808, -inf
      %v3235 = vmax.f32 %v3233, %v3234
      %v3236 = vsel %vm2934, %v2809, -inf
      %v3237 = vmax.f32 %v3235, %v3236
      %v3238 = vsel %vm2934, %v2810, -inf
      %v3239 = vmax.f32 %v3237, %v3238
      %v3240 = vsel %vm2934, %v2811, -inf
      %v3241 = vmax.f32 %v3239, %v3240
      %v3242 = vsel %vm2934, %v2812, -inf
      %v3243 = vmax.f32 %v3241, %v3242
      %v3244 = vsel %vm2934, %v2813, -inf
      %v3245 = vmax.f32 %v3243, %v3244
      %v3246 = vsel %vm2934, %v2814, -inf
      %v3247 = vmax.f32 %v3245, %v3246
      %v3248 = vsel %vm2934, %v2815, -inf
      %v3249 = vmax.f32 %v3247, %v3248
      %v3250 = vsel %vm2934, %v2816, -inf
      %v3251 = vmax.f32 %v3249, %v3250
      %v3252 = vsel %vm2934, %v2817, -inf
      %v3253 = vmax.f32 %v3251, %v3252
      %v3254 = vsel %vm2934, %v2818, -inf
      %v3255 = vmax.f32 %v3253, %v3254
      %v3256 = vsel %vm2934, %v2819, -inf
      %v3257 = vmax.f32 %v3255, %v3256
      %v3258 = vsel %vm2934, %v2820, -inf
      %v3259 = vmax.f32 %v3257, %v3258
      %v3260 = vsel %vm2934, %v2821, -inf
      %v3261 = vmax.f32 %v3259, %v3260
      %v3262 = vrot.slane %v3261, 4
      %v3263 = vmax.f32 %v3261, %v3262
      %v3264 = vrot.slane %v3263, 2
      %v3265 = vmax.f32 %v3263, %v3264
      %v3266 = vrot.slane %v3265, 1
      %v3267 = vmax.f32 %v3265, %v3266
      %v3268 = vsel %vm2934, %v2822, -inf
      %v3269 = vsel %vm2934, %v2823, -inf
      %v3270 = vmax.f32 %v3268, %v3269
      %v3271 = vsel %vm2934, %v2824, -inf
      %v3272 = vmax.f32 %v3270, %v3271
      %v3273 = vsel %vm2934, %v2825, -inf
      %v3274 = vmax.f32 %v3272, %v3273
      %v3275 = vsel %vm2934, %v2826, -inf
      %v3276 = vmax.f32 %v3274, %v3275
      %v3277 = vsel %vm2934, %v2827, -inf
      %v3278 = vmax.f32 %v3276, %v3277
      %v3279 = vsel %vm2934, %v2828, -inf
      %v3280 = vmax.f32 %v3278, %v3279
      %v3281 = vsel %vm2934, %v2829, -inf
      %v3282 = vmax.f32 %v3280, %v3281
      %v3283 = vsel %vm2934, %v2830, -inf
      %v3284 = vmax.f32 %v3282, %v3283
      %v3285 = vsel %vm2934, %v2831, -inf
      %v3286 = vmax.f32 %v3284, %v3285
      %v3287 = vsel %vm2934, %v2832, -inf
      %v3288 = vmax.f32 %v3286, %v3287
      %v3289 = vsel %vm2934, %v2833, -inf
      %v3290 = vmax.f32 %v3288, %v3289
      %v3291 = vsel %vm2934, %v2834, -inf
      %v3292 = vmax.f32 %v3290, %v3291
      %v3293 = vsel %vm2934, %v2835, -inf
      %v3294 = vmax.f32 %v3292, %v3293
      %v3295 = vsel %vm2934, %v2836, -inf
      %v3296 = vmax.f32 %v3294, %v3295
      %v3297 = vsel %vm2934, %v2837, -inf
      %v3298 = vmax.f32 %v3296, %v3297
      %v3299 = vrot.slane %v3298, 4
      %v3300 = vmax.f32 %v3298, %v3299
      %v3301 = vrot.slane %v3300, 2
      %v3302 = vmax.f32 %v3300, %v3301
      %v3303 = vrot.slane %v3302, 1
      %v3304 = vmax.f32 %v3302, %v3303
      %v3305 = vsel %vm2934, %v2838, -inf
      %v3306 = vsel %vm2934, %v2839, -inf
      %v3307 = vmax.f32 %v3305, %v3306
      %v3308 = vsel %vm2934, %v2840, -inf
      %v3309 = vmax.f32 %v3307, %v3308
      %v3310 = vsel %vm2934, %v2841, -inf
      %v3311 = vmax.f32 %v3309, %v3310
      %v3312 = vsel %vm2934, %v2842, -inf
      %v3313 = vmax.f32 %v3311, %v3312
      %v3314 = vsel %vm2934, %v2843, -inf
      %v3315 = vmax.f32 %v3313, %v3314
      %v3316 = vsel %vm2934, %v2844, -inf
      %v3317 = vmax.f32 %v3315, %v3316
      %v3318 = vsel %vm2934, %v2845, -inf
      %v3319 = vmax.f32 %v3317, %v3318
      %v3320 = vsel %vm2934, %v2846, -inf
      %v3321 = vmax.f32 %v3319, %v3320
      %v3322 = vsel %vm2934, %v2847, -inf
      %v3323 = vmax.f32 %v3321, %v3322
      %v3324 = vsel %vm2934, %v2848, -inf
      %v3325 = vmax.f32 %v3323, %v3324
      %v3326 = vsel %vm2934, %v2849, -inf
      %v3327 = vmax.f32 %v3325, %v3326
      %v3328 = vsel %vm2934, %v2850, -inf
      %v3329 = vmax.f32 %v3327, %v3328
      %v3330 = vsel %vm2934, %v2851, -inf
      %v3331 = vmax.f32 %v3329, %v3330
      %v3332 = vsel %vm2934, %v2852, -inf
      %v3333 = vmax.f32 %v3331, %v3332
      %v3334 = vsel %vm2934, %v2853, -inf
      %v3335 = vmax.f32 %v3333, %v3334
      %v3336 = vrot.slane %v3335, 4
      %v3337 = vmax.f32 %v3335, %v3336
      %v3338 = vrot.slane %v3337, 2
      %v3339 = vmax.f32 %v3337, %v3338
      %v3340 = vrot.slane %v3339, 1
      %v3341 = vmax.f32 %v3339, %v3340
      %v3342 = vsel %vm2934, %v2854, -inf
      %v3343 = vsel %vm2934, %v2855, -inf
      %v3344 = vmax.f32 %v3342, %v3343
      %v3345 = vsel %vm2934, %v2856, -inf
      %v3346 = vmax.f32 %v3344, %v3345
      %v3347 = vsel %vm2934, %v2857, -inf
      %v3348 = vmax.f32 %v3346, %v3347
      %v3349 = vsel %vm2934, %v2858, -inf
      %v3350 = vmax.f32 %v3348, %v3349
      %v3351 = vsel %vm2934, %v2859, -inf
      %v3352 = vmax.f32 %v3350, %v3351
      %v3353 = vsel %vm2934, %v2860, -inf
      %v3354 = vmax.f32 %v3352, %v3353
      %v3355 = vsel %vm2934, %v2861, -inf
      %v3356 = vmax.f32 %v3354, %v3355
      %v3357 = vsel %vm2934, %v2862, -inf
      %v3358 = vmax.f32 %v3356, %v3357
      %v3359 = vsel %vm2934, %v2863, -inf
      %v3360 = vmax.f32 %v3358, %v3359
      %v3361 = vsel %vm2934, %v2864, -inf
      %v3362 = vmax.f32 %v3360, %v3361
      %v3363 = vsel %vm2934, %v2865, -inf
      %v3364 = vmax.f32 %v3362, %v3363
      %v3365 = vsel %vm2934, %v2866, -inf
      %v3366 = vmax.f32 %v3364, %v3365
      %v3367 = vsel %vm2934, %v2867, -inf
      %v3368 = vmax.f32 %v3366, %v3367
      %v3369 = vsel %vm2934, %v2868, -inf
      %v3370 = vmax.f32 %v3368, %v3369
      %v3371 = vsel %vm2934, %v2869, -inf
      %v3372 = vmax.f32 %v3370, %v3371
      %v3373 = vrot.slane %v3372, 4
      %v3374 = vmax.f32 %v3372, %v3373
      %v3375 = vrot.slane %v3374, 2
      %v3376 = vmax.f32 %v3374, %v3375
      %v3377 = vrot.slane %v3376, 1
      %v3378 = vmax.f32 %v3376, %v3377
      %v3379 = vsel %vm2934, %v2870, -inf
      %v3380 = vsel %vm2934, %v2871, -inf
      %v3381 = vmax.f32 %v3379, %v3380
      %v3382 = vsel %vm2934, %v2872, -inf
      %v3383 = vmax.f32 %v3381, %v3382
      %v3384 = vsel %vm2934, %v2873, -inf
      %v3385 = vmax.f32 %v3383, %v3384
      %v3386 = vsel %vm2934, %v2874, -inf
      %v3387 = vmax.f32 %v3385, %v3386
      %v3388 = vsel %vm2934, %v2875, -inf
      %v3389 = vmax.f32 %v3387, %v3388
      %v3390 = vsel %vm2934, %v2876, -inf
      %v3391 = vmax.f32 %v3389, %v3390
      %v3392 = vsel %vm2934, %v2877, -inf
      %v3393 = vmax.f32 %v3391, %v3392
      %v3394 = vsel %vm2934, %v2878, -inf
      %v3395 = vmax.f32 %v3393, %v3394
      %v3396 = vsel %vm2934, %v2879, -inf
      %v3397 = vmax.f32 %v3395, %v3396
      %v3398 = vsel %vm2934, %v2880, -inf
      %v3399 = vmax.f32 %v3397, %v3398
      %v3400 = vsel %vm2934, %v2881, -inf
      %v3401 = vmax.f32 %v3399, %v3400
      %v3402 = vsel %vm2934, %v2882, -inf
      %v3403 = vmax.f32 %v3401, %v3402
      %v3404 = vsel %vm2934, %v2883, -inf
      %v3405 = vmax.f32 %v3403, %v3404
      %v3406 = vsel %vm2934, %v2884, -inf
      %v3407 = vmax.f32 %v3405, %v3406
      %v3408 = vsel %vm2934, %v2885, -inf
      %v3409 = vmax.f32 %v3407, %v3408
      %v3410 = vrot.slane %v3409, 4
      %v3411 = vmax.f32 %v3409, %v3410
      %v3412 = vrot.slane %v3411, 2
      %v3413 = vmax.f32 %v3411, %v3412
      %v3414 = vrot.slane %v3413, 1
      %v3415 = vmax.f32 %v3413, %v3414
      %v3416 = vsel %vm2934, %v2886, -inf
      %v3417 = vsel %vm2934, %v2887, -inf
      %v3418 = vmax.f32 %v3416, %v3417
      %v3419 = vsel %vm2934, %v2888, -inf
      %v3420 = vmax.f32 %v3418, %v3419
      %v3421 = vsel %vm2934, %v2889, -inf
      %v3422 = vmax.f32 %v3420, %v3421
      %v3423 = vsel %vm2934, %v2890, -inf
      %v3424 = vmax.f32 %v3422, %v3423
      %v3425 = vsel %vm2934, %v2891, -inf
      %v3426 = vmax.f32 %v3424, %v3425
      %v3427 = vsel %vm2934, %v2892, -inf
      %v3428 = vmax.f32 %v3426, %v3427
      %v3429 = vsel %vm2934, %v2893, -inf
      %v3430 = vmax.f32 %v3428, %v3429
      %v3431 = vsel %vm2934, %v2894, -inf
      %v3432 = vmax.f32 %v3430, %v3431
      %v3433 = vsel %vm2934, %v2895, -inf
      %v3434 = vmax.f32 %v3432, %v3433
      %v3435 = vsel %vm2934, %v2896, -inf
      %v3436 = vmax.f32 %v3434, %v3435
      %v3437 = vsel %vm2934, %v2897, -inf
      %v3438 = vmax.f32 %v3436, %v3437
      %v3439 = vsel %vm2934, %v2898, -inf
      %v3440 = vmax.f32 %v3438, %v3439
      %v3441 = vsel %vm2934, %v2899, -inf
      %v3442 = vmax.f32 %v3440, %v3441
      %v3443 = vsel %vm2934, %v2900, -inf
      %v3444 = vmax.f32 %v3442, %v3443
      %v3445 = vsel %vm2934, %v2901, -inf
      %v3446 = vmax.f32 %v3444, %v3445
      %v3447 = vrot.slane %v3446, 4
      %v3448 = vmax.f32 %v3446, %v3447
      %v3449 = vrot.slane %v3448, 2
      %v3450 = vmax.f32 %v3448, %v3449
      %v3451 = vrot.slane %v3450, 1
      %v3452 = vmax.f32 %v3450, %v3451
      %v3453 = vsel %vm2934, %v2902, -inf
      %v3454 = vsel %vm2934, %v2903, -inf
      %v3455 = vmax.f32 %v3453, %v3454
      %v3456 = vsel %vm2934, %v2904, -inf
      %v3457 = vmax.f32 %v3455, %v3456
      %v3458 = vsel %vm2934, %v2905, -inf
      %v3459 = vmax.f32 %v3457, %v3458
      %v3460 = vsel %vm2934, %v2906, -inf
      %v3461 = vmax.f32 %v3459, %v3460
      %v3462 = vsel %vm2934, %v2907, -inf
      %v3463 = vmax.f32 %v3461, %v3462
      %v3464 = vsel %vm2934, %v2908, -inf
      %v3465 = vmax.f32 %v3463, %v3464
      %v3466 = vsel %vm2934, %v2909, -inf
      %v3467 = vmax.f32 %v3465, %v3466
      %v3468 = vsel %vm2934, %v2910, -inf
      %v3469 = vmax.f32 %v3467, %v3468
      %v3470 = vsel %vm2934, %v2911, -inf
      %v3471 = vmax.f32 %v3469, %v3470
      %v3472 = vsel %vm2934, %v2912, -inf
      %v3473 = vmax.f32 %v3471, %v3472
      %v3474 = vsel %vm2934, %v2913, -inf
      %v3475 = vmax.f32 %v3473, %v3474
      %v3476 = vsel %vm2934, %v2914, -inf
      %v3477 = vmax.f32 %v3475, %v3476
      %v3478 = vsel %vm2934, %v2915, -inf
      %v3479 = vmax.f32 %v3477, %v3478
      %v3480 = vsel %vm2934, %v2916, -inf
      %v3481 = vmax.f32 %v3479, %v3480
      %v3482 = vsel %vm2934, %v2917, -inf
      %v3483 = vmax.f32 %v3481, %v3482
      %v3484 = vrot.slane %v3483, 4
      %v3485 = vmax.f32 %v3483, %v3484
      %v3486 = vrot.slane %v3485, 2
      %v3487 = vmax.f32 %v3485, %v3486
      %v3488 = vrot.slane %v3487, 1
      %v3489 = vmax.f32 %v3487, %v3488
      %v3490 = vsel %vm2934, %v2918, -inf
      %v3491 = vsel %vm2934, %v2919, -inf
      %v3492 = vmax.f32 %v3490, %v3491
      %v3493 = vsel %vm2934, %v2920, -inf
      %v3494 = vmax.f32 %v3492, %v3493
      %v3495 = vsel %vm2934, %v2921, -inf
      %v3496 = vmax.f32 %v3494, %v3495
      %v3497 = vsel %vm2934, %v2922, -inf
      %v3498 = vmax.f32 %v3496, %v3497
      %v3499 = vsel %vm2934, %v2923, -inf
      %v3500 = vmax.f32 %v3498, %v3499
      %v3501 = vsel %vm2934, %v2924, -inf
      %v3502 = vmax.f32 %v3500, %v3501
      %v3503 = vsel %vm2934, %v2925, -inf
      %v3504 = vmax.f32 %v3502, %v3503
      %v3505 = vsel %vm2934, %v2926, -inf
      %v3506 = vmax.f32 %v3504, %v3505
      %v3507 = vsel %vm2934, %v2927, -inf
      %v3508 = vmax.f32 %v3506, %v3507
      %v3509 = vsel %vm2934, %v2928, -inf
      %v3510 = vmax.f32 %v3508, %v3509
      %v3511 = vsel %vm2934, %v2929, -inf
      %v3512 = vmax.f32 %v3510, %v3511
      %v3513 = vsel %vm2934, %v2930, -inf
      %v3514 = vmax.f32 %v3512, %v3513
      %v3515 = vsel %vm2934, %v2931, -inf
      %v3516 = vmax.f32 %v3514, %v3515
      %v3517 = vsel %vm2934, %v2932, -inf
      %v3518 = vmax.f32 %v3516, %v3517
      %v3519 = vsel %vm2934, %v2933, -inf
      %v3520 = vmax.f32 %v3518, %v3519
      %v3521 = vrot.slane %v3520, 4
      %v3522 = vmax.f32 %v3520, %v3521
      %v3523 = vrot.slane %v3522, 2
      %v3524 = vmax.f32 %v3522, %v3523
      %v3525 = vrot.slane %v3524, 1
      %v3526 = vmax.f32 %v3524, %v3525
      %v3527 = vmax.f32 %v1065, %v2971
      %v3528 = vmax.f32 %v1066, %v3008
      %v3529 = vmax.f32 %v1067, %v3045
      %v3530 = vmax.f32 %v1068, %v3082
      %v3531 = vmax.f32 %v1069, %v3119
      %v3532 = vmax.f32 %v1070, %v3156
      %v3533 = vmax.f32 %v1071, %v3193
      %v3534 = vmax.f32 %v1072, %v3230
      %v3535 = vmax.f32 %v1073, %v3267
      %v3536 = vmax.f32 %v1074, %v3304
      %v3537 = vmax.f32 %v1075, %v3341
      %v3538 = vmax.f32 %v1076, %v3378
      %v3539 = vmax.f32 %v1077, %v3415
      %v3540 = vmax.f32 %v1078, %v3452
      %v3541 = vmax.f32 %v1079, %v3489
      %v3542 = vmax.f32 %v1080, %v3526
    $region54: #{_lambda_.7} parent=1 // loop_footer
      %s1064 = sadd.s32 1, %s1060
    $region55: #{_lambda_.7} parent=1 // loop_footer_branch
      %1059 = sbr.rel target = $region51
    $region56: #{_lambda_.7} parent=1 // loop_exit
      _
    %3545 = vrot.lane.b32.xlu0 %v1046, 64
    %v3546 = vpop.permute.xlu0 %3545
    %3547 = vrot.lane.b32.xlu0 %v1058, 64
    %v3548 = vpop.permute.xlu0 %3547
    %vm3567 = vcmask 1041409
    %v3568 = vsel %vm3567, %v1066, %v1065
    %vm3569 = vcmask 1042434
    %v3570 = vsel %vm3569, %v1067, %v3568
    %vm3571 = vcmask 1043459
    %v3572 = vsel %vm3571, %v1068, %v3570
    %vm3573 = vcmask 1044484
    %v3574 = vsel %vm3573, %v1069, %v3572
    %vm3575 = vcmask 1045509
    %v3576 = vsel %vm3575, %v1070, %v3574
    %vm3577 = vcmask 1046534
    %v3578 = vsel %vm3577, %v1071, %v3576
    %vm3579 = vcmask 1047559
    %v3580 = vsel %vm3579, %v1072, %v3578
    %v3581 = vsel %vm3567, %v1074, %v1073
    %v3582 = vsel %vm3569, %v1075, %v3581
    %v3583 = vsel %vm3571, %v1076, %v3582
    %v3584 = vsel %vm3573, %v1077, %v3583
    %v3585 = vsel %vm3575, %v1078, %v3584
    %v3586 = vsel %vm3577, %v1079, %v3585
    %v3587 = vsel %vm3579, %v1080, %v3586
    %3588 = vrot.lane.b32.xlu0 %v3580, 32
    %v3589 = vpop.permute.xlu0 %3588
    %3590 = vrot.lane.b32.xlu0 %v3587, 32
    %v3591 = vpop.permute.xlu0 %3590
    %vm3594 = vcmask 261120
    %v3595 = vsel %vm3594, %v209, %v239
    %v3596 = vsel %vm3594, %v211, %v254
    %vm3597 = vcmask 523264
    %v3598 = vsel %vm3597, %v3595, %v3546
    %v3599 = vsel %vm3597, %v3596, %v3548
    %vm3600 = vcmask 785408
    %v3601 = vsel %vm3600, %v3598, %v3589
    %v3602 = vsel %vm3600, %v3599, %v3591
    %v3603 = vadd.f32 %v209, 1.0
    %v3604 = vadd.f32 %v211, 1.0
    %v3605 = vlog2.pop %v3603
    %v3606 = vmul.f32 %v3605, 0.6931472
    %v3607 = vlog2.pop %v3604
    %v3608 = vmul.f32 %v3607, 0.6931472
    %v3609 = vmul.f32 %v3606, 0.86843246
    %v3610 = vmul.f32 %v3608, 0.86843246
    %vm3611 = vcmp.gt.f32.partialorder %v209, 0.0
    %vm3612 = vcmp.gt.f32.partialorder %v211, 0.0
    %v3613 = vadd.f32 %v3606, 1e-07
    %v3614 = vadd.f32 %v3608, 1e-07
    %v3615 = vrcp.pop %v3613
    %v3616 = vmul.f32 %v3613, %v3615
    %v3617 = vsub.f32 1.0, %v3616
    %v3618 = vmul.f32 %v3615, %v3617
    %v3619 = vadd.f32 %v3615, %v3618
    %vm3620 = vweird.f32 %v3613
    %vm3621 = vweird.f32 %v3615
    %vm3622 = vmor %vm3620, %vm3621
    %v3623 = vsel %vm3622, %v3615, %v3619
    %v3624 = vand.u32 2147483647, %v3613
    %vm3625 = vcmp.eq.f32.partialorder %v3624, 8.507059e+37
    %v3626 = vand.u32 %v3613, 2147483648
    %v3627 = vor.u32 1.1754944e-38, %v3626
    %v3628 = vsel %vm3625, %v3627, %v3623
    %v3629 = vmul.f32 1.1515, %v3628
    %v3630 = vrcp.pop %v3614
    %v3631 = vmul.f32 %v3614, %v3630
    %v3632 = vsub.f32 1.0, %v3631
    %v3633 = vmul.f32 %v3630, %v3632
    %v3634 = vadd.f32 %v3630, %v3633
    %vm3635 = vweird.f32 %v3614
    %vm3636 = vweird.f32 %v3630
    %vm3637 = vmor %vm3635, %vm3636
    %v3638 = vsel %vm3637, %v3630, %v3634
    %v3639 = vand.u32 2147483647, %v3614
    %vm3640 = vcmp.eq.f32.partialorder %v3639, 8.507059e+37
    %v3641 = vand.u32 %v3614, 2147483648
    %v3642 = vor.u32 1.1754944e-38, %v3641
    %v3643 = vsel %vm3640, %v3642, %v3638
    %v3644 = vmul.f32 1.1515, %v3643
    %v3645 = vsel %vm3611, %v3629, 0.0
    %v3646 = vsel %vm3612, %v3644, 0.0
    %3648 = vset.pattern.permute.xlu0 96
    %3649 = vperm.xlu0 %3648, %v3609
    %v3650 = vpop.permute.xlu0 %3649
    %3653 = vset.pattern.permute.xlu0 96
    %3654 = vperm.xlu0 %3653, %v3610
    %v3655 = vpop.permute.xlu0 %3654
    %v3657 = vmul.f32 %v3650, %v3601
    %v3658 = vmul.f32 %v3655, %v3602
    %3660 = vset.pattern.permute.xlu0 96
    %3661 = vperm.xlu0 %3660, %v3645
    %v3662 = vpop.permute.xlu0 %3661
    %3665 = vset.pattern.permute.xlu0 96
    %3666 = vperm.xlu0 %3665, %v3646
    %v3667 = vpop.permute.xlu0 %3666
    %v3669 = vmul.f32 %v3662, %v3601
    %v3670 = vmul.f32 %v3667, %v3602
    %v3671 = vpack.c.bf16 %v3602, %v3601
    %v3672 = vpack.c.bf16 %v3658, %v3657
    %v3673 = vpack.c.bf16 %v3670, %v3669
    %v3674 = vld [vmem:[%s3] sm:$0xf]
    %v3675 = vld [vmem:[%s3 + $0x4] sm:$0xf]
    %v3676 = vld [vmem:[%s3 + $0x8] sm:$0xf]
    %v3677 = vld [vmem:[%s3 + $0xc] sm:$0xf]
    %v3678 = vld [vmem:[%s3 + $0x10] sm:$0xf]
    %v3679 = vld [vmem:[%s3 + $0x14] sm:$0xf]
    %v3680 = vld [vmem:[%s3 + $0x18] sm:$0xf]
    %v3681 = vld [vmem:[%s3 + $0x1c] sm:$0xf]
    %v3682 = vld [vmem:[%s3 + $0x20] sm:$0xf]
    %v3683 = vld [vmem:[%s3 + $0x24] sm:$0xf]
    %v3684 = vld [vmem:[%s3 + $0x28] sm:$0xf]
    %v3685 = vld [vmem:[%s3 + $0x2c] sm:$0xf]
    %v3686 = vld [vmem:[%s3 + $0x30] sm:$0xf]
    %v3687 = vld [vmem:[%s3 + $0x34] sm:$0xf]
    %v3688 = vld [vmem:[%s3 + $0x38] sm:$0xf]
    %v3689 = vld [vmem:[%s3 + $0x3c] sm:$0xf]
    %v3690 = vld [vmem:[%s3 + $0x40] sm:$0xf]
    %v3691 = vld [vmem:[%s3 + $0x44] sm:$0xf]
    %v3692 = vld [vmem:[%s3 + $0x48] sm:$0xf]
    %v3693 = vld [vmem:[%s3 + $0x4c] sm:$0xf]
    %v3694 = vld [vmem:[%s3 + $0x50] sm:$0xf]
    %v3695 = vld [vmem:[%s3 + $0x54] sm:$0xf]
    %v3696 = vld [vmem:[%s3 + $0x58] sm:$0xf]
    %v3697 = vld [vmem:[%s3 + $0x5c] sm:$0xf]
    %v3698 = vld [vmem:[%s3 + $0x60] sm:$0xf]
    %v3699 = vld [vmem:[%s3 + $0x64] sm:$0xf]
    %v3700 = vld [vmem:[%s3 + $0x68] sm:$0xf]
    %v3701 = vld [vmem:[%s3 + $0x6c] sm:$0xf]
    %v3702 = vld [vmem:[%s3 + $0x70] sm:$0xf]
    %v3703 = vld [vmem:[%s3 + $0x74] sm:$0xf]
    %v3704 = vld [vmem:[%s3 + $0x78] sm:$0xf]
    %v3705 = vld [vmem:[%s3 + $0x7c] sm:$0xf]
    %v3706 = vld [vmem:[%s3 + $0x80] sm:$0xf]
    %v3707 = vld [vmem:[%s3 + $0x84] sm:$0xf]
    %v3708 = vld [vmem:[%s3 + $0x88] sm:$0xf]
    %v3709 = vld [vmem:[%s3 + $0x8c] sm:$0xf]
    %v3710 = vld [vmem:[%s3 + $0x90] sm:$0xf]
    %v3711 = vld [vmem:[%s3 + $0x94] sm:$0xf]
    %v3712 = vld [vmem:[%s3 + $0x98] sm:$0xf]
    %v3713 = vld [vmem:[%s3 + $0x9c] sm:$0xf]
    %v3714 = vld [vmem:[%s3 + $0xa0] sm:$0xf]
    %v3715 = vld [vmem:[%s3 + $0xa4] sm:$0xf]
    %v3716 = vld [vmem:[%s3 + $0xa8] sm:$0xf]
    %v3717 = vld [vmem:[%s3 + $0xac] sm:$0xf]
    %v3718 = vld [vmem:[%s3 + $0xb0] sm:$0xf]
    %v3719 = vld [vmem:[%s3 + $0xb4] sm:$0xf]
    %v3720 = vld [vmem:[%s3 + $0xb8] sm:$0xf]
    %v3721 = vld [vmem:[%s3 + $0xbc] sm:$0xf]
    %v3722 = vld [vmem:[%s4] sm:$0x1]
    %v3724 = vperm.slane %v3722, 0
    %v3774 = vunpack.c.l.b16 %v3674
    %v3775 = vunpack.c.l.b16 %v3675
    %v3776 = vunpack.c.l.b16 %v3676
    %v3777 = vunpack.c.l.b16 %v3677
    %v3778 = vunpack.c.l.b16 %v3678
    %v3779 = vunpack.c.l.b16 %v3679
    %v3780 = vunpack.c.l.b16 %v3680
    %v3781 = vunpack.c.l.b16 %v3681
    %v3782 = vunpack.c.l.b16 %v3682
    %v3783 = vunpack.c.l.b16 %v3683
    %v3784 = vunpack.c.l.b16 %v3684
    %v3785 = vunpack.c.l.b16 %v3685
    %v3786 = vunpack.c.l.b16 %v3686
    %v3787 = vunpack.c.l.b16 %v3687
    %v3788 = vunpack.c.l.b16 %v3688
    %v3789 = vunpack.c.l.b16 %v3689
    %v3790 = vunpack.c.l.b16 %v3690
    %v3791 = vunpack.c.l.b16 %v3691
    %v3792 = vunpack.c.l.b16 %v3692
    %v3793 = vunpack.c.l.b16 %v3693
    %v3794 = vunpack.c.l.b16 %v3694
    %v3795 = vunpack.c.l.b16 %v3695
    %v3796 = vunpack.c.l.b16 %v3696
    %v3797 = vunpack.c.l.b16 %v3697
    %v3798 = vunpack.c.l.b16 %v3698
    %v3799 = vunpack.c.l.b16 %v3699
    %v3800 = vunpack.c.l.b16 %v3700
    %v3801 = vunpack.c.l.b16 %v3701
    %v3802 = vunpack.c.l.b16 %v3702
    %v3803 = vunpack.c.l.b16 %v3703
    %v3804 = vunpack.c.l.b16 %v3704
    %v3805 = vunpack.c.l.b16 %v3705
    %v3806 = vunpack.c.l.b16 %v3706
    %v3807 = vunpack.c.l.b16 %v3707
    %v3808 = vunpack.c.l.b16 %v3708
    %v3809 = vunpack.c.l.b16 %v3709
    %v3810 = vunpack.c.l.b16 %v3710
    %v3811 = vunpack.c.l.b16 %v3711
    %v3812 = vunpack.c.l.b16 %v3712
    %v3813 = vunpack.c.l.b16 %v3713
    %v3814 = vunpack.c.l.b16 %v3714
    %v3815 = vunpack.c.l.b16 %v3715
    %v3816 = vunpack.c.l.b16 %v3716
    %v3817 = vunpack.c.l.b16 %v3717
    %v3818 = vunpack.c.l.b16 %v3718
    %v3819 = vunpack.c.l.b16 %v3719
    %v3820 = vunpack.c.l.b16 %v3720
    %v3821 = vunpack.c.l.b16 %v3721
    %v3822 = vpack.c.b16 %v3775, %v3774
    %v3823 = vpack.c.b16 %v3777, %v3776
    %v3824 = vpack.c.b16 %v3779, %v3778
    %v3825 = vpack.c.b16 %v3781, %v3780
    %v3826 = vpack.c.b16 %v3783, %v3782
    %v3827 = vpack.c.b16 %v3785, %v3784
    %v3828 = vpack.c.b16 %v3787, %v3786
    %v3829 = vpack.c.b16 %v3789, %v3788
    %v3830 = vpack.c.b16 %v3791, %v3790
    %v3831 = vpack.c.b16 %v3793, %v3792
    %v3832 = vpack.c.b16 %v3795, %v3794
    %v3833 = vpack.c.b16 %v3797, %v3796
    %v3834 = vpack.c.b16 %v3799, %v3798
    %v3835 = vpack.c.b16 %v3801, %v3800
    %v3836 = vpack.c.b16 %v3803, %v3802
    %v3837 = vpack.c.b16 %v3805, %v3804
    %v3838 = vpack.c.b16 %v3807, %v3806
    %v3839 = vpack.c.b16 %v3809, %v3808
    %v3840 = vpack.c.b16 %v3811, %v3810
    %v3841 = vpack.c.b16 %v3813, %v3812
    %v3842 = vpack.c.b16 %v3815, %v3814
    %v3843 = vpack.c.b16 %v3817, %v3816
    %v3844 = vpack.c.b16 %v3819, %v3818
    %v3845 = vpack.c.b16 %v3821, %v3820
    %3870 = vmatpush.bf16.msra.mxu0 %v3829
    %3871 = vmatpush.bf16.msra.mxu0 %v3828
    %3872 = vmatpush.bf16.msra.mxu0 %v3827
    %3873 = vmatpush.bf16.msra.mxu0 %v3826
    %3874 = vmatpush.bf16.msra.mxu0 %v3825
    %3875 = vmatpush.bf16.msra.mxu0 %v3824
    %3876 = vmatpush.bf16.msra.mxu0 %v3823
    %3877 = vmatpush.bf16.msra.mxu0 %v3822
    %3878 = vmatmul.bf16.gmra.mxu0 %v3671
    %v3879 = vpop.f32.mrf.mxu0
    %v3880 = vadd.f32 %v3724, %v3879
    %v3881 = vpop.f32.mrf.mxu0
    %v3882 = vadd.f32 %v3724, %v3881
    %3883 = vdwg.mxu0
    %3884 = vmatpush.bf16.msra.mxu0 %v3837
    %3885 = vmatpush.bf16.msra.mxu0 %v3836
    %3886 = vmatpush.bf16.msra.mxu0 %v3835
    %3887 = vmatpush.bf16.msra.mxu0 %v3834
    %3888 = vmatpush.bf16.msra.mxu0 %v3833
    %3889 = vmatpush.bf16.msra.mxu0 %v3832
    %3890 = vmatpush.bf16.msra.mxu0 %v3831
    %3891 = vmatpush.bf16.msra.mxu0 %v3830
    %3892 = vmatmul.bf16.gmra.mxu0 %v3672
    %v3893 = vpop.f32.mrf.mxu0
    %v3894 = vadd.f32 %v3880, %v3893
    %v3895 = vpop.f32.mrf.mxu0
    %v3896 = vadd.f32 %v3882, %v3895
    %3897 = vdwg.mxu0
    %3898 = vmatpush.bf16.msra.mxu0 %v3845
    %3899 = vmatpush.bf16.msra.mxu0 %v3844
    %3900 = vmatpush.bf16.msra.mxu0 %v3843
    %3901 = vmatpush.bf16.msra.mxu0 %v3842
    %3902 = vmatpush.bf16.msra.mxu0 %v3841
    %3903 = vmatpush.bf16.msra.mxu0 %v3840
    %3904 = vmatpush.bf16.msra.mxu0 %v3839
    %3905 = vmatpush.bf16.msra.mxu0 %v3838
    %3906 = vmatmul.bf16.gmra.mxu0 %v3673
    %v3907 = vpop.f32.mrf.mxu0
    %v3908 = vadd.f32 %v3894, %v3907
    %v3909 = vpop.f32.mrf.mxu0
    %v3910 = vadd.f32 %v3896, %v3909
    %3911 = vdwg.mxu0
    %v3912 = vld [vmem:[%s0] sm:$0xff]
    %v3913 = vld [vmem:[%s0 + $0x8] sm:$0xff]
    %v3914 = vstv %s44
    %v3915 = vmul.f32 %v3914, %v3908
    %v3916 = vmul.f32 %v3914, %v3910
    %v3917 = vadd.f32 %v3912, %v3915
    %v3918 = vadd.f32 %v3913, %v3916
    %v3919 = vsel %vm3594, %v3917, 0.0
    %3920 = vadd.xlane.f32.xlu0 %v3919
    %v3921 = vpop.xlane.xlu0 %3920
    %v3922 = vsel %vm3594, %v3918, 0.0
    %3923 = vadd.xlane.f32.xlu0 %v3922
    %v3924 = vpop.xlane.xlu0 %3923
    %v3925 = vrcp.pop 32.0
    %v3926 = vmul.f32 32.0, %v3925
    %v3927 = vsub.f32 1.0, %v3926
    %v3928 = vmul.f32 %v3925, %v3927
    %v3929 = vadd.f32 %v3925, %v3928
    %vm3930 = vweird.f32 %v3925
    %v3931 = vsel %vm3930, %v3925, %v3929
    %v3932 = vmul.f32 %v3921, %v3931
    %v3933 = vmul.f32 %v3924, %v3931
    %v3934 = vsub.f32 %v3917, %v3932
    %v3935 = vsub.f32 %v3918, %v3933
    %v3936 = vmul.f32 %v3934, %v3934
    %v3937 = vmul.f32 %v3935, %v3935
    %v3938 = vsel %vm3594, %v3936, 0.0
    %3939 = vadd.xlane.f32.xlu0 %v3938
    %v3940 = vpop.xlane.xlu0 %3939
    %v3941 = vsel %vm3594, %v3937, 0.0
    %3942 = vadd.xlane.f32.xlu0 %v3941
    %v3943 = vpop.xlane.xlu0 %3942
    %v3944 = vmul.f32 %v3940, %v3931
    %v3945 = vmul.f32 %v3943, %v3931
    %v3946 = vadd.f32 %v3944, 1e-05
    %v3947 = vadd.f32 %v3945, 1e-05
    %v3948 = vrsqrt.pop %v3946
    %v3949 = vmul.f32 %v3948, %v3946
    %v3950 = vmul.f32 %v3949, %v3948
    %v3951 = vmul.f32 0.5, %v3950
    %v3952 = vsub.f32 1.5, %v3951
    %v3953 = vmul.f32 %v3948, %v3952
    %vm3954 = vweird.f32 %v3946
    %vm3955 = vweird.f32 %v3948
    %vm3956 = vmor %vm3954, %vm3955
    %v3957 = vsel %vm3956, %v3948, %v3953
    %v3958 = vrsqrt.pop %v3947
    %v3959 = vmul.f32 %v3958, %v3947
    %v3960 = vmul.f32 %v3959, %v3958
    %v3961 = vmul.f32 0.5, %v3960
    %v3962 = vsub.f32 1.5, %v3961
    %v3963 = vmul.f32 %v3958, %v3962
    %vm3964 = vweird.f32 %v3947
    %vm3965 = vweird.f32 %v3958
    %vm3966 = vmor %vm3964, %vm3965
    %v3967 = vsel %vm3966, %v3958, %v3963
    %v3968 = vmul.f32 %v3934, %v3957
    %v3969 = vmul.f32 %v3935, %v3967
    %v3970 = vld [vmem:[%s5] sm:$0x1]
    %v3972 = vperm.slane %v3970, 0
    %v3974 = vmul.f32 %v3968, %v3972
    %v3975 = vmul.f32 %v3969, %v3972
    %v3976 = vld [vmem:[%s6] sm:$0x1]
    %v3978 = vperm.slane %v3976, 0
    %v3980 = vadd.f32 %v3974, %v3978
    %v3981 = vadd.f32 %v3975, %v3978
    %v3982 = vpack.c.bf16 %v3981, %v3980
    %v3983 = vld [vmem:[%s7] sm:$0xf]
    %v3984 = vld [vmem:[%s7 + $0x4] sm:$0xf]
    %v3985 = vld [vmem:[%s7 + $0x8] sm:$0xf]
    %v3986 = vld [vmem:[%s7 + $0xc] sm:$0xf]
    %v3987 = vld [vmem:[%s8] sm:$0x1]
    %v3989 = vperm.slane %v3987, 0
    %v3995 = vunpack.c.l.b16 %v3983
    %v3996 = vunpack.c.l.b16 %v3984
    %v3997 = vunpack.c.l.b16 %v3985
    %v3998 = vunpack.c.l.b16 %v3986
    %v3999 = vpack.c.b16 %v3996, %v3995
    %v4000 = vpack.c.b16 %v3998, %v3997
    %v4004 = vsel %vm3594, %v3982, 0
    %4006 = vmatpush.bf16.msra.mxu0 0
    %4007 = vmatpush.bf16.msra.mxu0 0
    %4008 = vmatpush.bf16.msra.mxu0 0
    %4009 = vmatpush.bf16.msra.mxu0 0
    %4010 = vmatpush.bf16.msra.mxu0 0
    %4011 = vmatpush.bf16.msra.mxu0 0
    %4012 = vmatpush.bf16.msra.mxu0 %v4000
    %4013 = vmatpush.bf16.msra.mxu0 %v3999
    %4014 = vmatmul.bf16.gmra.mxu0 %v4004
    %v4015 = vpop.f32.mrf.mxu0
    %v4016 = vadd.f32 %v3989, %v4015
    %v4017 = vpop.f32.mrf.mxu0
    %v4018 = vadd.f32 %v3989, %v4017
    %4019 = vdwg.mxu0
    %vm4020 = vcmp.ge.f32.partialorder %v4016, 0.0
    %vm4021 = vcmp.ge.f32.partialorder %v4018, 0.0
    %v4022 = vmul.f32 %v4016, 0.01
    %v4023 = vmul.f32 %v4018, 0.01
    %v4024 = vsel %vm4020, %v4016, %v4022
    %v4025 = vsel %vm4021, %v4018, %v4023
    %v4026 = vpack.c.bf16 %v4025, %v4024
    %v4027 = vld [vmem:[%s9] sm:$0xf]
    %v4028 = vld [vmem:[%s9 + $0x4] sm:$0xf]
    %v4029 = vld [vmem:[%s9 + $0x8] sm:$0xf]
    %v4030 = vld [vmem:[%s9 + $0xc] sm:$0xf]
    %v4031 = vld [vmem:[%s9 + $0x10] sm:$0xf]
    %v4032 = vld [vmem:[%s9 + $0x14] sm:$0xf]
    %v4033 = vld [vmem:[%s9 + $0x18] sm:$0xf]
    %v4034 = vld [vmem:[%s9 + $0x1c] sm:$0xf]
    %v4035 = vld [vmem:[%s10] sm:$0x1]
    %v4037 = vperm.slane %v4035, 0
    %v4047 = vunpack.c.l.b16 %v4027
    %v4048 = vunpack.c.l.b16 %v4028
    %v4049 = vunpack.c.l.b16 %v4029
    %v4050 = vunpack.c.l.b16 %v4030
    %v4051 = vunpack.c.l.b16 %v4031
    %v4052 = vunpack.c.l.b16 %v4032
    %v4053 = vunpack.c.l.b16 %v4033
    %v4054 = vunpack.c.l.b16 %v4034
    %v4055 = vpack.c.b16 %v4048, %v4047
    %v4056 = vpack.c.b16 %v4050, %v4049
    %v4057 = vpack.c.b16 %v4052, %v4051
    %v4058 = vpack.c.b16 %v4054, %v4053
    %v4064 = vsel %vm3597, %v4026, 0
    %4066 = vmatpush.bf16.msra.mxu0 0
    %4067 = vmatpush.bf16.msra.mxu0 0
    %4068 = vmatpush.bf16.msra.mxu0 0
    %4069 = vmatpush.bf16.msra.mxu0 0
    %4070 = vmatpush.bf16.msra.mxu0 %v4058
    %4071 = vmatpush.bf16.msra.mxu0 %v4057
    %4072 = vmatpush.bf16.msra.mxu0 %v4056
    %4073 = vmatpush.bf16.msra.mxu0 %v4055
    %4074 = vmatmul.bf16.gmra.mxu0 %v4064
    %v4075 = vpop.f32.mrf.mxu0
    %v4076 = vadd.f32 %v4037, %v4075
    %v4077 = vpop.f32.mrf.mxu0
    %v4078 = vadd.f32 %v4037, %v4077
    %4079 = vdwg.mxu0
    %v4080 = vmul.f32 %v3914, %v4076
    %v4081 = vmul.f32 %v3914, %v4078
    %v4082 = vadd.f32 %v3917, %v4080
    %v4083 = vadd.f32 %v3918, %v4081
    %4084 = vst.msk [vmem:[#allocation3] sm:$0xff] %vm3594, %v4082
    %4085 = vst.msk [vmem:[#allocation3 + $0x8] sm:$0xff] %vm3594, %v4083
    // Predicated region
    $region57: #{_lambda_.7} parent=1 // pred_check
      _
    $region58: #{_lambda_.7} parent=1 // pred_check_branch
      %4087 = sbr.rel (0) target = $region60
    $region59: #{_lambda_.7} parent=1 // pred_region
      %4089 = vsyncadd [#allocation4], 0
      %s4090 = sshll.u32 [#allocation3], 4
      %s4091 = int_to_ptr.vmem [resolvable:$true] %s4090
      %s4092 = sshll.u32 %s12, 4
      %s4093 = int_to_ptr.hbm [resolvable:$true] %s4092
      %4098 = dma.vmem_to_hbm [thread:$0]  %s4091, 256, %s4093, [#allocation4], 128, 128, 8
    $region60: #{_lambda_.7} parent=1 // pred_fallthru
      _
    // Predicated region
    $region61: #{_lambda_.7} parent=1 // pred_check
      _
    $region62: #{_lambda_.7} parent=1 // pred_check_branch
      %4100 = sbr.rel (0) target = $region64
    $region63: #{_lambda_.7} parent=1 // pred_region
      %4102 = dma.done [#allocation4], 256
    $region64: #{_lambda_.7} parent=1 // pred_fallthru
      _
    %4103 = vsyncpa [#allocation4], 1

</llo_original>
